<compile_context>
chip_gen: v6e
topology: v6e:2x2x1
jax: 0.10.0
libtpu: 0.0.40
codegen_flags: <defaults>
</compile_context>

<pallas_src>
import jax
import jax.numpy as jnp
from jax import lax
from jax.experimental import pallas as pl
from jax.experimental.pallas import tpu as pltpu

CPAD = 128   # channel axis padded to the 128-lane width
EPS = 1e-5   # PyTorch BatchNorm2d default eps


def _pick_rb(H, W, target_m=256):
    """Output rows per MXU dot. M = RB*W targets ~256 (fills the 256-wide MXU on
    v6e/v7x; v5e simply takes two M passes) with RB a sublane-aligned divisor of
    H when possible."""
    if H < 8 or H % 8 != 0:
        return H
    cands = [rb for rb in range(8, H + 1, 8) if H % rb == 0]
    fitting = [rb for rb in cands if rb * W <= target_m]
    return max(fitting) if fitting else min(cands)


def _make_kernel(H, W, RB):
    Hp, Wp = H + 2, W + 2
    nrb = H // RB
    C = CPAD
    f32, bf16 = jnp.float32, jnp.bfloat16
    aligned = (RB % 8 == 0)
    unroll = min(nrb, 2)     # cap unroll: keeps LLO visibility without spills

    def kernel(x_ref, w1_ref, w2_ref, b1_ref, b2_ref, out_ref, hpad_ref):
        # x_ref   : (Hp, Wp, C) bf16   one image, 1-px zero halo, NHWC
        # w1_ref  : (9*C, C)    bf16   conv1 (BN1-folded), rows = (kh, kw, cin)
        # w2_ref  : (9*C, C)    bf16   conv2 (BN2-folded)
        # b1_ref  : (1, C) f32         BN1-folded bias
        # b2_ref  : (1, C) f32         BN2-folded bias
        # out_ref : (H, W, C)   bf16
        # hpad_ref: (Hp, Wp, C) bf16   VMEM scratch: relu(conv1) with zero halo

        # Zero only the top/bottom halo rows; halo columns are baked into the
        # conv1 full-width row stores below.  Done every grid step (2 cheap
        # full-lane row stores) — a program_id(0)==0 gate would be unsafe with
        # a per-core persistent scratch and a "parallel" batch axis.
        zrow = jnp.zeros((1, Wp, C), bf16)
        hpad_ref[0:1, :, :] = zrow
        hpad_ref[Hp - 1:Hp, :, :] = zrow

        # hoist bias loads out of the row loops
        b1 = b1_ref[...]
        b2 = b2_ref[...]

        def row_start(rb):
            r0 = rb * RB
            return pl.multiple_of(r0, 8) if aligned else r0

        def conv3x3(src_ref, w_ref, r0):
            # 3 accumulating MXU dots (K = 3*C = 384), one per kernel row kh.
            # Each kh row band is loaded once; the 3 kw taps are value slices of
            # that band concatenated along the lane-aligned channel axis.
            acc = None
            for kh in range(3):
                band = src_ref[pl.ds(r0 + kh, RB), :, :]                 # (RB, Wp, C)
                patch = jnp.concatenate(
                    [band[:, kw:kw + W, :].reshape(RB * W, C) for kw in range(3)],
                    axis=-1)                                             # (RB*W, 3C)
                wk = w_ref[kh * 3 * C:(kh + 1) * 3 * C, :]               # (3C, C)
                d = jnp.dot(patch, wk, preferred_element_type=f32)
                acc = d if acc is None else acc + d
            return acc

        zcol = jnp.zeros((RB, 1, C), bf16)

        # ---- conv1 (+ folded BN1) + ReLU -> hpad interior -------------------
        def conv1_body(rb, carry):
            r0 = row_start(rb)
            h = jnp.maximum(conv3x3(x_ref, w1_ref, r0) + b1, 0.0)
            h = h.astype(bf16).reshape(RB, W, C)
            # full-width row store with the zero halo columns baked in
            hpad_ref[pl.ds(r0 + 1, RB), :, :] = jnp.concatenate(
                [zcol, h, zcol], axis=1)
            return carry

        lax.fori_loop(0, nrb, conv1_body, None, unroll=unroll)

        # ---- conv2 (+ folded BN2) + identity residual + ReLU -> out ---------
        def conv2_body(rb, carry):
            r0 = row_start(rb)
            o = conv3x3(hpad_ref, w2_ref, r0) + b2
            # residual = center tap of the (already VMEM-resident) input block
            res = x_ref[pl.ds(r0 + 1, RB), 1:1 + W, :].reshape(RB * W, C).astype(f32)
            o = jnp.maximum(o + res, 0.0)
            out_ref[pl.ds(r0, RB), :, :] = o.astype(out_ref.dtype).reshape(RB, W, C)
            return carry

        lax.fori_loop(0, nrb, conv2_body, None, unroll=unroll)

    return kernel


def _fold_bn(w, bn):
    """BN(conv(x)) == conv_{w*scale}(x) + (beta - mean*scale)."""
    g, b, m, v = (jnp.asarray(t, jnp.float32) for t in bn)
    scale = g * lax.rsqrt(v + EPS)
    w_folded = jnp.asarray(w, jnp.float32) * scale[:, None, None, None]
    return w_folded, b - m * scale


def _prep_w(w_folded, cin, cout):
    # OIHW -> (kh, kw, Cin, Cout) -> zero-pad channels -> (9*CPAD, CPAD) bf16
    wt = jnp.transpose(w_folded, (2, 3, 1, 0))
    wp = jnp.pad(wt, ((0, 0), (0, 0), (0, CPAD - cin), (0, CPAD - cout)))
    return wp.reshape(9 * CPAD, CPAD).astype(jnp.bfloat16)


def _prep_b(bias, cout):
    return jnp.pad(bias.reshape(1, cout), ((0, 0), (0, CPAD - cout))).astype(jnp.float32)


def basic_block_pallas(x_nchw, w1, w2, bn1, bn2):
    """x_nchw: (N, C, H, W); w*: (Cout, Cin, 3, 3) OIHW; bn*: (gamma, beta, mean, var)."""
    N, Cin, H, W = x_nchw.shape
    Cout = w1.shape[0]
    assert Cin == Cout and Cin <= CPAD, "identity shortcut: stride=1, in_planes == planes"
    Hp, Wp = H + 2, W + 2

    RB = _pick_rb(H, W)
    kernel = _make_kernel(H, W, RB)

    # NCHW -> NHWC, bf16 for the MXU, 1-px zero spatial halo, channels -> 128 lanes
    x_nhwc = jnp.transpose(x_nchw, (0, 2, 3, 1)).astype(jnp.bfloat16)
    xpad = jnp.pad(x_nhwc, ((0, 0), (1, 1), (1, 1), (0, CPAD - Cin)))

    w1f, b1 = _fold_bn(w1, bn1)
    w2f, b2 = _fold_bn(w2, bn2)
    args = (xpad, _prep_w(w1f, Cin, Cout), _prep_w(w2f, Cout, Cout),
            _prep_b(b1, Cout), _prep_b(b2, Cout))

    # Right-size the VMEM budget from the actual per-step footprint (+ margin):
    # double-buffered x / weights / out blocks + the hpad scratch.
    bytes_x = Hp * Wp * CPAD * 2
    bytes_w = 9 * CPAD * CPAD * 2
    bytes_out = H * W * CPAD * 2
    est = 2 * bytes_x + 2 * 2 * bytes_w + 2 * bytes_out + bytes_x + 4 * CPAD * 4
    vmem_limit = int(min(max(4 * est, 8 << 20), 64 << 20))

    flops = 2 * 2 * (N * H * W) * (9 * CPAD) * CPAD          # two K=9*128 convs
    bytes_accessed = int(sum(int(a.size) * a.dtype.itemsize for a in args)
                         + N * H * W * CPAD * 2)             # bf16 output writeback

    out_pad = pl.pallas_call(
        kernel,
        out_shape=jax.ShapeDtypeStruct((N, H, W, CPAD), jnp.bfloat16),
        grid_spec=pltpu.PrefetchScalarGridSpec(
            num_scalar_prefetch=0,
            grid=(N,),
            in_specs=[
                pl.BlockSpec((None, Hp, Wp, CPAD), lambda n: (n, 0, 0, 0)),  # x
                pl.BlockSpec((9 * CPAD, CPAD), lambda n: (0, 0)),            # w1
                pl.BlockSpec((9 * CPAD, CPAD), lambda n: (0, 0)),            # w2
                pl.BlockSpec((1, CPAD), lambda n: (0, 0)),                   # b1
                pl.BlockSpec((1, CPAD), lambda n: (0, 0)),                   # b2
            ],
            out_specs=pl.BlockSpec((None, H, W, CPAD), lambda n: (n, 0, 0, 0)),
            scratch_shapes=[pltpu.VMEM((Hp, Wp, CPAD), jnp.bfloat16)],
        ),
        compiler_params=pltpu.CompilerParams(
            dimension_semantics=("parallel",),   # batch axis; megacore-safe init
            vmem_limit_bytes=vmem_limit,
        ),
        cost_estimate=pl.CostEstimate(
            flops=flops, transcendentals=0, bytes_accessed=bytes_accessed),
    )(*args)

    # back to PyTorch NCHW f32, drop padded channels (cast fuses into the slice/transpose)
    return jnp.transpose(out_pad[..., :Cout], (0, 3, 1, 2)).astype(jnp.float32)


def basic_block_ref(x, w1, w2, bn1, bn2, matmul_dtype=jnp.float32):
    """Plain-JAX reference of the PyTorch forward (inference BN).
    matmul_dtype=bfloat16 mirrors the kernel's mixed-precision policy."""
    w1f, b1 = _fold_bn(w1, bn1)
    w2f, b2 = _fold_bn(w2, bn2)

    def conv(t, w):
        return lax.conv_general_dilated(
            t.astype(matmul_dtype), w.astype(matmul_dtype),
            window_strides=(1, 1), padding=((1, 1), (1, 1)),
            dimension_numbers=("NCHW", "OIHW", "NCHW"),
            preferred_element_type=jnp.float32)

    h = jnp.maximum(conv(x, w1f) + b1[None, :, None, None], 0.0)
    if matmul_dtype != jnp.float32:
        h = h.astype(matmul_dtype)                        # kernel stages conv1 out in bf16
        res = x.astype(matmul_dtype).astype(jnp.float32)  # kernel holds x in bf16
    else:
        res = x.astype(jnp.float32)
    o = conv(h, w2f) + b2[None, :, None, None] + res
    return jnp.maximum(o, 0.0)


if __name__ == "__main__":
    key = jax.random.PRNGKey(0)
    kx, k1, k2, *kb = jax.random.split(key, 11)

    N, C, H, W = 2, 4, 16, 16            # in_planes = planes = 4, stride = 1
    x = jax.random.normal(kx, (N, C, H, W), jnp.float32)
    w1 = jax.random.normal(k1, (C, C, 3, 3), jnp.float32) * 0.2
    w2 = jax.random.normal(k2, (C, C, 3, 3), jnp.float32) * 0.2
    bn1 = (jax.random.uniform(kb[0], (C,), minval=0.5, maxval=1.5),
           jax.random.normal(kb[1], (C,)) * 0.1,
           jax.random.normal(kb[2], (C,)) * 0.1,
           jax.random.uniform(kb[3], (C,), minval=0.5, maxval=1.5))
    bn2 = (jax.random.uniform(kb[4], (C,), minval=0.5, maxval=1.5),
           jax.random.normal(kb[5], (C,)) * 0.1,
           jax.random.normal(kb[6], (C,)) * 0.1,
           jax.random.uniform(kb[7], (C,), minval=0.5, maxval=1.5))

    out = jax.block_until_ready(jax.jit(basic_block_pallas)(x, w1, w2, bn1, bn2))

    # reference with the same bf16-matmul / f32-accumulate policy, output also
    # rounded to bf16 to mirror the kernel's bf16 HBM writeback
    ref_bf16 = basic_block_ref(x, w1, w2, bn1, bn2, matmul_dtype=jnp.bfloat16)
    ref_bf16 = ref_bf16.astype(jnp.bfloat16).astype(jnp.float32)
    ref_f32 = basic_block_ref(x, w1, w2, bn1, bn2)

    assert out.shape == (N, C, H, W)
    # tight check vs the matched-precision reference
    assert jnp.allclose(out, ref_bf16, atol=5e-2, rtol=5e-2), "mismatch vs bf16 reference"
    # loose sanity check vs the pure-f32 PyTorch-semantics reference
    assert jnp.allclose(out, ref_f32, atol=2e-1, rtol=2e-1), "mismatch vs f32 reference"
    print("KERNEL_OK")
</pallas_src>

<mosaic_0001>
module attributes {stable_mosaic.version = 11 : i64} {
  func.func @kernel(%arg0: i32, %arg1: memref<1x18x18x128xbf16, #tpu.memory_space<vmem>>, %arg2: memref<1152x128xbf16, #tpu.memory_space<vmem>>, %arg3: memref<1152x128xbf16, #tpu.memory_space<vmem>>, %arg4: memref<1x128xf32, #tpu.memory_space<vmem>>, %arg5: memref<1x128xf32, #tpu.memory_space<vmem>>, %arg6: memref<1x16x16x128xbf16, #tpu.memory_space<vmem>>, %arg7: memref<18x18x128xbf16, #tpu.memory_space<vmem>>) attributes {dimension_semantics = [#tpu.dimension_semantics<parallel>], iteration_bounds = array<i64: 2>, scalar_prefetch = 0 : i64, scratch_operands = 1 : i64, tpu.core_type = #tpu.core_type<tc>, window_params = [{transform_indices = @transform_0, window_bounds = array<i64: 1, 18, 18, 128>}, {pipeline_mode = #tpu.pipeline_mode<synchronous>, transform_indices = @transform_1, window_bounds = array<i64: 1152, 128>}, {pipeline_mode = #tpu.pipeline_mode<synchronous>, transform_indices = @transform_2, window_bounds = array<i64: 1152, 128>}, {pipeline_mode = #tpu.pipeline_mode<synchronous>, transform_indices = @transform_3, window_bounds = array<i64: 1, 128>}, {pipeline_mode = #tpu.pipeline_mode<synchronous>, transform_indices = @transform_4, window_bounds = array<i64: 1, 128>}, {transform_indices = @transform_5, window_bounds = array<i64: 1, 16, 16, 128>}]} {
    %cst = arith.constant 0.000000e+00 : bf16
    %0 = vector.broadcast %cst : bf16 to vector<1x18x128xbf16>
    %c0 = arith.constant 0 : index
    %c0_0 = arith.constant 0 : index
    %c0_1 = arith.constant 0 : index
    %1 = vector.load %arg7[%c0, %c0_0, %c0_1] : memref<18x18x128xbf16, #tpu.memory_space<vmem>>, vector<1x18x128xbf16>
    tpu.vector_store %arg7[%c0, %c0_0, %c0_1], %0 {strides = array<i32>} : memref<18x18x128xbf16, #tpu.memory_space<vmem>>, vector<1x18x128xbf16>,
    %c17 = arith.constant 17 : index
    %c0_2 = arith.constant 0 : index
    %c0_3 = arith.constant 0 : index
    %2 = vector.load %arg7[%c17, %c0_2, %c0_3] : memref<18x18x128xbf16, #tpu.memory_space<vmem>>, vector<1x18x128xbf16>
    tpu.vector_store %arg7[%c17, %c0_2, %c0_3], %0 {strides = array<i32>} : memref<18x18x128xbf16, #tpu.memory_space<vmem>>, vector<1x18x128xbf16>,
    %c0_4 = arith.constant 0 : index
    %c0_5 = arith.constant 0 : index
    %3 = vector.load %arg4[%c0_4, %c0_5] : memref<1x128xf32, #tpu.memory_space<vmem>>, vector<1x128xf32>
    %c0_6 = arith.constant 0 : index
    %c0_7 = arith.constant 0 : index
    %4 = vector.load %arg5[%c0_6, %c0_7] : memref<1x128xf32, #tpu.memory_space<vmem>>, vector<1x128xf32>
    %cst_8 = arith.constant 0.000000e+00 : bf16
    %5 = vector.broadcast %cst_8 : bf16 to vector<16x1x128xbf16>
    %c0_i32 = arith.constant 0 : i32
    %c16_i32 = arith.constant 16 : i32
    %6 = arith.muli %c0_i32, %c16_i32 : i32
    %7 = tpu.assume_multiple %6, 8 : i32
    %c0_i32_9 = arith.constant 0 : i32
    %8 = arith.addi %7, %c0_i32_9 : i32
    %c0_10 = arith.constant 0 : index
    %9 = arith.index_cast %8 : i32 to index
    %c0_11 = arith.constant 0 : index
    %c0_12 = arith.constant 0 : index
    %10 = vector.load %arg1[%c0_10, %9, %c0_11, %c0_12] : memref<1x18x18x128xbf16, #tpu.memory_space<vmem>>, vector<1x16x18x128xbf16>
    %11 = vector.shape_cast %10 : vector<1x16x18x128xbf16> to vector<16x18x128xbf16>
    %12 = vector.extract_strided_slice %11 {offsets = [0, 0, 0], sizes = [16, 16, 128], strides = [1, 1, 1]} : vector<16x18x128xbf16> to vector<16x16x128xbf16>
    %13 = vector.shape_cast %12 : vector<16x16x128xbf16> to vector<256x128xbf16>
    %14 = vector.extract_strided_slice %11 {offsets = [0, 1, 0], sizes = [16, 16, 128], strides = [1, 1, 1]} : vector<16x18x128xbf16> to vector<16x16x128xbf16>
    %15 = vector.shape_cast %14 : vector<16x16x128xbf16> to vector<256x128xbf16>
    %16 = vector.extract_strided_slice %11 {offsets = [0, 2, 0], sizes = [16, 16, 128], strides = [1, 1, 1]} : vector<16x18x128xbf16> to vector<16x16x128xbf16>
    %17 = vector.shape_cast %16 : vector<16x16x128xbf16> to vector<256x128xbf16>
    %18 = tpu.concatenate %13, %15, %17 in 1 : vector<256x128xbf16>, vector<256x128xbf16>, vector<256x128xbf16> -> vector<256x384xbf16>
    %c0_13 = arith.constant 0 : index
    %c0_14 = arith.constant 0 : index
    %19 = vector.load %arg2[%c0_13, %c0_14] : memref<1152x128xbf16, #tpu.memory_space<vmem>>, vector<384x128xbf16>
    %cst_15 = arith.constant dense<0.000000e+00> : vector<256x128xf32>
    %20 = tpu.matmul %18, %19, %cst_15 {dimension_numbers = #tpu.dot_dimension_numbers<[1], [0], [0], [1], [0, 0, 1, 1], [], []>} : vector<256x384xbf16>, vector<384x128xbf16>, vector<256x128xf32> -> vector<256x128xf32>
    %c1_i32 = arith.constant 1 : i32
    %21 = arith.addi %7, %c1_i32 : i32
    %c0_16 = arith.constant 0 : index
    %22 = arith.index_cast %21 : i32 to index
    %c0_17 = arith.constant 0 : index
    %c0_18 = arith.constant 0 : index
    %23 = vector.load %arg1[%c0_16, %22, %c0_17, %c0_18] : memref<1x18x18x128xbf16, #tpu.memory_space<vmem>>, vector<1x16x18x128xbf16>
    %24 = vector.shape_cast %23 : vector<1x16x18x128xbf16> to vector<16x18x128xbf16>
    %25 = vector.extract_strided_slice %24 {offsets = [0, 0, 0], sizes = [16, 16, 128], strides = [1, 1, 1]} : vector<16x18x128xbf16> to vector<16x16x128xbf16>
    %26 = vector.shape_cast %25 : vector<16x16x128xbf16> to vector<256x128xbf16>
    %27 = vector.extract_strided_slice %24 {offsets = [0, 1, 0], sizes = [16, 16, 128], strides = [1, 1, 1]} : vector<16x18x128xbf16> to vector<16x16x128xbf16>
    %28 = vector.shape_cast %27 : vector<16x16x128xbf16> to vector<256x128xbf16>
    %29 = vector.extract_strided_slice %24 {offsets = [0, 2, 0], sizes = [16, 16, 128], strides = [1, 1, 1]} : vector<16x18x128xbf16> to vector<16x16x128xbf16>
    %30 = vector.shape_cast %29 : vector<16x16x128xbf16> to vector<256x128xbf16>
    %31 = tpu.concatenate %26, %28, %30 in 1 : vector<256x128xbf16>, vector<256x128xbf16>, vector<256x128xbf16> -> vector<256x384xbf16>
    %c384 = arith.constant 384 : index
    %c0_19 = arith.constant 0 : index
    %32 = vector.load %arg2[%c384, %c0_19] : memref<1152x128xbf16, #tpu.memory_space<vmem>>, vector<384x128xbf16>
    %cst_20 = arith.constant dense<0.000000e+00> : vector<256x128xf32>
    %33 = tpu.matmul %31, %32, %cst_20 {dimension_numbers = #tpu.dot_dimension_numbers<[1], [0], [0], [1], [0, 0, 1, 1], [], []>} : vector<256x384xbf16>, vector<384x128xbf16>, vector<256x128xf32> -> vector<256x128xf32>
    %34 = arith.addf %20, %33 : vector<256x128xf32>
    %c2_i32 = arith.constant 2 : i32
    %35 = arith.addi %7, %c2_i32 : i32
    %c0_21 = arith.constant 0 : index
    %36 = arith.index_cast %35 : i32 to index
    %c0_22 = arith.constant 0 : index
    %c0_23 = arith.constant 0 : index
    %37 = vector.load %arg1[%c0_21, %36, %c0_22, %c0_23] : memref<1x18x18x128xbf16, #tpu.memory_space<vmem>>, vector<1x16x18x128xbf16>
    %38 = vector.shape_cast %37 : vector<1x16x18x128xbf16> to vector<16x18x128xbf16>
    %39 = vector.extract_strided_slice %38 {offsets = [0, 0, 0], sizes = [16, 16, 128], strides = [1, 1, 1]} : vector<16x18x128xbf16> to vector<16x16x128xbf16>
    %40 = vector.shape_cast %39 : vector<16x16x128xbf16> to vector<256x128xbf16>
    %41 = vector.extract_strided_slice %38 {offsets = [0, 1, 0], sizes = [16, 16, 128], strides = [1, 1, 1]} : vector<16x18x128xbf16> to vector<16x16x128xbf16>
    %42 = vector.shape_cast %41 : vector<16x16x128xbf16> to vector<256x128xbf16>
    %43 = vector.extract_strided_slice %38 {offsets = [0, 2, 0], sizes = [16, 16, 128], strides = [1, 1, 1]} : vector<16x18x128xbf16> to vector<16x16x128xbf16>
    %44 = vector.shape_cast %43 : vector<16x16x128xbf16> to vector<256x128xbf16>
    %45 = tpu.concatenate %40, %42, %44 in 1 : vector<256x128xbf16>, vector<256x128xbf16>, vector<256x128xbf16> -> vector<256x384xbf16>
    %c768 = arith.constant 768 : index
    %c0_24 = arith.constant 0 : index
    %46 = vector.load %arg2[%c768, %c0_24] : memref<1152x128xbf16, #tpu.memory_space<vmem>>, vector<384x128xbf16>
    %cst_25 = arith.constant dense<0.000000e+00> : vector<256x128xf32>
    %47 = tpu.matmul %45, %46, %cst_25 {dimension_numbers = #tpu.dot_dimension_numbers<[1], [0], [0], [1], [0, 0, 1, 1], [], []>} : vector<256x384xbf16>, vector<384x128xbf16>, vector<256x128xf32> -> vector<256x128xf32>
    %48 = arith.addf %34, %47 : vector<256x128xf32>
    %49 = vector.broadcast %3 : vector<1x128xf32> to vector<256x128xf32>
    %50 = arith.addf %48, %49 : vector<256x128xf32>
    %cst_26 = arith.constant 0.000000e+00 : f32
    %51 = vector.broadcast %cst_26 : f32 to vector<256x128xf32>
    %52 = arith.maximumf %50, %51 : vector<256x128xf32>
    %53 = arith.truncf %52 : vector<256x128xf32> to vector<256x128xbf16>
    %54 = vector.shape_cast %53 : vector<256x128xbf16> to vector<16x16x128xbf16>
    %55 = tpu.concatenate %5, %54, %5 in 1 : vector<16x1x128xbf16>, vector<16x16x128xbf16>, vector<16x1x128xbf16> -> vector<16x18x128xbf16>
    %c1_i32_27 = arith.constant 1 : i32
    %56 = arith.addi %7, %c1_i32_27 : i32
    %57 = arith.index_cast %56 : i32 to index
    %c0_28 = arith.constant 0 : index
    %c0_29 = arith.constant 0 : index
    %58 = vector.load %arg7[%57, %c0_28, %c0_29] : memref<18x18x128xbf16, #tpu.memory_space<vmem>>, vector<16x18x128xbf16>
    tpu.vector_store %arg7[%57, %c0_28, %c0_29], %55 {strides = array<i32>} : memref<18x18x128xbf16, #tpu.memory_space<vmem>>, vector<16x18x128xbf16>,
    %c1_i32_30 = arith.constant 1 : i32
    %c0_i32_31 = arith.constant 0 : i32
    %c16_i32_32 = arith.constant 16 : i32
    %59 = arith.muli %c0_i32_31, %c16_i32_32 : i32
    %60 = tpu.assume_multiple %59, 8 : i32
    %c0_i32_33 = arith.constant 0 : i32
    %61 = arith.addi %60, %c0_i32_33 : i32
    %62 = arith.index_cast %61 : i32 to index
    %c0_34 = arith.constant 0 : index
    %c0_35 = arith.constant 0 : index
    %63 = vector.load %arg7[%62, %c0_34, %c0_35] : memref<18x18x128xbf16, #tpu.memory_space<vmem>>, vector<16x18x128xbf16>
    %64 = vector.extract_strided_slice %63 {offsets = [0, 0, 0], sizes = [16, 16, 128], strides = [1, 1, 1]} : vector<16x18x128xbf16> to vector<16x16x128xbf16>
    %65 = vector.shape_cast %64 : vector<16x16x128xbf16> to vector<256x128xbf16>
    %66 = vector.extract_strided_slice %63 {offsets = [0, 1, 0], sizes = [16, 16, 128], strides = [1, 1, 1]} : vector<16x18x128xbf16> to vector<16x16x128xbf16>
    %67 = vector.shape_cast %66 : vector<16x16x128xbf16> to vector<256x128xbf16>
    %68 = vector.extract_strided_slice %63 {offsets = [0, 2, 0], sizes = [16, 16, 128], strides = [1, 1, 1]} : vector<16x18x128xbf16> to vector<16x16x128xbf16>
    %69 = vector.shape_cast %68 : vector<16x16x128xbf16> to vector<256x128xbf16>
    %70 = tpu.concatenate %65, %67, %69 in 1 : vector<256x128xbf16>, vector<256x128xbf16>, vector<256x128xbf16> -> vector<256x384xbf16>
    %c0_36 = arith.constant 0 : index
    %c0_37 = arith.constant 0 : index
    %71 = vector.load %arg3[%c0_36, %c0_37] : memref<1152x128xbf16, #tpu.memory_space<vmem>>, vector<384x128xbf16>
    %cst_38 = arith.constant dense<0.000000e+00> : vector<256x128xf32>
    %72 = tpu.matmul %70, %71, %cst_38 {dimension_numbers = #tpu.dot_dimension_numbers<[1], [0], [0], [1], [0, 0, 1, 1], [], []>} : vector<256x384xbf16>, vector<384x128xbf16>, vector<256x128xf32> -> vector<256x128xf32>
    %c1_i32_39 = arith.constant 1 : i32
    %73 = arith.addi %60, %c1_i32_39 : i32
    %74 = arith.index_cast %73 : i32 to index
    %c0_40 = arith.constant 0 : index
    %c0_41 = arith.constant 0 : index
    %75 = vector.load %arg7[%74, %c0_40, %c0_41] : memref<18x18x128xbf16, #tpu.memory_space<vmem>>, vector<16x18x128xbf16>
    %76 = vector.extract_strided_slice %75 {offsets = [0, 0, 0], sizes = [16, 16, 128], strides = [1, 1, 1]} : vector<16x18x128xbf16> to vector<16x16x128xbf16>
    %77 = vector.shape_cast %76 : vector<16x16x128xbf16> to vector<256x128xbf16>
    %78 = vector.extract_strided_slice %75 {offsets = [0, 1, 0], sizes = [16, 16, 128], strides = [1, 1, 1]} : vector<16x18x128xbf16> to vector<16x16x128xbf16>
    %79 = vector.shape_cast %78 : vector<16x16x128xbf16> to vector<256x128xbf16>
    %80 = vector.extract_strided_slice %75 {offsets = [0, 2, 0], sizes = [16, 16, 128], strides = [1, 1, 1]} : vector<16x18x128xbf16> to vector<16x16x128xbf16>
    %81 = vector.shape_cast %80 : vector<16x16x128xbf16> to vector<256x128xbf16>
    %82 = tpu.concatenate %77, %79, %81 in 1 : vector<256x128xbf16>, vector<256x128xbf16>, vector<256x128xbf16> -> vector<256x384xbf16>
    %c384_42 = arith.constant 384 : index
    %c0_43 = arith.constant 0 : index
    %83 = vector.load %arg3[%c384_42, %c0_43] : memref<1152x128xbf16, #tpu.memory_space<vmem>>, vector<384x128xbf16>
    %cst_44 = arith.constant dense<0.000000e+00> : vector<256x128xf32>
    %84 = tpu.matmul %82, %83, %cst_44 {dimension_numbers = #tpu.dot_dimension_numbers<[1], [0], [0], [1], [0, 0, 1, 1], [], []>} : vector<256x384xbf16>, vector<384x128xbf16>, vector<256x128xf32> -> vector<256x128xf32>
    %85 = arith.addf %72, %84 : vector<256x128xf32>
    %c2_i32_45 = arith.constant 2 : i32
    %86 = arith.addi %60, %c2_i32_45 : i32
    %87 = arith.index_cast %86 : i32 to index
    %c0_46 = arith.constant 0 : index
    %c0_47 = arith.constant 0 : index
    %88 = vector.load %arg7[%87, %c0_46, %c0_47] : memref<18x18x128xbf16, #tpu.memory_space<vmem>>, vector<16x18x128xbf16>
    %89 = vector.extract_strided_slice %88 {offsets = [0, 0, 0], sizes = [16, 16, 128], strides = [1, 1, 1]} : vector<16x18x128xbf16> to vector<16x16x128xbf16>
    %90 = vector.shape_cast %89 : vector<16x16x128xbf16> to vector<256x128xbf16>
    %91 = vector.extract_strided_slice %88 {offsets = [0, 1, 0], sizes = [16, 16, 128], strides = [1, 1, 1]} : vector<16x18x128xbf16> to vector<16x16x128xbf16>
    %92 = vector.shape_cast %91 : vector<16x16x128xbf16> to vector<256x128xbf16>
    %93 = vector.extract_strided_slice %88 {offsets = [0, 2, 0], sizes = [16, 16, 128], strides = [1, 1, 1]} : vector<16x18x128xbf16> to vector<16x16x128xbf16>
    %94 = vector.shape_cast %93 : vector<16x16x128xbf16> to vector<256x128xbf16>
    %95 = tpu.concatenate %90, %92, %94 in 1 : vector<256x128xbf16>, vector<256x128xbf16>, vector<256x128xbf16> -> vector<256x384xbf16>
    %c768_48 = arith.constant 768 : index
    %c0_49 = arith.constant 0 : index
    %96 = vector.load %arg3[%c768_48, %c0_49] : memref<1152x128xbf16, #tpu.memory_space<vmem>>, vector<384x128xbf16>
    %cst_50 = arith.constant dense<0.000000e+00> : vector<256x128xf32>
    %97 = tpu.matmul %95, %96, %cst_50 {dimension_numbers = #tpu.dot_dimension_numbers<[1], [0], [0], [1], [0, 0, 1, 1], [], []>} : vector<256x384xbf16>, vector<384x128xbf16>, vector<256x128xf32> -> vector<256x128xf32>
    %98 = arith.addf %85, %97 : vector<256x128xf32>
    %99 = vector.broadcast %4 : vector<1x128xf32> to vector<256x128xf32>
    %100 = arith.addf %98, %99 : vector<256x128xf32>
    %c1_i32_51 = arith.constant 1 : i32
    %101 = arith.addi %60, %c1_i32_51 : i32
    %c0_52 = arith.constant 0 : index
    %102 = arith.index_cast %101 : i32 to index
    %c1 = arith.constant 1 : index
    %c0_53 = arith.constant 0 : index
    %103 = vector.load %arg1[%c0_52, %102, %c1, %c0_53] : memref<1x18x18x128xbf16, #tpu.memory_space<vmem>>, vector<1x16x16x128xbf16>
    %104 = vector.shape_cast %103 : vector<1x16x16x128xbf16> to vector<16x16x128xbf16>
    %105 = vector.shape_cast %104 : vector<16x16x128xbf16> to vector<256x128xbf16>
    %106 = arith.extf %105 : vector<256x128xbf16> to vector<256x128xf32>
    %107 = arith.addf %100, %106 : vector<256x128xf32>
    %cst_54 = arith.constant 0.000000e+00 : f32
    %108 = vector.broadcast %cst_54 : f32 to vector<256x128xf32>
    %109 = arith.maximumf %107, %108 : vector<256x128xf32>
    %110 = arith.truncf %109 : vector<256x128xf32> to vector<256x128xbf16>
    %111 = vector.shape_cast %110 : vector<256x128xbf16> to vector<16x16x128xbf16>
    %c0_55 = arith.constant 0 : index
    %112 = arith.index_cast %60 : i32 to index
    %c0_56 = arith.constant 0 : index
    %c0_57 = arith.constant 0 : index
    %113 = vector.load %arg6[%c0_55, %112, %c0_56, %c0_57] : memref<1x16x16x128xbf16, #tpu.memory_space<vmem>>, vector<1x16x16x128xbf16>
    %114 = vector.shape_cast %113 : vector<1x16x16x128xbf16> to vector<16x16x128xbf16>
    %115 = vector.shape_cast %111 : vector<16x16x128xbf16> to vector<1x16x16x128xbf16>
    tpu.vector_store %arg6[%c0_55, %112, %c0_56, %c0_57], %115 {strides = array<i32>} : memref<1x16x16x128xbf16, #tpu.memory_space<vmem>>, vector<1x16x16x128xbf16>,
    %c1_i32_58 = arith.constant 1 : i32
    return
  }
  func.func @transform_0(%arg0: i32) -> (i32, i32, i32, i32) {
    %c0_i32 = arith.constant 0 : i32
    %c0_i32_0 = arith.constant 0 : i32
    %c0_i32_1 = arith.constant 0 : i32
    %c0_i32_2 = arith.constant 0 : i32
    return %arg0, %c0_i32, %c0_i32_0, %c0_i32_1 : i32, i32, i32, i32
  }
  func.func @transform_1(%arg0: i32) -> (i32, i32) {
    %c0_i32 = arith.constant 0 : i32
    %c0_i32_0 = arith.constant 0 : i32
    %c0_i32_1 = arith.constant 0 : i32
    return %c0_i32, %c0_i32_0 : i32, i32
  }
  func.func @transform_2(%arg0: i32) -> (i32, i32) {
    %c0_i32 = arith.constant 0 : i32
    %c0_i32_0 = arith.constant 0 : i32
    %c0_i32_1 = arith.constant 0 : i32
    return %c0_i32, %c0_i32_0 : i32, i32
  }
  func.func @transform_3(%arg0: i32) -> (i32, i32) {
    %c0_i32 = arith.constant 0 : i32
    %c0_i32_0 = arith.constant 0 : i32
    %c0_i32_1 = arith.constant 0 : i32
    return %c0_i32, %c0_i32_0 : i32, i32
  }
  func.func @transform_4(%arg0: i32) -> (i32, i32) {
    %c0_i32 = arith.constant 0 : i32
    %c0_i32_0 = arith.constant 0 : i32
    %c0_i32_1 = arith.constant 0 : i32
    return %c0_i32, %c0_i32_0 : i32, i32
  }
  func.func @transform_5(%arg0: i32) -> (i32, i32, i32, i32) {
    %c0_i32 = arith.constant 0 : i32
    %c0_i32_0 = arith.constant 0 : i32
    %c0_i32_1 = arith.constant 0 : i32
    %c0_i32_2 = arith.constant 0 : i32
    return %arg0, %c0_i32, %c0_i32_0, %c0_i32_1 : i32, i32, i32, i32
  }
}

</mosaic_0001>

<llo_original>
// kernel: basic_block_pallas.1
$region0: #{basic_block_pallas.1}
  #allocation0 [shape = 'u32[]', space=smem, size = 0x4, offset = 0x4, fixed_abs, tag = 'smem constant byte address 0x4 - core index']
  #allocation1 [shape = 'u32[144,128]{1,0:T(1,128)}', space=vmem, size = 0x12000, scoped, tag = 'internal scratch']
  #allocation2 [shape = 'bf16[18,18,128]{2,1,0:T(8,128)(2,1)}', space=vmem, size = 0x1b000, scoped, tag = 'scratch operand']
  %s0 = inlined_call_operand.vmem [shape: bf16[2,18,18,128], index: 0, kind: input, shape index: {}]
  %s1 = inlined_call_operand.vmem [shape: bf16[1152,128], index: 1, kind: input, shape index: {}]
  %s2 = inlined_call_operand.vmem [shape: bf16[1152,128], index: 2, kind: input, shape index: {}]
  %s3 = inlined_call_operand.vmem [shape: f32[1,128], index: 3, kind: input, shape index: {}]
  %s4 = inlined_call_operand.vmem [shape: f32[1,128], index: 4, kind: input, shape index: {}]
  %s5 = inlined_call_operand.vmem [shape: bf16[2,16,16,128], index: 5, kind: output, shape index: {}]
  %s6 = sld [smem:[#allocation0]]
  $region53: #{basic_block_pallas.1} parent=0
    _
  %s8 = ssub.s32 1, %s6
  %s9 = scalar_select 0, %s8, %s6
  loop: start=0, step=1, limit=4
  $region2: #{basic_block_pallas.1} parent=0 // loop_pre_header
    _
  $region3: #{basic_block_pallas.1} parent=0 // loop_header
    %s11 = sphi 0, %s15
    %p12 = scmp.ge.s32.totalorder %s11, 4
    %s21 = sphi 0, %s23
    %s24 = sphi 0, %s21
    %s25 = sphi 0, %s24
    %s41 = sphi 0, %s25
    %s45 = sphi 0, %s45
    %s47 = sphi 0, %s45
    %s48 = sphi 0, %s47
    %s62 = sphi 0, %s48
    %s66 = sphi 0, %s66
    %s68 = sphi 0, %s66
    %s69 = sphi 0, %s68
    %s83 = sphi 0, %s69
    %s87 = sphi 0, %s87
    %s89 = sphi 0, %s87
    %s90 = sphi 0, %s89
    %s104 = sphi 0, %s90
    %s108 = sphi 0, %s108
    %s110 = sphi 0, %s108
    %s111 = sphi 0, %s110
    %s125 = sphi 0, %s111
    %s131 = sphi 0, %s133
    %s134 = sphi 0, %s131
    %s135 = sphi 0, %s134
    %s151 = sphi 0, %s135
  $region4: #{basic_block_pallas.1} parent=0 // loop_header_branch
    %14 = sbr.rel (%p12) target = $region8
  $region5: #{basic_block_pallas.1} parent=0 // loop_body
    %s16 = ssub.s32 %s11, 1
    %s17 = ssub.s32 %s11, 2
    %s18 = sadd.s32 %s11, 1
    %s19 = ssub.s32 %s11, %s18
    %p20 = scmp.eq.s32.totalorder %s19, 0
    %s22 = sadd.s32 %s21, 1
    %s23 = scalar_select %p20, %s21, %s22
    %p26 = pneg %p20
    %p27 = scmp.eq.s32.totalorder %s11, 1
    %p28 = por %p26, %p27
    %p29 = scmp.ne.s32.totalorder %s21, %s24
    %p30 = scmp.eq.s32.totalorder %s11, 0
    %p31 = por %p29, %p30
    %p32 = scmp.ne.s32.totalorder %s21, %s24
    %p33 = scmp.eq.s32.totalorder %s16, 1
    %p34 = por %p32, %p33
    %p35 = scmp.ne.s32.totalorder %s24, %s25
    %p36 = scmp.eq.s32.totalorder %s16, 0
    %p37 = por %p35, %p36
    %p38 = scmp.ne.s32.totalorder %s24, %s25
    %p39 = scmp.eq.s32.totalorder %s17, 1
    %p40 = por %p38, %p39
    %p42 = scmp.ne.s32.totalorder %s25, %s41
    %p43 = scmp.eq.s32.totalorder %s17, 0
    %p44 = por %p42, %p43
    %s46 = sadd.s32 %s45, 1
    %p49 = scmp.eq.s32.totalorder %s11, 1
    %p50 = scmp.ne.s32.totalorder %s45, %s47
    %p51 = scmp.eq.s32.totalorder %s11, 0
    %p52 = por %p50, %p51
    %p53 = scmp.ne.s32.totalorder %s45, %s47
    %p54 = scmp.eq.s32.totalorder %s16, 1
    %p55 = por %p53, %p54
    %p56 = scmp.ne.s32.totalorder %s47, %s48
    %p57 = scmp.eq.s32.totalorder %s16, 0
    %p58 = por %p56, %p57
    %p59 = scmp.ne.s32.totalorder %s47, %s48
    %p60 = scmp.eq.s32.totalorder %s17, 1
    %p61 = por %p59, %p60
    %p63 = scmp.ne.s32.totalorder %s48, %s62
    %p64 = scmp.eq.s32.totalorder %s17, 0
    %p65 = por %p63, %p64
    %s67 = sadd.s32 %s66, 1
    %p70 = scmp.eq.s32.totalorder %s11, 1
    %p71 = scmp.ne.s32.totalorder %s66, %s68
    %p72 = scmp.eq.s32.totalorder %s11, 0
    %p73 = por %p71, %p72
    %p74 = scmp.ne.s32.totalorder %s66, %s68
    %p75 = scmp.eq.s32.totalorder %s16, 1
    %p76 = por %p74, %p75
    %p77 = scmp.ne.s32.totalorder %s68, %s69
    %p78 = scmp.eq.s32.totalorder %s16, 0
    %p79 = por %p77, %p78
    %p80 = scmp.ne.s32.totalorder %s68, %s69
    %p81 = scmp.eq.s32.totalorder %s17, 1
    %p82 = por %p80, %p81
    %p84 = scmp.ne.s32.totalorder %s69, %s83
    %p85 = scmp.eq.s32.totalorder %s17, 0
    %p86 = por %p84, %p85
    %s88 = sadd.s32 %s87, 1
    %p91 = scmp.eq.s32.totalorder %s11, 1
    %p92 = scmp.ne.s32.totalorder %s87, %s89
    %p93 = scmp.eq.s32.totalorder %s11, 0
    %p94 = por %p92, %p93
    %p95 = scmp.ne.s32.totalorder %s87, %s89
    %p96 = scmp.eq.s32.totalorder %s16, 1
    %p97 = por %p95, %p96
    %p98 = scmp.ne.s32.totalorder %s89, %s90
    %p99 = scmp.eq.s32.totalorder %s16, 0
    %p100 = por %p98, %p99
    %p101 = scmp.ne.s32.totalorder %s89, %s90
    %p102 = scmp.eq.s32.totalorder %s17, 1
    %p103 = por %p101, %p102
    %p105 = scmp.ne.s32.totalorder %s90, %s104
    %p106 = scmp.eq.s32.totalorder %s17, 0
    %p107 = por %p105, %p106
    %s109 = sadd.s32 %s108, 1
    %p112 = scmp.eq.s32.totalorder %s11, 1
    %p113 = scmp.ne.s32.totalorder %s108, %s110
    %p114 = scmp.eq.s32.totalorder %s11, 0
    %p115 = por %p113, %p114
    %p116 = scmp.ne.s32.totalorder %s108, %s110
    %p117 = scmp.eq.s32.totalorder %s16, 1
    %p118 = por %p116, %p117
    %p119 = scmp.ne.s32.totalorder %s110, %s111
    %p120 = scmp.eq.s32.totalorder %s16, 0
    %p121 = por %p119, %p120
    %p122 = scmp.ne.s32.totalorder %s110, %s111
    %p123 = scmp.eq.s32.totalorder %s17, 1
    %p124 = por %p122, %p123
    %p126 = scmp.ne.s32.totalorder %s111, %s125
    %p127 = scmp.eq.s32.totalorder %s17, 0
    %p128 = por %p126, %p127
    %s129 = ssub.s32 %s11, %s18
    %p130 = scmp.eq.s32.totalorder %s129, 0
    %s132 = sadd.s32 %s131, 1
    %s133 = scalar_select %p130, %s131, %s132
    %p136 = pneg %p130
    %p137 = scmp.eq.s32.totalorder %s11, 1
    %p138 = por %p136, %p137
    %p139 = scmp.ne.s32.totalorder %s131, %s134
    %p140 = scmp.eq.s32.totalorder %s11, 0
    %p141 = por %p139, %p140
    %p142 = scmp.ne.s32.totalorder %s131, %s134
    %p143 = scmp.eq.s32.totalorder %s16, 1
    %p144 = por %p142, %p143
    %p145 = scmp.ne.s32.totalorder %s134, %s135
    %p146 = scmp.eq.s32.totalorder %s16, 0
    %p147 = por %p145, %p146
    %p148 = scmp.ne.s32.totalorder %s134, %s135
    %p149 = scmp.eq.s32.totalorder %s17, 1
    %p150 = por %p148, %p149
    %p152 = scmp.ne.s32.totalorder %s135, %s151
    %p153 = scmp.eq.s32.totalorder %s17, 0
    %p154 = por %p152, %p153
    %p155 = scmp.le.s32.totalorder 1, %s11
    %p156 = scmp.lt.s32.totalorder %s11, 3
    %p157 = pnand %p155, %p156
    %p158 = pneg %p157
    // Predicated region
    $region9: #{basic_block_pallas.1} parent=5 // pred_check
      _
    $region10: #{basic_block_pallas.1} parent=5 // pred_check_branch
      %160 = sbr.rel (%p157) target = $region12
    $region11: #{basic_block_pallas.1} parent=5 // pred_region
      %s161 = ssub.s32 %s11, 1
      // Predicated region
      $region13: #{basic_block_pallas.1} parent=11 // pred_check
        %p162 = pneg %p58
      $region14: #{basic_block_pallas.1} parent=11 // pred_check_branch
        %164 = sbr.rel (%p162) target = $region16
      $region15: #{basic_block_pallas.1} parent=11 // pred_region
        _
      $region16: #{basic_block_pallas.1} parent=11 // pred_fallthru
        _
      // Predicated region
      $region17: #{basic_block_pallas.1} parent=11 // pred_check
        %p165 = pneg %p79
      $region18: #{basic_block_pallas.1} parent=11 // pred_check_branch
        %167 = sbr.rel (%p165) target = $region20
      $region19: #{basic_block_pallas.1} parent=11 // pred_region
        _
      $region20: #{basic_block_pallas.1} parent=11 // pred_fallthru
        _
      // Predicated region
      $region21: #{basic_block_pallas.1} parent=11 // pred_check
        %p168 = pneg %p100
      $region22: #{basic_block_pallas.1} parent=11 // pred_check_branch
        %170 = sbr.rel (%p168) target = $region24
      $region23: #{basic_block_pallas.1} parent=11 // pred_region
        _
      $region24: #{basic_block_pallas.1} parent=11 // pred_fallthru
        _
      // Predicated region
      $region25: #{basic_block_pallas.1} parent=11 // pred_check
        %p171 = pneg %p121
      $region26: #{basic_block_pallas.1} parent=11 // pred_check_branch
        %173 = sbr.rel (%p171) target = $region28
      $region27: #{basic_block_pallas.1} parent=11 // pred_region
        _
      $region28: #{basic_block_pallas.1} parent=11 // pred_fallthru
        _
    $region12: #{basic_block_pallas.1} parent=5 // pred_fallthru
      _
    %p174 = scmp.lt.s32.totalorder %s11, 2
    // Predicated region
    $region29: #{basic_block_pallas.1} parent=5 // pred_check
      %p175 = pneg %p174
    $region30: #{basic_block_pallas.1} parent=5 // pred_check_branch
      %177 = sbr.rel (%p175) target = $region32
    $region31: #{basic_block_pallas.1} parent=5 // pred_region
      // Predicated region
      $region33: #{basic_block_pallas.1} parent=31 // pred_check
        %p178 = pneg %p31
      $region34: #{basic_block_pallas.1} parent=31 // pred_check_branch
        %180 = sbr.rel (%p178) target = $region36
      $region35: #{basic_block_pallas.1} parent=31 // pred_region
        %p181 = scmp.lt.s32.totalorder %s11, 1
        %s182 = scalar_select %p181, %s11, 1
        %s183 = smul.addr %s182, 54
        %s184 = smul.addr %s183, 4
        %s185 = scalar_lea.vmem %s0, %s184
      $region36: #{basic_block_pallas.1} parent=31 // pred_fallthru
        _
    $region32: #{basic_block_pallas.1} parent=5 // pred_fallthru
      _
    %p186 = scmp.le.s32.totalorder 1, %s11
    %p187 = scmp.lt.s32.totalorder %s11, 3
    %p188 = pnand %p186, %p187
    %p189 = pneg %p188
    // Predicated region
    $region37: #{basic_block_pallas.1} parent=5 // pred_check
      _
    $region38: #{basic_block_pallas.1} parent=5 // pred_check_branch
      %191 = sbr.rel (%p188) target = $region40
    $region39: #{basic_block_pallas.1} parent=5 // pred_region
      %s192 = ssub.s32 %s11, 1
      %p193 = scmp.lt.s32.totalorder %s16, 1
      %s194 = scalar_select %p193, %s16, 1
      %s195 = smul.addr %s194, 54
      %s196 = smul.addr %s195, 4
      %s197 = scalar_lea.vmem %s0, %s196
      %p198 = pneg %p37
      %p199 = pneg %p34
      %p200 = pneg %p58
      %p201 = pneg %p55
      %p202 = pneg %p79
      %p203 = pneg %p76
      %p204 = pneg %p100
      %p205 = pneg %p97
      %p206 = pneg %p121
      %p207 = pneg %p118
      %p208 = pneg %p147
      %p209 = pneg %p144
      %p210 = scmp.lt.s32.totalorder %s16, 1
      %s211 = scalar_select %p210, %s16, 1
      %s212 = smul.addr %s211, 32
      %s213 = smul.addr %s212, 4
      %s214 = scalar_lea.vmem %s5, %s213
      %p215 = scmp.lt.s32.totalorder %s16, 1
      %s216 = scalar_select %p215, %s16, 1
      %s217 = smul.addr %s216, 54
      %s218 = smul.addr %s217, 4
      %s219 = scalar_lea.vmem %s0, %s218
      %p220 = scmp.lt.s32.totalorder %s16, 1
      %s221 = scalar_select %p220, %s16, 1
      %s222 = smul.addr %s221, 32
      %s223 = smul.addr %s222, 4
      %s224 = scalar_lea.vmem %s5, %s223
      %226 = vst [vmem:[#allocation2] sm:$0xf] 0
      %227 = vst [vmem:[#allocation2 + $0x4] sm:$0xf] 0
      %228 = vst [vmem:[#allocation2 + $0x8] sm:$0x1] 0
      %s229 = scalar_lea.vmem [#allocation2], 204
      %230 = vst [vmem:[%s229] sm:$0xf] 0
      %231 = vst [vmem:[%s229 + $0x4] sm:$0xf] 0
      %232 = vst [vmem:[%s229 + $0x8] sm:$0x1] 0
      %v233 = vld [vmem:[%s3] sm:$0x1]
      %v234 = vld [vmem:[%s4] sm:$0x1]
      %s235 = smul.u32 0, 3
      %s236 = smul.addr %s235, 4
      %s237 = scalar_lea.vmem %s219, %s236
      %v238 = vld [vmem:[%s237] sm:$0xf]
      %v239 = vld [vmem:[%s237 + $0x4] sm:$0xf]
      %v240 = vld [vmem:[%s237 + $0x8] sm:$0x1]
      %v241 = vld [vmem:[%s237 + $0xc] sm:$0xf]
      %v242 = vld [vmem:[%s237 + $0x10] sm:$0xf]
      %v243 = vld [vmem:[%s237 + $0x14] sm:$0x1]
      %v244 = vld [vmem:[%s237 + $0x18] sm:$0xf]
      %v245 = vld [vmem:[%s237 + $0x1c] sm:$0xf]
      %v246 = vld [vmem:[%s237 + $0x20] sm:$0x1]
      %v247 = vld [vmem:[%s237 + $0x24] sm:$0xf]
      %v248 = vld [vmem:[%s237 + $0x28] sm:$0xf]
      %v249 = vld [vmem:[%s237 + $0x2c] sm:$0x1]
      %v250 = vld [vmem:[%s237 + $0x30] sm:$0xf]
      %v251 = vld [vmem:[%s237 + $0x34] sm:$0xf]
      %v252 = vld [vmem:[%s237 + $0x38] sm:$0x1]
      %v253 = vld [vmem:[%s237 + $0x3c] sm:$0xf]
      %v254 = vld [vmem:[%s237 + $0x40] sm:$0xf]
      %v255 = vld [vmem:[%s237 + $0x44] sm:$0x1]
      %v256 = vld [vmem:[%s237 + $0x48] sm:$0xf]
      %v257 = vld [vmem:[%s237 + $0x4c] sm:$0xf]
      %v258 = vld [vmem:[%s237 + $0x50] sm:$0x1]
      %v259 = vld [vmem:[%s237 + $0x54] sm:$0xf]
      %v260 = vld [vmem:[%s237 + $0x58] sm:$0xf]
      %v261 = vld [vmem:[%s237 + $0x5c] sm:$0x1]
      %v262 = vld [vmem:[%s237 + $0x60] sm:$0xf]
      %v263 = vld [vmem:[%s237 + $0x64] sm:$0xf]
      %v264 = vld [vmem:[%s237 + $0x68] sm:$0x1]
      %v265 = vld [vmem:[%s237 + $0x6c] sm:$0xf]
      %v266 = vld [vmem:[%s237 + $0x70] sm:$0xf]
      %v267 = vld [vmem:[%s237 + $0x74] sm:$0x1]
      %v268 = vld [vmem:[%s237 + $0x78] sm:$0xf]
      %v269 = vld [vmem:[%s237 + $0x7c] sm:$0xf]
      %v270 = vld [vmem:[%s237 + $0x80] sm:$0x1]
      %v271 = vld [vmem:[%s237 + $0x84] sm:$0xf]
      %v272 = vld [vmem:[%s237 + $0x88] sm:$0xf]
      %v273 = vld [vmem:[%s237 + $0x8c] sm:$0x1]
      %v274 = vld [vmem:[%s237 + $0x90] sm:$0xf]
      %v275 = vld [vmem:[%s237 + $0x94] sm:$0xf]
      %v276 = vld [vmem:[%s237 + $0x98] sm:$0x1]
      %v277 = vld [vmem:[%s237 + $0x9c] sm:$0xf]
      %v278 = vld [vmem:[%s237 + $0xa0] sm:$0xf]
      %v279 = vld [vmem:[%s237 + $0xa4] sm:$0x1]
      %v280 = vld [vmem:[%s237 + $0xa8] sm:$0xf]
      %v281 = vld [vmem:[%s237 + $0xac] sm:$0xf]
      %v282 = vld [vmem:[%s237 + $0xb0] sm:$0x1]
      %v283 = vld [vmem:[%s237 + $0xb4] sm:$0xf]
      %v284 = vld [vmem:[%s237 + $0xb8] sm:$0xf]
      %v285 = vld [vmem:[%s237 + $0xbc] sm:$0x1]
      %vm286 = vsmask.f32 3328
      %vm287 = vsmask.f32 7440
      %vm288 = vmor %vm286, %vm287
      %v290 = vshrl.u32 %v238, 16
      %v292 = vrot.slane %v290, 4
      %v293 = vshll.u32 %v238, 16
      %v295 = vrot.slane %v293, 5
      %v296 = vor.u32 %v292, %v295
      %v297 = vrot.slane %v296, 4
      %v299 = vshll.u32 %v239, 16
      %v301 = vrot.slane %v299, 5
      %v302 = vsel %vm288, %v297, %v301
      %v303 = vshrl.u32 %v239, 16
      %v305 = vrot.slane %v303, 4
      %v306 = vor.u32 %v305, %v301
      %v307 = vrot.slane %v306, 4
      %v309 = vshll.u32 %v240, 16
      %v311 = vrot.slane %v309, 5
      %v312 = vsel %vm288, %v307, %v311
      %v314 = vshrl.u32 %v241, 16
      %v316 = vrot.slane %v314, 4
      %v317 = vshll.u32 %v241, 16
      %v319 = vrot.slane %v317, 5
      %v320 = vor.u32 %v316, %v319
      %v321 = vrot.slane %v320, 4
      %v323 = vshll.u32 %v242, 16
      %v325 = vrot.slane %v323, 5
      %v326 = vsel %vm288, %v321, %v325
      %v327 = vshrl.u32 %v242, 16
      %v329 = vrot.slane %v327, 4
      %v330 = vor.u32 %v329, %v325
      %v331 = vrot.slane %v330, 4
      %v333 = vshll.u32 %v243, 16
      %v335 = vrot.slane %v333, 5
      %v336 = vsel %vm288, %v331, %v335
      %v338 = vshrl.u32 %v244, 16
      %v340 = vrot.slane %v338, 4
      %v341 = vshll.u32 %v244, 16
      %v343 = vrot.slane %v341, 5
      %v344 = vor.u32 %v340, %v343
      %v345 = vrot.slane %v344, 4
      %v347 = vshll.u32 %v245, 16
      %v349 = vrot.slane %v347, 5
      %v350 = vsel %vm288, %v345, %v349
      %v351 = vshrl.u32 %v245, 16
      %v353 = vrot.slane %v351, 4
      %v354 = vor.u32 %v353, %v349
      %v355 = vrot.slane %v354, 4
      %v357 = vshll.u32 %v246, 16
      %v359 = vrot.slane %v357, 5
      %v360 = vsel %vm288, %v355, %v359
      %v362 = vshrl.u32 %v247, 16
      %v364 = vrot.slane %v362, 4
      %v365 = vshll.u32 %v247, 16
      %v367 = vrot.slane %v365, 5
      %v368 = vor.u32 %v364, %v367
      %v369 = vrot.slane %v368, 4
      %v371 = vshll.u32 %v248, 16
      %v373 = vrot.slane %v371, 5
      %v374 = vsel %vm288, %v369, %v373
      %v375 = vshrl.u32 %v248, 16
      %v377 = vrot.slane %v375, 4
      %v378 = vor.u32 %v377, %v373
      %v379 = vrot.slane %v378, 4
      %v381 = vshll.u32 %v249, 16
      %v383 = vrot.slane %v381, 5
      %v384 = vsel %vm288, %v379, %v383
      %v386 = vshrl.u32 %v250, 16
      %v388 = vrot.slane %v386, 4
      %v389 = vshll.u32 %v250, 16
      %v391 = vrot.slane %v389, 5
      %v392 = vor.u32 %v388, %v391
      %v393 = vrot.slane %v392, 4
      %v395 = vshll.u32 %v251, 16
      %v397 = vrot.slane %v395, 5
      %v398 = vsel %vm288, %v393, %v397
      %v399 = vshrl.u32 %v251, 16
      %v401 = vrot.slane %v399, 4
      %v402 = vor.u32 %v401, %v397
      %v403 = vrot.slane %v402, 4
      %v405 = vshll.u32 %v252, 16
      %v407 = vrot.slane %v405, 5
      %v408 = vsel %vm288, %v403, %v407
      %v410 = vshrl.u32 %v253, 16
      %v412 = vrot.slane %v410, 4
      %v413 = vshll.u32 %v253, 16
      %v415 = vrot.slane %v413, 5
      %v416 = vor.u32 %v412, %v415
      %v417 = vrot.slane %v416, 4
      %v419 = vshll.u32 %v254, 16
      %v421 = vrot.slane %v419, 5
      %v422 = vsel %vm288, %v417, %v421
      %v423 = vshrl.u32 %v254, 16
      %v425 = vrot.slane %v423, 4
      %v426 = vor.u32 %v425, %v421
      %v427 = vrot.slane %v426, 4
      %v429 = vshll.u32 %v255, 16
      %v431 = vrot.slane %v429, 5
      %v432 = vsel %vm288, %v427, %v431
      %v434 = vshrl.u32 %v256, 16
      %v436 = vrot.slane %v434, 4
      %v437 = vshll.u32 %v256, 16
      %v439 = vrot.slane %v437, 5
      %v440 = vor.u32 %v436, %v439
      %v441 = vrot.slane %v440, 4
      %v443 = vshll.u32 %v257, 16
      %v445 = vrot.slane %v443, 5
      %v446 = vsel %vm288, %v441, %v445
      %v447 = vshrl.u32 %v257, 16
      %v449 = vrot.slane %v447, 4
      %v450 = vor.u32 %v449, %v445
      %v451 = vrot.slane %v450, 4
      %v453 = vshll.u32 %v258, 16
      %v455 = vrot.slane %v453, 5
      %v456 = vsel %vm288, %v451, %v455
      %v458 = vshrl.u32 %v259, 16
      %v460 = vrot.slane %v458, 4
      %v461 = vshll.u32 %v259, 16
      %v463 = vrot.slane %v461, 5
      %v464 = vor.u32 %v460, %v463
      %v465 = vrot.slane %v464, 4
      %v467 = vshll.u32 %v260, 16
      %v469 = vrot.slane %v467, 5
      %v470 = vsel %vm288, %v465, %v469
      %v471 = vshrl.u32 %v260, 16
      %v473 = vrot.slane %v471, 4
      %v474 = vor.u32 %v473, %v469
      %v475 = vrot.slane %v474, 4
      %v477 = vshll.u32 %v261, 16
      %v479 = vrot.slane %v477, 5
      %v480 = vsel %vm288, %v475, %v479
      %v482 = vshrl.u32 %v262, 16
      %v484 = vrot.slane %v482, 4
      %v485 = vshll.u32 %v262, 16
      %v487 = vrot.slane %v485, 5
      %v488 = vor.u32 %v484, %v487
      %v489 = vrot.slane %v488, 4
      %v491 = vshll.u32 %v263, 16
      %v493 = vrot.slane %v491, 5
      %v494 = vsel %vm288, %v489, %v493
      %v495 = vshrl.u32 %v263, 16
      %v497 = vrot.slane %v495, 4
      %v498 = vor.u32 %v497, %v493
      %v499 = vrot.slane %v498, 4
      %v501 = vshll.u32 %v264, 16
      %v503 = vrot.slane %v501, 5
      %v504 = vsel %vm288, %v499, %v503
      %v506 = vshrl.u32 %v265, 16
      %v508 = vrot.slane %v506, 4
      %v509 = vshll.u32 %v265, 16
      %v511 = vrot.slane %v509, 5
      %v512 = vor.u32 %v508, %v511
      %v513 = vrot.slane %v512, 4
      %v515 = vshll.u32 %v266, 16
      %v517 = vrot.slane %v515, 5
      %v518 = vsel %vm288, %v513, %v517
      %v519 = vshrl.u32 %v266, 16
      %v521 = vrot.slane %v519, 4
      %v522 = vor.u32 %v521, %v517
      %v523 = vrot.slane %v522, 4
      %v525 = vshll.u32 %v267, 16
      %v527 = vrot.slane %v525, 5
      %v528 = vsel %vm288, %v523, %v527
      %v530 = vshrl.u32 %v268, 16
      %v532 = vrot.slane %v530, 4
      %v533 = vshll.u32 %v268, 16
      %v535 = vrot.slane %v533, 5
      %v536 = vor.u32 %v532, %v535
      %v537 = vrot.slane %v536, 4
      %v539 = vshll.u32 %v269, 16
      %v541 = vrot.slane %v539, 5
      %v542 = vsel %vm288, %v537, %v541
      %v543 = vshrl.u32 %v269, 16
      %v545 = vrot.slane %v543, 4
      %v546 = vor.u32 %v545, %v541
      %v547 = vrot.slane %v546, 4
      %v549 = vshll.u32 %v270, 16
      %v551 = vrot.slane %v549, 5
      %v552 = vsel %vm288, %v547, %v551
      %v554 = vshrl.u32 %v271, 16
      %v556 = vrot.slane %v554, 4
      %v557 = vshll.u32 %v271, 16
      %v559 = vrot.slane %v557, 5
      %v560 = vor.u32 %v556, %v559
      %v561 = vrot.slane %v560, 4
      %v563 = vshll.u32 %v272, 16
      %v565 = vrot.slane %v563, 5
      %v566 = vsel %vm288, %v561, %v565
      %v567 = vshrl.u32 %v272, 16
      %v569 = vrot.slane %v567, 4
      %v570 = vor.u32 %v569, %v565
      %v571 = vrot.slane %v570, 4
      %v573 = vshll.u32 %v273, 16
      %v575 = vrot.slane %v573, 5
      %v576 = vsel %vm288, %v571, %v575
      %v578 = vshrl.u32 %v274, 16
      %v580 = vrot.slane %v578, 4
      %v581 = vshll.u32 %v274, 16
      %v583 = vrot.slane %v581, 5
      %v584 = vor.u32 %v580, %v583
      %v585 = vrot.slane %v584, 4
      %v587 = vshll.u32 %v275, 16
      %v589 = vrot.slane %v587, 5
      %v590 = vsel %vm288, %v585, %v589
      %v591 = vshrl.u32 %v275, 16
      %v593 = vrot.slane %v591, 4
      %v594 = vor.u32 %v593, %v589
      %v595 = vrot.slane %v594, 4
      %v597 = vshll.u32 %v276, 16
      %v599 = vrot.slane %v597, 5
      %v600 = vsel %vm288, %v595, %v599
      %v602 = vshrl.u32 %v277, 16
      %v604 = vrot.slane %v602, 4
      %v605 = vshll.u32 %v277, 16
      %v607 = vrot.slane %v605, 5
      %v608 = vor.u32 %v604, %v607
      %v609 = vrot.slane %v608, 4
      %v611 = vshll.u32 %v278, 16
      %v613 = vrot.slane %v611, 5
      %v614 = vsel %vm288, %v609, %v613
      %v615 = vshrl.u32 %v278, 16
      %v617 = vrot.slane %v615, 4
      %v618 = vor.u32 %v617, %v613
      %v619 = vrot.slane %v618, 4
      %v621 = vshll.u32 %v279, 16
      %v623 = vrot.slane %v621, 5
      %v624 = vsel %vm288, %v619, %v623
      %v626 = vshrl.u32 %v280, 16
      %v628 = vrot.slane %v626, 4
      %v629 = vshll.u32 %v280, 16
      %v631 = vrot.slane %v629, 5
      %v632 = vor.u32 %v628, %v631
      %v633 = vrot.slane %v632, 4
      %v635 = vshll.u32 %v281, 16
      %v637 = vrot.slane %v635, 5
      %v638 = vsel %vm288, %v633, %v637
      %v639 = vshrl.u32 %v281, 16
      %v641 = vrot.slane %v639, 4
      %v642 = vor.u32 %v641, %v637
      %v643 = vrot.slane %v642, 4
      %v645 = vshll.u32 %v282, 16
      %v647 = vrot.slane %v645, 5
      %v648 = vsel %vm288, %v643, %v647
      %v650 = vshrl.u32 %v283, 16
      %v652 = vrot.slane %v650, 4
      %v653 = vshll.u32 %v283, 16
      %v655 = vrot.slane %v653, 5
      %v656 = vor.u32 %v652, %v655
      %v657 = vrot.slane %v656, 4
      %v659 = vshll.u32 %v284, 16
      %v661 = vrot.slane %v659, 5
      %v662 = vsel %vm288, %v657, %v661
      %v663 = vshrl.u32 %v284, 16
      %v665 = vrot.slane %v663, 4
      %v666 = vor.u32 %v665, %v661
      %v667 = vrot.slane %v666, 4
      %v669 = vshll.u32 %v285, 16
      %v671 = vrot.slane %v669, 5
      %v672 = vsel %vm288, %v667, %v671
      %vm721 = vcmask 1042432
      %vm722 = vcmask 1046532
      %vm723 = vmor %vm721, %vm722
      %v724 = vrot.slane %v238, 5
      %v725 = vrot.slane %v724, 4
      %v726 = vrot.slane %v239, 5
      %v727 = vsel %vm723, %v725, %v726
      %v728 = vrot.slane %v726, 4
      %v729 = vrot.slane %v240, 5
      %v730 = vsel %vm723, %v728, %v729
      %v731 = vrot.slane %v241, 5
      %v732 = vrot.slane %v731, 4
      %v733 = vrot.slane %v242, 5
      %v734 = vsel %vm723, %v732, %v733
      %v735 = vrot.slane %v733, 4
      %v736 = vrot.slane %v243, 5
      %v737 = vsel %vm723, %v735, %v736
      %v738 = vrot.slane %v244, 5
      %v739 = vrot.slane %v738, 4
      %v740 = vrot.slane %v245, 5
      %v741 = vsel %vm723, %v739, %v740
      %v742 = vrot.slane %v740, 4
      %v743 = vrot.slane %v246, 5
      %v744 = vsel %vm723, %v742, %v743
      %v745 = vrot.slane %v247, 5
      %v746 = vrot.slane %v745, 4
      %v747 = vrot.slane %v248, 5
      %v748 = vsel %vm723, %v746, %v747
      %v749 = vrot.slane %v747, 4
      %v750 = vrot.slane %v249, 5
      %v751 = vsel %vm723, %v749, %v750
      %v752 = vrot.slane %v250, 5
      %v753 = vrot.slane %v752, 4
      %v754 = vrot.slane %v251, 5
      %v755 = vsel %vm723, %v753, %v754
      %v756 = vrot.slane %v754, 4
      %v757 = vrot.slane %v252, 5
      %v758 = vsel %vm723, %v756, %v757
      %v759 = vrot.slane %v253, 5
      %v760 = vrot.slane %v759, 4
      %v761 = vrot.slane %v254, 5
      %v762 = vsel %vm723, %v760, %v761
      %v763 = vrot.slane %v761, 4
      %v764 = vrot.slane %v255, 5
      %v765 = vsel %vm723, %v763, %v764
      %v766 = vrot.slane %v256, 5
      %v767 = vrot.slane %v766, 4
      %v768 = vrot.slane %v257, 5
      %v769 = vsel %vm723, %v767, %v768
      %v770 = vrot.slane %v768, 4
      %v771 = vrot.slane %v258, 5
      %v772 = vsel %vm723, %v770, %v771
      %v773 = vrot.slane %v259, 5
      %v774 = vrot.slane %v773, 4
      %v775 = vrot.slane %v260, 5
      %v776 = vsel %vm723, %v774, %v775
      %v777 = vrot.slane %v775, 4
      %v778 = vrot.slane %v261, 5
      %v779 = vsel %vm723, %v777, %v778
      %v780 = vrot.slane %v262, 5
      %v781 = vrot.slane %v780, 4
      %v782 = vrot.slane %v263, 5
      %v783 = vsel %vm723, %v781, %v782
      %v784 = vrot.slane %v782, 4
      %v785 = vrot.slane %v264, 5
      %v786 = vsel %vm723, %v784, %v785
      %v787 = vrot.slane %v265, 5
      %v788 = vrot.slane %v787, 4
      %v789 = vrot.slane %v266, 5
      %v790 = vsel %vm723, %v788, %v789
      %v791 = vrot.slane %v789, 4
      %v792 = vrot.slane %v267, 5
      %v793 = vsel %vm723, %v791, %v792
      %v794 = vrot.slane %v268, 5
      %v795 = vrot.slane %v794, 4
      %v796 = vrot.slane %v269, 5
      %v797 = vsel %vm723, %v795, %v796
      %v798 = vrot.slane %v796, 4
      %v799 = vrot.slane %v270, 5
      %v800 = vsel %vm723, %v798, %v799
      %v801 = vrot.slane %v271, 5
      %v802 = vrot.slane %v801, 4
      %v803 = vrot.slane %v272, 5
      %v804 = vsel %vm723, %v802, %v803
      %v805 = vrot.slane %v803, 4
      %v806 = vrot.slane %v273, 5
      %v807 = vsel %vm723, %v805, %v806
      %v808 = vrot.slane %v274, 5
      %v809 = vrot.slane %v808, 4
      %v810 = vrot.slane %v275, 5
      %v811 = vsel %vm723, %v809, %v810
      %v812 = vrot.slane %v810, 4
      %v813 = vrot.slane %v276, 5
      %v814 = vsel %vm723, %v812, %v813
      %v815 = vrot.slane %v277, 5
      %v816 = vrot.slane %v815, 4
      %v817 = vrot.slane %v278, 5
      %v818 = vsel %vm723, %v816, %v817
      %v819 = vrot.slane %v817, 4
      %v820 = vrot.slane %v279, 5
      %v821 = vsel %vm723, %v819, %v820
      %v822 = vrot.slane %v280, 5
      %v823 = vrot.slane %v822, 4
      %v824 = vrot.slane %v281, 5
      %v825 = vsel %vm723, %v823, %v824
      %v826 = vrot.slane %v824, 4
      %v827 = vrot.slane %v282, 5
      %v828 = vsel %vm723, %v826, %v827
      %v829 = vrot.slane %v283, 5
      %v830 = vrot.slane %v829, 4
      %v831 = vrot.slane %v284, 5
      %v832 = vsel %vm723, %v830, %v831
      %v833 = vrot.slane %v831, 4
      %v834 = vrot.slane %v285, 5
      %v835 = vsel %vm723, %v833, %v834
      %v836 = vunpack.c.l.b16 %v238
      %v837 = vunpack.c.l.b16 %v239
      %v838 = vunpack.c.l.b16 %v241
      %v839 = vunpack.c.l.b16 %v242
      %v840 = vunpack.c.l.b16 %v244
      %v841 = vunpack.c.l.b16 %v245
      %v842 = vunpack.c.l.b16 %v247
      %v843 = vunpack.c.l.b16 %v248
      %v844 = vunpack.c.l.b16 %v250
      %v845 = vunpack.c.l.b16 %v251
      %v846 = vunpack.c.l.b16 %v253
      %v847 = vunpack.c.l.b16 %v254
      %v848 = vunpack.c.l.b16 %v256
      %v849 = vunpack.c.l.b16 %v257
      %v850 = vunpack.c.l.b16 %v259
      %v851 = vunpack.c.l.b16 %v260
      %v852 = vunpack.c.l.b16 %v262
      %v853 = vunpack.c.l.b16 %v263
      %v854 = vunpack.c.l.b16 %v265
      %v855 = vunpack.c.l.b16 %v266
      %v856 = vunpack.c.l.b16 %v268
      %v857 = vunpack.c.l.b16 %v269
      %v858 = vunpack.c.l.b16 %v271
      %v859 = vunpack.c.l.b16 %v272
      %v860 = vunpack.c.l.b16 %v274
      %v861 = vunpack.c.l.b16 %v275
      %v862 = vunpack.c.l.b16 %v277
      %v863 = vunpack.c.l.b16 %v278
      %v864 = vunpack.c.l.b16 %v280
      %v865 = vunpack.c.l.b16 %v281
      %v866 = vunpack.c.l.b16 %v283
      %v867 = vunpack.c.l.b16 %v284
      %v868 = vpack.c.b16 %v837, %v836
      %v869 = vpack.c.b16 %v839, %v838
      %v870 = vpack.c.b16 %v841, %v840
      %v871 = vpack.c.b16 %v843, %v842
      %v872 = vpack.c.b16 %v845, %v844
      %v873 = vpack.c.b16 %v847, %v846
      %v874 = vpack.c.b16 %v849, %v848
      %v875 = vpack.c.b16 %v851, %v850
      %v876 = vpack.c.b16 %v853, %v852
      %v877 = vpack.c.b16 %v855, %v854
      %v878 = vpack.c.b16 %v857, %v856
      %v879 = vpack.c.b16 %v859, %v858
      %v880 = vpack.c.b16 %v861, %v860
      %v881 = vpack.c.b16 %v863, %v862
      %v882 = vpack.c.b16 %v865, %v864
      %v883 = vpack.c.b16 %v867, %v866
      %v900 = vunpack.c.l.b16 %v302
      %v901 = vunpack.c.l.b16 %v312
      %v902 = vunpack.c.l.b16 %v326
      %v903 = vunpack.c.l.b16 %v336
      %v904 = vunpack.c.l.b16 %v350
      %v905 = vunpack.c.l.b16 %v360
      %v906 = vunpack.c.l.b16 %v374
      %v907 = vunpack.c.l.b16 %v384
      %v908 = vunpack.c.l.b16 %v398
      %v909 = vunpack.c.l.b16 %v408
      %v910 = vunpack.c.l.b16 %v422
      %v911 = vunpack.c.l.b16 %v432
      %v912 = vunpack.c.l.b16 %v446
      %v913 = vunpack.c.l.b16 %v456
      %v914 = vunpack.c.l.b16 %v470
      %v915 = vunpack.c.l.b16 %v480
      %v916 = vunpack.c.l.b16 %v494
      %v917 = vunpack.c.l.b16 %v504
      %v918 = vunpack.c.l.b16 %v518
      %v919 = vunpack.c.l.b16 %v528
      %v920 = vunpack.c.l.b16 %v542
      %v921 = vunpack.c.l.b16 %v552
      %v922 = vunpack.c.l.b16 %v566
      %v923 = vunpack.c.l.b16 %v576
      %v924 = vunpack.c.l.b16 %v590
      %v925 = vunpack.c.l.b16 %v600
      %v926 = vunpack.c.l.b16 %v614
      %v927 = vunpack.c.l.b16 %v624
      %v928 = vunpack.c.l.b16 %v638
      %v929 = vunpack.c.l.b16 %v648
      %v930 = vunpack.c.l.b16 %v662
      %v931 = vunpack.c.l.b16 %v672
      %v932 = vpack.c.b16 %v901, %v900
      %v933 = vpack.c.b16 %v903, %v902
      %v934 = vpack.c.b16 %v905, %v904
      %v935 = vpack.c.b16 %v907, %v906
      %v936 = vpack.c.b16 %v909, %v908
      %v937 = vpack.c.b16 %v911, %v910
      %v938 = vpack.c.b16 %v913, %v912
      %v939 = vpack.c.b16 %v915, %v914
      %v940 = vpack.c.b16 %v917, %v916
      %v941 = vpack.c.b16 %v919, %v918
      %v942 = vpack.c.b16 %v921, %v920
      %v943 = vpack.c.b16 %v923, %v922
      %v944 = vpack.c.b16 %v925, %v924
      %v945 = vpack.c.b16 %v927, %v926
      %v946 = vpack.c.b16 %v929, %v928
      %v947 = vpack.c.b16 %v931, %v930
      %v964 = vunpack.c.l.b16 %v727
      %v965 = vunpack.c.l.b16 %v730
      %v966 = vunpack.c.l.b16 %v734
      %v967 = vunpack.c.l.b16 %v737
      %v968 = vunpack.c.l.b16 %v741
      %v969 = vunpack.c.l.b16 %v744
      %v970 = vunpack.c.l.b16 %v748
      %v971 = vunpack.c.l.b16 %v751
      %v972 = vunpack.c.l.b16 %v755
      %v973 = vunpack.c.l.b16 %v758
      %v974 = vunpack.c.l.b16 %v762
      %v975 = vunpack.c.l.b16 %v765
      %v976 = vunpack.c.l.b16 %v769
      %v977 = vunpack.c.l.b16 %v772
      %v978 = vunpack.c.l.b16 %v776
      %v979 = vunpack.c.l.b16 %v779
      %v980 = vunpack.c.l.b16 %v783
      %v981 = vunpack.c.l.b16 %v786
      %v982 = vunpack.c.l.b16 %v790
      %v983 = vunpack.c.l.b16 %v793
      %v984 = vunpack.c.l.b16 %v797
      %v985 = vunpack.c.l.b16 %v800
      %v986 = vunpack.c.l.b16 %v804
      %v987 = vunpack.c.l.b16 %v807
      %v988 = vunpack.c.l.b16 %v811
      %v989 = vunpack.c.l.b16 %v814
      %v990 = vunpack.c.l.b16 %v818
      %v991 = vunpack.c.l.b16 %v821
      %v992 = vunpack.c.l.b16 %v825
      %v993 = vunpack.c.l.b16 %v828
      %v994 = vunpack.c.l.b16 %v832
      %v995 = vunpack.c.l.b16 %v835
      %v996 = vpack.c.b16 %v965, %v964
      %v997 = vpack.c.b16 %v967, %v966
      %v998 = vpack.c.b16 %v969, %v968
      %v999 = vpack.c.b16 %v971, %v970
      %v1000 = vpack.c.b16 %v973, %v972
      %v1001 = vpack.c.b16 %v975, %v974
      %v1002 = vpack.c.b16 %v977, %v976
      %v1003 = vpack.c.b16 %v979, %v978
      %v1004 = vpack.c.b16 %v981, %v980
      %v1005 = vpack.c.b16 %v983, %v982
      %v1006 = vpack.c.b16 %v985, %v984
      %v1007 = vpack.c.b16 %v987, %v986
      %v1008 = vpack.c.b16 %v989, %v988
      %v1009 = vpack.c.b16 %v991, %v990
      %v1010 = vpack.c.b16 %v993, %v992
      %v1011 = vpack.c.b16 %v995, %v994
      %v1028 = vld [vmem:[%s1] sm:$0xf]
      %v1029 = vld [vmem:[%s1 + $0x4] sm:$0xf]
      %v1030 = vld [vmem:[%s1 + $0x8] sm:$0xf]
      %v1031 = vld [vmem:[%s1 + $0xc] sm:$0xf]
      %v1032 = vld [vmem:[%s1 + $0x10] sm:$0xf]
      %v1033 = vld [vmem:[%s1 + $0x14] sm:$0xf]
      %v1034 = vld [vmem:[%s1 + $0x18] sm:$0xf]
      %v1035 = vld [vmem:[%s1 + $0x1c] sm:$0xf]
      %v1036 = vld [vmem:[%s1 + $0x20] sm:$0xf]
      %v1037 = vld [vmem:[%s1 + $0x24] sm:$0xf]
      %v1038 = vld [vmem:[%s1 + $0x28] sm:$0xf]
      %v1039 = vld [vmem:[%s1 + $0x2c] sm:$0xf]
      %v1040 = vld [vmem:[%s1 + $0x30] sm:$0xf]
      %v1041 = vld [vmem:[%s1 + $0x34] sm:$0xf]
      %v1042 = vld [vmem:[%s1 + $0x38] sm:$0xf]
      %v1043 = vld [vmem:[%s1 + $0x3c] sm:$0xf]
      %v1044 = vld [vmem:[%s1 + $0x40] sm:$0xf]
      %v1045 = vld [vmem:[%s1 + $0x44] sm:$0xf]
      %v1046 = vld [vmem:[%s1 + $0x48] sm:$0xf]
      %v1047 = vld [vmem:[%s1 + $0x4c] sm:$0xf]
      %v1048 = vld [vmem:[%s1 + $0x50] sm:$0xf]
      %v1049 = vld [vmem:[%s1 + $0x54] sm:$0xf]
      %v1050 = vld [vmem:[%s1 + $0x58] sm:$0xf]
      %v1051 = vld [vmem:[%s1 + $0x5c] sm:$0xf]
      %v1052 = vld [vmem:[%s1 + $0x60] sm:$0xf]
      %v1053 = vld [vmem:[%s1 + $0x64] sm:$0xf]
      %v1054 = vld [vmem:[%s1 + $0x68] sm:$0xf]
      %v1055 = vld [vmem:[%s1 + $0x6c] sm:$0xf]
      %v1056 = vld [vmem:[%s1 + $0x70] sm:$0xf]
      %v1057 = vld [vmem:[%s1 + $0x74] sm:$0xf]
      %v1058 = vld [vmem:[%s1 + $0x78] sm:$0xf]
      %v1059 = vld [vmem:[%s1 + $0x7c] sm:$0xf]
      %v1060 = vld [vmem:[%s1 + $0x80] sm:$0xf]
      %v1061 = vld [vmem:[%s1 + $0x84] sm:$0xf]
      %v1062 = vld [vmem:[%s1 + $0x88] sm:$0xf]
      %v1063 = vld [vmem:[%s1 + $0x8c] sm:$0xf]
      %v1064 = vld [vmem:[%s1 + $0x90] sm:$0xf]
      %v1065 = vld [vmem:[%s1 + $0x94] sm:$0xf]
      %v1066 = vld [vmem:[%s1 + $0x98] sm:$0xf]
      %v1067 = vld [vmem:[%s1 + $0x9c] sm:$0xf]
      %v1068 = vld [vmem:[%s1 + $0xa0] sm:$0xf]
      %v1069 = vld [vmem:[%s1 + $0xa4] sm:$0xf]
      %v1070 = vld [vmem:[%s1 + $0xa8] sm:$0xf]
      %v1071 = vld [vmem:[%s1 + $0xac] sm:$0xf]
      %v1072 = vld [vmem:[%s1 + $0xb0] sm:$0xf]
      %v1073 = vld [vmem:[%s1 + $0xb4] sm:$0xf]
      %v1074 = vld [vmem:[%s1 + $0xb8] sm:$0xf]
      %v1075 = vld [vmem:[%s1 + $0xbc] sm:$0xf]
      %s1076 = sadd.s32 0, 1
      %s1077 = smul.u32 %s1076, 3
      %s1078 = smul.addr %s1077, 4
      %s1079 = scalar_lea.vmem %s219, %s1078
      %v1080 = vld [vmem:[%s1079] sm:$0xf]
      %v1081 = vld [vmem:[%s1079 + $0x4] sm:$0xf]
      %v1082 = vld [vmem:[%s1079 + $0x8] sm:$0x1]
      %v1083 = vld [vmem:[%s1079 + $0xc] sm:$0xf]
      %v1084 = vld [vmem:[%s1079 + $0x10] sm:$0xf]
      %v1085 = vld [vmem:[%s1079 + $0x14] sm:$0x1]
      %v1086 = vld [vmem:[%s1079 + $0x18] sm:$0xf]
      %v1087 = vld [vmem:[%s1079 + $0x1c] sm:$0xf]
      %v1088 = vld [vmem:[%s1079 + $0x20] sm:$0x1]
      %v1089 = vld [vmem:[%s1079 + $0x24] sm:$0xf]
      %v1090 = vld [vmem:[%s1079 + $0x28] sm:$0xf]
      %v1091 = vld [vmem:[%s1079 + $0x2c] sm:$0x1]
      %v1092 = vld [vmem:[%s1079 + $0x30] sm:$0xf]
      %v1093 = vld [vmem:[%s1079 + $0x34] sm:$0xf]
      %v1094 = vld [vmem:[%s1079 + $0x38] sm:$0x1]
      %v1095 = vld [vmem:[%s1079 + $0x3c] sm:$0xf]
      %v1096 = vld [vmem:[%s1079 + $0x40] sm:$0xf]
      %v1097 = vld [vmem:[%s1079 + $0x44] sm:$0x1]
      %v1098 = vld [vmem:[%s1079 + $0x48] sm:$0xf]
      %v1099 = vld [vmem:[%s1079 + $0x4c] sm:$0xf]
      %v1100 = vld [vmem:[%s1079 + $0x50] sm:$0x1]
      %v1101 = vld [vmem:[%s1079 + $0x54] sm:$0xf]
      %v1102 = vld [vmem:[%s1079 + $0x58] sm:$0xf]
      %v1103 = vld [vmem:[%s1079 + $0x5c] sm:$0x1]
      %v1104 = vld [vmem:[%s1079 + $0x60] sm:$0xf]
      %v1105 = vld [vmem:[%s1079 + $0x64] sm:$0xf]
      %v1106 = vld [vmem:[%s1079 + $0x68] sm:$0x1]
      %v1107 = vld [vmem:[%s1079 + $0x6c] sm:$0xf]
      %v1108 = vld [vmem:[%s1079 + $0x70] sm:$0xf]
      %v1109 = vld [vmem:[%s1079 + $0x74] sm:$0x1]
      %v1110 = vld [vmem:[%s1079 + $0x78] sm:$0xf]
      %v1111 = vld [vmem:[%s1079 + $0x7c] sm:$0xf]
      %v1112 = vld [vmem:[%s1079 + $0x80] sm:$0x1]
      %v1113 = vld [vmem:[%s1079 + $0x84] sm:$0xf]
      %v1114 = vld [vmem:[%s1079 + $0x88] sm:$0xf]
      %v1115 = vld [vmem:[%s1079 + $0x8c] sm:$0x1]
      %v1116 = vld [vmem:[%s1079 + $0x90] sm:$0xf]
      %v1117 = vld [vmem:[%s1079 + $0x94] sm:$0xf]
      %v1118 = vld [vmem:[%s1079 + $0x98] sm:$0x1]
      %v1119 = vld [vmem:[%s1079 + $0x9c] sm:$0xf]
      %v1120 = vld [vmem:[%s1079 + $0xa0] sm:$0xf]
      %v1121 = vld [vmem:[%s1079 + $0xa4] sm:$0x1]
      %v1122 = vld [vmem:[%s1079 + $0xa8] sm:$0xf]
      %v1123 = vld [vmem:[%s1079 + $0xac] sm:$0xf]
      %v1124 = vld [vmem:[%s1079 + $0xb0] sm:$0x1]
      %v1125 = vld [vmem:[%s1079 + $0xb4] sm:$0xf]
      %v1126 = vld [vmem:[%s1079 + $0xb8] sm:$0xf]
      %v1127 = vld [vmem:[%s1079 + $0xbc] sm:$0x1]
      %v1129 = vshrl.u32 %v1080, 16
      %v1131 = vrot.slane %v1129, 4
      %v1132 = vshll.u32 %v1080, 16
      %v1134 = vrot.slane %v1132, 5
      %v1135 = vor.u32 %v1131, %v1134
      %v1136 = vrot.slane %v1135, 4
      %v1138 = vshll.u32 %v1081, 16
      %v1140 = vrot.slane %v1138, 5
      %v1141 = vsel %vm288, %v1136, %v1140
      %v1142 = vshrl.u32 %v1081, 16
      %v1144 = vrot.slane %v1142, 4
      %v1145 = vor.u32 %v1144, %v1140
      %v1146 = vrot.slane %v1145, 4
      %v1148 = vshll.u32 %v1082, 16
      %v1150 = vrot.slane %v1148, 5
      %v1151 = vsel %vm288, %v1146, %v1150
      %v1153 = vshrl.u32 %v1083, 16
      %v1155 = vrot.slane %v1153, 4
      %v1156 = vshll.u32 %v1083, 16
      %v1158 = vrot.slane %v1156, 5
      %v1159 = vor.u32 %v1155, %v1158
      %v1160 = vrot.slane %v1159, 4
      %v1162 = vshll.u32 %v1084, 16
      %v1164 = vrot.slane %v1162, 5
      %v1165 = vsel %vm288, %v1160, %v1164
      %v1166 = vshrl.u32 %v1084, 16
      %v1168 = vrot.slane %v1166, 4
      %v1169 = vor.u32 %v1168, %v1164
      %v1170 = vrot.slane %v1169, 4
      %v1172 = vshll.u32 %v1085, 16
      %v1174 = vrot.slane %v1172, 5
      %v1175 = vsel %vm288, %v1170, %v1174
      %v1177 = vshrl.u32 %v1086, 16
      %v1179 = vrot.slane %v1177, 4
      %v1180 = vshll.u32 %v1086, 16
      %v1182 = vrot.slane %v1180, 5
      %v1183 = vor.u32 %v1179, %v1182
      %v1184 = vrot.slane %v1183, 4
      %v1186 = vshll.u32 %v1087, 16
      %v1188 = vrot.slane %v1186, 5
      %v1189 = vsel %vm288, %v1184, %v1188
      %v1190 = vshrl.u32 %v1087, 16
      %v1192 = vrot.slane %v1190, 4
      %v1193 = vor.u32 %v1192, %v1188
      %v1194 = vrot.slane %v1193, 4
      %v1196 = vshll.u32 %v1088, 16
      %v1198 = vrot.slane %v1196, 5
      %v1199 = vsel %vm288, %v1194, %v1198
      %v1201 = vshrl.u32 %v1089, 16
      %v1203 = vrot.slane %v1201, 4
      %v1204 = vshll.u32 %v1089, 16
      %v1206 = vrot.slane %v1204, 5
      %v1207 = vor.u32 %v1203, %v1206
      %v1208 = vrot.slane %v1207, 4
      %v1210 = vshll.u32 %v1090, 16
      %v1212 = vrot.slane %v1210, 5
      %v1213 = vsel %vm288, %v1208, %v1212
      %v1214 = vshrl.u32 %v1090, 16
      %v1216 = vrot.slane %v1214, 4
      %v1217 = vor.u32 %v1216, %v1212
      %v1218 = vrot.slane %v1217, 4
      %v1220 = vshll.u32 %v1091, 16
      %v1222 = vrot.slane %v1220, 5
      %v1223 = vsel %vm288, %v1218, %v1222
      %v1225 = vshrl.u32 %v1092, 16
      %v1227 = vrot.slane %v1225, 4
      %v1228 = vshll.u32 %v1092, 16
      %v1230 = vrot.slane %v1228, 5
      %v1231 = vor.u32 %v1227, %v1230
      %v1232 = vrot.slane %v1231, 4
      %v1234 = vshll.u32 %v1093, 16
      %v1236 = vrot.slane %v1234, 5
      %v1237 = vsel %vm288, %v1232, %v1236
      %v1238 = vshrl.u32 %v1093, 16
      %v1240 = vrot.slane %v1238, 4
      %v1241 = vor.u32 %v1240, %v1236
      %v1242 = vrot.slane %v1241, 4
      %v1244 = vshll.u32 %v1094, 16
      %v1246 = vrot.slane %v1244, 5
      %v1247 = vsel %vm288, %v1242, %v1246
      %v1249 = vshrl.u32 %v1095, 16
      %v1251 = vrot.slane %v1249, 4
      %v1252 = vshll.u32 %v1095, 16
      %v1254 = vrot.slane %v1252, 5
      %v1255 = vor.u32 %v1251, %v1254
      %v1256 = vrot.slane %v1255, 4
      %v1258 = vshll.u32 %v1096, 16
      %v1260 = vrot.slane %v1258, 5
      %v1261 = vsel %vm288, %v1256, %v1260
      %v1262 = vshrl.u32 %v1096, 16
      %v1264 = vrot.slane %v1262, 4
      %v1265 = vor.u32 %v1264, %v1260
      %v1266 = vrot.slane %v1265, 4
      %v1268 = vshll.u32 %v1097, 16
      %v1270 = vrot.slane %v1268, 5
      %v1271 = vsel %vm288, %v1266, %v1270
      %v1273 = vshrl.u32 %v1098, 16
      %v1275 = vrot.slane %v1273, 4
      %v1276 = vshll.u32 %v1098, 16
      %v1278 = vrot.slane %v1276, 5
      %v1279 = vor.u32 %v1275, %v1278
      %v1280 = vrot.slane %v1279, 4
      %v1282 = vshll.u32 %v1099, 16
      %v1284 = vrot.slane %v1282, 5
      %v1285 = vsel %vm288, %v1280, %v1284
      %v1286 = vshrl.u32 %v1099, 16
      %v1288 = vrot.slane %v1286, 4
      %v1289 = vor.u32 %v1288, %v1284
      %v1290 = vrot.slane %v1289, 4
      %v1292 = vshll.u32 %v1100, 16
      %v1294 = vrot.slane %v1292, 5
      %v1295 = vsel %vm288, %v1290, %v1294
      %v1297 = vshrl.u32 %v1101, 16
      %v1299 = vrot.slane %v1297, 4
      %v1300 = vshll.u32 %v1101, 16
      %v1302 = vrot.slane %v1300, 5
      %v1303 = vor.u32 %v1299, %v1302
      %v1304 = vrot.slane %v1303, 4
      %v1306 = vshll.u32 %v1102, 16
      %v1308 = vrot.slane %v1306, 5
      %v1309 = vsel %vm288, %v1304, %v1308
      %v1310 = vshrl.u32 %v1102, 16
      %v1312 = vrot.slane %v1310, 4
      %v1313 = vor.u32 %v1312, %v1308
      %v1314 = vrot.slane %v1313, 4
      %v1316 = vshll.u32 %v1103, 16
      %v1318 = vrot.slane %v1316, 5
      %v1319 = vsel %vm288, %v1314, %v1318
      %v1321 = vshrl.u32 %v1104, 16
      %v1323 = vrot.slane %v1321, 4
      %v1324 = vshll.u32 %v1104, 16
      %v1326 = vrot.slane %v1324, 5
      %v1327 = vor.u32 %v1323, %v1326
      %v1328 = vrot.slane %v1327, 4
      %v1330 = vshll.u32 %v1105, 16
      %v1332 = vrot.slane %v1330, 5
      %v1333 = vsel %vm288, %v1328, %v1332
      %v1334 = vshrl.u32 %v1105, 16
      %v1336 = vrot.slane %v1334, 4
      %v1337 = vor.u32 %v1336, %v1332
      %v1338 = vrot.slane %v1337, 4
      %v1340 = vshll.u32 %v1106, 16
      %v1342 = vrot.slane %v1340, 5
      %v1343 = vsel %vm288, %v1338, %v1342
      %v1345 = vshrl.u32 %v1107, 16
      %v1347 = vrot.slane %v1345, 4
      %v1348 = vshll.u32 %v1107, 16
      %v1350 = vrot.slane %v1348, 5
      %v1351 = vor.u32 %v1347, %v1350
      %v1352 = vrot.slane %v1351, 4
      %v1354 = vshll.u32 %v1108, 16
      %v1356 = vrot.slane %v1354, 5
      %v1357 = vsel %vm288, %v1352, %v1356
      %v1358 = vshrl.u32 %v1108, 16
      %v1360 = vrot.slane %v1358, 4
      %v1361 = vor.u32 %v1360, %v1356
      %v1362 = vrot.slane %v1361, 4
      %v1364 = vshll.u32 %v1109, 16
      %v1366 = vrot.slane %v1364, 5
      %v1367 = vsel %vm288, %v1362, %v1366
      %v1369 = vshrl.u32 %v1110, 16
      %v1371 = vrot.slane %v1369, 4
      %v1372 = vshll.u32 %v1110, 16
      %v1374 = vrot.slane %v1372, 5
      %v1375 = vor.u32 %v1371, %v1374
      %v1376 = vrot.slane %v1375, 4
      %v1378 = vshll.u32 %v1111, 16
      %v1380 = vrot.slane %v1378, 5
      %v1381 = vsel %vm288, %v1376, %v1380
      %v1382 = vshrl.u32 %v1111, 16
      %v1384 = vrot.slane %v1382, 4
      %v1385 = vor.u32 %v1384, %v1380
      %v1386 = vrot.slane %v1385, 4
      %v1388 = vshll.u32 %v1112, 16
      %v1390 = vrot.slane %v1388, 5
      %v1391 = vsel %vm288, %v1386, %v1390
      %v1393 = vshrl.u32 %v1113, 16
      %v1395 = vrot.slane %v1393, 4
      %v1396 = vshll.u32 %v1113, 16
      %v1398 = vrot.slane %v1396, 5
      %v1399 = vor.u32 %v1395, %v1398
      %v1400 = vrot.slane %v1399, 4
      %v1402 = vshll.u32 %v1114, 16
      %v1404 = vrot.slane %v1402, 5
      %v1405 = vsel %vm288, %v1400, %v1404
      %v1406 = vshrl.u32 %v1114, 16
      %v1408 = vrot.slane %v1406, 4
      %v1409 = vor.u32 %v1408, %v1404
      %v1410 = vrot.slane %v1409, 4
      %v1412 = vshll.u32 %v1115, 16
      %v1414 = vrot.slane %v1412, 5
      %v1415 = vsel %vm288, %v1410, %v1414
      %v1417 = vshrl.u32 %v1116, 16
      %v1419 = vrot.slane %v1417, 4
      %v1420 = vshll.u32 %v1116, 16
      %v1422 = vrot.slane %v1420, 5
      %v1423 = vor.u32 %v1419, %v1422
      %v1424 = vrot.slane %v1423, 4
      %v1426 = vshll.u32 %v1117, 16
      %v1428 = vrot.slane %v1426, 5
      %v1429 = vsel %vm288, %v1424, %v1428
      %v1430 = vshrl.u32 %v1117, 16
      %v1432 = vrot.slane %v1430, 4
      %v1433 = vor.u32 %v1432, %v1428
      %v1434 = vrot.slane %v1433, 4
      %v1436 = vshll.u32 %v1118, 16
      %v1438 = vrot.slane %v1436, 5
      %v1439 = vsel %vm288, %v1434, %v1438
      %v1441 = vshrl.u32 %v1119, 16
      %v1443 = vrot.slane %v1441, 4
      %v1444 = vshll.u32 %v1119, 16
      %v1446 = vrot.slane %v1444, 5
      %v1447 = vor.u32 %v1443, %v1446
      %v1448 = vrot.slane %v1447, 4
      %v1450 = vshll.u32 %v1120, 16
      %v1452 = vrot.slane %v1450, 5
      %v1453 = vsel %vm288, %v1448, %v1452
      %v1454 = vshrl.u32 %v1120, 16
      %v1456 = vrot.slane %v1454, 4
      %v1457 = vor.u32 %v1456, %v1452
      %v1458 = vrot.slane %v1457, 4
      %v1460 = vshll.u32 %v1121, 16
      %v1462 = vrot.slane %v1460, 5
      %v1463 = vsel %vm288, %v1458, %v1462
      %v1465 = vshrl.u32 %v1122, 16
      %v1467 = vrot.slane %v1465, 4
      %v1468 = vshll.u32 %v1122, 16
      %v1470 = vrot.slane %v1468, 5
      %v1471 = vor.u32 %v1467, %v1470
      %v1472 = vrot.slane %v1471, 4
      %v1474 = vshll.u32 %v1123, 16
      %v1476 = vrot.slane %v1474, 5
      %v1477 = vsel %vm288, %v1472, %v1476
      %v1478 = vshrl.u32 %v1123, 16
      %v1480 = vrot.slane %v1478, 4
      %v1481 = vor.u32 %v1480, %v1476
      %v1482 = vrot.slane %v1481, 4
      %v1484 = vshll.u32 %v1124, 16
      %v1486 = vrot.slane %v1484, 5
      %v1487 = vsel %vm288, %v1482, %v1486
      %v1489 = vshrl.u32 %v1125, 16
      %v1491 = vrot.slane %v1489, 4
      %v1492 = vshll.u32 %v1125, 16
      %v1494 = vrot.slane %v1492, 5
      %v1495 = vor.u32 %v1491, %v1494
      %v1496 = vrot.slane %v1495, 4
      %v1498 = vshll.u32 %v1126, 16
      %v1500 = vrot.slane %v1498, 5
      %v1501 = vsel %vm288, %v1496, %v1500
      %v1502 = vshrl.u32 %v1126, 16
      %v1504 = vrot.slane %v1502, 4
      %v1505 = vor.u32 %v1504, %v1500
      %v1506 = vrot.slane %v1505, 4
      %v1508 = vshll.u32 %v1127, 16
      %v1510 = vrot.slane %v1508, 5
      %v1511 = vsel %vm288, %v1506, %v1510
      %v1560 = vrot.slane %v1080, 5
      %v1561 = vrot.slane %v1560, 4
      %v1562 = vrot.slane %v1081, 5
      %v1563 = vsel %vm723, %v1561, %v1562
      %v1564 = vrot.slane %v1562, 4
      %v1565 = vrot.slane %v1082, 5
      %v1566 = vsel %vm723, %v1564, %v1565
      %v1567 = vrot.slane %v1083, 5
      %v1568 = vrot.slane %v1567, 4
      %v1569 = vrot.slane %v1084, 5
      %v1570 = vsel %vm723, %v1568, %v1569
      %v1571 = vrot.slane %v1569, 4
      %v1572 = vrot.slane %v1085, 5
      %v1573 = vsel %vm723, %v1571, %v1572
      %v1574 = vrot.slane %v1086, 5
      %v1575 = vrot.slane %v1574, 4
      %v1576 = vrot.slane %v1087, 5
      %v1577 = vsel %vm723, %v1575, %v1576
      %v1578 = vrot.slane %v1576, 4
      %v1579 = vrot.slane %v1088, 5
      %v1580 = vsel %vm723, %v1578, %v1579
      %v1581 = vrot.slane %v1089, 5
      %v1582 = vrot.slane %v1581, 4
      %v1583 = vrot.slane %v1090, 5
      %v1584 = vsel %vm723, %v1582, %v1583
      %v1585 = vrot.slane %v1583, 4
      %v1586 = vrot.slane %v1091, 5
      %v1587 = vsel %vm723, %v1585, %v1586
      %v1588 = vrot.slane %v1092, 5
      %v1589 = vrot.slane %v1588, 4
      %v1590 = vrot.slane %v1093, 5
      %v1591 = vsel %vm723, %v1589, %v1590
      %v1592 = vrot.slane %v1590, 4
      %v1593 = vrot.slane %v1094, 5
      %v1594 = vsel %vm723, %v1592, %v1593
      %v1595 = vrot.slane %v1095, 5
      %v1596 = vrot.slane %v1595, 4
      %v1597 = vrot.slane %v1096, 5
      %v1598 = vsel %vm723, %v1596, %v1597
      %v1599 = vrot.slane %v1597, 4
      %v1600 = vrot.slane %v1097, 5
      %v1601 = vsel %vm723, %v1599, %v1600
      %v1602 = vrot.slane %v1098, 5
      %v1603 = vrot.slane %v1602, 4
      %v1604 = vrot.slane %v1099, 5
      %v1605 = vsel %vm723, %v1603, %v1604
      %v1606 = vrot.slane %v1604, 4
      %v1607 = vrot.slane %v1100, 5
      %v1608 = vsel %vm723, %v1606, %v1607
      %v1609 = vrot.slane %v1101, 5
      %v1610 = vrot.slane %v1609, 4
      %v1611 = vrot.slane %v1102, 5
      %v1612 = vsel %vm723, %v1610, %v1611
      %v1613 = vrot.slane %v1611, 4
      %v1614 = vrot.slane %v1103, 5
      %v1615 = vsel %vm723, %v1613, %v1614
      %v1616 = vrot.slane %v1104, 5
      %v1617 = vrot.slane %v1616, 4
      %v1618 = vrot.slane %v1105, 5
      %v1619 = vsel %vm723, %v1617, %v1618
      %v1620 = vrot.slane %v1618, 4
      %v1621 = vrot.slane %v1106, 5
      %v1622 = vsel %vm723, %v1620, %v1621
      %v1623 = vrot.slane %v1107, 5
      %v1624 = vrot.slane %v1623, 4
      %v1625 = vrot.slane %v1108, 5
      %v1626 = vsel %vm723, %v1624, %v1625
      %v1627 = vrot.slane %v1625, 4
      %v1628 = vrot.slane %v1109, 5
      %v1629 = vsel %vm723, %v1627, %v1628
      %v1630 = vrot.slane %v1110, 5
      %v1631 = vrot.slane %v1630, 4
      %v1632 = vrot.slane %v1111, 5
      %v1633 = vsel %vm723, %v1631, %v1632
      %v1634 = vrot.slane %v1632, 4
      %v1635 = vrot.slane %v1112, 5
      %v1636 = vsel %vm723, %v1634, %v1635
      %v1637 = vrot.slane %v1113, 5
      %v1638 = vrot.slane %v1637, 4
      %v1639 = vrot.slane %v1114, 5
      %v1640 = vsel %vm723, %v1638, %v1639
      %v1641 = vrot.slane %v1639, 4
      %v1642 = vrot.slane %v1115, 5
      %v1643 = vsel %vm723, %v1641, %v1642
      %v1644 = vrot.slane %v1116, 5
      %v1645 = vrot.slane %v1644, 4
      %v1646 = vrot.slane %v1117, 5
      %v1647 = vsel %vm723, %v1645, %v1646
      %v1648 = vrot.slane %v1646, 4
      %v1649 = vrot.slane %v1118, 5
      %v1650 = vsel %vm723, %v1648, %v1649
      %v1651 = vrot.slane %v1119, 5
      %v1652 = vrot.slane %v1651, 4
      %v1653 = vrot.slane %v1120, 5
      %v1654 = vsel %vm723, %v1652, %v1653
      %v1655 = vrot.slane %v1653, 4
      %v1656 = vrot.slane %v1121, 5
      %v1657 = vsel %vm723, %v1655, %v1656
      %v1658 = vrot.slane %v1122, 5
      %v1659 = vrot.slane %v1658, 4
      %v1660 = vrot.slane %v1123, 5
      %v1661 = vsel %vm723, %v1659, %v1660
      %v1662 = vrot.slane %v1660, 4
      %v1663 = vrot.slane %v1124, 5
      %v1664 = vsel %vm723, %v1662, %v1663
      %v1665 = vrot.slane %v1125, 5
      %v1666 = vrot.slane %v1665, 4
      %v1667 = vrot.slane %v1126, 5
      %v1668 = vsel %vm723, %v1666, %v1667
      %v1669 = vrot.slane %v1667, 4
      %v1670 = vrot.slane %v1127, 5
      %v1671 = vsel %vm723, %v1669, %v1670
      %v1672 = vunpack.c.l.b16 %v1080
      %v1673 = vunpack.c.l.b16 %v1081
      %v1674 = vunpack.c.l.b16 %v1083
      %v1675 = vunpack.c.l.b16 %v1084
      %v1676 = vunpack.c.l.b16 %v1086
      %v1677 = vunpack.c.l.b16 %v1087
      %v1678 = vunpack.c.l.b16 %v1089
      %v1679 = vunpack.c.l.b16 %v1090
      %v1680 = vunpack.c.l.b16 %v1092
      %v1681 = vunpack.c.l.b16 %v1093
      %v1682 = vunpack.c.l.b16 %v1095
      %v1683 = vunpack.c.l.b16 %v1096
      %v1684 = vunpack.c.l.b16 %v1098
      %v1685 = vunpack.c.l.b16 %v1099
      %v1686 = vunpack.c.l.b16 %v1101
      %v1687 = vunpack.c.l.b16 %v1102
      %v1688 = vunpack.c.l.b16 %v1104
      %v1689 = vunpack.c.l.b16 %v1105
      %v1690 = vunpack.c.l.b16 %v1107
      %v1691 = vunpack.c.l.b16 %v1108
      %v1692 = vunpack.c.l.b16 %v1110
      %v1693 = vunpack.c.l.b16 %v1111
      %v1694 = vunpack.c.l.b16 %v1113
      %v1695 = vunpack.c.l.b16 %v1114
      %v1696 = vunpack.c.l.b16 %v1116
      %v1697 = vunpack.c.l.b16 %v1117
      %v1698 = vunpack.c.l.b16 %v1119
      %v1699 = vunpack.c.l.b16 %v1120
      %v1700 = vunpack.c.l.b16 %v1122
      %v1701 = vunpack.c.l.b16 %v1123
      %v1702 = vunpack.c.l.b16 %v1125
      %v1703 = vunpack.c.l.b16 %v1126
      %v1704 = vpack.c.b16 %v1673, %v1672
      %v1705 = vpack.c.b16 %v1675, %v1674
      %v1706 = vpack.c.b16 %v1677, %v1676
      %v1707 = vpack.c.b16 %v1679, %v1678
      %v1708 = vpack.c.b16 %v1681, %v1680
      %v1709 = vpack.c.b16 %v1683, %v1682
      %v1710 = vpack.c.b16 %v1685, %v1684
      %v1711 = vpack.c.b16 %v1687, %v1686
      %v1712 = vpack.c.b16 %v1689, %v1688
      %v1713 = vpack.c.b16 %v1691, %v1690
      %v1714 = vpack.c.b16 %v1693, %v1692
      %v1715 = vpack.c.b16 %v1695, %v1694
      %v1716 = vpack.c.b16 %v1697, %v1696
      %v1717 = vpack.c.b16 %v1699, %v1698
      %v1718 = vpack.c.b16 %v1701, %v1700
      %v1719 = vpack.c.b16 %v1703, %v1702
      %v1736 = vunpack.c.l.b16 %v1141
      %v1737 = vunpack.c.l.b16 %v1151
      %v1738 = vunpack.c.l.b16 %v1165
      %v1739 = vunpack.c.l.b16 %v1175
      %v1740 = vunpack.c.l.b16 %v1189
      %v1741 = vunpack.c.l.b16 %v1199
      %v1742 = vunpack.c.l.b16 %v1213
      %v1743 = vunpack.c.l.b16 %v1223
      %v1744 = vunpack.c.l.b16 %v1237
      %v1745 = vunpack.c.l.b16 %v1247
      %v1746 = vunpack.c.l.b16 %v1261
      %v1747 = vunpack.c.l.b16 %v1271
      %v1748 = vunpack.c.l.b16 %v1285
      %v1749 = vunpack.c.l.b16 %v1295
      %v1750 = vunpack.c.l.b16 %v1309
      %v1751 = vunpack.c.l.b16 %v1319
      %v1752 = vunpack.c.l.b16 %v1333
      %v1753 = vunpack.c.l.b16 %v1343
      %v1754 = vunpack.c.l.b16 %v1357
      %v1755 = vunpack.c.l.b16 %v1367
      %v1756 = vunpack.c.l.b16 %v1381
      %v1757 = vunpack.c.l.b16 %v1391
      %v1758 = vunpack.c.l.b16 %v1405
      %v1759 = vunpack.c.l.b16 %v1415
      %v1760 = vunpack.c.l.b16 %v1429
      %v1761 = vunpack.c.l.b16 %v1439
      %v1762 = vunpack.c.l.b16 %v1453
      %v1763 = vunpack.c.l.b16 %v1463
      %v1764 = vunpack.c.l.b16 %v1477
      %v1765 = vunpack.c.l.b16 %v1487
      %v1766 = vunpack.c.l.b16 %v1501
      %v1767 = vunpack.c.l.b16 %v1511
      %v1768 = vpack.c.b16 %v1737, %v1736
      %v1769 = vpack.c.b16 %v1739, %v1738
      %v1770 = vpack.c.b16 %v1741, %v1740
      %v1771 = vpack.c.b16 %v1743, %v1742
      %v1772 = vpack.c.b16 %v1745, %v1744
      %v1773 = vpack.c.b16 %v1747, %v1746
      %v1774 = vpack.c.b16 %v1749, %v1748
      %v1775 = vpack.c.b16 %v1751, %v1750
      %v1776 = vpack.c.b16 %v1753, %v1752
      %v1777 = vpack.c.b16 %v1755, %v1754
      %v1778 = vpack.c.b16 %v1757, %v1756
      %v1779 = vpack.c.b16 %v1759, %v1758
      %v1780 = vpack.c.b16 %v1761, %v1760
      %v1781 = vpack.c.b16 %v1763, %v1762
      %v1782 = vpack.c.b16 %v1765, %v1764
      %v1783 = vpack.c.b16 %v1767, %v1766
      %v1800 = vunpack.c.l.b16 %v1563
      %v1801 = vunpack.c.l.b16 %v1566
      %v1802 = vunpack.c.l.b16 %v1570
      %v1803 = vunpack.c.l.b16 %v1573
      %v1804 = vunpack.c.l.b16 %v1577
      %v1805 = vunpack.c.l.b16 %v1580
      %v1806 = vunpack.c.l.b16 %v1584
      %v1807 = vunpack.c.l.b16 %v1587
      %v1808 = vunpack.c.l.b16 %v1591
      %v1809 = vunpack.c.l.b16 %v1594
      %v1810 = vunpack.c.l.b16 %v1598
      %v1811 = vunpack.c.l.b16 %v1601
      %v1812 = vunpack.c.l.b16 %v1605
      %v1813 = vunpack.c.l.b16 %v1608
      %v1814 = vunpack.c.l.b16 %v1612
      %v1815 = vunpack.c.l.b16 %v1615
      %v1816 = vunpack.c.l.b16 %v1619
      %v1817 = vunpack.c.l.b16 %v1622
      %v1818 = vunpack.c.l.b16 %v1626
      %v1819 = vunpack.c.l.b16 %v1629
      %v1820 = vunpack.c.l.b16 %v1633
      %v1821 = vunpack.c.l.b16 %v1636
      %v1822 = vunpack.c.l.b16 %v1640
      %v1823 = vunpack.c.l.b16 %v1643
      %v1824 = vunpack.c.l.b16 %v1647
      %v1825 = vunpack.c.l.b16 %v1650
      %v1826 = vunpack.c.l.b16 %v1654
      %v1827 = vunpack.c.l.b16 %v1657
      %v1828 = vunpack.c.l.b16 %v1661
      %v1829 = vunpack.c.l.b16 %v1664
      %v1830 = vunpack.c.l.b16 %v1668
      %v1831 = vunpack.c.l.b16 %v1671
      %v1832 = vpack.c.b16 %v1801, %v1800
      %v1833 = vpack.c.b16 %v1803, %v1802
      %v1834 = vpack.c.b16 %v1805, %v1804
      %v1835 = vpack.c.b16 %v1807, %v1806
      %v1836 = vpack.c.b16 %v1809, %v1808
      %v1837 = vpack.c.b16 %v1811, %v1810
      %v1838 = vpack.c.b16 %v1813, %v1812
      %v1839 = vpack.c.b16 %v1815, %v1814
      %v1840 = vpack.c.b16 %v1817, %v1816
      %v1841 = vpack.c.b16 %v1819, %v1818
      %v1842 = vpack.c.b16 %v1821, %v1820
      %v1843 = vpack.c.b16 %v1823, %v1822
      %v1844 = vpack.c.b16 %v1825, %v1824
      %v1845 = vpack.c.b16 %v1827, %v1826
      %v1846 = vpack.c.b16 %v1829, %v1828
      %v1847 = vpack.c.b16 %v1831, %v1830
      %v1864 = vld [vmem:[%s1 + $0xc0] sm:$0xf]
      %v1865 = vld [vmem:[%s1 + $0xc4] sm:$0xf]
      %v1866 = vld [vmem:[%s1 + $0xc8] sm:$0xf]
      %v1867 = vld [vmem:[%s1 + $0xcc] sm:$0xf]
      %v1868 = vld [vmem:[%s1 + $0xd0] sm:$0xf]
      %v1869 = vld [vmem:[%s1 + $0xd4] sm:$0xf]
      %v1870 = vld [vmem:[%s1 + $0xd8] sm:$0xf]
      %v1871 = vld [vmem:[%s1 + $0xdc] sm:$0xf]
      %v1872 = vld [vmem:[%s1 + $0xe0] sm:$0xf]
      %v1873 = vld [vmem:[%s1 + $0xe4] sm:$0xf]
      %v1874 = vld [vmem:[%s1 + $0xe8] sm:$0xf]
      %v1875 = vld [vmem:[%s1 + $0xec] sm:$0xf]
      %v1876 = vld [vmem:[%s1 + $0xf0] sm:$0xf]
      %v1877 = vld [vmem:[%s1 + $0xf4] sm:$0xf]
      %v1878 = vld [vmem:[%s1 + $0xf8] sm:$0xf]
      %v1879 = vld [vmem:[%s1 + $0xfc] sm:$0xf]
      %v1880 = vld [vmem:[%s1 + $0x100] sm:$0xf]
      %v1881 = vld [vmem:[%s1 + $0x104] sm:$0xf]
      %v1882 = vld [vmem:[%s1 + $0x108] sm:$0xf]
      %v1883 = vld [vmem:[%s1 + $0x10c] sm:$0xf]
      %v1884 = vld [vmem:[%s1 + $0x110] sm:$0xf]
      %v1885 = vld [vmem:[%s1 + $0x114] sm:$0xf]
      %v1886 = vld [vmem:[%s1 + $0x118] sm:$0xf]
      %v1887 = vld [vmem:[%s1 + $0x11c] sm:$0xf]
      %v1888 = vld [vmem:[%s1 + $0x120] sm:$0xf]
      %v1889 = vld [vmem:[%s1 + $0x124] sm:$0xf]
      %v1890 = vld [vmem:[%s1 + $0x128] sm:$0xf]
      %v1891 = vld [vmem:[%s1 + $0x12c] sm:$0xf]
      %v1892 = vld [vmem:[%s1 + $0x130] sm:$0xf]
      %v1893 = vld [vmem:[%s1 + $0x134] sm:$0xf]
      %v1894 = vld [vmem:[%s1 + $0x138] sm:$0xf]
      %v1895 = vld [vmem:[%s1 + $0x13c] sm:$0xf]
      %v1896 = vld [vmem:[%s1 + $0x140] sm:$0xf]
      %v1897 = vld [vmem:[%s1 + $0x144] sm:$0xf]
      %v1898 = vld [vmem:[%s1 + $0x148] sm:$0xf]
      %v1899 = vld [vmem:[%s1 + $0x14c] sm:$0xf]
      %v1900 = vld [vmem:[%s1 + $0x150] sm:$0xf]
      %v1901 = vld [vmem:[%s1 + $0x154] sm:$0xf]
      %v1902 = vld [vmem:[%s1 + $0x158] sm:$0xf]
      %v1903 = vld [vmem:[%s1 + $0x15c] sm:$0xf]
      %v1904 = vld [vmem:[%s1 + $0x160] sm:$0xf]
      %v1905 = vld [vmem:[%s1 + $0x164] sm:$0xf]
      %v1906 = vld [vmem:[%s1 + $0x168] sm:$0xf]
      %v1907 = vld [vmem:[%s1 + $0x16c] sm:$0xf]
      %v1908 = vld [vmem:[%s1 + $0x170] sm:$0xf]
      %v1909 = vld [vmem:[%s1 + $0x174] sm:$0xf]
      %v1910 = vld [vmem:[%s1 + $0x178] sm:$0xf]
      %v1911 = vld [vmem:[%s1 + $0x17c] sm:$0xf]
      %v1960 = vunpack.c.l.b16 %v1864
      %v1961 = vunpack.c.l.b16 %v1865
      %v1962 = vunpack.c.l.b16 %v1866
      %v1963 = vunpack.c.l.b16 %v1867
      %v1964 = vunpack.c.l.b16 %v1868
      %v1965 = vunpack.c.l.b16 %v1869
      %v1966 = vunpack.c.l.b16 %v1870
      %v1967 = vunpack.c.l.b16 %v1871
      %v1968 = vunpack.c.l.b16 %v1872
      %v1969 = vunpack.c.l.b16 %v1873
      %v1970 = vunpack.c.l.b16 %v1874
      %v1971 = vunpack.c.l.b16 %v1875
      %v1972 = vunpack.c.l.b16 %v1876
      %v1973 = vunpack.c.l.b16 %v1877
      %v1974 = vunpack.c.l.b16 %v1878
      %v1975 = vunpack.c.l.b16 %v1879
      %v1976 = vunpack.c.l.b16 %v1880
      %v1977 = vunpack.c.l.b16 %v1881
      %v1978 = vunpack.c.l.b16 %v1882
      %v1979 = vunpack.c.l.b16 %v1883
      %v1980 = vunpack.c.l.b16 %v1884
      %v1981 = vunpack.c.l.b16 %v1885
      %v1982 = vunpack.c.l.b16 %v1886
      %v1983 = vunpack.c.l.b16 %v1887
      %v1984 = vunpack.c.l.b16 %v1888
      %v1985 = vunpack.c.l.b16 %v1889
      %v1986 = vunpack.c.l.b16 %v1890
      %v1987 = vunpack.c.l.b16 %v1891
      %v1988 = vunpack.c.l.b16 %v1892
      %v1989 = vunpack.c.l.b16 %v1893
      %v1990 = vunpack.c.l.b16 %v1894
      %v1991 = vunpack.c.l.b16 %v1895
      %v1992 = vunpack.c.l.b16 %v1896
      %v1993 = vunpack.c.l.b16 %v1897
      %v1994 = vunpack.c.l.b16 %v1898
      %v1995 = vunpack.c.l.b16 %v1899
      %v1996 = vunpack.c.l.b16 %v1900
      %v1997 = vunpack.c.l.b16 %v1901
      %v1998 = vunpack.c.l.b16 %v1902
      %v1999 = vunpack.c.l.b16 %v1903
      %v2000 = vunpack.c.l.b16 %v1904
      %v2001 = vunpack.c.l.b16 %v1905
      %v2002 = vunpack.c.l.b16 %v1906
      %v2003 = vunpack.c.l.b16 %v1907
      %v2004 = vunpack.c.l.b16 %v1908
      %v2005 = vunpack.c.l.b16 %v1909
      %v2006 = vunpack.c.l.b16 %v1910
      %v2007 = vunpack.c.l.b16 %v1911
      %v2008 = vpack.c.b16 %v1961, %v1960
      %v2009 = vpack.c.b16 %v1963, %v1962
      %v2010 = vpack.c.b16 %v1965, %v1964
      %v2011 = vpack.c.b16 %v1967, %v1966
      %v2012 = vpack.c.b16 %v1969, %v1968
      %v2013 = vpack.c.b16 %v1971, %v1970
      %v2014 = vpack.c.b16 %v1973, %v1972
      %v2015 = vpack.c.b16 %v1975, %v1974
      %v2016 = vpack.c.b16 %v1977, %v1976
      %v2017 = vpack.c.b16 %v1979, %v1978
      %v2018 = vpack.c.b16 %v1981, %v1980
      %v2019 = vpack.c.b16 %v1983, %v1982
      %v2020 = vpack.c.b16 %v1985, %v1984
      %v2021 = vpack.c.b16 %v1987, %v1986
      %v2022 = vpack.c.b16 %v1989, %v1988
      %v2023 = vpack.c.b16 %v1991, %v1990
      %v2024 = vpack.c.b16 %v1993, %v1992
      %v2025 = vpack.c.b16 %v1995, %v1994
      %v2026 = vpack.c.b16 %v1997, %v1996
      %v2027 = vpack.c.b16 %v1999, %v1998
      %v2028 = vpack.c.b16 %v2001, %v2000
      %v2029 = vpack.c.b16 %v2003, %v2002
      %v2030 = vpack.c.b16 %v2005, %v2004
      %v2031 = vpack.c.b16 %v2007, %v2006
      %2056 = vmatprep.subr.bf16.mxu0 0
      %2057 = vmatpush1.bf16.msra.mxu0 %v2015
      %2058 = vmatprep.subr.bf16.mxu0 0
      %2059 = vmatpush1.bf16.msra.mxu0 %v2014
      %2060 = vmatprep.subr.bf16.mxu0 0
      %2061 = vmatpush1.bf16.msra.mxu0 %v2013
      %2062 = vmatprep.subr.bf16.mxu0 0
      %2063 = vmatpush1.bf16.msra.mxu0 %v2012
      %2064 = vmatprep.subr.bf16.mxu0 0
      %2065 = vmatpush1.bf16.msra.mxu0 %v2011
      %2066 = vmatprep.subr.bf16.mxu0 0
      %2067 = vmatpush1.bf16.msra.mxu0 %v2010
      %2068 = vmatprep.subr.bf16.mxu0 0
      %2069 = vmatpush1.bf16.msra.mxu0 %v2009
      %2070 = vmatprep.subr.bf16.mxu0 0
      %2071 = vmatpush1.bf16.msra.mxu0 %v2008
      %2072 = vmatprep.subr.bf16.mxu0 0
      %2073 = vmatpush2.bf16.msra.mxu0 %v2023
      %2074 = vmatprep.subr.bf16.mxu0 0
      %2075 = vmatpush2.bf16.msra.mxu0 %v2022
      %2076 = vmatprep.subr.bf16.mxu0 0
      %2077 = vmatpush2.bf16.msra.mxu0 %v2021
      %2078 = vmatprep.subr.bf16.mxu0 0
      %2079 = vmatpush2.bf16.msra.mxu0 %v2020
      %2080 = vmatprep.subr.bf16.mxu0 0
      %2081 = vmatpush2.bf16.msra.mxu0 %v2019
      %2082 = vmatprep.subr.bf16.mxu0 0
      %2083 = vmatpush2.bf16.msra.mxu0 %v2018
      %2084 = vmatprep.subr.bf16.mxu0 0
      %2085 = vmatpush2.bf16.msra.mxu0 %v2017
      %2086 = vmatprep.subr.bf16.mxu0 0
      %2087 = vmatpush2.bf16.msra.mxu0 %v2016
      %2088 = vmatprep.mubr.bf16.mxu0 %v1768
      %2089 = vmatmul.mubr.bf16.gmra.mxu0 %v1704
      %v2090 = vpop.f32.mrf.mxu0
      %v2091 = vadd.f32 0.0, %v2090
      %v2092 = vpop.f32.mrf.mxu0
      %v2093 = vpop.f32.mrf.mxu0
      %v2094 = vadd.f32 0.0, %v2093
      %v2095 = vpop.f32.mrf.mxu0
      %2096 = vmatprep.mubr.bf16.mxu0 %v1769
      %2097 = vmatmul.mubr.bf16.gmra.mxu0 %v1705
      %v2098 = vpop.f32.mrf.mxu0
      %v2099 = vadd.f32 0.0, %v2098
      %v2100 = vpop.f32.mrf.mxu0
      %v2101 = vpop.f32.mrf.mxu0
      %v2102 = vadd.f32 0.0, %v2101
      %v2103 = vpop.f32.mrf.mxu0
      %2104 = vmatprep.mubr.bf16.mxu0 %v1770
      %2105 = vmatmul.mubr.bf16.gmra.mxu0 %v1706
      %v2106 = vpop.f32.mrf.mxu0
      %v2107 = vadd.f32 0.0, %v2106
      %v2108 = vpop.f32.mrf.mxu0
      %v2109 = vpop.f32.mrf.mxu0
      %v2110 = vadd.f32 0.0, %v2109
      %v2111 = vpop.f32.mrf.mxu0
      %2112 = vmatprep.mubr.bf16.mxu0 %v1771
      %2113 = vmatmul.mubr.bf16.gmra.mxu0 %v1707
      %v2114 = vpop.f32.mrf.mxu0
      %v2115 = vadd.f32 0.0, %v2114
      %v2116 = vpop.f32.mrf.mxu0
      %v2117 = vpop.f32.mrf.mxu0
      %v2118 = vadd.f32 0.0, %v2117
      %v2119 = vpop.f32.mrf.mxu0
      %2120 = vmatprep.mubr.bf16.mxu0 %v1772
      %2121 = vmatmul.mubr.bf16.gmra.mxu0 %v1708
      %v2122 = vpop.f32.mrf.mxu0
      %v2123 = vadd.f32 0.0, %v2122
      %v2124 = vpop.f32.mrf.mxu0
      %v2125 = vpop.f32.mrf.mxu0
      %v2126 = vadd.f32 0.0, %v2125
      %v2127 = vpop.f32.mrf.mxu0
      %2128 = vmatprep.mubr.bf16.mxu0 %v1773
      %2129 = vmatmul.mubr.bf16.gmra.mxu0 %v1709
      %v2130 = vpop.f32.mrf.mxu0
      %v2131 = vadd.f32 0.0, %v2130
      %v2132 = vpop.f32.mrf.mxu0
      %v2133 = vpop.f32.mrf.mxu0
      %v2134 = vadd.f32 0.0, %v2133
      %v2135 = vpop.f32.mrf.mxu0
      %2136 = vmatprep.mubr.bf16.mxu0 %v1774
      %2137 = vmatmul.mubr.bf16.gmra.mxu0 %v1710
      %v2138 = vpop.f32.mrf.mxu0
      %v2139 = vadd.f32 0.0, %v2138
      %v2140 = vpop.f32.mrf.mxu0
      %v2141 = vpop.f32.mrf.mxu0
      %v2142 = vadd.f32 0.0, %v2141
      %v2143 = vpop.f32.mrf.mxu0
      %2144 = vmatprep.mubr.bf16.mxu0 %v1775
      %2145 = vmatmul.mubr.bf16.gmra.mxu0 %v1711
      %v2146 = vpop.f32.mrf.mxu0
      %v2147 = vadd.f32 0.0, %v2146
      %v2148 = vpop.f32.mrf.mxu0
      %v2149 = vpop.f32.mrf.mxu0
      %v2150 = vadd.f32 0.0, %v2149
      %v2151 = vpop.f32.mrf.mxu0
      %2152 = vmatprep.mubr.bf16.mxu0 %v1776
      %2153 = vmatmul.mubr.bf16.gmra.mxu0 %v1712
      %v2154 = vpop.f32.mrf.mxu0
      %v2155 = vadd.f32 0.0, %v2154
      %v2156 = vpop.f32.mrf.mxu0
      %v2157 = vpop.f32.mrf.mxu0
      %v2158 = vadd.f32 0.0, %v2157
      %v2159 = vpop.f32.mrf.mxu0
      %2160 = vmatprep.mubr.bf16.mxu0 %v1777
      %2161 = vmatmul.mubr.bf16.gmra.mxu0 %v1713
      %v2162 = vpop.f32.mrf.mxu0
      %v2163 = vadd.f32 0.0, %v2162
      %v2164 = vpop.f32.mrf.mxu0
      %v2165 = vpop.f32.mrf.mxu0
      %v2166 = vadd.f32 0.0, %v2165
      %v2167 = vpop.f32.mrf.mxu0
      %2168 = vmatprep.mubr.bf16.mxu0 %v1778
      %2169 = vmatmul.mubr.bf16.gmra.mxu0 %v1714
      %v2170 = vpop.f32.mrf.mxu0
      %v2171 = vadd.f32 0.0, %v2170
      %v2172 = vpop.f32.mrf.mxu0
      %v2173 = vpop.f32.mrf.mxu0
      %v2174 = vadd.f32 0.0, %v2173
      %v2175 = vpop.f32.mrf.mxu0
      %2176 = vmatprep.mubr.bf16.mxu0 %v1779
      %2177 = vmatmul.mubr.bf16.gmra.mxu0 %v1715
      %v2178 = vpop.f32.mrf.mxu0
      %v2179 = vadd.f32 0.0, %v2178
      %v2180 = vpop.f32.mrf.mxu0
      %v2181 = vpop.f32.mrf.mxu0
      %v2182 = vadd.f32 0.0, %v2181
      %v2183 = vpop.f32.mrf.mxu0
      %2184 = vmatprep.mubr.bf16.mxu0 %v1780
      %2185 = vmatmul.mubr.bf16.gmra.mxu0 %v1716
      %v2186 = vpop.f32.mrf.mxu0
      %v2187 = vadd.f32 0.0, %v2186
      %v2188 = vpop.f32.mrf.mxu0
      %v2189 = vpop.f32.mrf.mxu0
      %v2190 = vadd.f32 0.0, %v2189
      %v2191 = vpop.f32.mrf.mxu0
      %2192 = vmatprep.mubr.bf16.mxu0 %v1781
      %2193 = vmatmul.mubr.bf16.gmra.mxu0 %v1717
      %v2194 = vpop.f32.mrf.mxu0
      %v2195 = vadd.f32 0.0, %v2194
      %v2196 = vpop.f32.mrf.mxu0
      %v2197 = vpop.f32.mrf.mxu0
      %v2198 = vadd.f32 0.0, %v2197
      %v2199 = vpop.f32.mrf.mxu0
      %2200 = vmatprep.mubr.bf16.mxu0 %v1782
      %2201 = vmatmul.mubr.bf16.gmra.mxu0 %v1718
      %v2202 = vpop.f32.mrf.mxu0
      %v2203 = vadd.f32 0.0, %v2202
      %v2204 = vpop.f32.mrf.mxu0
      %v2205 = vpop.f32.mrf.mxu0
      %v2206 = vadd.f32 0.0, %v2205
      %v2207 = vpop.f32.mrf.mxu0
      %2208 = vmatprep.mubr.bf16.mxu0 %v1783
      %2209 = vmatmul.mubr.bf16.gmra.mxu0 %v1719
      %v2210 = vpop.f32.mrf.mxu0
      %v2211 = vadd.f32 0.0, %v2210
      %v2212 = vpop.f32.mrf.mxu0
      %v2213 = vpop.f32.mrf.mxu0
      %v2214 = vadd.f32 0.0, %v2213
      %v2215 = vpop.f32.mrf.mxu0
      %2216 = vdwg.mxu0
      %2217 = vmatprep.subr.bf16.mxu0 0
      %2218 = vmatpush1.bf16.msra.mxu0 %v2031
      %2219 = vmatprep.subr.bf16.mxu0 0
      %2220 = vmatpush1.bf16.msra.mxu0 %v2030
      %2221 = vmatprep.subr.bf16.mxu0 0
      %2222 = vmatpush1.bf16.msra.mxu0 %v2029
      %2223 = vmatprep.subr.bf16.mxu0 0
      %2224 = vmatpush1.bf16.msra.mxu0 %v2028
      %2225 = vmatprep.subr.bf16.mxu0 0
      %2226 = vmatpush1.bf16.msra.mxu0 %v2027
      %2227 = vmatprep.subr.bf16.mxu0 0
      %2228 = vmatpush1.bf16.msra.mxu0 %v2026
      %2229 = vmatprep.subr.bf16.mxu0 0
      %2230 = vmatpush1.bf16.msra.mxu0 %v2025
      %2231 = vmatprep.subr.bf16.mxu0 0
      %2232 = vmatpush1.bf16.msra.mxu0 %v2024
      %2233 = vmatprep.subr.bf16.mxu0 0
      %2234 = vmatpush2.bf16.msra.mxu0 0
      %2235 = vmatprep.subr.bf16.mxu0 0
      %2236 = vmatpush2.bf16.msra.mxu0 0
      %2237 = vmatprep.subr.bf16.mxu0 0
      %2238 = vmatpush2.bf16.msra.mxu0 0
      %2239 = vmatprep.subr.bf16.mxu0 0
      %2240 = vmatpush2.bf16.msra.mxu0 0
      %2241 = vmatprep.subr.bf16.mxu0 0
      %2242 = vmatpush2.bf16.msra.mxu0 0
      %2243 = vmatprep.subr.bf16.mxu0 0
      %2244 = vmatpush2.bf16.msra.mxu0 0
      %2245 = vmatprep.subr.bf16.mxu0 0
      %2246 = vmatpush2.bf16.msra.mxu0 0
      %2247 = vmatprep.subr.bf16.mxu0 0
      %2248 = vmatpush2.bf16.msra.mxu0 0
      %2249 = vmatprep.mubr.bf16.mxu0 0
      %2250 = vmatmul.mubr.bf16.gmra.mxu0 %v1832
      %v2251 = vpop.f32.mrf.mxu0
      %v2252 = vadd.f32 %v2091, %v2251
      %v2253 = vpop.f32.mrf.mxu0
      %v2254 = vpop.f32.mrf.mxu0
      %v2255 = vadd.f32 %v2094, %v2254
      %v2256 = vpop.f32.mrf.mxu0
      %2257 = vmatprep.mubr.bf16.mxu0 0
      %2258 = vmatmul.mubr.bf16.gmra.mxu0 %v1833
      %v2259 = vpop.f32.mrf.mxu0
      %v2260 = vadd.f32 %v2099, %v2259
      %v2261 = vpop.f32.mrf.mxu0
      %v2262 = vpop.f32.mrf.mxu0
      %v2263 = vadd.f32 %v2102, %v2262
      %v2264 = vpop.f32.mrf.mxu0
      %2265 = vmatprep.mubr.bf16.mxu0 0
      %2266 = vmatmul.mubr.bf16.gmra.mxu0 %v1834
      %v2267 = vpop.f32.mrf.mxu0
      %v2268 = vadd.f32 %v2107, %v2267
      %v2269 = vpop.f32.mrf.mxu0
      %v2270 = vpop.f32.mrf.mxu0
      %v2271 = vadd.f32 %v2110, %v2270
      %v2272 = vpop.f32.mrf.mxu0
      %2273 = vmatprep.mubr.bf16.mxu0 0
      %2274 = vmatmul.mubr.bf16.gmra.mxu0 %v1835
      %v2275 = vpop.f32.mrf.mxu0
      %v2276 = vadd.f32 %v2115, %v2275
      %v2277 = vpop.f32.mrf.mxu0
      %v2278 = vpop.f32.mrf.mxu0
      %v2279 = vadd.f32 %v2118, %v2278
      %v2280 = vpop.f32.mrf.mxu0
      %2281 = vmatprep.mubr.bf16.mxu0 0
      %2282 = vmatmul.mubr.bf16.gmra.mxu0 %v1836
      %v2283 = vpop.f32.mrf.mxu0
      %v2284 = vadd.f32 %v2123, %v2283
      %v2285 = vpop.f32.mrf.mxu0
      %v2286 = vpop.f32.mrf.mxu0
      %v2287 = vadd.f32 %v2126, %v2286
      %v2288 = vpop.f32.mrf.mxu0
      %2289 = vmatprep.mubr.bf16.mxu0 0
      %2290 = vmatmul.mubr.bf16.gmra.mxu0 %v1837
      %v2291 = vpop.f32.mrf.mxu0
      %v2292 = vadd.f32 %v2131, %v2291
      %v2293 = vpop.f32.mrf.mxu0
      %v2294 = vpop.f32.mrf.mxu0
      %v2295 = vadd.f32 %v2134, %v2294
      %v2296 = vpop.f32.mrf.mxu0
      %2297 = vmatprep.mubr.bf16.mxu0 0
      %2298 = vmatmul.mubr.bf16.gmra.mxu0 %v1838
      %v2299 = vpop.f32.mrf.mxu0
      %v2300 = vadd.f32 %v2139, %v2299
      %v2301 = vpop.f32.mrf.mxu0
      %v2302 = vpop.f32.mrf.mxu0
      %v2303 = vadd.f32 %v2142, %v2302
      %v2304 = vpop.f32.mrf.mxu0
      %2305 = vmatprep.mubr.bf16.mxu0 0
      %2306 = vmatmul.mubr.bf16.gmra.mxu0 %v1839
      %v2307 = vpop.f32.mrf.mxu0
      %v2308 = vadd.f32 %v2147, %v2307
      %v2309 = vpop.f32.mrf.mxu0
      %v2310 = vpop.f32.mrf.mxu0
      %v2311 = vadd.f32 %v2150, %v2310
      %v2312 = vpop.f32.mrf.mxu0
      %2313 = vmatprep.mubr.bf16.mxu0 0
      %2314 = vmatmul.mubr.bf16.gmra.mxu0 %v1840
      %v2315 = vpop.f32.mrf.mxu0
      %v2316 = vadd.f32 %v2155, %v2315
      %v2317 = vpop.f32.mrf.mxu0
      %v2318 = vpop.f32.mrf.mxu0
      %v2319 = vadd.f32 %v2158, %v2318
      %v2320 = vpop.f32.mrf.mxu0
      %2321 = vmatprep.mubr.bf16.mxu0 0
      %2322 = vmatmul.mubr.bf16.gmra.mxu0 %v1841
      %v2323 = vpop.f32.mrf.mxu0
      %v2324 = vadd.f32 %v2163, %v2323
      %v2325 = vpop.f32.mrf.mxu0
      %v2326 = vpop.f32.mrf.mxu0
      %v2327 = vadd.f32 %v2166, %v2326
      %v2328 = vpop.f32.mrf.mxu0
      %2329 = vmatprep.mubr.bf16.mxu0 0
      %2330 = vmatmul.mubr.bf16.gmra.mxu0 %v1842
      %v2331 = vpop.f32.mrf.mxu0
      %v2332 = vadd.f32 %v2171, %v2331
      %v2333 = vpop.f32.mrf.mxu0
      %v2334 = vpop.f32.mrf.mxu0
      %v2335 = vadd.f32 %v2174, %v2334
      %v2336 = vpop.f32.mrf.mxu0
      %2337 = vmatprep.mubr.bf16.mxu0 0
      %2338 = vmatmul.mubr.bf16.gmra.mxu0 %v1843
      %v2339 = vpop.f32.mrf.mxu0
      %v2340 = vadd.f32 %v2179, %v2339
      %v2341 = vpop.f32.mrf.mxu0
      %v2342 = vpop.f32.mrf.mxu0
      %v2343 = vadd.f32 %v2182, %v2342
      %v2344 = vpop.f32.mrf.mxu0
      %2345 = vmatprep.mubr.bf16.mxu0 0
      %2346 = vmatmul.mubr.bf16.gmra.mxu0 %v1844
      %v2347 = vpop.f32.mrf.mxu0
      %v2348 = vadd.f32 %v2187, %v2347
      %v2349 = vpop.f32.mrf.mxu0
      %v2350 = vpop.f32.mrf.mxu0
      %v2351 = vadd.f32 %v2190, %v2350
      %v2352 = vpop.f32.mrf.mxu0
      %2353 = vmatprep.mubr.bf16.mxu0 0
      %2354 = vmatmul.mubr.bf16.gmra.mxu0 %v1845
      %v2355 = vpop.f32.mrf.mxu0
      %v2356 = vadd.f32 %v2195, %v2355
      %v2357 = vpop.f32.mrf.mxu0
      %v2358 = vpop.f32.mrf.mxu0
      %v2359 = vadd.f32 %v2198, %v2358
      %v2360 = vpop.f32.mrf.mxu0
      %2361 = vmatprep.mubr.bf16.mxu0 0
      %2362 = vmatmul.mubr.bf16.gmra.mxu0 %v1846
      %v2363 = vpop.f32.mrf.mxu0
      %v2364 = vadd.f32 %v2203, %v2363
      %v2365 = vpop.f32.mrf.mxu0
      %v2366 = vpop.f32.mrf.mxu0
      %v2367 = vadd.f32 %v2206, %v2366
      %v2368 = vpop.f32.mrf.mxu0
      %2369 = vmatprep.mubr.bf16.mxu0 0
      %2370 = vmatmul.mubr.bf16.gmra.mxu0 %v1847
      %v2371 = vpop.f32.mrf.mxu0
      %v2372 = vadd.f32 %v2211, %v2371
      %v2373 = vpop.f32.mrf.mxu0
      %v2374 = vpop.f32.mrf.mxu0
      %v2375 = vadd.f32 %v2214, %v2374
      %v2376 = vpop.f32.mrf.mxu0
      %2377 = vdwg.mxu0
      %v2426 = vunpack.c.l.b16 %v1028
      %v2427 = vunpack.c.l.b16 %v1029
      %v2428 = vunpack.c.l.b16 %v1030
      %v2429 = vunpack.c.l.b16 %v1031
      %v2430 = vunpack.c.l.b16 %v1032
      %v2431 = vunpack.c.l.b16 %v1033
      %v2432 = vunpack.c.l.b16 %v1034
      %v2433 = vunpack.c.l.b16 %v1035
      %v2434 = vunpack.c.l.b16 %v1036
      %v2435 = vunpack.c.l.b16 %v1037
      %v2436 = vunpack.c.l.b16 %v1038
      %v2437 = vunpack.c.l.b16 %v1039
      %v2438 = vunpack.c.l.b16 %v1040
      %v2439 = vunpack.c.l.b16 %v1041
      %v2440 = vunpack.c.l.b16 %v1042
      %v2441 = vunpack.c.l.b16 %v1043
      %v2442 = vunpack.c.l.b16 %v1044
      %v2443 = vunpack.c.l.b16 %v1045
      %v2444 = vunpack.c.l.b16 %v1046
      %v2445 = vunpack.c.l.b16 %v1047
      %v2446 = vunpack.c.l.b16 %v1048
      %v2447 = vunpack.c.l.b16 %v1049
      %v2448 = vunpack.c.l.b16 %v1050
      %v2449 = vunpack.c.l.b16 %v1051
      %v2450 = vunpack.c.l.b16 %v1052
      %v2451 = vunpack.c.l.b16 %v1053
      %v2452 = vunpack.c.l.b16 %v1054
      %v2453 = vunpack.c.l.b16 %v1055
      %v2454 = vunpack.c.l.b16 %v1056
      %v2455 = vunpack.c.l.b16 %v1057
      %v2456 = vunpack.c.l.b16 %v1058
      %v2457 = vunpack.c.l.b16 %v1059
      %v2458 = vunpack.c.l.b16 %v1060
      %v2459 = vunpack.c.l.b16 %v1061
      %v2460 = vunpack.c.l.b16 %v1062
      %v2461 = vunpack.c.l.b16 %v1063
      %v2462 = vunpack.c.l.b16 %v1064
      %v2463 = vunpack.c.l.b16 %v1065
      %v2464 = vunpack.c.l.b16 %v1066
      %v2465 = vunpack.c.l.b16 %v1067
      %v2466 = vunpack.c.l.b16 %v1068
      %v2467 = vunpack.c.l.b16 %v1069
      %v2468 = vunpack.c.l.b16 %v1070
      %v2469 = vunpack.c.l.b16 %v1071
      %v2470 = vunpack.c.l.b16 %v1072
      %v2471 = vunpack.c.l.b16 %v1073
      %v2472 = vunpack.c.l.b16 %v1074
      %v2473 = vunpack.c.l.b16 %v1075
      %v2474 = vpack.c.b16 %v2427, %v2426
      %v2475 = vpack.c.b16 %v2429, %v2428
      %v2476 = vpack.c.b16 %v2431, %v2430
      %v2477 = vpack.c.b16 %v2433, %v2432
      %v2478 = vpack.c.b16 %v2435, %v2434
      %v2479 = vpack.c.b16 %v2437, %v2436
      %v2480 = vpack.c.b16 %v2439, %v2438
      %v2481 = vpack.c.b16 %v2441, %v2440
      %v2482 = vpack.c.b16 %v2443, %v2442
      %v2483 = vpack.c.b16 %v2445, %v2444
      %v2484 = vpack.c.b16 %v2447, %v2446
      %v2485 = vpack.c.b16 %v2449, %v2448
      %v2486 = vpack.c.b16 %v2451, %v2450
      %v2487 = vpack.c.b16 %v2453, %v2452
      %v2488 = vpack.c.b16 %v2455, %v2454
      %v2489 = vpack.c.b16 %v2457, %v2456
      %v2490 = vpack.c.b16 %v2459, %v2458
      %v2491 = vpack.c.b16 %v2461, %v2460
      %v2492 = vpack.c.b16 %v2463, %v2462
      %v2493 = vpack.c.b16 %v2465, %v2464
      %v2494 = vpack.c.b16 %v2467, %v2466
      %v2495 = vpack.c.b16 %v2469, %v2468
      %v2496 = vpack.c.b16 %v2471, %v2470
      %v2497 = vpack.c.b16 %v2473, %v2472
      %2522 = vmatprep.subr.bf16.mxu0 0
      %2523 = vmatpush1.bf16.msra.mxu0 %v2481
      %2524 = vmatprep.subr.bf16.mxu0 0
      %2525 = vmatpush1.bf16.msra.mxu0 %v2480
      %2526 = vmatprep.subr.bf16.mxu0 0
      %2527 = vmatpush1.bf16.msra.mxu0 %v2479
      %2528 = vmatprep.subr.bf16.mxu0 0
      %2529 = vmatpush1.bf16.msra.mxu0 %v2478
      %2530 = vmatprep.subr.bf16.mxu0 0
      %2531 = vmatpush1.bf16.msra.mxu0 %v2477
      %2532 = vmatprep.subr.bf16.mxu0 0
      %2533 = vmatpush1.bf16.msra.mxu0 %v2476
      %2534 = vmatprep.subr.bf16.mxu0 0
      %2535 = vmatpush1.bf16.msra.mxu0 %v2475
      %2536 = vmatprep.subr.bf16.mxu0 0
      %2537 = vmatpush1.bf16.msra.mxu0 %v2474
      %2538 = vmatprep.subr.bf16.mxu0 0
      %2539 = vmatpush2.bf16.msra.mxu0 %v2489
      %2540 = vmatprep.subr.bf16.mxu0 0
      %2541 = vmatpush2.bf16.msra.mxu0 %v2488
      %2542 = vmatprep.subr.bf16.mxu0 0
      %2543 = vmatpush2.bf16.msra.mxu0 %v2487
      %2544 = vmatprep.subr.bf16.mxu0 0
      %2545 = vmatpush2.bf16.msra.mxu0 %v2486
      %2546 = vmatprep.subr.bf16.mxu0 0
      %2547 = vmatpush2.bf16.msra.mxu0 %v2485
      %2548 = vmatprep.subr.bf16.mxu0 0
      %2549 = vmatpush2.bf16.msra.mxu0 %v2484
      %2550 = vmatprep.subr.bf16.mxu0 0
      %2551 = vmatpush2.bf16.msra.mxu0 %v2483
      %2552 = vmatprep.subr.bf16.mxu0 0
      %2553 = vmatpush2.bf16.msra.mxu0 %v2482
      %2554 = vmatprep.mubr.bf16.mxu0 %v932
      %2555 = vmatmul.mubr.bf16.gmra.mxu0 %v868
      %v2556 = vpop.f32.mrf.mxu0
      %v2557 = vadd.f32 %v2252, %v2556
      %v2558 = vpop.f32.mrf.mxu0
      %v2559 = vpop.f32.mrf.mxu0
      %v2560 = vadd.f32 %v2255, %v2559
      %v2561 = vpop.f32.mrf.mxu0
      %2562 = vmatprep.mubr.bf16.mxu0 %v933
      %2563 = vmatmul.mubr.bf16.gmra.mxu0 %v869
      %v2564 = vpop.f32.mrf.mxu0
      %v2565 = vadd.f32 %v2260, %v2564
      %v2566 = vpop.f32.mrf.mxu0
      %v2567 = vpop.f32.mrf.mxu0
      %v2568 = vadd.f32 %v2263, %v2567
      %v2569 = vpop.f32.mrf.mxu0
      %2570 = vmatprep.mubr.bf16.mxu0 %v934
      %2571 = vmatmul.mubr.bf16.gmra.mxu0 %v870
      %v2572 = vpop.f32.mrf.mxu0
      %v2573 = vadd.f32 %v2268, %v2572
      %v2574 = vpop.f32.mrf.mxu0
      %v2575 = vpop.f32.mrf.mxu0
      %v2576 = vadd.f32 %v2271, %v2575
      %v2577 = vpop.f32.mrf.mxu0
      %2578 = vmatprep.mubr.bf16.mxu0 %v935
      %2579 = vmatmul.mubr.bf16.gmra.mxu0 %v871
      %v2580 = vpop.f32.mrf.mxu0
      %v2581 = vadd.f32 %v2276, %v2580
      %v2582 = vpop.f32.mrf.mxu0
      %v2583 = vpop.f32.mrf.mxu0
      %v2584 = vadd.f32 %v2279, %v2583
      %v2585 = vpop.f32.mrf.mxu0
      %2586 = vmatprep.mubr.bf16.mxu0 %v936
      %2587 = vmatmul.mubr.bf16.gmra.mxu0 %v872
      %v2588 = vpop.f32.mrf.mxu0
      %v2589 = vadd.f32 %v2284, %v2588
      %v2590 = vpop.f32.mrf.mxu0
      %v2591 = vpop.f32.mrf.mxu0
      %v2592 = vadd.f32 %v2287, %v2591
      %v2593 = vpop.f32.mrf.mxu0
      %2594 = vmatprep.mubr.bf16.mxu0 %v937
      %2595 = vmatmul.mubr.bf16.gmra.mxu0 %v873
      %v2596 = vpop.f32.mrf.mxu0
      %v2597 = vadd.f32 %v2292, %v2596
      %v2598 = vpop.f32.mrf.mxu0
      %v2599 = vpop.f32.mrf.mxu0
      %v2600 = vadd.f32 %v2295, %v2599
      %v2601 = vpop.f32.mrf.mxu0
      %2602 = vmatprep.mubr.bf16.mxu0 %v938
      %2603 = vmatmul.mubr.bf16.gmra.mxu0 %v874
      %v2604 = vpop.f32.mrf.mxu0
      %v2605 = vadd.f32 %v2300, %v2604
      %v2606 = vpop.f32.mrf.mxu0
      %v2607 = vpop.f32.mrf.mxu0
      %v2608 = vadd.f32 %v2303, %v2607
      %v2609 = vpop.f32.mrf.mxu0
      %2610 = vmatprep.mubr.bf16.mxu0 %v939
      %2611 = vmatmul.mubr.bf16.gmra.mxu0 %v875
      %v2612 = vpop.f32.mrf.mxu0
      %v2613 = vadd.f32 %v2308, %v2612
      %v2614 = vpop.f32.mrf.mxu0
      %v2615 = vpop.f32.mrf.mxu0
      %v2616 = vadd.f32 %v2311, %v2615
      %v2617 = vpop.f32.mrf.mxu0
      %2618 = vmatprep.mubr.bf16.mxu0 %v940
      %2619 = vmatmul.mubr.bf16.gmra.mxu0 %v876
      %v2620 = vpop.f32.mrf.mxu0
      %v2621 = vadd.f32 %v2316, %v2620
      %v2622 = vpop.f32.mrf.mxu0
      %v2623 = vpop.f32.mrf.mxu0
      %v2624 = vadd.f32 %v2319, %v2623
      %v2625 = vpop.f32.mrf.mxu0
      %2626 = vmatprep.mubr.bf16.mxu0 %v941
      %2627 = vmatmul.mubr.bf16.gmra.mxu0 %v877
      %v2628 = vpop.f32.mrf.mxu0
      %v2629 = vadd.f32 %v2324, %v2628
      %v2630 = vpop.f32.mrf.mxu0
      %v2631 = vpop.f32.mrf.mxu0
      %v2632 = vadd.f32 %v2327, %v2631
      %v2633 = vpop.f32.mrf.mxu0
      %2634 = vmatprep.mubr.bf16.mxu0 %v942
      %2635 = vmatmul.mubr.bf16.gmra.mxu0 %v878
      %v2636 = vpop.f32.mrf.mxu0
      %v2637 = vadd.f32 %v2332, %v2636
      %v2638 = vpop.f32.mrf.mxu0
      %v2639 = vpop.f32.mrf.mxu0
      %v2640 = vadd.f32 %v2335, %v2639
      %v2641 = vpop.f32.mrf.mxu0
      %2642 = vmatprep.mubr.bf16.mxu0 %v943
      %2643 = vmatmul.mubr.bf16.gmra.mxu0 %v879
      %v2644 = vpop.f32.mrf.mxu0
      %v2645 = vadd.f32 %v2340, %v2644
      %v2646 = vpop.f32.mrf.mxu0
      %v2647 = vpop.f32.mrf.mxu0
      %v2648 = vadd.f32 %v2343, %v2647
      %v2649 = vpop.f32.mrf.mxu0
      %2650 = vmatprep.mubr.bf16.mxu0 %v944
      %2651 = vmatmul.mubr.bf16.gmra.mxu0 %v880
      %v2652 = vpop.f32.mrf.mxu0
      %v2653 = vadd.f32 %v2348, %v2652
      %v2654 = vpop.f32.mrf.mxu0
      %v2655 = vpop.f32.mrf.mxu0
      %v2656 = vadd.f32 %v2351, %v2655
      %v2657 = vpop.f32.mrf.mxu0
      %2658 = vmatprep.mubr.bf16.mxu0 %v945
      %2659 = vmatmul.mubr.bf16.gmra.mxu0 %v881
      %v2660 = vpop.f32.mrf.mxu0
      %v2661 = vadd.f32 %v2356, %v2660
      %v2662 = vpop.f32.mrf.mxu0
      %v2663 = vpop.f32.mrf.mxu0
      %v2664 = vadd.f32 %v2359, %v2663
      %v2665 = vpop.f32.mrf.mxu0
      %2666 = vmatprep.mubr.bf16.mxu0 %v946
      %2667 = vmatmul.mubr.bf16.gmra.mxu0 %v882
      %v2668 = vpop.f32.mrf.mxu0
      %v2669 = vadd.f32 %v2364, %v2668
      %v2670 = vpop.f32.mrf.mxu0
      %v2671 = vpop.f32.mrf.mxu0
      %v2672 = vadd.f32 %v2367, %v2671
      %v2673 = vpop.f32.mrf.mxu0
      %2674 = vmatprep.mubr.bf16.mxu0 %v947
      %2675 = vmatmul.mubr.bf16.gmra.mxu0 %v883
      %v2676 = vpop.f32.mrf.mxu0
      %v2677 = vadd.f32 %v2372, %v2676
      %v2678 = vpop.f32.mrf.mxu0
      %v2679 = vpop.f32.mrf.mxu0
      %v2680 = vadd.f32 %v2375, %v2679
      %v2681 = vpop.f32.mrf.mxu0
      %2682 = vdwg.mxu0
      %2683 = vmatprep.subr.bf16.mxu0 0
      %2684 = vmatpush1.bf16.msra.mxu0 %v2497
      %2685 = vmatprep.subr.bf16.mxu0 0
      %2686 = vmatpush1.bf16.msra.mxu0 %v2496
      %2687 = vmatprep.subr.bf16.mxu0 0
      %2688 = vmatpush1.bf16.msra.mxu0 %v2495
      %2689 = vmatprep.subr.bf16.mxu0 0
      %2690 = vmatpush1.bf16.msra.mxu0 %v2494
      %2691 = vmatprep.subr.bf16.mxu0 0
      %2692 = vmatpush1.bf16.msra.mxu0 %v2493
      %2693 = vmatprep.subr.bf16.mxu0 0
      %2694 = vmatpush1.bf16.msra.mxu0 %v2492
      %2695 = vmatprep.subr.bf16.mxu0 0
      %2696 = vmatpush1.bf16.msra.mxu0 %v2491
      %2697 = vmatprep.subr.bf16.mxu0 0
      %2698 = vmatpush1.bf16.msra.mxu0 %v2490
      %2699 = vmatprep.subr.bf16.mxu0 0
      %2700 = vmatpush2.bf16.msra.mxu0 0
      %2701 = vmatprep.subr.bf16.mxu0 0
      %2702 = vmatpush2.bf16.msra.mxu0 0
      %2703 = vmatprep.subr.bf16.mxu0 0
      %2704 = vmatpush2.bf16.msra.mxu0 0
      %2705 = vmatprep.subr.bf16.mxu0 0
      %2706 = vmatpush2.bf16.msra.mxu0 0
      %2707 = vmatprep.subr.bf16.mxu0 0
      %2708 = vmatpush2.bf16.msra.mxu0 0
      %2709 = vmatprep.subr.bf16.mxu0 0
      %2710 = vmatpush2.bf16.msra.mxu0 0
      %2711 = vmatprep.subr.bf16.mxu0 0
      %2712 = vmatpush2.bf16.msra.mxu0 0
      %2713 = vmatprep.subr.bf16.mxu0 0
      %2714 = vmatpush2.bf16.msra.mxu0 0
      %2715 = vmatprep.mubr.bf16.mxu0 0
      %2716 = vmatmul.mubr.bf16.gmra.mxu0 %v996
      %v2717 = vpop.f32.mrf.mxu0
      %v2718 = vadd.f32 %v2557, %v2717
      %v2719 = vpop.f32.mrf.mxu0
      %v2720 = vpop.f32.mrf.mxu0
      %v2721 = vadd.f32 %v2560, %v2720
      %v2722 = vpop.f32.mrf.mxu0
      %2723 = vmatprep.mubr.bf16.mxu0 0
      %2724 = vmatmul.mubr.bf16.gmra.mxu0 %v997
      %v2725 = vpop.f32.mrf.mxu0
      %v2726 = vadd.f32 %v2565, %v2725
      %v2727 = vpop.f32.mrf.mxu0
      %v2728 = vpop.f32.mrf.mxu0
      %v2729 = vadd.f32 %v2568, %v2728
      %v2730 = vpop.f32.mrf.mxu0
      %2731 = vmatprep.mubr.bf16.mxu0 0
      %2732 = vmatmul.mubr.bf16.gmra.mxu0 %v998
      %v2733 = vpop.f32.mrf.mxu0
      %v2734 = vadd.f32 %v2573, %v2733
      %v2735 = vpop.f32.mrf.mxu0
      %v2736 = vpop.f32.mrf.mxu0
      %v2737 = vadd.f32 %v2576, %v2736
      %v2738 = vpop.f32.mrf.mxu0
      %2739 = vmatprep.mubr.bf16.mxu0 0
      %2740 = vmatmul.mubr.bf16.gmra.mxu0 %v999
      %v2741 = vpop.f32.mrf.mxu0
      %v2742 = vadd.f32 %v2581, %v2741
      %v2743 = vpop.f32.mrf.mxu0
      %v2744 = vpop.f32.mrf.mxu0
      %v2745 = vadd.f32 %v2584, %v2744
      %v2746 = vpop.f32.mrf.mxu0
      %2747 = vmatprep.mubr.bf16.mxu0 0
      %2748 = vmatmul.mubr.bf16.gmra.mxu0 %v1000
      %v2749 = vpop.f32.mrf.mxu0
      %v2750 = vadd.f32 %v2589, %v2749
      %v2751 = vpop.f32.mrf.mxu0
      %v2752 = vpop.f32.mrf.mxu0
      %v2753 = vadd.f32 %v2592, %v2752
      %v2754 = vpop.f32.mrf.mxu0
      %2755 = vmatprep.mubr.bf16.mxu0 0
      %2756 = vmatmul.mubr.bf16.gmra.mxu0 %v1001
      %v2757 = vpop.f32.mrf.mxu0
      %v2758 = vadd.f32 %v2597, %v2757
      %v2759 = vpop.f32.mrf.mxu0
      %v2760 = vpop.f32.mrf.mxu0
      %v2761 = vadd.f32 %v2600, %v2760
      %v2762 = vpop.f32.mrf.mxu0
      %2763 = vmatprep.mubr.bf16.mxu0 0
      %2764 = vmatmul.mubr.bf16.gmra.mxu0 %v1002
      %v2765 = vpop.f32.mrf.mxu0
      %v2766 = vadd.f32 %v2605, %v2765
      %v2767 = vpop.f32.mrf.mxu0
      %v2768 = vpop.f32.mrf.mxu0
      %v2769 = vadd.f32 %v2608, %v2768
      %v2770 = vpop.f32.mrf.mxu0
      %2771 = vmatprep.mubr.bf16.mxu0 0
      %2772 = vmatmul.mubr.bf16.gmra.mxu0 %v1003
      %v2773 = vpop.f32.mrf.mxu0
      %v2774 = vadd.f32 %v2613, %v2773
      %v2775 = vpop.f32.mrf.mxu0
      %v2776 = vpop.f32.mrf.mxu0
      %v2777 = vadd.f32 %v2616, %v2776
      %v2778 = vpop.f32.mrf.mxu0
      %2779 = vmatprep.mubr.bf16.mxu0 0
      %2780 = vmatmul.mubr.bf16.gmra.mxu0 %v1004
      %v2781 = vpop.f32.mrf.mxu0
      %v2782 = vadd.f32 %v2621, %v2781
      %v2783 = vpop.f32.mrf.mxu0
      %v2784 = vpop.f32.mrf.mxu0
      %v2785 = vadd.f32 %v2624, %v2784
      %v2786 = vpop.f32.mrf.mxu0
      %2787 = vmatprep.mubr.bf16.mxu0 0
      %2788 = vmatmul.mubr.bf16.gmra.mxu0 %v1005
      %v2789 = vpop.f32.mrf.mxu0
      %v2790 = vadd.f32 %v2629, %v2789
      %v2791 = vpop.f32.mrf.mxu0
      %v2792 = vpop.f32.mrf.mxu0
      %v2793 = vadd.f32 %v2632, %v2792
      %v2794 = vpop.f32.mrf.mxu0
      %2795 = vmatprep.mubr.bf16.mxu0 0
      %2796 = vmatmul.mubr.bf16.gmra.mxu0 %v1006
      %v2797 = vpop.f32.mrf.mxu0
      %v2798 = vadd.f32 %v2637, %v2797
      %v2799 = vpop.f32.mrf.mxu0
      %v2800 = vpop.f32.mrf.mxu0
      %v2801 = vadd.f32 %v2640, %v2800
      %v2802 = vpop.f32.mrf.mxu0
      %2803 = vmatprep.mubr.bf16.mxu0 0
      %2804 = vmatmul.mubr.bf16.gmra.mxu0 %v1007
      %v2805 = vpop.f32.mrf.mxu0
      %v2806 = vadd.f32 %v2645, %v2805
      %v2807 = vpop.f32.mrf.mxu0
      %v2808 = vpop.f32.mrf.mxu0
      %v2809 = vadd.f32 %v2648, %v2808
      %v2810 = vpop.f32.mrf.mxu0
      %2811 = vmatprep.mubr.bf16.mxu0 0
      %2812 = vmatmul.mubr.bf16.gmra.mxu0 %v1008
      %v2813 = vpop.f32.mrf.mxu0
      %v2814 = vadd.f32 %v2653, %v2813
      %v2815 = vpop.f32.mrf.mxu0
      %v2816 = vpop.f32.mrf.mxu0
      %v2817 = vadd.f32 %v2656, %v2816
      %v2818 = vpop.f32.mrf.mxu0
      %2819 = vmatprep.mubr.bf16.mxu0 0
      %2820 = vmatmul.mubr.bf16.gmra.mxu0 %v1009
      %v2821 = vpop.f32.mrf.mxu0
      %v2822 = vadd.f32 %v2661, %v2821
      %v2823 = vpop.f32.mrf.mxu0
      %v2824 = vpop.f32.mrf.mxu0
      %v2825 = vadd.f32 %v2664, %v2824
      %v2826 = vpop.f32.mrf.mxu0
      %2827 = vmatprep.mubr.bf16.mxu0 0
      %2828 = vmatmul.mubr.bf16.gmra.mxu0 %v1010
      %v2829 = vpop.f32.mrf.mxu0
      %v2830 = vadd.f32 %v2669, %v2829
      %v2831 = vpop.f32.mrf.mxu0
      %v2832 = vpop.f32.mrf.mxu0
      %v2833 = vadd.f32 %v2672, %v2832
      %v2834 = vpop.f32.mrf.mxu0
      %2835 = vmatprep.mubr.bf16.mxu0 0
      %2836 = vmatmul.mubr.bf16.gmra.mxu0 %v1011
      %v2837 = vpop.f32.mrf.mxu0
      %v2838 = vadd.f32 %v2677, %v2837
      %v2839 = vpop.f32.mrf.mxu0
      %v2840 = vpop.f32.mrf.mxu0
      %v2841 = vadd.f32 %v2680, %v2840
      %v2842 = vpop.f32.mrf.mxu0
      %2843 = vdwg.mxu0
      %s2844 = sadd.s32 0, 2
      %s2845 = smul.u32 %s2844, 3
      %s2846 = smul.addr %s2845, 4
      %s2847 = scalar_lea.vmem %s219, %s2846
      %v2848 = vld [vmem:[%s2847] sm:$0xf]
      %v2849 = vld [vmem:[%s2847 + $0x4] sm:$0xf]
      %v2850 = vld [vmem:[%s2847 + $0x8] sm:$0x1]
      %v2851 = vld [vmem:[%s2847 + $0xc] sm:$0xf]
      %v2852 = vld [vmem:[%s2847 + $0x10] sm:$0xf]
      %v2853 = vld [vmem:[%s2847 + $0x14] sm:$0x1]
      %v2854 = vld [vmem:[%s2847 + $0x18] sm:$0xf]
      %v2855 = vld [vmem:[%s2847 + $0x1c] sm:$0xf]
      %v2856 = vld [vmem:[%s2847 + $0x20] sm:$0x1]
      %v2857 = vld [vmem:[%s2847 + $0x24] sm:$0xf]
      %v2858 = vld [vmem:[%s2847 + $0x28] sm:$0xf]
      %v2859 = vld [vmem:[%s2847 + $0x2c] sm:$0x1]
      %v2860 = vld [vmem:[%s2847 + $0x30] sm:$0xf]
      %v2861 = vld [vmem:[%s2847 + $0x34] sm:$0xf]
      %v2862 = vld [vmem:[%s2847 + $0x38] sm:$0x1]
      %v2863 = vld [vmem:[%s2847 + $0x3c] sm:$0xf]
      %v2864 = vld [vmem:[%s2847 + $0x40] sm:$0xf]
      %v2865 = vld [vmem:[%s2847 + $0x44] sm:$0x1]
      %v2866 = vld [vmem:[%s2847 + $0x48] sm:$0xf]
      %v2867 = vld [vmem:[%s2847 + $0x4c] sm:$0xf]
      %v2868 = vld [vmem:[%s2847 + $0x50] sm:$0x1]
      %v2869 = vld [vmem:[%s2847 + $0x54] sm:$0xf]
      %v2870 = vld [vmem:[%s2847 + $0x58] sm:$0xf]
      %v2871 = vld [vmem:[%s2847 + $0x5c] sm:$0x1]
      %v2872 = vld [vmem:[%s2847 + $0x60] sm:$0xf]
      %v2873 = vld [vmem:[%s2847 + $0x64] sm:$0xf]
      %v2874 = vld [vmem:[%s2847 + $0x68] sm:$0x1]
      %v2875 = vld [vmem:[%s2847 + $0x6c] sm:$0xf]
      %v2876 = vld [vmem:[%s2847 + $0x70] sm:$0xf]
      %v2877 = vld [vmem:[%s2847 + $0x74] sm:$0x1]
      %v2878 = vld [vmem:[%s2847 + $0x78] sm:$0xf]
      %v2879 = vld [vmem:[%s2847 + $0x7c] sm:$0xf]
      %v2880 = vld [vmem:[%s2847 + $0x80] sm:$0x1]
      %v2881 = vld [vmem:[%s2847 + $0x84] sm:$0xf]
      %v2882 = vld [vmem:[%s2847 + $0x88] sm:$0xf]
      %v2883 = vld [vmem:[%s2847 + $0x8c] sm:$0x1]
      %v2884 = vld [vmem:[%s2847 + $0x90] sm:$0xf]
      %v2885 = vld [vmem:[%s2847 + $0x94] sm:$0xf]
      %v2886 = vld [vmem:[%s2847 + $0x98] sm:$0x1]
      %v2887 = vld [vmem:[%s2847 + $0x9c] sm:$0xf]
      %v2888 = vld [vmem:[%s2847 + $0xa0] sm:$0xf]
      %v2889 = vld [vmem:[%s2847 + $0xa4] sm:$0x1]
      %v2890 = vld [vmem:[%s2847 + $0xa8] sm:$0xf]
      %v2891 = vld [vmem:[%s2847 + $0xac] sm:$0xf]
      %v2892 = vld [vmem:[%s2847 + $0xb0] sm:$0x1]
      %v2893 = vld [vmem:[%s2847 + $0xb4] sm:$0xf]
      %v2894 = vld [vmem:[%s2847 + $0xb8] sm:$0xf]
      %v2895 = vld [vmem:[%s2847 + $0xbc] sm:$0x1]
      %v2897 = vshrl.u32 %v2848, 16
      %v2899 = vrot.slane %v2897, 4
      %v2900 = vshll.u32 %v2848, 16
      %v2902 = vrot.slane %v2900, 5
      %v2903 = vor.u32 %v2899, %v2902
      %v2904 = vrot.slane %v2903, 4
      %v2906 = vshll.u32 %v2849, 16
      %v2908 = vrot.slane %v2906, 5
      %v2909 = vsel %vm288, %v2904, %v2908
      %v2910 = vshrl.u32 %v2849, 16
      %v2912 = vrot.slane %v2910, 4
      %v2913 = vor.u32 %v2912, %v2908
      %v2914 = vrot.slane %v2913, 4
      %v2916 = vshll.u32 %v2850, 16
      %v2918 = vrot.slane %v2916, 5
      %v2919 = vsel %vm288, %v2914, %v2918
      %v2921 = vshrl.u32 %v2851, 16
      %v2923 = vrot.slane %v2921, 4
      %v2924 = vshll.u32 %v2851, 16
      %v2926 = vrot.slane %v2924, 5
      %v2927 = vor.u32 %v2923, %v2926
      %v2928 = vrot.slane %v2927, 4
      %v2930 = vshll.u32 %v2852, 16
      %v2932 = vrot.slane %v2930, 5
      %v2933 = vsel %vm288, %v2928, %v2932
      %v2934 = vshrl.u32 %v2852, 16
      %v2936 = vrot.slane %v2934, 4
      %v2937 = vor.u32 %v2936, %v2932
      %v2938 = vrot.slane %v2937, 4
      %v2940 = vshll.u32 %v2853, 16
      %v2942 = vrot.slane %v2940, 5
      %v2943 = vsel %vm288, %v2938, %v2942
      %v2945 = vshrl.u32 %v2854, 16
      %v2947 = vrot.slane %v2945, 4
      %v2948 = vshll.u32 %v2854, 16
      %v2950 = vrot.slane %v2948, 5
      %v2951 = vor.u32 %v2947, %v2950
      %v2952 = vrot.slane %v2951, 4
      %v2954 = vshll.u32 %v2855, 16
      %v2956 = vrot.slane %v2954, 5
      %v2957 = vsel %vm288, %v2952, %v2956
      %v2958 = vshrl.u32 %v2855, 16
      %v2960 = vrot.slane %v2958, 4
      %v2961 = vor.u32 %v2960, %v2956
      %v2962 = vrot.slane %v2961, 4
      %v2964 = vshll.u32 %v2856, 16
      %v2966 = vrot.slane %v2964, 5
      %v2967 = vsel %vm288, %v2962, %v2966
      %v2969 = vshrl.u32 %v2857, 16
      %v2971 = vrot.slane %v2969, 4
      %v2972 = vshll.u32 %v2857, 16
      %v2974 = vrot.slane %v2972, 5
      %v2975 = vor.u32 %v2971, %v2974
      %v2976 = vrot.slane %v2975, 4
      %v2978 = vshll.u32 %v2858, 16
      %v2980 = vrot.slane %v2978, 5
      %v2981 = vsel %vm288, %v2976, %v2980
      %v2982 = vshrl.u32 %v2858, 16
      %v2984 = vrot.slane %v2982, 4
      %v2985 = vor.u32 %v2984, %v2980
      %v2986 = vrot.slane %v2985, 4
      %v2988 = vshll.u32 %v2859, 16
      %v2990 = vrot.slane %v2988, 5
      %v2991 = vsel %vm288, %v2986, %v2990
      %v2993 = vshrl.u32 %v2860, 16
      %v2995 = vrot.slane %v2993, 4
      %v2996 = vshll.u32 %v2860, 16
      %v2998 = vrot.slane %v2996, 5
      %v2999 = vor.u32 %v2995, %v2998
      %v3000 = vrot.slane %v2999, 4
      %v3002 = vshll.u32 %v2861, 16
      %v3004 = vrot.slane %v3002, 5
      %v3005 = vsel %vm288, %v3000, %v3004
      %v3006 = vshrl.u32 %v2861, 16
      %v3008 = vrot.slane %v3006, 4
      %v3009 = vor.u32 %v3008, %v3004
      %v3010 = vrot.slane %v3009, 4
      %v3012 = vshll.u32 %v2862, 16
      %v3014 = vrot.slane %v3012, 5
      %v3015 = vsel %vm288, %v3010, %v3014
      %v3017 = vshrl.u32 %v2863, 16
      %v3019 = vrot.slane %v3017, 4
      %v3020 = vshll.u32 %v2863, 16
      %v3022 = vrot.slane %v3020, 5
      %v3023 = vor.u32 %v3019, %v3022
      %v3024 = vrot.slane %v3023, 4
      %v3026 = vshll.u32 %v2864, 16
      %v3028 = vrot.slane %v3026, 5
      %v3029 = vsel %vm288, %v3024, %v3028
      %v3030 = vshrl.u32 %v2864, 16
      %v3032 = vrot.slane %v3030, 4
      %v3033 = vor.u32 %v3032, %v3028
      %v3034 = vrot.slane %v3033, 4
      %v3036 = vshll.u32 %v2865, 16
      %v3038 = vrot.slane %v3036, 5
      %v3039 = vsel %vm288, %v3034, %v3038
      %v3041 = vshrl.u32 %v2866, 16
      %v3043 = vrot.slane %v3041, 4
      %v3044 = vshll.u32 %v2866, 16
      %v3046 = vrot.slane %v3044, 5
      %v3047 = vor.u32 %v3043, %v3046
      %v3048 = vrot.slane %v3047, 4
      %v3050 = vshll.u32 %v2867, 16
      %v3052 = vrot.slane %v3050, 5
      %v3053 = vsel %vm288, %v3048, %v3052
      %v3054 = vshrl.u32 %v2867, 16
      %v3056 = vrot.slane %v3054, 4
      %v3057 = vor.u32 %v3056, %v3052
      %v3058 = vrot.slane %v3057, 4
      %v3060 = vshll.u32 %v2868, 16
      %v3062 = vrot.slane %v3060, 5
      %v3063 = vsel %vm288, %v3058, %v3062
      %v3065 = vshrl.u32 %v2869, 16
      %v3067 = vrot.slane %v3065, 4
      %v3068 = vshll.u32 %v2869, 16
      %v3070 = vrot.slane %v3068, 5
      %v3071 = vor.u32 %v3067, %v3070
      %v3072 = vrot.slane %v3071, 4
      %v3074 = vshll.u32 %v2870, 16
      %v3076 = vrot.slane %v3074, 5
      %v3077 = vsel %vm288, %v3072, %v3076
      %v3078 = vshrl.u32 %v2870, 16
      %v3080 = vrot.slane %v3078, 4
      %v3081 = vor.u32 %v3080, %v3076
      %v3082 = vrot.slane %v3081, 4
      %v3084 = vshll.u32 %v2871, 16
      %v3086 = vrot.slane %v3084, 5
      %v3087 = vsel %vm288, %v3082, %v3086
      %v3089 = vshrl.u32 %v2872, 16
      %v3091 = vrot.slane %v3089, 4
      %v3092 = vshll.u32 %v2872, 16
      %v3094 = vrot.slane %v3092, 5
      %v3095 = vor.u32 %v3091, %v3094
      %v3096 = vrot.slane %v3095, 4
      %v3098 = vshll.u32 %v2873, 16
      %v3100 = vrot.slane %v3098, 5
      %v3101 = vsel %vm288, %v3096, %v3100
      %v3102 = vshrl.u32 %v2873, 16
      %v3104 = vrot.slane %v3102, 4
      %v3105 = vor.u32 %v3104, %v3100
      %v3106 = vrot.slane %v3105, 4
      %v3108 = vshll.u32 %v2874, 16
      %v3110 = vrot.slane %v3108, 5
      %v3111 = vsel %vm288, %v3106, %v3110
      %v3113 = vshrl.u32 %v2875, 16
      %v3115 = vrot.slane %v3113, 4
      %v3116 = vshll.u32 %v2875, 16
      %v3118 = vrot.slane %v3116, 5
      %v3119 = vor.u32 %v3115, %v3118
      %v3120 = vrot.slane %v3119, 4
      %v3122 = vshll.u32 %v2876, 16
      %v3124 = vrot.slane %v3122, 5
      %v3125 = vsel %vm288, %v3120, %v3124
      %v3126 = vshrl.u32 %v2876, 16
      %v3128 = vrot.slane %v3126, 4
      %v3129 = vor.u32 %v3128, %v3124
      %v3130 = vrot.slane %v3129, 4
      %v3132 = vshll.u32 %v2877, 16
      %v3134 = vrot.slane %v3132, 5
      %v3135 = vsel %vm288, %v3130, %v3134
      %v3137 = vshrl.u32 %v2878, 16
      %v3139 = vrot.slane %v3137, 4
      %v3140 = vshll.u32 %v2878, 16
      %v3142 = vrot.slane %v3140, 5
      %v3143 = vor.u32 %v3139, %v3142
      %v3144 = vrot.slane %v3143, 4
      %v3146 = vshll.u32 %v2879, 16
      %v3148 = vrot.slane %v3146, 5
      %v3149 = vsel %vm288, %v3144, %v3148
      %v3150 = vshrl.u32 %v2879, 16
      %v3152 = vrot.slane %v3150, 4
      %v3153 = vor.u32 %v3152, %v3148
      %v3154 = vrot.slane %v3153, 4
      %v3156 = vshll.u32 %v2880, 16
      %v3158 = vrot.slane %v3156, 5
      %v3159 = vsel %vm288, %v3154, %v3158
      %v3161 = vshrl.u32 %v2881, 16
      %v3163 = vrot.slane %v3161, 4
      %v3164 = vshll.u32 %v2881, 16
      %v3166 = vrot.slane %v3164, 5
      %v3167 = vor.u32 %v3163, %v3166
      %v3168 = vrot.slane %v3167, 4
      %v3170 = vshll.u32 %v2882, 16
      %v3172 = vrot.slane %v3170, 5
      %v3173 = vsel %vm288, %v3168, %v3172
      %v3174 = vshrl.u32 %v2882, 16
      %v3176 = vrot.slane %v3174, 4
      %v3177 = vor.u32 %v3176, %v3172
      %v3178 = vrot.slane %v3177, 4
      %v3180 = vshll.u32 %v2883, 16
      %v3182 = vrot.slane %v3180, 5
      %v3183 = vsel %vm288, %v3178, %v3182
      %v3185 = vshrl.u32 %v2884, 16
      %v3187 = vrot.slane %v3185, 4
      %v3188 = vshll.u32 %v2884, 16
      %v3190 = vrot.slane %v3188, 5
      %v3191 = vor.u32 %v3187, %v3190
      %v3192 = vrot.slane %v3191, 4
      %v3194 = vshll.u32 %v2885, 16
      %v3196 = vrot.slane %v3194, 5
      %v3197 = vsel %vm288, %v3192, %v3196
      %v3198 = vshrl.u32 %v2885, 16
      %v3200 = vrot.slane %v3198, 4
      %v3201 = vor.u32 %v3200, %v3196
      %v3202 = vrot.slane %v3201, 4
      %v3204 = vshll.u32 %v2886, 16
      %v3206 = vrot.slane %v3204, 5
      %v3207 = vsel %vm288, %v3202, %v3206
      %v3209 = vshrl.u32 %v2887, 16
      %v3211 = vrot.slane %v3209, 4
      %v3212 = vshll.u32 %v2887, 16
      %v3214 = vrot.slane %v3212, 5
      %v3215 = vor.u32 %v3211, %v3214
      %v3216 = vrot.slane %v3215, 4
      %v3218 = vshll.u32 %v2888, 16
      %v3220 = vrot.slane %v3218, 5
      %v3221 = vsel %vm288, %v3216, %v3220
      %v3222 = vshrl.u32 %v2888, 16
      %v3224 = vrot.slane %v3222, 4
      %v3225 = vor.u32 %v3224, %v3220
      %v3226 = vrot.slane %v3225, 4
      %v3228 = vshll.u32 %v2889, 16
      %v3230 = vrot.slane %v3228, 5
      %v3231 = vsel %vm288, %v3226, %v3230
      %v3233 = vshrl.u32 %v2890, 16
      %v3235 = vrot.slane %v3233, 4
      %v3236 = vshll.u32 %v2890, 16
      %v3238 = vrot.slane %v3236, 5
      %v3239 = vor.u32 %v3235, %v3238
      %v3240 = vrot.slane %v3239, 4
      %v3242 = vshll.u32 %v2891, 16
      %v3244 = vrot.slane %v3242, 5
      %v3245 = vsel %vm288, %v3240, %v3244
      %v3246 = vshrl.u32 %v2891, 16
      %v3248 = vrot.slane %v3246, 4
      %v3249 = vor.u32 %v3248, %v3244
      %v3250 = vrot.slane %v3249, 4
      %v3252 = vshll.u32 %v2892, 16
      %v3254 = vrot.slane %v3252, 5
      %v3255 = vsel %vm288, %v3250, %v3254
      %v3257 = vshrl.u32 %v2893, 16
      %v3259 = vrot.slane %v3257, 4
      %v3260 = vshll.u32 %v2893, 16
      %v3262 = vrot.slane %v3260, 5
      %v3263 = vor.u32 %v3259, %v3262
      %v3264 = vrot.slane %v3263, 4
      %v3266 = vshll.u32 %v2894, 16
      %v3268 = vrot.slane %v3266, 5
      %v3269 = vsel %vm288, %v3264, %v3268
      %v3270 = vshrl.u32 %v2894, 16
      %v3272 = vrot.slane %v3270, 4
      %v3273 = vor.u32 %v3272, %v3268
      %v3274 = vrot.slane %v3273, 4
      %v3276 = vshll.u32 %v2895, 16
      %v3278 = vrot.slane %v3276, 5
      %v3279 = vsel %vm288, %v3274, %v3278
      %v3328 = vrot.slane %v2848, 5
      %v3329 = vrot.slane %v3328, 4
      %v3330 = vrot.slane %v2849, 5
      %v3331 = vsel %vm723, %v3329, %v3330
      %v3332 = vrot.slane %v3330, 4
      %v3333 = vrot.slane %v2850, 5
      %v3334 = vsel %vm723, %v3332, %v3333
      %v3335 = vrot.slane %v2851, 5
      %v3336 = vrot.slane %v3335, 4
      %v3337 = vrot.slane %v2852, 5
      %v3338 = vsel %vm723, %v3336, %v3337
      %v3339 = vrot.slane %v3337, 4
      %v3340 = vrot.slane %v2853, 5
      %v3341 = vsel %vm723, %v3339, %v3340
      %v3342 = vrot.slane %v2854, 5
      %v3343 = vrot.slane %v3342, 4
      %v3344 = vrot.slane %v2855, 5
      %v3345 = vsel %vm723, %v3343, %v3344
      %v3346 = vrot.slane %v3344, 4
      %v3347 = vrot.slane %v2856, 5
      %v3348 = vsel %vm723, %v3346, %v3347
      %v3349 = vrot.slane %v2857, 5
      %v3350 = vrot.slane %v3349, 4
      %v3351 = vrot.slane %v2858, 5
      %v3352 = vsel %vm723, %v3350, %v3351
      %v3353 = vrot.slane %v3351, 4
      %v3354 = vrot.slane %v2859, 5
      %v3355 = vsel %vm723, %v3353, %v3354
      %v3356 = vrot.slane %v2860, 5
      %v3357 = vrot.slane %v3356, 4
      %v3358 = vrot.slane %v2861, 5
      %v3359 = vsel %vm723, %v3357, %v3358
      %v3360 = vrot.slane %v3358, 4
      %v3361 = vrot.slane %v2862, 5
      %v3362 = vsel %vm723, %v3360, %v3361
      %v3363 = vrot.slane %v2863, 5
      %v3364 = vrot.slane %v3363, 4
      %v3365 = vrot.slane %v2864, 5
      %v3366 = vsel %vm723, %v3364, %v3365
      %v3367 = vrot.slane %v3365, 4
      %v3368 = vrot.slane %v2865, 5
      %v3369 = vsel %vm723, %v3367, %v3368
      %v3370 = vrot.slane %v2866, 5
      %v3371 = vrot.slane %v3370, 4
      %v3372 = vrot.slane %v2867, 5
      %v3373 = vsel %vm723, %v3371, %v3372
      %v3374 = vrot.slane %v3372, 4
      %v3375 = vrot.slane %v2868, 5
      %v3376 = vsel %vm723, %v3374, %v3375
      %v3377 = vrot.slane %v2869, 5
      %v3378 = vrot.slane %v3377, 4
      %v3379 = vrot.slane %v2870, 5
      %v3380 = vsel %vm723, %v3378, %v3379
      %v3381 = vrot.slane %v3379, 4
      %v3382 = vrot.slane %v2871, 5
      %v3383 = vsel %vm723, %v3381, %v3382
      %v3384 = vrot.slane %v2872, 5
      %v3385 = vrot.slane %v3384, 4
      %v3386 = vrot.slane %v2873, 5
      %v3387 = vsel %vm723, %v3385, %v3386
      %v3388 = vrot.slane %v3386, 4
      %v3389 = vrot.slane %v2874, 5
      %v3390 = vsel %vm723, %v3388, %v3389
      %v3391 = vrot.slane %v2875, 5
      %v3392 = vrot.slane %v3391, 4
      %v3393 = vrot.slane %v2876, 5
      %v3394 = vsel %vm723, %v3392, %v3393
      %v3395 = vrot.slane %v3393, 4
      %v3396 = vrot.slane %v2877, 5
      %v3397 = vsel %vm723, %v3395, %v3396
      %v3398 = vrot.slane %v2878, 5
      %v3399 = vrot.slane %v3398, 4
      %v3400 = vrot.slane %v2879, 5
      %v3401 = vsel %vm723, %v3399, %v3400
      %v3402 = vrot.slane %v3400, 4
      %v3403 = vrot.slane %v2880, 5
      %v3404 = vsel %vm723, %v3402, %v3403
      %v3405 = vrot.slane %v2881, 5
      %v3406 = vrot.slane %v3405, 4
      %v3407 = vrot.slane %v2882, 5
      %v3408 = vsel %vm723, %v3406, %v3407
      %v3409 = vrot.slane %v3407, 4
      %v3410 = vrot.slane %v2883, 5
      %v3411 = vsel %vm723, %v3409, %v3410
      %v3412 = vrot.slane %v2884, 5
      %v3413 = vrot.slane %v3412, 4
      %v3414 = vrot.slane %v2885, 5
      %v3415 = vsel %vm723, %v3413, %v3414
      %v3416 = vrot.slane %v3414, 4
      %v3417 = vrot.slane %v2886, 5
      %v3418 = vsel %vm723, %v3416, %v3417
      %v3419 = vrot.slane %v2887, 5
      %v3420 = vrot.slane %v3419, 4
      %v3421 = vrot.slane %v2888, 5
      %v3422 = vsel %vm723, %v3420, %v3421
      %v3423 = vrot.slane %v3421, 4
      %v3424 = vrot.slane %v2889, 5
      %v3425 = vsel %vm723, %v3423, %v3424
      %v3426 = vrot.slane %v2890, 5
      %v3427 = vrot.slane %v3426, 4
      %v3428 = vrot.slane %v2891, 5
      %v3429 = vsel %vm723, %v3427, %v3428
      %v3430 = vrot.slane %v3428, 4
      %v3431 = vrot.slane %v2892, 5
      %v3432 = vsel %vm723, %v3430, %v3431
      %v3433 = vrot.slane %v2893, 5
      %v3434 = vrot.slane %v3433, 4
      %v3435 = vrot.slane %v2894, 5
      %v3436 = vsel %vm723, %v3434, %v3435
      %v3437 = vrot.slane %v3435, 4
      %v3438 = vrot.slane %v2895, 5
      %v3439 = vsel %vm723, %v3437, %v3438
      %v3440 = vunpack.c.l.b16 %v2848
      %v3441 = vunpack.c.l.b16 %v2849
      %v3442 = vunpack.c.l.b16 %v2851
      %v3443 = vunpack.c.l.b16 %v2852
      %v3444 = vunpack.c.l.b16 %v2854
      %v3445 = vunpack.c.l.b16 %v2855
      %v3446 = vunpack.c.l.b16 %v2857
      %v3447 = vunpack.c.l.b16 %v2858
      %v3448 = vunpack.c.l.b16 %v2860
      %v3449 = vunpack.c.l.b16 %v2861
      %v3450 = vunpack.c.l.b16 %v2863
      %v3451 = vunpack.c.l.b16 %v2864
      %v3452 = vunpack.c.l.b16 %v2866
      %v3453 = vunpack.c.l.b16 %v2867
      %v3454 = vunpack.c.l.b16 %v2869
      %v3455 = vunpack.c.l.b16 %v2870
      %v3456 = vunpack.c.l.b16 %v2872
      %v3457 = vunpack.c.l.b16 %v2873
      %v3458 = vunpack.c.l.b16 %v2875
      %v3459 = vunpack.c.l.b16 %v2876
      %v3460 = vunpack.c.l.b16 %v2878
      %v3461 = vunpack.c.l.b16 %v2879
      %v3462 = vunpack.c.l.b16 %v2881
      %v3463 = vunpack.c.l.b16 %v2882
      %v3464 = vunpack.c.l.b16 %v2884
      %v3465 = vunpack.c.l.b16 %v2885
      %v3466 = vunpack.c.l.b16 %v2887
      %v3467 = vunpack.c.l.b16 %v2888
      %v3468 = vunpack.c.l.b16 %v2890
      %v3469 = vunpack.c.l.b16 %v2891
      %v3470 = vunpack.c.l.b16 %v2893
      %v3471 = vunpack.c.l.b16 %v2894
      %v3472 = vpack.c.b16 %v3441, %v3440
      %v3473 = vpack.c.b16 %v3443, %v3442
      %v3474 = vpack.c.b16 %v3445, %v3444
      %v3475 = vpack.c.b16 %v3447, %v3446
      %v3476 = vpack.c.b16 %v3449, %v3448
      %v3477 = vpack.c.b16 %v3451, %v3450
      %v3478 = vpack.c.b16 %v3453, %v3452
      %v3479 = vpack.c.b16 %v3455, %v3454
      %v3480 = vpack.c.b16 %v3457, %v3456
      %v3481 = vpack.c.b16 %v3459, %v3458
      %v3482 = vpack.c.b16 %v3461, %v3460
      %v3483 = vpack.c.b16 %v3463, %v3462
      %v3484 = vpack.c.b16 %v3465, %v3464
      %v3485 = vpack.c.b16 %v3467, %v3466
      %v3486 = vpack.c.b16 %v3469, %v3468
      %v3487 = vpack.c.b16 %v3471, %v3470
      %v3504 = vunpack.c.l.b16 %v2909
      %v3505 = vunpack.c.l.b16 %v2919
      %v3506 = vunpack.c.l.b16 %v2933
      %v3507 = vunpack.c.l.b16 %v2943
      %v3508 = vunpack.c.l.b16 %v2957
      %v3509 = vunpack.c.l.b16 %v2967
      %v3510 = vunpack.c.l.b16 %v2981
      %v3511 = vunpack.c.l.b16 %v2991
      %v3512 = vunpack.c.l.b16 %v3005
      %v3513 = vunpack.c.l.b16 %v3015
      %v3514 = vunpack.c.l.b16 %v3029
      %v3515 = vunpack.c.l.b16 %v3039
      %v3516 = vunpack.c.l.b16 %v3053
      %v3517 = vunpack.c.l.b16 %v3063
      %v3518 = vunpack.c.l.b16 %v3077
      %v3519 = vunpack.c.l.b16 %v3087
      %v3520 = vunpack.c.l.b16 %v3101
      %v3521 = vunpack.c.l.b16 %v3111
      %v3522 = vunpack.c.l.b16 %v3125
      %v3523 = vunpack.c.l.b16 %v3135
      %v3524 = vunpack.c.l.b16 %v3149
      %v3525 = vunpack.c.l.b16 %v3159
      %v3526 = vunpack.c.l.b16 %v3173
      %v3527 = vunpack.c.l.b16 %v3183
      %v3528 = vunpack.c.l.b16 %v3197
      %v3529 = vunpack.c.l.b16 %v3207
      %v3530 = vunpack.c.l.b16 %v3221
      %v3531 = vunpack.c.l.b16 %v3231
      %v3532 = vunpack.c.l.b16 %v3245
      %v3533 = vunpack.c.l.b16 %v3255
      %v3534 = vunpack.c.l.b16 %v3269
      %v3535 = vunpack.c.l.b16 %v3279
      %v3536 = vpack.c.b16 %v3505, %v3504
      %v3537 = vpack.c.b16 %v3507, %v3506
      %v3538 = vpack.c.b16 %v3509, %v3508
      %v3539 = vpack.c.b16 %v3511, %v3510
      %v3540 = vpack.c.b16 %v3513, %v3512
      %v3541 = vpack.c.b16 %v3515, %v3514
      %v3542 = vpack.c.b16 %v3517, %v3516
      %v3543 = vpack.c.b16 %v3519, %v3518
      %v3544 = vpack.c.b16 %v3521, %v3520
      %v3545 = vpack.c.b16 %v3523, %v3522
      %v3546 = vpack.c.b16 %v3525, %v3524
      %v3547 = vpack.c.b16 %v3527, %v3526
      %v3548 = vpack.c.b16 %v3529, %v3528
      %v3549 = vpack.c.b16 %v3531, %v3530
      %v3550 = vpack.c.b16 %v3533, %v3532
      %v3551 = vpack.c.b16 %v3535, %v3534
      %v3568 = vunpack.c.l.b16 %v3331
      %v3569 = vunpack.c.l.b16 %v3334
      %v3570 = vunpack.c.l.b16 %v3338
      %v3571 = vunpack.c.l.b16 %v3341
      %v3572 = vunpack.c.l.b16 %v3345
      %v3573 = vunpack.c.l.b16 %v3348
      %v3574 = vunpack.c.l.b16 %v3352
      %v3575 = vunpack.c.l.b16 %v3355
      %v3576 = vunpack.c.l.b16 %v3359
      %v3577 = vunpack.c.l.b16 %v3362
      %v3578 = vunpack.c.l.b16 %v3366
      %v3579 = vunpack.c.l.b16 %v3369
      %v3580 = vunpack.c.l.b16 %v3373
      %v3581 = vunpack.c.l.b16 %v3376
      %v3582 = vunpack.c.l.b16 %v3380
      %v3583 = vunpack.c.l.b16 %v3383
      %v3584 = vunpack.c.l.b16 %v3387
      %v3585 = vunpack.c.l.b16 %v3390
      %v3586 = vunpack.c.l.b16 %v3394
      %v3587 = vunpack.c.l.b16 %v3397
      %v3588 = vunpack.c.l.b16 %v3401
      %v3589 = vunpack.c.l.b16 %v3404
      %v3590 = vunpack.c.l.b16 %v3408
      %v3591 = vunpack.c.l.b16 %v3411
      %v3592 = vunpack.c.l.b16 %v3415
      %v3593 = vunpack.c.l.b16 %v3418
      %v3594 = vunpack.c.l.b16 %v3422
      %v3595 = vunpack.c.l.b16 %v3425
      %v3596 = vunpack.c.l.b16 %v3429
      %v3597 = vunpack.c.l.b16 %v3432
      %v3598 = vunpack.c.l.b16 %v3436
      %v3599 = vunpack.c.l.b16 %v3439
      %v3600 = vpack.c.b16 %v3569, %v3568
      %v3601 = vpack.c.b16 %v3571, %v3570
      %v3602 = vpack.c.b16 %v3573, %v3572
      %v3603 = vpack.c.b16 %v3575, %v3574
      %v3604 = vpack.c.b16 %v3577, %v3576
      %v3605 = vpack.c.b16 %v3579, %v3578
      %v3606 = vpack.c.b16 %v3581, %v3580
      %v3607 = vpack.c.b16 %v3583, %v3582
      %v3608 = vpack.c.b16 %v3585, %v3584
      %v3609 = vpack.c.b16 %v3587, %v3586
      %v3610 = vpack.c.b16 %v3589, %v3588
      %v3611 = vpack.c.b16 %v3591, %v3590
      %v3612 = vpack.c.b16 %v3593, %v3592
      %v3613 = vpack.c.b16 %v3595, %v3594
      %v3614 = vpack.c.b16 %v3597, %v3596
      %v3615 = vpack.c.b16 %v3599, %v3598
      %v3632 = vld [vmem:[%s1 + $0x180] sm:$0xf]
      %v3633 = vld [vmem:[%s1 + $0x184] sm:$0xf]
      %v3634 = vld [vmem:[%s1 + $0x188] sm:$0xf]
      %v3635 = vld [vmem:[%s1 + $0x18c] sm:$0xf]
      %v3636 = vld [vmem:[%s1 + $0x190] sm:$0xf]
      %v3637 = vld [vmem:[%s1 + $0x194] sm:$0xf]
      %v3638 = vld [vmem:[%s1 + $0x198] sm:$0xf]
      %v3639 = vld [vmem:[%s1 + $0x19c] sm:$0xf]
      %v3640 = vld [vmem:[%s1 + $0x1a0] sm:$0xf]
      %v3641 = vld [vmem:[%s1 + $0x1a4] sm:$0xf]
      %v3642 = vld [vmem:[%s1 + $0x1a8] sm:$0xf]
      %v3643 = vld [vmem:[%s1 + $0x1ac] sm:$0xf]
      %v3644 = vld [vmem:[%s1 + $0x1b0] sm:$0xf]
      %v3645 = vld [vmem:[%s1 + $0x1b4] sm:$0xf]
      %v3646 = vld [vmem:[%s1 + $0x1b8] sm:$0xf]
      %v3647 = vld [vmem:[%s1 + $0x1bc] sm:$0xf]
      %v3648 = vld [vmem:[%s1 + $0x1c0] sm:$0xf]
      %v3649 = vld [vmem:[%s1 + $0x1c4] sm:$0xf]
      %v3650 = vld [vmem:[%s1 + $0x1c8] sm:$0xf]
      %v3651 = vld [vmem:[%s1 + $0x1cc] sm:$0xf]
      %v3652 = vld [vmem:[%s1 + $0x1d0] sm:$0xf]
      %v3653 = vld [vmem:[%s1 + $0x1d4] sm:$0xf]
      %v3654 = vld [vmem:[%s1 + $0x1d8] sm:$0xf]
      %v3655 = vld [vmem:[%s1 + $0x1dc] sm:$0xf]
      %v3656 = vld [vmem:[%s1 + $0x1e0] sm:$0xf]
      %v3657 = vld [vmem:[%s1 + $0x1e4] sm:$0xf]
      %v3658 = vld [vmem:[%s1 + $0x1e8] sm:$0xf]
      %v3659 = vld [vmem:[%s1 + $0x1ec] sm:$0xf]
      %v3660 = vld [vmem:[%s1 + $0x1f0] sm:$0xf]
      %v3661 = vld [vmem:[%s1 + $0x1f4] sm:$0xf]
      %v3662 = vld [vmem:[%s1 + $0x1f8] sm:$0xf]
      %v3663 = vld [vmem:[%s1 + $0x1fc] sm:$0xf]
      %v3664 = vld [vmem:[%s1 + $0x200] sm:$0xf]
      %v3665 = vld [vmem:[%s1 + $0x204] sm:$0xf]
      %v3666 = vld [vmem:[%s1 + $0x208] sm:$0xf]
      %v3667 = vld [vmem:[%s1 + $0x20c] sm:$0xf]
      %v3668 = vld [vmem:[%s1 + $0x210] sm:$0xf]
      %v3669 = vld [vmem:[%s1 + $0x214] sm:$0xf]
      %v3670 = vld [vmem:[%s1 + $0x218] sm:$0xf]
      %v3671 = vld [vmem:[%s1 + $0x21c] sm:$0xf]
      %v3672 = vld [vmem:[%s1 + $0x220] sm:$0xf]
      %v3673 = vld [vmem:[%s1 + $0x224] sm:$0xf]
      %v3674 = vld [vmem:[%s1 + $0x228] sm:$0xf]
      %v3675 = vld [vmem:[%s1 + $0x22c] sm:$0xf]
      %v3676 = vld [vmem:[%s1 + $0x230] sm:$0xf]
      %v3677 = vld [vmem:[%s1 + $0x234] sm:$0xf]
      %v3678 = vld [vmem:[%s1 + $0x238] sm:$0xf]
      %v3679 = vld [vmem:[%s1 + $0x23c] sm:$0xf]
      %v3728 = vunpack.c.l.b16 %v3632
      %v3729 = vunpack.c.l.b16 %v3633
      %v3730 = vunpack.c.l.b16 %v3634
      %v3731 = vunpack.c.l.b16 %v3635
      %v3732 = vunpack.c.l.b16 %v3636
      %v3733 = vunpack.c.l.b16 %v3637
      %v3734 = vunpack.c.l.b16 %v3638
      %v3735 = vunpack.c.l.b16 %v3639
      %v3736 = vunpack.c.l.b16 %v3640
      %v3737 = vunpack.c.l.b16 %v3641
      %v3738 = vunpack.c.l.b16 %v3642
      %v3739 = vunpack.c.l.b16 %v3643
      %v3740 = vunpack.c.l.b16 %v3644
      %v3741 = vunpack.c.l.b16 %v3645
      %v3742 = vunpack.c.l.b16 %v3646
      %v3743 = vunpack.c.l.b16 %v3647
      %v3744 = vunpack.c.l.b16 %v3648
      %v3745 = vunpack.c.l.b16 %v3649
      %v3746 = vunpack.c.l.b16 %v3650
      %v3747 = vunpack.c.l.b16 %v3651
      %v3748 = vunpack.c.l.b16 %v3652
      %v3749 = vunpack.c.l.b16 %v3653
      %v3750 = vunpack.c.l.b16 %v3654
      %v3751 = vunpack.c.l.b16 %v3655
      %v3752 = vunpack.c.l.b16 %v3656
      %v3753 = vunpack.c.l.b16 %v3657
      %v3754 = vunpack.c.l.b16 %v3658
      %v3755 = vunpack.c.l.b16 %v3659
      %v3756 = vunpack.c.l.b16 %v3660
      %v3757 = vunpack.c.l.b16 %v3661
      %v3758 = vunpack.c.l.b16 %v3662
      %v3759 = vunpack.c.l.b16 %v3663
      %v3760 = vunpack.c.l.b16 %v3664
      %v3761 = vunpack.c.l.b16 %v3665
      %v3762 = vunpack.c.l.b16 %v3666
      %v3763 = vunpack.c.l.b16 %v3667
      %v3764 = vunpack.c.l.b16 %v3668
      %v3765 = vunpack.c.l.b16 %v3669
      %v3766 = vunpack.c.l.b16 %v3670
      %v3767 = vunpack.c.l.b16 %v3671
      %v3768 = vunpack.c.l.b16 %v3672
      %v3769 = vunpack.c.l.b16 %v3673
      %v3770 = vunpack.c.l.b16 %v3674
      %v3771 = vunpack.c.l.b16 %v3675
      %v3772 = vunpack.c.l.b16 %v3676
      %v3773 = vunpack.c.l.b16 %v3677
      %v3774 = vunpack.c.l.b16 %v3678
      %v3775 = vunpack.c.l.b16 %v3679
      %v3776 = vpack.c.b16 %v3729, %v3728
      %v3777 = vpack.c.b16 %v3731, %v3730
      %v3778 = vpack.c.b16 %v3733, %v3732
      %v3779 = vpack.c.b16 %v3735, %v3734
      %v3780 = vpack.c.b16 %v3737, %v3736
      %v3781 = vpack.c.b16 %v3739, %v3738
      %v3782 = vpack.c.b16 %v3741, %v3740
      %v3783 = vpack.c.b16 %v3743, %v3742
      %v3784 = vpack.c.b16 %v3745, %v3744
      %v3785 = vpack.c.b16 %v3747, %v3746
      %v3786 = vpack.c.b16 %v3749, %v3748
      %v3787 = vpack.c.b16 %v3751, %v3750
      %v3788 = vpack.c.b16 %v3753, %v3752
      %v3789 = vpack.c.b16 %v3755, %v3754
      %v3790 = vpack.c.b16 %v3757, %v3756
      %v3791 = vpack.c.b16 %v3759, %v3758
      %v3792 = vpack.c.b16 %v3761, %v3760
      %v3793 = vpack.c.b16 %v3763, %v3762
      %v3794 = vpack.c.b16 %v3765, %v3764
      %v3795 = vpack.c.b16 %v3767, %v3766
      %v3796 = vpack.c.b16 %v3769, %v3768
      %v3797 = vpack.c.b16 %v3771, %v3770
      %v3798 = vpack.c.b16 %v3773, %v3772
      %v3799 = vpack.c.b16 %v3775, %v3774
      %3824 = vmatprep.subr.bf16.mxu0 0
      %3825 = vmatpush1.bf16.msra.mxu0 %v3783
      %3826 = vmatprep.subr.bf16.mxu0 0
      %3827 = vmatpush1.bf16.msra.mxu0 %v3782
      %3828 = vmatprep.subr.bf16.mxu0 0
      %3829 = vmatpush1.bf16.msra.mxu0 %v3781
      %3830 = vmatprep.subr.bf16.mxu0 0
      %3831 = vmatpush1.bf16.msra.mxu0 %v3780
      %3832 = vmatprep.subr.bf16.mxu0 0
      %3833 = vmatpush1.bf16.msra.mxu0 %v3779
      %3834 = vmatprep.subr.bf16.mxu0 0
      %3835 = vmatpush1.bf16.msra.mxu0 %v3778
      %3836 = vmatprep.subr.bf16.mxu0 0
      %3837 = vmatpush1.bf16.msra.mxu0 %v3777
      %3838 = vmatprep.subr.bf16.mxu0 0
      %3839 = vmatpush1.bf16.msra.mxu0 %v3776
      %3840 = vmatprep.subr.bf16.mxu0 0
      %3841 = vmatpush2.bf16.msra.mxu0 %v3791
      %3842 = vmatprep.subr.bf16.mxu0 0
      %3843 = vmatpush2.bf16.msra.mxu0 %v3790
      %3844 = vmatprep.subr.bf16.mxu0 0
      %3845 = vmatpush2.bf16.msra.mxu0 %v3789
      %3846 = vmatprep.subr.bf16.mxu0 0
      %3847 = vmatpush2.bf16.msra.mxu0 %v3788
      %3848 = vmatprep.subr.bf16.mxu0 0
      %3849 = vmatpush2.bf16.msra.mxu0 %v3787
      %3850 = vmatprep.subr.bf16.mxu0 0
      %3851 = vmatpush2.bf16.msra.mxu0 %v3786
      %3852 = vmatprep.subr.bf16.mxu0 0
      %3853 = vmatpush2.bf16.msra.mxu0 %v3785
      %3854 = vmatprep.subr.bf16.mxu0 0
      %3855 = vmatpush2.bf16.msra.mxu0 %v3784
      %3856 = vmatprep.mubr.bf16.mxu0 %v3536
      %3857 = vmatmul.mubr.bf16.gmra.mxu0 %v3472
      %v3858 = vpop.f32.mrf.mxu0
      %v3859 = vadd.f32 0.0, %v3858
      %v3860 = vpop.f32.mrf.mxu0
      %v3861 = vpop.f32.mrf.mxu0
      %v3862 = vadd.f32 0.0, %v3861
      %v3863 = vpop.f32.mrf.mxu0
      %3864 = vmatprep.mubr.bf16.mxu0 %v3537
      %3865 = vmatmul.mubr.bf16.gmra.mxu0 %v3473
      %v3866 = vpop.f32.mrf.mxu0
      %v3867 = vadd.f32 0.0, %v3866
      %v3868 = vpop.f32.mrf.mxu0
      %v3869 = vpop.f32.mrf.mxu0
      %v3870 = vadd.f32 0.0, %v3869
      %v3871 = vpop.f32.mrf.mxu0
      %3872 = vmatprep.mubr.bf16.mxu0 %v3538
      %3873 = vmatmul.mubr.bf16.gmra.mxu0 %v3474
      %v3874 = vpop.f32.mrf.mxu0
      %v3875 = vadd.f32 0.0, %v3874
      %v3876 = vpop.f32.mrf.mxu0
      %v3877 = vpop.f32.mrf.mxu0
      %v3878 = vadd.f32 0.0, %v3877
      %v3879 = vpop.f32.mrf.mxu0
      %3880 = vmatprep.mubr.bf16.mxu0 %v3539
      %3881 = vmatmul.mubr.bf16.gmra.mxu0 %v3475
      %v3882 = vpop.f32.mrf.mxu0
      %v3883 = vadd.f32 0.0, %v3882
      %v3884 = vpop.f32.mrf.mxu0
      %v3885 = vpop.f32.mrf.mxu0
      %v3886 = vadd.f32 0.0, %v3885
      %v3887 = vpop.f32.mrf.mxu0
      %3888 = vmatprep.mubr.bf16.mxu0 %v3540
      %3889 = vmatmul.mubr.bf16.gmra.mxu0 %v3476
      %v3890 = vpop.f32.mrf.mxu0
      %v3891 = vadd.f32 0.0, %v3890
      %v3892 = vpop.f32.mrf.mxu0
      %v3893 = vpop.f32.mrf.mxu0
      %v3894 = vadd.f32 0.0, %v3893
      %v3895 = vpop.f32.mrf.mxu0
      %3896 = vmatprep.mubr.bf16.mxu0 %v3541
      %3897 = vmatmul.mubr.bf16.gmra.mxu0 %v3477
      %v3898 = vpop.f32.mrf.mxu0
      %v3899 = vadd.f32 0.0, %v3898
      %v3900 = vpop.f32.mrf.mxu0
      %v3901 = vpop.f32.mrf.mxu0
      %v3902 = vadd.f32 0.0, %v3901
      %v3903 = vpop.f32.mrf.mxu0
      %3904 = vmatprep.mubr.bf16.mxu0 %v3542
      %3905 = vmatmul.mubr.bf16.gmra.mxu0 %v3478
      %v3906 = vpop.f32.mrf.mxu0
      %v3907 = vadd.f32 0.0, %v3906
      %v3908 = vpop.f32.mrf.mxu0
      %v3909 = vpop.f32.mrf.mxu0
      %v3910 = vadd.f32 0.0, %v3909
      %v3911 = vpop.f32.mrf.mxu0
      %3912 = vmatprep.mubr.bf16.mxu0 %v3543
      %3913 = vmatmul.mubr.bf16.gmra.mxu0 %v3479
      %v3914 = vpop.f32.mrf.mxu0
      %v3915 = vadd.f32 0.0, %v3914
      %v3916 = vpop.f32.mrf.mxu0
      %v3917 = vpop.f32.mrf.mxu0
      %v3918 = vadd.f32 0.0, %v3917
      %v3919 = vpop.f32.mrf.mxu0
      %3920 = vmatprep.mubr.bf16.mxu0 %v3544
      %3921 = vmatmul.mubr.bf16.gmra.mxu0 %v3480
      %v3922 = vpop.f32.mrf.mxu0
      %v3923 = vadd.f32 0.0, %v3922
      %v3924 = vpop.f32.mrf.mxu0
      %v3925 = vpop.f32.mrf.mxu0
      %v3926 = vadd.f32 0.0, %v3925
      %v3927 = vpop.f32.mrf.mxu0
      %3928 = vmatprep.mubr.bf16.mxu0 %v3545
      %3929 = vmatmul.mubr.bf16.gmra.mxu0 %v3481
      %v3930 = vpop.f32.mrf.mxu0
      %v3931 = vadd.f32 0.0, %v3930
      %v3932 = vpop.f32.mrf.mxu0
      %v3933 = vpop.f32.mrf.mxu0
      %v3934 = vadd.f32 0.0, %v3933
      %v3935 = vpop.f32.mrf.mxu0
      %3936 = vmatprep.mubr.bf16.mxu0 %v3546
      %3937 = vmatmul.mubr.bf16.gmra.mxu0 %v3482
      %v3938 = vpop.f32.mrf.mxu0
      %v3939 = vadd.f32 0.0, %v3938
      %v3940 = vpop.f32.mrf.mxu0
      %v3941 = vpop.f32.mrf.mxu0
      %v3942 = vadd.f32 0.0, %v3941
      %v3943 = vpop.f32.mrf.mxu0
      %3944 = vmatprep.mubr.bf16.mxu0 %v3547
      %3945 = vmatmul.mubr.bf16.gmra.mxu0 %v3483
      %v3946 = vpop.f32.mrf.mxu0
      %v3947 = vadd.f32 0.0, %v3946
      %v3948 = vpop.f32.mrf.mxu0
      %v3949 = vpop.f32.mrf.mxu0
      %v3950 = vadd.f32 0.0, %v3949
      %v3951 = vpop.f32.mrf.mxu0
      %3952 = vmatprep.mubr.bf16.mxu0 %v3548
      %3953 = vmatmul.mubr.bf16.gmra.mxu0 %v3484
      %v3954 = vpop.f32.mrf.mxu0
      %v3955 = vadd.f32 0.0, %v3954
      %v3956 = vpop.f32.mrf.mxu0
      %v3957 = vpop.f32.mrf.mxu0
      %v3958 = vadd.f32 0.0, %v3957
      %v3959 = vpop.f32.mrf.mxu0
      %3960 = vmatprep.mubr.bf16.mxu0 %v3549
      %3961 = vmatmul.mubr.bf16.gmra.mxu0 %v3485
      %v3962 = vpop.f32.mrf.mxu0
      %v3963 = vadd.f32 0.0, %v3962
      %v3964 = vpop.f32.mrf.mxu0
      %v3965 = vpop.f32.mrf.mxu0
      %v3966 = vadd.f32 0.0, %v3965
      %v3967 = vpop.f32.mrf.mxu0
      %3968 = vmatprep.mubr.bf16.mxu0 %v3550
      %3969 = vmatmul.mubr.bf16.gmra.mxu0 %v3486
      %v3970 = vpop.f32.mrf.mxu0
      %v3971 = vadd.f32 0.0, %v3970
      %v3972 = vpop.f32.mrf.mxu0
      %v3973 = vpop.f32.mrf.mxu0
      %v3974 = vadd.f32 0.0, %v3973
      %v3975 = vpop.f32.mrf.mxu0
      %3976 = vmatprep.mubr.bf16.mxu0 %v3551
      %3977 = vmatmul.mubr.bf16.gmra.mxu0 %v3487
      %v3978 = vpop.f32.mrf.mxu0
      %v3979 = vadd.f32 0.0, %v3978
      %v3980 = vpop.f32.mrf.mxu0
      %v3981 = vpop.f32.mrf.mxu0
      %v3982 = vadd.f32 0.0, %v3981
      %v3983 = vpop.f32.mrf.mxu0
      %3984 = vdwg.mxu0
      %3985 = vmatprep.subr.bf16.mxu0 0
      %3986 = vmatpush1.bf16.msra.mxu0 %v3799
      %3987 = vmatprep.subr.bf16.mxu0 0
      %3988 = vmatpush1.bf16.msra.mxu0 %v3798
      %3989 = vmatprep.subr.bf16.mxu0 0
      %3990 = vmatpush1.bf16.msra.mxu0 %v3797
      %3991 = vmatprep.subr.bf16.mxu0 0
      %3992 = vmatpush1.bf16.msra.mxu0 %v3796
      %3993 = vmatprep.subr.bf16.mxu0 0
      %3994 = vmatpush1.bf16.msra.mxu0 %v3795
      %3995 = vmatprep.subr.bf16.mxu0 0
      %3996 = vmatpush1.bf16.msra.mxu0 %v3794
      %3997 = vmatprep.subr.bf16.mxu0 0
      %3998 = vmatpush1.bf16.msra.mxu0 %v3793
      %3999 = vmatprep.subr.bf16.mxu0 0
      %4000 = vmatpush1.bf16.msra.mxu0 %v3792
      %4001 = vmatprep.subr.bf16.mxu0 0
      %4002 = vmatpush2.bf16.msra.mxu0 0
      %4003 = vmatprep.subr.bf16.mxu0 0
      %4004 = vmatpush2.bf16.msra.mxu0 0
      %4005 = vmatprep.subr.bf16.mxu0 0
      %4006 = vmatpush2.bf16.msra.mxu0 0
      %4007 = vmatprep.subr.bf16.mxu0 0
      %4008 = vmatpush2.bf16.msra.mxu0 0
      %4009 = vmatprep.subr.bf16.mxu0 0
      %4010 = vmatpush2.bf16.msra.mxu0 0
      %4011 = vmatprep.subr.bf16.mxu0 0
      %4012 = vmatpush2.bf16.msra.mxu0 0
      %4013 = vmatprep.subr.bf16.mxu0 0
      %4014 = vmatpush2.bf16.msra.mxu0 0
      %4015 = vmatprep.subr.bf16.mxu0 0
      %4016 = vmatpush2.bf16.msra.mxu0 0
      %4017 = vmatprep.mubr.bf16.mxu0 0
      %4018 = vmatmul.mubr.bf16.gmra.mxu0 %v3600
      %v4019 = vpop.f32.mrf.mxu0
      %v4020 = vadd.f32 %v3859, %v4019
      %v4021 = vpop.f32.mrf.mxu0
      %v4022 = vpop.f32.mrf.mxu0
      %v4023 = vadd.f32 %v3862, %v4022
      %v4024 = vpop.f32.mrf.mxu0
      %4025 = vmatprep.mubr.bf16.mxu0 0
      %4026 = vmatmul.mubr.bf16.gmra.mxu0 %v3601
      %v4027 = vpop.f32.mrf.mxu0
      %v4028 = vadd.f32 %v3867, %v4027
      %v4029 = vpop.f32.mrf.mxu0
      %v4030 = vpop.f32.mrf.mxu0
      %v4031 = vadd.f32 %v3870, %v4030
      %v4032 = vpop.f32.mrf.mxu0
      %4033 = vmatprep.mubr.bf16.mxu0 0
      %4034 = vmatmul.mubr.bf16.gmra.mxu0 %v3602
      %v4035 = vpop.f32.mrf.mxu0
      %v4036 = vadd.f32 %v3875, %v4035
      %v4037 = vpop.f32.mrf.mxu0
      %v4038 = vpop.f32.mrf.mxu0
      %v4039 = vadd.f32 %v3878, %v4038
      %v4040 = vpop.f32.mrf.mxu0
      %4041 = vmatprep.mubr.bf16.mxu0 0
      %4042 = vmatmul.mubr.bf16.gmra.mxu0 %v3603
      %v4043 = vpop.f32.mrf.mxu0
      %v4044 = vadd.f32 %v3883, %v4043
      %v4045 = vpop.f32.mrf.mxu0
      %v4046 = vpop.f32.mrf.mxu0
      %v4047 = vadd.f32 %v3886, %v4046
      %v4048 = vpop.f32.mrf.mxu0
      %4049 = vmatprep.mubr.bf16.mxu0 0
      %4050 = vmatmul.mubr.bf16.gmra.mxu0 %v3604
      %v4051 = vpop.f32.mrf.mxu0
      %v4052 = vadd.f32 %v3891, %v4051
      %v4053 = vpop.f32.mrf.mxu0
      %v4054 = vpop.f32.mrf.mxu0
      %v4055 = vadd.f32 %v3894, %v4054
      %v4056 = vpop.f32.mrf.mxu0
      %4057 = vmatprep.mubr.bf16.mxu0 0
      %4058 = vmatmul.mubr.bf16.gmra.mxu0 %v3605
      %v4059 = vpop.f32.mrf.mxu0
      %v4060 = vadd.f32 %v3899, %v4059
      %v4061 = vpop.f32.mrf.mxu0
      %v4062 = vpop.f32.mrf.mxu0
      %v4063 = vadd.f32 %v3902, %v4062
      %v4064 = vpop.f32.mrf.mxu0
      %4065 = vmatprep.mubr.bf16.mxu0 0
      %4066 = vmatmul.mubr.bf16.gmra.mxu0 %v3606
      %v4067 = vpop.f32.mrf.mxu0
      %v4068 = vadd.f32 %v3907, %v4067
      %v4069 = vpop.f32.mrf.mxu0
      %v4070 = vpop.f32.mrf.mxu0
      %v4071 = vadd.f32 %v3910, %v4070
      %v4072 = vpop.f32.mrf.mxu0
      %4073 = vmatprep.mubr.bf16.mxu0 0
      %4074 = vmatmul.mubr.bf16.gmra.mxu0 %v3607
      %v4075 = vpop.f32.mrf.mxu0
      %v4076 = vadd.f32 %v3915, %v4075
      %v4077 = vpop.f32.mrf.mxu0
      %v4078 = vpop.f32.mrf.mxu0
      %v4079 = vadd.f32 %v3918, %v4078
      %v4080 = vpop.f32.mrf.mxu0
      %4081 = vmatprep.mubr.bf16.mxu0 0
      %4082 = vmatmul.mubr.bf16.gmra.mxu0 %v3608
      %v4083 = vpop.f32.mrf.mxu0
      %v4084 = vadd.f32 %v3923, %v4083
      %v4085 = vpop.f32.mrf.mxu0
      %v4086 = vpop.f32.mrf.mxu0
      %v4087 = vadd.f32 %v3926, %v4086
      %v4088 = vpop.f32.mrf.mxu0
      %4089 = vmatprep.mubr.bf16.mxu0 0
      %4090 = vmatmul.mubr.bf16.gmra.mxu0 %v3609
      %v4091 = vpop.f32.mrf.mxu0
      %v4092 = vadd.f32 %v3931, %v4091
      %v4093 = vpop.f32.mrf.mxu0
      %v4094 = vpop.f32.mrf.mxu0
      %v4095 = vadd.f32 %v3934, %v4094
      %v4096 = vpop.f32.mrf.mxu0
      %4097 = vmatprep.mubr.bf16.mxu0 0
      %4098 = vmatmul.mubr.bf16.gmra.mxu0 %v3610
      %v4099 = vpop.f32.mrf.mxu0
      %v4100 = vadd.f32 %v3939, %v4099
      %v4101 = vpop.f32.mrf.mxu0
      %v4102 = vpop.f32.mrf.mxu0
      %v4103 = vadd.f32 %v3942, %v4102
      %v4104 = vpop.f32.mrf.mxu0
      %4105 = vmatprep.mubr.bf16.mxu0 0
      %4106 = vmatmul.mubr.bf16.gmra.mxu0 %v3611
      %v4107 = vpop.f32.mrf.mxu0
      %v4108 = vadd.f32 %v3947, %v4107
      %v4109 = vpop.f32.mrf.mxu0
      %v4110 = vpop.f32.mrf.mxu0
      %v4111 = vadd.f32 %v3950, %v4110
      %v4112 = vpop.f32.mrf.mxu0
      %4113 = vmatprep.mubr.bf16.mxu0 0
      %4114 = vmatmul.mubr.bf16.gmra.mxu0 %v3612
      %v4115 = vpop.f32.mrf.mxu0
      %v4116 = vadd.f32 %v3955, %v4115
      %v4117 = vpop.f32.mrf.mxu0
      %v4118 = vpop.f32.mrf.mxu0
      %v4119 = vadd.f32 %v3958, %v4118
      %v4120 = vpop.f32.mrf.mxu0
      %4121 = vmatprep.mubr.bf16.mxu0 0
      %4122 = vmatmul.mubr.bf16.gmra.mxu0 %v3613
      %v4123 = vpop.f32.mrf.mxu0
      %v4124 = vadd.f32 %v3963, %v4123
      %v4125 = vpop.f32.mrf.mxu0
      %v4126 = vpop.f32.mrf.mxu0
      %v4127 = vadd.f32 %v3966, %v4126
      %v4128 = vpop.f32.mrf.mxu0
      %4129 = vmatprep.mubr.bf16.mxu0 0
      %4130 = vmatmul.mubr.bf16.gmra.mxu0 %v3614
      %v4131 = vpop.f32.mrf.mxu0
      %v4132 = vadd.f32 %v3971, %v4131
      %v4133 = vpop.f32.mrf.mxu0
      %v4134 = vpop.f32.mrf.mxu0
      %v4135 = vadd.f32 %v3974, %v4134
      %v4136 = vpop.f32.mrf.mxu0
      %4137 = vmatprep.mubr.bf16.mxu0 0
      %4138 = vmatmul.mubr.bf16.gmra.mxu0 %v3615
      %v4139 = vpop.f32.mrf.mxu0
      %v4140 = vadd.f32 %v3979, %v4139
      %v4141 = vpop.f32.mrf.mxu0
      %v4142 = vpop.f32.mrf.mxu0
      %v4143 = vadd.f32 %v3982, %v4142
      %v4144 = vpop.f32.mrf.mxu0
      %4145 = vdwg.mxu0
      %v4146 = vadd.f32 %v2718, %v4020
      %v4147 = vadd.f32 %v2721, %v4023
      %v4148 = vadd.f32 %v2726, %v4028
      %v4149 = vadd.f32 %v2729, %v4031
      %v4150 = vadd.f32 %v2734, %v4036
      %v4151 = vadd.f32 %v2737, %v4039
      %v4152 = vadd.f32 %v2742, %v4044
      %v4153 = vadd.f32 %v2745, %v4047
      %v4154 = vadd.f32 %v2750, %v4052
      %v4155 = vadd.f32 %v2753, %v4055
      %v4156 = vadd.f32 %v2758, %v4060
      %v4157 = vadd.f32 %v2761, %v4063
      %v4158 = vadd.f32 %v2766, %v4068
      %v4159 = vadd.f32 %v2769, %v4071
      %v4160 = vadd.f32 %v2774, %v4076
      %v4161 = vadd.f32 %v2777, %v4079
      %v4162 = vadd.f32 %v2782, %v4084
      %v4163 = vadd.f32 %v2785, %v4087
      %v4164 = vadd.f32 %v2790, %v4092
      %v4165 = vadd.f32 %v2793, %v4095
      %v4166 = vadd.f32 %v2798, %v4100
      %v4167 = vadd.f32 %v2801, %v4103
      %v4168 = vadd.f32 %v2806, %v4108
      %v4169 = vadd.f32 %v2809, %v4111
      %v4170 = vadd.f32 %v2814, %v4116
      %v4171 = vadd.f32 %v2817, %v4119
      %v4172 = vadd.f32 %v2822, %v4124
      %v4173 = vadd.f32 %v2825, %v4127
      %v4174 = vadd.f32 %v2830, %v4132
      %v4175 = vadd.f32 %v2833, %v4135
      %v4176 = vadd.f32 %v2838, %v4140
      %v4177 = vadd.f32 %v2841, %v4143
      %v4179 = vlaneseq
      %v4180 = vshrl.u32 %v4179, 7
      %v4181 = vsub.s32 0, %v4180
      %v4182 = vrot.slane %v233, %v4181
      %v4184 = vadd.f32 %v4146, %v4182
      %v4185 = vadd.f32 %v4147, %v4182
      %v4186 = vadd.f32 %v4148, %v4182
      %v4187 = vadd.f32 %v4149, %v4182
      %v4188 = vadd.f32 %v4150, %v4182
      %v4189 = vadd.f32 %v4151, %v4182
      %v4190 = vadd.f32 %v4152, %v4182
      %v4191 = vadd.f32 %v4153, %v4182
      %v4192 = vadd.f32 %v4154, %v4182
      %v4193 = vadd.f32 %v4155, %v4182
      %v4194 = vadd.f32 %v4156, %v4182
      %v4195 = vadd.f32 %v4157, %v4182
      %v4196 = vadd.f32 %v4158, %v4182
      %v4197 = vadd.f32 %v4159, %v4182
      %v4198 = vadd.f32 %v4160, %v4182
      %v4199 = vadd.f32 %v4161, %v4182
      %v4200 = vadd.f32 %v4162, %v4182
      %v4201 = vadd.f32 %v4163, %v4182
      %v4202 = vadd.f32 %v4164, %v4182
      %v4203 = vadd.f32 %v4165, %v4182
      %v4204 = vadd.f32 %v4166, %v4182
      %v4205 = vadd.f32 %v4167, %v4182
      %v4206 = vadd.f32 %v4168, %v4182
      %v4207 = vadd.f32 %v4169, %v4182
      %v4208 = vadd.f32 %v4170, %v4182
      %v4209 = vadd.f32 %v4171, %v4182
      %v4210 = vadd.f32 %v4172, %v4182
      %v4211 = vadd.f32 %v4173, %v4182
      %v4212 = vadd.f32 %v4174, %v4182
      %v4213 = vadd.f32 %v4175, %v4182
      %v4214 = vadd.f32 %v4176, %v4182
      %v4215 = vadd.f32 %v4177, %v4182
      %v4216 = vmax.f32 %v4184, 0.0
      %v4217 = vmax.f32 %v4185, 0.0
      %v4218 = vmax.f32 %v4186, 0.0
      %v4219 = vmax.f32 %v4187, 0.0
      %v4220 = vmax.f32 %v4188, 0.0
      %v4221 = vmax.f32 %v4189, 0.0
      %v4222 = vmax.f32 %v4190, 0.0
      %v4223 = vmax.f32 %v4191, 0.0
      %v4224 = vmax.f32 %v4192, 0.0
      %v4225 = vmax.f32 %v4193, 0.0
      %v4226 = vmax.f32 %v4194, 0.0
      %v4227 = vmax.f32 %v4195, 0.0
      %v4228 = vmax.f32 %v4196, 0.0
      %v4229 = vmax.f32 %v4197, 0.0
      %v4230 = vmax.f32 %v4198, 0.0
      %v4231 = vmax.f32 %v4199, 0.0
      %v4232 = vmax.f32 %v4200, 0.0
      %v4233 = vmax.f32 %v4201, 0.0
      %v4234 = vmax.f32 %v4202, 0.0
      %v4235 = vmax.f32 %v4203, 0.0
      %v4236 = vmax.f32 %v4204, 0.0
      %v4237 = vmax.f32 %v4205, 0.0
      %v4238 = vmax.f32 %v4206, 0.0
      %v4239 = vmax.f32 %v4207, 0.0
      %v4240 = vmax.f32 %v4208, 0.0
      %v4241 = vmax.f32 %v4209, 0.0
      %v4242 = vmax.f32 %v4210, 0.0
      %v4243 = vmax.f32 %v4211, 0.0
      %v4244 = vmax.f32 %v4212, 0.0
      %v4245 = vmax.f32 %v4213, 0.0
      %v4246 = vmax.f32 %v4214, 0.0
      %v4247 = vmax.f32 %v4215, 0.0
      %v4248 = vpack.c.bf16 %v4217, %v4216
      %v4249 = vpack.c.bf16 %v4219, %v4218
      %v4250 = vpack.c.bf16 %v4221, %v4220
      %v4251 = vpack.c.bf16 %v4223, %v4222
      %v4252 = vpack.c.bf16 %v4225, %v4224
      %v4253 = vpack.c.bf16 %v4227, %v4226
      %v4254 = vpack.c.bf16 %v4229, %v4228
      %v4255 = vpack.c.bf16 %v4231, %v4230
      %v4256 = vpack.c.bf16 %v4233, %v4232
      %v4257 = vpack.c.bf16 %v4235, %v4234
      %v4258 = vpack.c.bf16 %v4237, %v4236
      %v4259 = vpack.c.bf16 %v4239, %v4238
      %v4260 = vpack.c.bf16 %v4241, %v4240
      %v4261 = vpack.c.bf16 %v4243, %v4242
      %v4262 = vpack.c.bf16 %v4245, %v4244
      %v4263 = vpack.c.bf16 %v4247, %v4246
      %v4265 = vshrl.u32 %v4248, 16
      %v4267 = vrot.slane %v4265, 7
      %v4268 = vshll.u32 %v4248, 16
      %v4270 = vor.u32 %v4267, %v4268
      %v4272 = vshrl.u32 %v4249, 16
      %v4274 = vrot.slane %v4272, 7
      %v4275 = vshll.u32 %v4249, 16
      %v4277 = vor.u32 %v4274, %v4275
      %v4279 = vshrl.u32 %v4250, 16
      %v4281 = vrot.slane %v4279, 7
      %v4282 = vshll.u32 %v4250, 16
      %v4284 = vor.u32 %v4281, %v4282
      %v4286 = vshrl.u32 %v4251, 16
      %v4288 = vrot.slane %v4286, 7
      %v4289 = vshll.u32 %v4251, 16
      %v4291 = vor.u32 %v4288, %v4289
      %v4293 = vshrl.u32 %v4252, 16
      %v4295 = vrot.slane %v4293, 7
      %v4296 = vshll.u32 %v4252, 16
      %v4298 = vor.u32 %v4295, %v4296
      %v4300 = vshrl.u32 %v4253, 16
      %v4302 = vrot.slane %v4300, 7
      %v4303 = vshll.u32 %v4253, 16
      %v4305 = vor.u32 %v4302, %v4303
      %v4307 = vshrl.u32 %v4254, 16
      %v4309 = vrot.slane %v4307, 7
      %v4310 = vshll.u32 %v4254, 16
      %v4312 = vor.u32 %v4309, %v4310
      %v4314 = vshrl.u32 %v4255, 16
      %v4316 = vrot.slane %v4314, 7
      %v4317 = vshll.u32 %v4255, 16
      %v4319 = vor.u32 %v4316, %v4317
      %v4321 = vshrl.u32 %v4256, 16
      %v4323 = vrot.slane %v4321, 7
      %v4324 = vshll.u32 %v4256, 16
      %v4326 = vor.u32 %v4323, %v4324
      %v4328 = vshrl.u32 %v4257, 16
      %v4330 = vrot.slane %v4328, 7
      %v4331 = vshll.u32 %v4257, 16
      %v4333 = vor.u32 %v4330, %v4331
      %v4335 = vshrl.u32 %v4258, 16
      %v4337 = vrot.slane %v4335, 7
      %v4338 = vshll.u32 %v4258, 16
      %v4340 = vor.u32 %v4337, %v4338
      %v4342 = vshrl.u32 %v4259, 16
      %v4344 = vrot.slane %v4342, 7
      %v4345 = vshll.u32 %v4259, 16
      %v4347 = vor.u32 %v4344, %v4345
      %v4349 = vshrl.u32 %v4260, 16
      %v4351 = vrot.slane %v4349, 7
      %v4352 = vshll.u32 %v4260, 16
      %v4354 = vor.u32 %v4351, %v4352
      %v4356 = vshrl.u32 %v4261, 16
      %v4358 = vrot.slane %v4356, 7
      %v4359 = vshll.u32 %v4261, 16
      %v4361 = vor.u32 %v4358, %v4359
      %v4363 = vshrl.u32 %v4262, 16
      %v4365 = vrot.slane %v4363, 7
      %v4366 = vshll.u32 %v4262, 16
      %v4368 = vor.u32 %v4365, %v4366
      %v4370 = vshrl.u32 %v4263, 16
      %v4372 = vrot.slane %v4370, 7
      %v4373 = vshll.u32 %v4263, 16
      %v4375 = vor.u32 %v4372, %v4373
      %vm4408 = vcmask 1040384
      %vm4409 = vsmask.f32 256
      %vm4410 = vmand %vm4408, %vm4409
      %v4411 = vsel %vm4410, 0, %v4270
      %v4412 = vsel %vm4410, 0, %v4277
      %v4413 = vsel %vm4410, 0, %v4284
      %v4414 = vsel %vm4410, 0, %v4291
      %v4415 = vsel %vm4410, 0, %v4298
      %v4416 = vsel %vm4410, 0, %v4305
      %v4417 = vsel %vm4410, 0, %v4312
      %v4418 = vsel %vm4410, 0, %v4319
      %v4419 = vsel %vm4410, 0, %v4326
      %v4420 = vsel %vm4410, 0, %v4333
      %v4421 = vsel %vm4410, 0, %v4340
      %v4422 = vsel %vm4410, 0, %v4347
      %v4423 = vsel %vm4410, 0, %v4354
      %v4424 = vsel %vm4410, 0, %v4361
      %v4425 = vsel %vm4410, 0, %v4368
      %v4426 = vsel %vm4410, 0, %v4375
      %v4427 = vsel %vm4410, %v4267, 0
      %v4428 = vsel %vm4410, %v4274, 0
      %v4429 = vsel %vm4410, %v4281, 0
      %v4430 = vsel %vm4410, %v4288, 0
      %v4431 = vsel %vm4410, %v4295, 0
      %v4432 = vsel %vm4410, %v4302, 0
      %v4433 = vsel %vm4410, %v4309, 0
      %v4434 = vsel %vm4410, %v4316, 0
      %v4435 = vsel %vm4410, %v4323, 0
      %v4436 = vsel %vm4410, %v4330, 0
      %v4437 = vsel %vm4410, %v4337, 0
      %v4438 = vsel %vm4410, %v4344, 0
      %v4439 = vsel %vm4410, %v4351, 0
      %v4440 = vsel %vm4410, %v4358, 0
      %v4441 = vsel %vm4410, %v4365, 0
      %v4442 = vsel %vm4410, %v4372, 0
      %v4475 = vunpack.c.l.b16 %v4411
      %v4476 = vunpack.c.h.b16 %v4411
      %v4477 = vunpack.c.l.b16 %v4427
      %v4478 = vunpack.c.l.b16 %v4412
      %v4479 = vunpack.c.h.b16 %v4412
      %v4480 = vunpack.c.l.b16 %v4428
      %v4481 = vunpack.c.l.b16 %v4413
      %v4482 = vunpack.c.h.b16 %v4413
      %v4483 = vunpack.c.l.b16 %v4429
      %v4484 = vunpack.c.l.b16 %v4414
      %v4485 = vunpack.c.h.b16 %v4414
      %v4486 = vunpack.c.l.b16 %v4430
      %v4487 = vunpack.c.l.b16 %v4415
      %v4488 = vunpack.c.h.b16 %v4415
      %v4489 = vunpack.c.l.b16 %v4431
      %v4490 = vunpack.c.l.b16 %v4416
      %v4491 = vunpack.c.h.b16 %v4416
      %v4492 = vunpack.c.l.b16 %v4432
      %v4493 = vunpack.c.l.b16 %v4417
      %v4494 = vunpack.c.h.b16 %v4417
      %v4495 = vunpack.c.l.b16 %v4433
      %v4496 = vunpack.c.l.b16 %v4418
      %v4497 = vunpack.c.h.b16 %v4418
      %v4498 = vunpack.c.l.b16 %v4434
      %v4499 = vunpack.c.l.b16 %v4419
      %v4500 = vunpack.c.h.b16 %v4419
      %v4501 = vunpack.c.l.b16 %v4435
      %v4502 = vunpack.c.l.b16 %v4420
      %v4503 = vunpack.c.h.b16 %v4420
      %v4504 = vunpack.c.l.b16 %v4436
      %v4505 = vunpack.c.l.b16 %v4421
      %v4506 = vunpack.c.h.b16 %v4421
      %v4507 = vunpack.c.l.b16 %v4437
      %v4508 = vunpack.c.l.b16 %v4422
      %v4509 = vunpack.c.h.b16 %v4422
      %v4510 = vunpack.c.l.b16 %v4438
      %v4511 = vunpack.c.l.b16 %v4423
      %v4512 = vunpack.c.h.b16 %v4423
      %v4513 = vunpack.c.l.b16 %v4439
      %v4514 = vunpack.c.l.b16 %v4424
      %v4515 = vunpack.c.h.b16 %v4424
      %v4516 = vunpack.c.l.b16 %v4440
      %v4517 = vunpack.c.l.b16 %v4425
      %v4518 = vunpack.c.h.b16 %v4425
      %v4519 = vunpack.c.l.b16 %v4441
      %v4520 = vunpack.c.l.b16 %v4426
      %v4521 = vunpack.c.h.b16 %v4426
      %v4522 = vunpack.c.l.b16 %v4442
      %v4523 = vpack.c.b16 %v4475, %v4475
      %v4524 = vpack.c.b16 %v4476, %v4476
      %v4525 = vpack.c.b16 %v4477, %v4477
      %v4526 = vpack.c.b16 %v4478, %v4478
      %v4527 = vpack.c.b16 %v4479, %v4479
      %v4528 = vpack.c.b16 %v4480, %v4480
      %v4529 = vpack.c.b16 %v4481, %v4481
      %v4530 = vpack.c.b16 %v4482, %v4482
      %v4531 = vpack.c.b16 %v4483, %v4483
      %v4532 = vpack.c.b16 %v4484, %v4484
      %v4533 = vpack.c.b16 %v4485, %v4485
      %v4534 = vpack.c.b16 %v4486, %v4486
      %v4535 = vpack.c.b16 %v4487, %v4487
      %v4536 = vpack.c.b16 %v4488, %v4488
      %v4537 = vpack.c.b16 %v4489, %v4489
      %v4538 = vpack.c.b16 %v4490, %v4490
      %v4539 = vpack.c.b16 %v4491, %v4491
      %v4540 = vpack.c.b16 %v4492, %v4492
      %v4541 = vpack.c.b16 %v4493, %v4493
      %v4542 = vpack.c.b16 %v4494, %v4494
      %v4543 = vpack.c.b16 %v4495, %v4495
      %v4544 = vpack.c.b16 %v4496, %v4496
      %v4545 = vpack.c.b16 %v4497, %v4497
      %v4546 = vpack.c.b16 %v4498, %v4498
      %v4547 = vpack.c.b16 %v4499, %v4499
      %v4548 = vpack.c.b16 %v4500, %v4500
      %v4549 = vpack.c.b16 %v4501, %v4501
      %v4550 = vpack.c.b16 %v4502, %v4502
      %v4551 = vpack.c.b16 %v4503, %v4503
      %v4552 = vpack.c.b16 %v4504, %v4504
      %v4553 = vpack.c.b16 %v4505, %v4505
      %v4554 = vpack.c.b16 %v4506, %v4506
      %v4555 = vpack.c.b16 %v4507, %v4507
      %v4556 = vpack.c.b16 %v4508, %v4508
      %v4557 = vpack.c.b16 %v4509, %v4509
      %v4558 = vpack.c.b16 %v4510, %v4510
      %v4559 = vpack.c.b16 %v4511, %v4511
      %v4560 = vpack.c.b16 %v4512, %v4512
      %v4561 = vpack.c.b16 %v4513, %v4513
      %v4562 = vpack.c.b16 %v4514, %v4514
      %v4563 = vpack.c.b16 %v4515, %v4515
      %v4564 = vpack.c.b16 %v4516, %v4516
      %v4565 = vpack.c.b16 %v4517, %v4517
      %v4566 = vpack.c.b16 %v4518, %v4518
      %v4567 = vpack.c.b16 %v4519, %v4519
      %v4568 = vpack.c.b16 %v4520, %v4520
      %v4569 = vpack.c.b16 %v4521, %v4521
      %v4570 = vpack.c.b16 %v4522, %v4522
      %s4619 = smul.addr %s1077, 4
      %s4620 = scalar_lea.vmem [#allocation2], %s4619
      %4621 = vst [vmem:[%s4620] sm:$0xf] %v4523
      %4622 = vst [vmem:[%s4620 + $0x4] sm:$0xf] %v4524
      %4623 = vst [vmem:[%s4620 + $0x8] sm:$0x1] %v4525
      %4624 = vst [vmem:[%s4620 + $0xc] sm:$0xf] %v4526
      %4625 = vst [vmem:[%s4620 + $0x10] sm:$0xf] %v4527
      %4626 = vst [vmem:[%s4620 + $0x14] sm:$0x1] %v4528
      %4627 = vst [vmem:[%s4620 + $0x18] sm:$0xf] %v4529
      %4628 = vst [vmem:[%s4620 + $0x1c] sm:$0xf] %v4530
      %4629 = vst [vmem:[%s4620 + $0x20] sm:$0x1] %v4531
      %4630 = vst [vmem:[%s4620 + $0x24] sm:$0xf] %v4532
      %4631 = vst [vmem:[%s4620 + $0x28] sm:$0xf] %v4533
      %4632 = vst [vmem:[%s4620 + $0x2c] sm:$0x1] %v4534
      %4633 = vst [vmem:[%s4620 + $0x30] sm:$0xf] %v4535
      %4634 = vst [vmem:[%s4620 + $0x34] sm:$0xf] %v4536
      %4635 = vst [vmem:[%s4620 + $0x38] sm:$0x1] %v4537
      %4636 = vst [vmem:[%s4620 + $0x3c] sm:$0xf] %v4538
      %4637 = vst [vmem:[%s4620 + $0x40] sm:$0xf] %v4539
      %4638 = vst [vmem:[%s4620 + $0x44] sm:$0x1] %v4540
      %4639 = vst [vmem:[%s4620 + $0x48] sm:$0xf] %v4541
      %4640 = vst [vmem:[%s4620 + $0x4c] sm:$0xf] %v4542
      %4641 = vst [vmem:[%s4620 + $0x50] sm:$0x1] %v4543
      %4642 = vst [vmem:[%s4620 + $0x54] sm:$0xf] %v4544
      %4643 = vst [vmem:[%s4620 + $0x58] sm:$0xf] %v4545
      %4644 = vst [vmem:[%s4620 + $0x5c] sm:$0x1] %v4546
      %4645 = vst [vmem:[%s4620 + $0x60] sm:$0xf] %v4547
      %4646 = vst [vmem:[%s4620 + $0x64] sm:$0xf] %v4548
      %4647 = vst [vmem:[%s4620 + $0x68] sm:$0x1] %v4549
      %4648 = vst [vmem:[%s4620 + $0x6c] sm:$0xf] %v4550
      %4649 = vst [vmem:[%s4620 + $0x70] sm:$0xf] %v4551
      %4650 = vst [vmem:[%s4620 + $0x74] sm:$0x1] %v4552
      %4651 = vst [vmem:[%s4620 + $0x78] sm:$0xf] %v4553
      %4652 = vst [vmem:[%s4620 + $0x7c] sm:$0xf] %v4554
      %4653 = vst [vmem:[%s4620 + $0x80] sm:$0x1] %v4555
      %4654 = vst [vmem:[%s4620 + $0x84] sm:$0xf] %v4556
      %4655 = vst [vmem:[%s4620 + $0x88] sm:$0xf] %v4557
      %4656 = vst [vmem:[%s4620 + $0x8c] sm:$0x1] %v4558
      %4657 = vst [vmem:[%s4620 + $0x90] sm:$0xf] %v4559
      %4658 = vst [vmem:[%s4620 + $0x94] sm:$0xf] %v4560
      %4659 = vst [vmem:[%s4620 + $0x98] sm:$0x1] %v4561
      %4660 = vst [vmem:[%s4620 + $0x9c] sm:$0xf] %v4562
      %4661 = vst [vmem:[%s4620 + $0xa0] sm:$0xf] %v4563
      %4662 = vst [vmem:[%s4620 + $0xa4] sm:$0x1] %v4564
      %4663 = vst [vmem:[%s4620 + $0xa8] sm:$0xf] %v4565
      %4664 = vst [vmem:[%s4620 + $0xac] sm:$0xf] %v4566
      %4665 = vst [vmem:[%s4620 + $0xb0] sm:$0x1] %v4567
      %4666 = vst [vmem:[%s4620 + $0xb4] sm:$0xf] %v4568
      %4667 = vst [vmem:[%s4620 + $0xb8] sm:$0xf] %v4569
      %4668 = vst [vmem:[%s4620 + $0xbc] sm:$0x1] %v4570
      %s4669 = smul.addr %s235, 4
      %s4670 = scalar_lea.vmem [#allocation2], %s4669
      %v4671 = vld [vmem:[%s4670] sm:$0xf]
      %v4672 = vld [vmem:[%s4670 + $0x4] sm:$0xf]
      %v4673 = vld [vmem:[%s4670 + $0x8] sm:$0x1]
      %v4674 = vld [vmem:[%s4670 + $0xc] sm:$0xf]
      %v4675 = vld [vmem:[%s4670 + $0x10] sm:$0xf]
      %v4676 = vld [vmem:[%s4670 + $0x14] sm:$0x1]
      %v4677 = vld [vmem:[%s4670 + $0x18] sm:$0xf]
      %v4678 = vld [vmem:[%s4670 + $0x1c] sm:$0xf]
      %v4679 = vld [vmem:[%s4670 + $0x20] sm:$0x1]
      %v4680 = vld [vmem:[%s4670 + $0x24] sm:$0xf]
      %v4681 = vld [vmem:[%s4670 + $0x28] sm:$0xf]
      %v4682 = vld [vmem:[%s4670 + $0x2c] sm:$0x1]
      %v4683 = vld [vmem:[%s4670 + $0x30] sm:$0xf]
      %v4684 = vld [vmem:[%s4670 + $0x34] sm:$0xf]
      %v4685 = vld [vmem:[%s4670 + $0x38] sm:$0x1]
      %v4686 = vld [vmem:[%s4670 + $0x3c] sm:$0xf]
      %v4687 = vld [vmem:[%s4670 + $0x40] sm:$0xf]
      %v4688 = vld [vmem:[%s4670 + $0x44] sm:$0x1]
      %v4689 = vld [vmem:[%s4670 + $0x48] sm:$0xf]
      %v4690 = vld [vmem:[%s4670 + $0x4c] sm:$0xf]
      %v4691 = vld [vmem:[%s4670 + $0x50] sm:$0x1]
      %v4692 = vld [vmem:[%s4670 + $0x54] sm:$0xf]
      %v4693 = vld [vmem:[%s4670 + $0x58] sm:$0xf]
      %v4694 = vld [vmem:[%s4670 + $0x5c] sm:$0x1]
      %v4695 = vld [vmem:[%s4670 + $0x60] sm:$0xf]
      %v4696 = vld [vmem:[%s4670 + $0x64] sm:$0xf]
      %v4697 = vld [vmem:[%s4670 + $0x68] sm:$0x1]
      %v4698 = vld [vmem:[%s4670 + $0x6c] sm:$0xf]
      %v4699 = vld [vmem:[%s4670 + $0x70] sm:$0xf]
      %v4700 = vld [vmem:[%s4670 + $0x74] sm:$0x1]
      %v4701 = vld [vmem:[%s4670 + $0x78] sm:$0xf]
      %v4702 = vld [vmem:[%s4670 + $0x7c] sm:$0xf]
      %v4703 = vld [vmem:[%s4670 + $0x80] sm:$0x1]
      %v4704 = vld [vmem:[%s4670 + $0x84] sm:$0xf]
      %v4705 = vld [vmem:[%s4670 + $0x88] sm:$0xf]
      %v4706 = vld [vmem:[%s4670 + $0x8c] sm:$0x1]
      %v4707 = vld [vmem:[%s4670 + $0x90] sm:$0xf]
      %v4708 = vld [vmem:[%s4670 + $0x94] sm:$0xf]
      %v4709 = vld [vmem:[%s4670 + $0x98] sm:$0x1]
      %v4710 = vld [vmem:[%s4670 + $0x9c] sm:$0xf]
      %v4711 = vld [vmem:[%s4670 + $0xa0] sm:$0xf]
      %v4712 = vld [vmem:[%s4670 + $0xa4] sm:$0x1]
      %v4713 = vld [vmem:[%s4670 + $0xa8] sm:$0xf]
      %v4714 = vld [vmem:[%s4670 + $0xac] sm:$0xf]
      %v4715 = vld [vmem:[%s4670 + $0xb0] sm:$0x1]
      %v4716 = vld [vmem:[%s4670 + $0xb4] sm:$0xf]
      %v4717 = vld [vmem:[%s4670 + $0xb8] sm:$0xf]
      %v4718 = vld [vmem:[%s4670 + $0xbc] sm:$0x1]
      %v4720 = vshrl.u32 %v4671, 16
      %v4722 = vrot.slane %v4720, 4
      %v4723 = vshll.u32 %v4671, 16
      %v4725 = vrot.slane %v4723, 5
      %v4726 = vor.u32 %v4722, %v4725
      %v4727 = vrot.slane %v4726, 4
      %v4729 = vshll.u32 %v4672, 16
      %v4731 = vrot.slane %v4729, 5
      %v4732 = vsel %vm288, %v4727, %v4731
      %v4733 = vshrl.u32 %v4672, 16
      %v4735 = vrot.slane %v4733, 4
      %v4736 = vor.u32 %v4735, %v4731
      %v4737 = vrot.slane %v4736, 4
      %v4739 = vshll.u32 %v4673, 16
      %v4741 = vrot.slane %v4739, 5
      %v4742 = vsel %vm288, %v4737, %v4741
      %v4744 = vshrl.u32 %v4674, 16
      %v4746 = vrot.slane %v4744, 4
      %v4747 = vshll.u32 %v4674, 16
      %v4749 = vrot.slane %v4747, 5
      %v4750 = vor.u32 %v4746, %v4749
      %v4751 = vrot.slane %v4750, 4
      %v4753 = vshll.u32 %v4675, 16
      %v4755 = vrot.slane %v4753, 5
      %v4756 = vsel %vm288, %v4751, %v4755
      %v4757 = vshrl.u32 %v4675, 16
      %v4759 = vrot.slane %v4757, 4
      %v4760 = vor.u32 %v4759, %v4755
      %v4761 = vrot.slane %v4760, 4
      %v4763 = vshll.u32 %v4676, 16
      %v4765 = vrot.slane %v4763, 5
      %v4766 = vsel %vm288, %v4761, %v4765
      %v4768 = vshrl.u32 %v4677, 16
      %v4770 = vrot.slane %v4768, 4
      %v4771 = vshll.u32 %v4677, 16
      %v4773 = vrot.slane %v4771, 5
      %v4774 = vor.u32 %v4770, %v4773
      %v4775 = vrot.slane %v4774, 4
      %v4777 = vshll.u32 %v4678, 16
      %v4779 = vrot.slane %v4777, 5
      %v4780 = vsel %vm288, %v4775, %v4779
      %v4781 = vshrl.u32 %v4678, 16
      %v4783 = vrot.slane %v4781, 4
      %v4784 = vor.u32 %v4783, %v4779
      %v4785 = vrot.slane %v4784, 4
      %v4787 = vshll.u32 %v4679, 16
      %v4789 = vrot.slane %v4787, 5
      %v4790 = vsel %vm288, %v4785, %v4789
      %v4792 = vshrl.u32 %v4680, 16
      %v4794 = vrot.slane %v4792, 4
      %v4795 = vshll.u32 %v4680, 16
      %v4797 = vrot.slane %v4795, 5
      %v4798 = vor.u32 %v4794, %v4797
      %v4799 = vrot.slane %v4798, 4
      %v4801 = vshll.u32 %v4681, 16
      %v4803 = vrot.slane %v4801, 5
      %v4804 = vsel %vm288, %v4799, %v4803
      %v4805 = vshrl.u32 %v4681, 16
      %v4807 = vrot.slane %v4805, 4
      %v4808 = vor.u32 %v4807, %v4803
      %v4809 = vrot.slane %v4808, 4
      %v4811 = vshll.u32 %v4682, 16
      %v4813 = vrot.slane %v4811, 5
      %v4814 = vsel %vm288, %v4809, %v4813
      %v4816 = vshrl.u32 %v4683, 16
      %v4818 = vrot.slane %v4816, 4
      %v4819 = vshll.u32 %v4683, 16
      %v4821 = vrot.slane %v4819, 5
      %v4822 = vor.u32 %v4818, %v4821
      %v4823 = vrot.slane %v4822, 4
      %v4825 = vshll.u32 %v4684, 16
      %v4827 = vrot.slane %v4825, 5
      %v4828 = vsel %vm288, %v4823, %v4827
      %v4829 = vshrl.u32 %v4684, 16
      %v4831 = vrot.slane %v4829, 4
      %v4832 = vor.u32 %v4831, %v4827
      %v4833 = vrot.slane %v4832, 4
      %v4835 = vshll.u32 %v4685, 16
      %v4837 = vrot.slane %v4835, 5
      %v4838 = vsel %vm288, %v4833, %v4837
      %v4840 = vshrl.u32 %v4686, 16
      %v4842 = vrot.slane %v4840, 4
      %v4843 = vshll.u32 %v4686, 16
      %v4845 = vrot.slane %v4843, 5
      %v4846 = vor.u32 %v4842, %v4845
      %v4847 = vrot.slane %v4846, 4
      %v4849 = vshll.u32 %v4687, 16
      %v4851 = vrot.slane %v4849, 5
      %v4852 = vsel %vm288, %v4847, %v4851
      %v4853 = vshrl.u32 %v4687, 16
      %v4855 = vrot.slane %v4853, 4
      %v4856 = vor.u32 %v4855, %v4851
      %v4857 = vrot.slane %v4856, 4
      %v4859 = vshll.u32 %v4688, 16
      %v4861 = vrot.slane %v4859, 5
      %v4862 = vsel %vm288, %v4857, %v4861
      %v4864 = vshrl.u32 %v4689, 16
      %v4866 = vrot.slane %v4864, 4
      %v4867 = vshll.u32 %v4689, 16
      %v4869 = vrot.slane %v4867, 5
      %v4870 = vor.u32 %v4866, %v4869
      %v4871 = vrot.slane %v4870, 4
      %v4873 = vshll.u32 %v4690, 16
      %v4875 = vrot.slane %v4873, 5
      %v4876 = vsel %vm288, %v4871, %v4875
      %v4877 = vshrl.u32 %v4690, 16
      %v4879 = vrot.slane %v4877, 4
      %v4880 = vor.u32 %v4879, %v4875
      %v4881 = vrot.slane %v4880, 4
      %v4883 = vshll.u32 %v4691, 16
      %v4885 = vrot.slane %v4883, 5
      %v4886 = vsel %vm288, %v4881, %v4885
      %v4888 = vshrl.u32 %v4692, 16
      %v4890 = vrot.slane %v4888, 4
      %v4891 = vshll.u32 %v4692, 16
      %v4893 = vrot.slane %v4891, 5
      %v4894 = vor.u32 %v4890, %v4893
      %v4895 = vrot.slane %v4894, 4
      %v4897 = vshll.u32 %v4693, 16
      %v4899 = vrot.slane %v4897, 5
      %v4900 = vsel %vm288, %v4895, %v4899
      %v4901 = vshrl.u32 %v4693, 16
      %v4903 = vrot.slane %v4901, 4
      %v4904 = vor.u32 %v4903, %v4899
      %v4905 = vrot.slane %v4904, 4
      %v4907 = vshll.u32 %v4694, 16
      %v4909 = vrot.slane %v4907, 5
      %v4910 = vsel %vm288, %v4905, %v4909
      %v4912 = vshrl.u32 %v4695, 16
      %v4914 = vrot.slane %v4912, 4
      %v4915 = vshll.u32 %v4695, 16
      %v4917 = vrot.slane %v4915, 5
      %v4918 = vor.u32 %v4914, %v4917
      %v4919 = vrot.slane %v4918, 4
      %v4921 = vshll.u32 %v4696, 16
      %v4923 = vrot.slane %v4921, 5
      %v4924 = vsel %vm288, %v4919, %v4923
      %v4925 = vshrl.u32 %v4696, 16
      %v4927 = vrot.slane %v4925, 4
      %v4928 = vor.u32 %v4927, %v4923
      %v4929 = vrot.slane %v4928, 4
      %v4931 = vshll.u32 %v4697, 16
      %v4933 = vrot.slane %v4931, 5
      %v4934 = vsel %vm288, %v4929, %v4933
      %v4936 = vshrl.u32 %v4698, 16
      %v4938 = vrot.slane %v4936, 4
      %v4939 = vshll.u32 %v4698, 16
      %v4941 = vrot.slane %v4939, 5
      %v4942 = vor.u32 %v4938, %v4941
      %v4943 = vrot.slane %v4942, 4
      %v4945 = vshll.u32 %v4699, 16
      %v4947 = vrot.slane %v4945, 5
      %v4948 = vsel %vm288, %v4943, %v4947
      %v4949 = vshrl.u32 %v4699, 16
      %v4951 = vrot.slane %v4949, 4
      %v4952 = vor.u32 %v4951, %v4947
      %v4953 = vrot.slane %v4952, 4
      %v4955 = vshll.u32 %v4700, 16
      %v4957 = vrot.slane %v4955, 5
      %v4958 = vsel %vm288, %v4953, %v4957
      %v4960 = vshrl.u32 %v4701, 16
      %v4962 = vrot.slane %v4960, 4
      %v4963 = vshll.u32 %v4701, 16
      %v4965 = vrot.slane %v4963, 5
      %v4966 = vor.u32 %v4962, %v4965
      %v4967 = vrot.slane %v4966, 4
      %v4969 = vshll.u32 %v4702, 16
      %v4971 = vrot.slane %v4969, 5
      %v4972 = vsel %vm288, %v4967, %v4971
      %v4973 = vshrl.u32 %v4702, 16
      %v4975 = vrot.slane %v4973, 4
      %v4976 = vor.u32 %v4975, %v4971
      %v4977 = vrot.slane %v4976, 4
      %v4979 = vshll.u32 %v4703, 16
      %v4981 = vrot.slane %v4979, 5
      %v4982 = vsel %vm288, %v4977, %v4981
      %v4984 = vshrl.u32 %v4704, 16
      %v4986 = vrot.slane %v4984, 4
      %v4987 = vshll.u32 %v4704, 16
      %v4989 = vrot.slane %v4987, 5
      %v4990 = vor.u32 %v4986, %v4989
      %v4991 = vrot.slane %v4990, 4
      %v4993 = vshll.u32 %v4705, 16
      %v4995 = vrot.slane %v4993, 5
      %v4996 = vsel %vm288, %v4991, %v4995
      %v4997 = vshrl.u32 %v4705, 16
      %v4999 = vrot.slane %v4997, 4
      %v5000 = vor.u32 %v4999, %v4995
      %v5001 = vrot.slane %v5000, 4
      %v5003 = vshll.u32 %v4706, 16
      %v5005 = vrot.slane %v5003, 5
      %v5006 = vsel %vm288, %v5001, %v5005
      %v5008 = vshrl.u32 %v4707, 16
      %v5010 = vrot.slane %v5008, 4
      %v5011 = vshll.u32 %v4707, 16
      %v5013 = vrot.slane %v5011, 5
      %v5014 = vor.u32 %v5010, %v5013
      %v5015 = vrot.slane %v5014, 4
      %v5017 = vshll.u32 %v4708, 16
      %v5019 = vrot.slane %v5017, 5
      %v5020 = vsel %vm288, %v5015, %v5019
      %v5021 = vshrl.u32 %v4708, 16
      %v5023 = vrot.slane %v5021, 4
      %v5024 = vor.u32 %v5023, %v5019
      %v5025 = vrot.slane %v5024, 4
      %v5027 = vshll.u32 %v4709, 16
      %v5029 = vrot.slane %v5027, 5
      %v5030 = vsel %vm288, %v5025, %v5029
      %v5032 = vshrl.u32 %v4710, 16
      %v5034 = vrot.slane %v5032, 4
      %v5035 = vshll.u32 %v4710, 16
      %v5037 = vrot.slane %v5035, 5
      %v5038 = vor.u32 %v5034, %v5037
      %v5039 = vrot.slane %v5038, 4
      %v5041 = vshll.u32 %v4711, 16
      %v5043 = vrot.slane %v5041, 5
      %v5044 = vsel %vm288, %v5039, %v5043
      %v5045 = vshrl.u32 %v4711, 16
      %v5047 = vrot.slane %v5045, 4
      %v5048 = vor.u32 %v5047, %v5043
      %v5049 = vrot.slane %v5048, 4
      %v5051 = vshll.u32 %v4712, 16
      %v5053 = vrot.slane %v5051, 5
      %v5054 = vsel %vm288, %v5049, %v5053
      %v5056 = vshrl.u32 %v4713, 16
      %v5058 = vrot.slane %v5056, 4
      %v5059 = vshll.u32 %v4713, 16
      %v5061 = vrot.slane %v5059, 5
      %v5062 = vor.u32 %v5058, %v5061
      %v5063 = vrot.slane %v5062, 4
      %v5065 = vshll.u32 %v4714, 16
      %v5067 = vrot.slane %v5065, 5
      %v5068 = vsel %vm288, %v5063, %v5067
      %v5069 = vshrl.u32 %v4714, 16
      %v5071 = vrot.slane %v5069, 4
      %v5072 = vor.u32 %v5071, %v5067
      %v5073 = vrot.slane %v5072, 4
      %v5075 = vshll.u32 %v4715, 16
      %v5077 = vrot.slane %v5075, 5
      %v5078 = vsel %vm288, %v5073, %v5077
      %v5080 = vshrl.u32 %v4716, 16
      %v5082 = vrot.slane %v5080, 4
      %v5083 = vshll.u32 %v4716, 16
      %v5085 = vrot.slane %v5083, 5
      %v5086 = vor.u32 %v5082, %v5085
      %v5087 = vrot.slane %v5086, 4
      %v5089 = vshll.u32 %v4717, 16
      %v5091 = vrot.slane %v5089, 5
      %v5092 = vsel %vm288, %v5087, %v5091
      %v5093 = vshrl.u32 %v4717, 16
      %v5095 = vrot.slane %v5093, 4
      %v5096 = vor.u32 %v5095, %v5091
      %v5097 = vrot.slane %v5096, 4
      %v5099 = vshll.u32 %v4718, 16
      %v5101 = vrot.slane %v5099, 5
      %v5102 = vsel %vm288, %v5097, %v5101
      %v5151 = vrot.slane %v4671, 5
      %v5152 = vrot.slane %v5151, 4
      %v5153 = vrot.slane %v4672, 5
      %v5154 = vsel %vm723, %v5152, %v5153
      %v5155 = vrot.slane %v5153, 4
      %v5156 = vrot.slane %v4673, 5
      %v5157 = vsel %vm723, %v5155, %v5156
      %v5158 = vrot.slane %v4674, 5
      %v5159 = vrot.slane %v5158, 4
      %v5160 = vrot.slane %v4675, 5
      %v5161 = vsel %vm723, %v5159, %v5160
      %v5162 = vrot.slane %v5160, 4
      %v5163 = vrot.slane %v4676, 5
      %v5164 = vsel %vm723, %v5162, %v5163
      %v5165 = vrot.slane %v4677, 5
      %v5166 = vrot.slane %v5165, 4
      %v5167 = vrot.slane %v4678, 5
      %v5168 = vsel %vm723, %v5166, %v5167
      %v5169 = vrot.slane %v5167, 4
      %v5170 = vrot.slane %v4679, 5
      %v5171 = vsel %vm723, %v5169, %v5170
      %v5172 = vrot.slane %v4680, 5
      %v5173 = vrot.slane %v5172, 4
      %v5174 = vrot.slane %v4681, 5
      %v5175 = vsel %vm723, %v5173, %v5174
      %v5176 = vrot.slane %v5174, 4
      %v5177 = vrot.slane %v4682, 5
      %v5178 = vsel %vm723, %v5176, %v5177
      %v5179 = vrot.slane %v4683, 5
      %v5180 = vrot.slane %v5179, 4
      %v5181 = vrot.slane %v4684, 5
      %v5182 = vsel %vm723, %v5180, %v5181
      %v5183 = vrot.slane %v5181, 4
      %v5184 = vrot.slane %v4685, 5
      %v5185 = vsel %vm723, %v5183, %v5184
      %v5186 = vrot.slane %v4686, 5
      %v5187 = vrot.slane %v5186, 4
      %v5188 = vrot.slane %v4687, 5
      %v5189 = vsel %vm723, %v5187, %v5188
      %v5190 = vrot.slane %v5188, 4
      %v5191 = vrot.slane %v4688, 5
      %v5192 = vsel %vm723, %v5190, %v5191
      %v5193 = vrot.slane %v4689, 5
      %v5194 = vrot.slane %v5193, 4
      %v5195 = vrot.slane %v4690, 5
      %v5196 = vsel %vm723, %v5194, %v5195
      %v5197 = vrot.slane %v5195, 4
      %v5198 = vrot.slane %v4691, 5
      %v5199 = vsel %vm723, %v5197, %v5198
      %v5200 = vrot.slane %v4692, 5
      %v5201 = vrot.slane %v5200, 4
      %v5202 = vrot.slane %v4693, 5
      %v5203 = vsel %vm723, %v5201, %v5202
      %v5204 = vrot.slane %v5202, 4
      %v5205 = vrot.slane %v4694, 5
      %v5206 = vsel %vm723, %v5204, %v5205
      %v5207 = vrot.slane %v4695, 5
      %v5208 = vrot.slane %v5207, 4
      %v5209 = vrot.slane %v4696, 5
      %v5210 = vsel %vm723, %v5208, %v5209
      %v5211 = vrot.slane %v5209, 4
      %v5212 = vrot.slane %v4697, 5
      %v5213 = vsel %vm723, %v5211, %v5212
      %v5214 = vrot.slane %v4698, 5
      %v5215 = vrot.slane %v5214, 4
      %v5216 = vrot.slane %v4699, 5
      %v5217 = vsel %vm723, %v5215, %v5216
      %v5218 = vrot.slane %v5216, 4
      %v5219 = vrot.slane %v4700, 5
      %v5220 = vsel %vm723, %v5218, %v5219
      %v5221 = vrot.slane %v4701, 5
      %v5222 = vrot.slane %v5221, 4
      %v5223 = vrot.slane %v4702, 5
      %v5224 = vsel %vm723, %v5222, %v5223
      %v5225 = vrot.slane %v5223, 4
      %v5226 = vrot.slane %v4703, 5
      %v5227 = vsel %vm723, %v5225, %v5226
      %v5228 = vrot.slane %v4704, 5
      %v5229 = vrot.slane %v5228, 4
      %v5230 = vrot.slane %v4705, 5
      %v5231 = vsel %vm723, %v5229, %v5230
      %v5232 = vrot.slane %v5230, 4
      %v5233 = vrot.slane %v4706, 5
      %v5234 = vsel %vm723, %v5232, %v5233
      %v5235 = vrot.slane %v4707, 5
      %v5236 = vrot.slane %v5235, 4
      %v5237 = vrot.slane %v4708, 5
      %v5238 = vsel %vm723, %v5236, %v5237
      %v5239 = vrot.slane %v5237, 4
      %v5240 = vrot.slane %v4709, 5
      %v5241 = vsel %vm723, %v5239, %v5240
      %v5242 = vrot.slane %v4710, 5
      %v5243 = vrot.slane %v5242, 4
      %v5244 = vrot.slane %v4711, 5
      %v5245 = vsel %vm723, %v5243, %v5244
      %v5246 = vrot.slane %v5244, 4
      %v5247 = vrot.slane %v4712, 5
      %v5248 = vsel %vm723, %v5246, %v5247
      %v5249 = vrot.slane %v4713, 5
      %v5250 = vrot.slane %v5249, 4
      %v5251 = vrot.slane %v4714, 5
      %v5252 = vsel %vm723, %v5250, %v5251
      %v5253 = vrot.slane %v5251, 4
      %v5254 = vrot.slane %v4715, 5
      %v5255 = vsel %vm723, %v5253, %v5254
      %v5256 = vrot.slane %v4716, 5
      %v5257 = vrot.slane %v5256, 4
      %v5258 = vrot.slane %v4717, 5
      %v5259 = vsel %vm723, %v5257, %v5258
      %v5260 = vrot.slane %v5258, 4
      %v5261 = vrot.slane %v4718, 5
      %v5262 = vsel %vm723, %v5260, %v5261
      %v5263 = vunpack.c.l.b16 %v4671
      %v5264 = vunpack.c.l.b16 %v4672
      %v5265 = vunpack.c.l.b16 %v4674
      %v5266 = vunpack.c.l.b16 %v4675
      %v5267 = vunpack.c.l.b16 %v4677
      %v5268 = vunpack.c.l.b16 %v4678
      %v5269 = vunpack.c.l.b16 %v4680
      %v5270 = vunpack.c.l.b16 %v4681
      %v5271 = vunpack.c.l.b16 %v4683
      %v5272 = vunpack.c.l.b16 %v4684
      %v5273 = vunpack.c.l.b16 %v4686
      %v5274 = vunpack.c.l.b16 %v4687
      %v5275 = vunpack.c.l.b16 %v4689
      %v5276 = vunpack.c.l.b16 %v4690
      %v5277 = vunpack.c.l.b16 %v4692
      %v5278 = vunpack.c.l.b16 %v4693
      %v5279 = vunpack.c.l.b16 %v4695
      %v5280 = vunpack.c.l.b16 %v4696
      %v5281 = vunpack.c.l.b16 %v4698
      %v5282 = vunpack.c.l.b16 %v4699
      %v5283 = vunpack.c.l.b16 %v4701
      %v5284 = vunpack.c.l.b16 %v4702
      %v5285 = vunpack.c.l.b16 %v4704
      %v5286 = vunpack.c.l.b16 %v4705
      %v5287 = vunpack.c.l.b16 %v4707
      %v5288 = vunpack.c.l.b16 %v4708
      %v5289 = vunpack.c.l.b16 %v4710
      %v5290 = vunpack.c.l.b16 %v4711
      %v5291 = vunpack.c.l.b16 %v4713
      %v5292 = vunpack.c.l.b16 %v4714
      %v5293 = vunpack.c.l.b16 %v4716
      %v5294 = vunpack.c.l.b16 %v4717
      %v5295 = vpack.c.b16 %v5264, %v5263
      %v5296 = vpack.c.b16 %v5266, %v5265
      %v5297 = vpack.c.b16 %v5268, %v5267
      %v5298 = vpack.c.b16 %v5270, %v5269
      %v5299 = vpack.c.b16 %v5272, %v5271
      %v5300 = vpack.c.b16 %v5274, %v5273
      %v5301 = vpack.c.b16 %v5276, %v5275
      %v5302 = vpack.c.b16 %v5278, %v5277
      %v5303 = vpack.c.b16 %v5280, %v5279
      %v5304 = vpack.c.b16 %v5282, %v5281
      %v5305 = vpack.c.b16 %v5284, %v5283
      %v5306 = vpack.c.b16 %v5286, %v5285
      %v5307 = vpack.c.b16 %v5288, %v5287
      %v5308 = vpack.c.b16 %v5290, %v5289
      %v5309 = vpack.c.b16 %v5292, %v5291
      %v5310 = vpack.c.b16 %v5294, %v5293
      %v5327 = vunpack.c.l.b16 %v4732
      %v5328 = vunpack.c.l.b16 %v4742
      %v5329 = vunpack.c.l.b16 %v4756
      %v5330 = vunpack.c.l.b16 %v4766
      %v5331 = vunpack.c.l.b16 %v4780
      %v5332 = vunpack.c.l.b16 %v4790
      %v5333 = vunpack.c.l.b16 %v4804
      %v5334 = vunpack.c.l.b16 %v4814
      %v5335 = vunpack.c.l.b16 %v4828
      %v5336 = vunpack.c.l.b16 %v4838
      %v5337 = vunpack.c.l.b16 %v4852
      %v5338 = vunpack.c.l.b16 %v4862
      %v5339 = vunpack.c.l.b16 %v4876
      %v5340 = vunpack.c.l.b16 %v4886
      %v5341 = vunpack.c.l.b16 %v4900
      %v5342 = vunpack.c.l.b16 %v4910
      %v5343 = vunpack.c.l.b16 %v4924
      %v5344 = vunpack.c.l.b16 %v4934
      %v5345 = vunpack.c.l.b16 %v4948
      %v5346 = vunpack.c.l.b16 %v4958
      %v5347 = vunpack.c.l.b16 %v4972
      %v5348 = vunpack.c.l.b16 %v4982
      %v5349 = vunpack.c.l.b16 %v4996
      %v5350 = vunpack.c.l.b16 %v5006
      %v5351 = vunpack.c.l.b16 %v5020
      %v5352 = vunpack.c.l.b16 %v5030
      %v5353 = vunpack.c.l.b16 %v5044
      %v5354 = vunpack.c.l.b16 %v5054
      %v5355 = vunpack.c.l.b16 %v5068
      %v5356 = vunpack.c.l.b16 %v5078
      %v5357 = vunpack.c.l.b16 %v5092
      %v5358 = vunpack.c.l.b16 %v5102
      %v5359 = vpack.c.b16 %v5328, %v5327
      %v5360 = vpack.c.b16 %v5330, %v5329
      %v5361 = vpack.c.b16 %v5332, %v5331
      %v5362 = vpack.c.b16 %v5334, %v5333
      %v5363 = vpack.c.b16 %v5336, %v5335
      %v5364 = vpack.c.b16 %v5338, %v5337
      %v5365 = vpack.c.b16 %v5340, %v5339
      %v5366 = vpack.c.b16 %v5342, %v5341
      %v5367 = vpack.c.b16 %v5344, %v5343
      %v5368 = vpack.c.b16 %v5346, %v5345
      %v5369 = vpack.c.b16 %v5348, %v5347
      %v5370 = vpack.c.b16 %v5350, %v5349
      %v5371 = vpack.c.b16 %v5352, %v5351
      %v5372 = vpack.c.b16 %v5354, %v5353
      %v5373 = vpack.c.b16 %v5356, %v5355
      %v5374 = vpack.c.b16 %v5358, %v5357
      %v5391 = vunpack.c.l.b16 %v5154
      %v5392 = vunpack.c.l.b16 %v5157
      %v5393 = vunpack.c.l.b16 %v5161
      %v5394 = vunpack.c.l.b16 %v5164
      %v5395 = vunpack.c.l.b16 %v5168
      %v5396 = vunpack.c.l.b16 %v5171
      %v5397 = vunpack.c.l.b16 %v5175
      %v5398 = vunpack.c.l.b16 %v5178
      %v5399 = vunpack.c.l.b16 %v5182
      %v5400 = vunpack.c.l.b16 %v5185
      %v5401 = vunpack.c.l.b16 %v5189
      %v5402 = vunpack.c.l.b16 %v5192
      %v5403 = vunpack.c.l.b16 %v5196
      %v5404 = vunpack.c.l.b16 %v5199
      %v5405 = vunpack.c.l.b16 %v5203
      %v5406 = vunpack.c.l.b16 %v5206
      %v5407 = vunpack.c.l.b16 %v5210
      %v5408 = vunpack.c.l.b16 %v5213
      %v5409 = vunpack.c.l.b16 %v5217
      %v5410 = vunpack.c.l.b16 %v5220
      %v5411 = vunpack.c.l.b16 %v5224
      %v5412 = vunpack.c.l.b16 %v5227
      %v5413 = vunpack.c.l.b16 %v5231
      %v5414 = vunpack.c.l.b16 %v5234
      %v5415 = vunpack.c.l.b16 %v5238
      %v5416 = vunpack.c.l.b16 %v5241
      %v5417 = vunpack.c.l.b16 %v5245
      %v5418 = vunpack.c.l.b16 %v5248
      %v5419 = vunpack.c.l.b16 %v5252
      %v5420 = vunpack.c.l.b16 %v5255
      %v5421 = vunpack.c.l.b16 %v5259
      %v5422 = vunpack.c.l.b16 %v5262
      %v5423 = vpack.c.b16 %v5392, %v5391
      %v5424 = vpack.c.b16 %v5394, %v5393
      %v5425 = vpack.c.b16 %v5396, %v5395
      %v5426 = vpack.c.b16 %v5398, %v5397
      %v5427 = vpack.c.b16 %v5400, %v5399
      %v5428 = vpack.c.b16 %v5402, %v5401
      %v5429 = vpack.c.b16 %v5404, %v5403
      %v5430 = vpack.c.b16 %v5406, %v5405
      %v5431 = vpack.c.b16 %v5408, %v5407
      %v5432 = vpack.c.b16 %v5410, %v5409
      %v5433 = vpack.c.b16 %v5412, %v5411
      %v5434 = vpack.c.b16 %v5414, %v5413
      %v5435 = vpack.c.b16 %v5416, %v5415
      %v5436 = vpack.c.b16 %v5418, %v5417
      %v5437 = vpack.c.b16 %v5420, %v5419
      %v5438 = vpack.c.b16 %v5422, %v5421
      %v5455 = vld [vmem:[%s2] sm:$0xf]
      %v5456 = vld [vmem:[%s2 + $0x4] sm:$0xf]
      %v5457 = vld [vmem:[%s2 + $0x8] sm:$0xf]
      %v5458 = vld [vmem:[%s2 + $0xc] sm:$0xf]
      %v5459 = vld [vmem:[%s2 + $0x10] sm:$0xf]
      %v5460 = vld [vmem:[%s2 + $0x14] sm:$0xf]
      %v5461 = vld [vmem:[%s2 + $0x18] sm:$0xf]
      %v5462 = vld [vmem:[%s2 + $0x1c] sm:$0xf]
      %v5463 = vld [vmem:[%s2 + $0x20] sm:$0xf]
      %v5464 = vld [vmem:[%s2 + $0x24] sm:$0xf]
      %v5465 = vld [vmem:[%s2 + $0x28] sm:$0xf]
      %v5466 = vld [vmem:[%s2 + $0x2c] sm:$0xf]
      %v5467 = vld [vmem:[%s2 + $0x30] sm:$0xf]
      %v5468 = vld [vmem:[%s2 + $0x34] sm:$0xf]
      %v5469 = vld [vmem:[%s2 + $0x38] sm:$0xf]
      %v5470 = vld [vmem:[%s2 + $0x3c] sm:$0xf]
      %v5471 = vld [vmem:[%s2 + $0x40] sm:$0xf]
      %v5472 = vld [vmem:[%s2 + $0x44] sm:$0xf]
      %v5473 = vld [vmem:[%s2 + $0x48] sm:$0xf]
      %v5474 = vld [vmem:[%s2 + $0x4c] sm:$0xf]
      %v5475 = vld [vmem:[%s2 + $0x50] sm:$0xf]
      %v5476 = vld [vmem:[%s2 + $0x54] sm:$0xf]
      %v5477 = vld [vmem:[%s2 + $0x58] sm:$0xf]
      %v5478 = vld [vmem:[%s2 + $0x5c] sm:$0xf]
      %v5479 = vld [vmem:[%s2 + $0x60] sm:$0xf]
      %v5480 = vld [vmem:[%s2 + $0x64] sm:$0xf]
      %v5481 = vld [vmem:[%s2 + $0x68] sm:$0xf]
      %v5482 = vld [vmem:[%s2 + $0x6c] sm:$0xf]
      %v5483 = vld [vmem:[%s2 + $0x70] sm:$0xf]
      %v5484 = vld [vmem:[%s2 + $0x74] sm:$0xf]
      %v5485 = vld [vmem:[%s2 + $0x78] sm:$0xf]
      %v5486 = vld [vmem:[%s2 + $0x7c] sm:$0xf]
      %v5487 = vld [vmem:[%s2 + $0x80] sm:$0xf]
      %v5488 = vld [vmem:[%s2 + $0x84] sm:$0xf]
      %v5489 = vld [vmem:[%s2 + $0x88] sm:$0xf]
      %v5490 = vld [vmem:[%s2 + $0x8c] sm:$0xf]
      %v5491 = vld [vmem:[%s2 + $0x90] sm:$0xf]
      %v5492 = vld [vmem:[%s2 + $0x94] sm:$0xf]
      %v5493 = vld [vmem:[%s2 + $0x98] sm:$0xf]
      %v5494 = vld [vmem:[%s2 + $0x9c] sm:$0xf]
      %v5495 = vld [vmem:[%s2 + $0xa0] sm:$0xf]
      %v5496 = vld [vmem:[%s2 + $0xa4] sm:$0xf]
      %v5497 = vld [vmem:[%s2 + $0xa8] sm:$0xf]
      %v5498 = vld [vmem:[%s2 + $0xac] sm:$0xf]
      %v5499 = vld [vmem:[%s2 + $0xb0] sm:$0xf]
      %v5500 = vld [vmem:[%s2 + $0xb4] sm:$0xf]
      %v5501 = vld [vmem:[%s2 + $0xb8] sm:$0xf]
      %v5502 = vld [vmem:[%s2 + $0xbc] sm:$0xf]
      %v5503 = vld [vmem:[%s4620] sm:$0xf]
      %v5504 = vld [vmem:[%s4620 + $0x4] sm:$0xf]
      %v5505 = vld [vmem:[%s4620 + $0x8] sm:$0x1]
      %v5506 = vld [vmem:[%s4620 + $0xc] sm:$0xf]
      %v5507 = vld [vmem:[%s4620 + $0x10] sm:$0xf]
      %v5508 = vld [vmem:[%s4620 + $0x14] sm:$0x1]
      %v5509 = vld [vmem:[%s4620 + $0x18] sm:$0xf]
      %v5510 = vld [vmem:[%s4620 + $0x1c] sm:$0xf]
      %v5511 = vld [vmem:[%s4620 + $0x20] sm:$0x1]
      %v5512 = vld [vmem:[%s4620 + $0x24] sm:$0xf]
      %v5513 = vld [vmem:[%s4620 + $0x28] sm:$0xf]
      %v5514 = vld [vmem:[%s4620 + $0x2c] sm:$0x1]
      %v5515 = vld [vmem:[%s4620 + $0x30] sm:$0xf]
      %v5516 = vld [vmem:[%s4620 + $0x34] sm:$0xf]
      %v5517 = vld [vmem:[%s4620 + $0x38] sm:$0x1]
      %v5518 = vld [vmem:[%s4620 + $0x3c] sm:$0xf]
      %v5519 = vld [vmem:[%s4620 + $0x40] sm:$0xf]
      %v5520 = vld [vmem:[%s4620 + $0x44] sm:$0x1]
      %v5521 = vld [vmem:[%s4620 + $0x48] sm:$0xf]
      %v5522 = vld [vmem:[%s4620 + $0x4c] sm:$0xf]
      %v5523 = vld [vmem:[%s4620 + $0x50] sm:$0x1]
      %v5524 = vld [vmem:[%s4620 + $0x54] sm:$0xf]
      %v5525 = vld [vmem:[%s4620 + $0x58] sm:$0xf]
      %v5526 = vld [vmem:[%s4620 + $0x5c] sm:$0x1]
      %v5527 = vld [vmem:[%s4620 + $0x60] sm:$0xf]
      %v5528 = vld [vmem:[%s4620 + $0x64] sm:$0xf]
      %v5529 = vld [vmem:[%s4620 + $0x68] sm:$0x1]
      %v5530 = vld [vmem:[%s4620 + $0x6c] sm:$0xf]
      %v5531 = vld [vmem:[%s4620 + $0x70] sm:$0xf]
      %v5532 = vld [vmem:[%s4620 + $0x74] sm:$0x1]
      %v5533 = vld [vmem:[%s4620 + $0x78] sm:$0xf]
      %v5534 = vld [vmem:[%s4620 + $0x7c] sm:$0xf]
      %v5535 = vld [vmem:[%s4620 + $0x80] sm:$0x1]
      %v5536 = vld [vmem:[%s4620 + $0x84] sm:$0xf]
      %v5537 = vld [vmem:[%s4620 + $0x88] sm:$0xf]
      %v5538 = vld [vmem:[%s4620 + $0x8c] sm:$0x1]
      %v5539 = vld [vmem:[%s4620 + $0x90] sm:$0xf]
      %v5540 = vld [vmem:[%s4620 + $0x94] sm:$0xf]
      %v5541 = vld [vmem:[%s4620 + $0x98] sm:$0x1]
      %v5542 = vld [vmem:[%s4620 + $0x9c] sm:$0xf]
      %v5543 = vld [vmem:[%s4620 + $0xa0] sm:$0xf]
      %v5544 = vld [vmem:[%s4620 + $0xa4] sm:$0x1]
      %v5545 = vld [vmem:[%s4620 + $0xa8] sm:$0xf]
      %v5546 = vld [vmem:[%s4620 + $0xac] sm:$0xf]
      %v5547 = vld [vmem:[%s4620 + $0xb0] sm:$0x1]
      %v5548 = vld [vmem:[%s4620 + $0xb4] sm:$0xf]
      %v5549 = vld [vmem:[%s4620 + $0xb8] sm:$0xf]
      %v5550 = vld [vmem:[%s4620 + $0xbc] sm:$0x1]
      %v5552 = vshrl.u32 %v5503, 16
      %v5554 = vrot.slane %v5552, 4
      %v5555 = vshll.u32 %v5503, 16
      %v5557 = vrot.slane %v5555, 5
      %v5558 = vor.u32 %v5554, %v5557
      %v5559 = vrot.slane %v5558, 4
      %v5561 = vshll.u32 %v5504, 16
      %v5563 = vrot.slane %v5561, 5
      %v5564 = vsel %vm288, %v5559, %v5563
      %v5565 = vshrl.u32 %v5504, 16
      %v5567 = vrot.slane %v5565, 4
      %v5568 = vor.u32 %v5567, %v5563
      %v5569 = vrot.slane %v5568, 4
      %v5571 = vshll.u32 %v5505, 16
      %v5573 = vrot.slane %v5571, 5
      %v5574 = vsel %vm288, %v5569, %v5573
      %v5576 = vshrl.u32 %v5506, 16
      %v5578 = vrot.slane %v5576, 4
      %v5579 = vshll.u32 %v5506, 16
      %v5581 = vrot.slane %v5579, 5
      %v5582 = vor.u32 %v5578, %v5581
      %v5583 = vrot.slane %v5582, 4
      %v5585 = vshll.u32 %v5507, 16
      %v5587 = vrot.slane %v5585, 5
      %v5588 = vsel %vm288, %v5583, %v5587
      %v5589 = vshrl.u32 %v5507, 16
      %v5591 = vrot.slane %v5589, 4
      %v5592 = vor.u32 %v5591, %v5587
      %v5593 = vrot.slane %v5592, 4
      %v5595 = vshll.u32 %v5508, 16
      %v5597 = vrot.slane %v5595, 5
      %v5598 = vsel %vm288, %v5593, %v5597
      %v5600 = vshrl.u32 %v5509, 16
      %v5602 = vrot.slane %v5600, 4
      %v5603 = vshll.u32 %v5509, 16
      %v5605 = vrot.slane %v5603, 5
      %v5606 = vor.u32 %v5602, %v5605
      %v5607 = vrot.slane %v5606, 4
      %v5609 = vshll.u32 %v5510, 16
      %v5611 = vrot.slane %v5609, 5
      %v5612 = vsel %vm288, %v5607, %v5611
      %v5613 = vshrl.u32 %v5510, 16
      %v5615 = vrot.slane %v5613, 4
      %v5616 = vor.u32 %v5615, %v5611
      %v5617 = vrot.slane %v5616, 4
      %v5619 = vshll.u32 %v5511, 16
      %v5621 = vrot.slane %v5619, 5
      %v5622 = vsel %vm288, %v5617, %v5621
      %v5624 = vshrl.u32 %v5512, 16
      %v5626 = vrot.slane %v5624, 4
      %v5627 = vshll.u32 %v5512, 16
      %v5629 = vrot.slane %v5627, 5
      %v5630 = vor.u32 %v5626, %v5629
      %v5631 = vrot.slane %v5630, 4
      %v5633 = vshll.u32 %v5513, 16
      %v5635 = vrot.slane %v5633, 5
      %v5636 = vsel %vm288, %v5631, %v5635
      %v5637 = vshrl.u32 %v5513, 16
      %v5639 = vrot.slane %v5637, 4
      %v5640 = vor.u32 %v5639, %v5635
      %v5641 = vrot.slane %v5640, 4
      %v5643 = vshll.u32 %v5514, 16
      %v5645 = vrot.slane %v5643, 5
      %v5646 = vsel %vm288, %v5641, %v5645
      %v5648 = vshrl.u32 %v5515, 16
      %v5650 = vrot.slane %v5648, 4
      %v5651 = vshll.u32 %v5515, 16
      %v5653 = vrot.slane %v5651, 5
      %v5654 = vor.u32 %v5650, %v5653
      %v5655 = vrot.slane %v5654, 4
      %v5657 = vshll.u32 %v5516, 16
      %v5659 = vrot.slane %v5657, 5
      %v5660 = vsel %vm288, %v5655, %v5659
      %v5661 = vshrl.u32 %v5516, 16
      %v5663 = vrot.slane %v5661, 4
      %v5664 = vor.u32 %v5663, %v5659
      %v5665 = vrot.slane %v5664, 4
      %v5667 = vshll.u32 %v5517, 16
      %v5669 = vrot.slane %v5667, 5
      %v5670 = vsel %vm288, %v5665, %v5669
      %v5672 = vshrl.u32 %v5518, 16
      %v5674 = vrot.slane %v5672, 4
      %v5675 = vshll.u32 %v5518, 16
      %v5677 = vrot.slane %v5675, 5
      %v5678 = vor.u32 %v5674, %v5677
      %v5679 = vrot.slane %v5678, 4
      %v5681 = vshll.u32 %v5519, 16
      %v5683 = vrot.slane %v5681, 5
      %v5684 = vsel %vm288, %v5679, %v5683
      %v5685 = vshrl.u32 %v5519, 16
      %v5687 = vrot.slane %v5685, 4
      %v5688 = vor.u32 %v5687, %v5683
      %v5689 = vrot.slane %v5688, 4
      %v5691 = vshll.u32 %v5520, 16
      %v5693 = vrot.slane %v5691, 5
      %v5694 = vsel %vm288, %v5689, %v5693
      %v5696 = vshrl.u32 %v5521, 16
      %v5698 = vrot.slane %v5696, 4
      %v5699 = vshll.u32 %v5521, 16
      %v5701 = vrot.slane %v5699, 5
      %v5702 = vor.u32 %v5698, %v5701
      %v5703 = vrot.slane %v5702, 4
      %v5705 = vshll.u32 %v5522, 16
      %v5707 = vrot.slane %v5705, 5
      %v5708 = vsel %vm288, %v5703, %v5707
      %v5709 = vshrl.u32 %v5522, 16
      %v5711 = vrot.slane %v5709, 4
      %v5712 = vor.u32 %v5711, %v5707
      %v5713 = vrot.slane %v5712, 4
      %v5715 = vshll.u32 %v5523, 16
      %v5717 = vrot.slane %v5715, 5
      %v5718 = vsel %vm288, %v5713, %v5717
      %v5720 = vshrl.u32 %v5524, 16
      %v5722 = vrot.slane %v5720, 4
      %v5723 = vshll.u32 %v5524, 16
      %v5725 = vrot.slane %v5723, 5
      %v5726 = vor.u32 %v5722, %v5725
      %v5727 = vrot.slane %v5726, 4
      %v5729 = vshll.u32 %v5525, 16
      %v5731 = vrot.slane %v5729, 5
      %v5732 = vsel %vm288, %v5727, %v5731
      %v5733 = vshrl.u32 %v5525, 16
      %v5735 = vrot.slane %v5733, 4
      %v5736 = vor.u32 %v5735, %v5731
      %v5737 = vrot.slane %v5736, 4
      %v5739 = vshll.u32 %v5526, 16
      %v5741 = vrot.slane %v5739, 5
      %v5742 = vsel %vm288, %v5737, %v5741
      %v5744 = vshrl.u32 %v5527, 16
      %v5746 = vrot.slane %v5744, 4
      %v5747 = vshll.u32 %v5527, 16
      %v5749 = vrot.slane %v5747, 5
      %v5750 = vor.u32 %v5746, %v5749
      %v5751 = vrot.slane %v5750, 4
      %v5753 = vshll.u32 %v5528, 16
      %v5755 = vrot.slane %v5753, 5
      %v5756 = vsel %vm288, %v5751, %v5755
      %v5757 = vshrl.u32 %v5528, 16
      %v5759 = vrot.slane %v5757, 4
      %v5760 = vor.u32 %v5759, %v5755
      %v5761 = vrot.slane %v5760, 4
      %v5763 = vshll.u32 %v5529, 16
      %v5765 = vrot.slane %v5763, 5
      %v5766 = vsel %vm288, %v5761, %v5765
      %v5768 = vshrl.u32 %v5530, 16
      %v5770 = vrot.slane %v5768, 4
      %v5771 = vshll.u32 %v5530, 16
      %v5773 = vrot.slane %v5771, 5
      %v5774 = vor.u32 %v5770, %v5773
      %v5775 = vrot.slane %v5774, 4
      %v5777 = vshll.u32 %v5531, 16
      %v5779 = vrot.slane %v5777, 5
      %v5780 = vsel %vm288, %v5775, %v5779
      %v5781 = vshrl.u32 %v5531, 16
      %v5783 = vrot.slane %v5781, 4
      %v5784 = vor.u32 %v5783, %v5779
      %v5785 = vrot.slane %v5784, 4
      %v5787 = vshll.u32 %v5532, 16
      %v5789 = vrot.slane %v5787, 5
      %v5790 = vsel %vm288, %v5785, %v5789
      %v5792 = vshrl.u32 %v5533, 16
      %v5794 = vrot.slane %v5792, 4
      %v5795 = vshll.u32 %v5533, 16
      %v5797 = vrot.slane %v5795, 5
      %v5798 = vor.u32 %v5794, %v5797
      %v5799 = vrot.slane %v5798, 4
      %v5801 = vshll.u32 %v5534, 16
      %v5803 = vrot.slane %v5801, 5
      %v5804 = vsel %vm288, %v5799, %v5803
      %v5805 = vshrl.u32 %v5534, 16
      %v5807 = vrot.slane %v5805, 4
      %v5808 = vor.u32 %v5807, %v5803
      %v5809 = vrot.slane %v5808, 4
      %v5811 = vshll.u32 %v5535, 16
      %v5813 = vrot.slane %v5811, 5
      %v5814 = vsel %vm288, %v5809, %v5813
      %v5816 = vshrl.u32 %v5536, 16
      %v5818 = vrot.slane %v5816, 4
      %v5819 = vshll.u32 %v5536, 16
      %v5821 = vrot.slane %v5819, 5
      %v5822 = vor.u32 %v5818, %v5821
      %v5823 = vrot.slane %v5822, 4
      %v5825 = vshll.u32 %v5537, 16
      %v5827 = vrot.slane %v5825, 5
      %v5828 = vsel %vm288, %v5823, %v5827
      %v5829 = vshrl.u32 %v5537, 16
      %v5831 = vrot.slane %v5829, 4
      %v5832 = vor.u32 %v5831, %v5827
      %v5833 = vrot.slane %v5832, 4
      %v5835 = vshll.u32 %v5538, 16
      %v5837 = vrot.slane %v5835, 5
      %v5838 = vsel %vm288, %v5833, %v5837
      %v5840 = vshrl.u32 %v5539, 16
      %v5842 = vrot.slane %v5840, 4
      %v5843 = vshll.u32 %v5539, 16
      %v5845 = vrot.slane %v5843, 5
      %v5846 = vor.u32 %v5842, %v5845
      %v5847 = vrot.slane %v5846, 4
      %v5849 = vshll.u32 %v5540, 16
      %v5851 = vrot.slane %v5849, 5
      %v5852 = vsel %vm288, %v5847, %v5851
      %v5853 = vshrl.u32 %v5540, 16
      %v5855 = vrot.slane %v5853, 4
      %v5856 = vor.u32 %v5855, %v5851
      %v5857 = vrot.slane %v5856, 4
      %v5859 = vshll.u32 %v5541, 16
      %v5861 = vrot.slane %v5859, 5
      %v5862 = vsel %vm288, %v5857, %v5861
      %v5864 = vshrl.u32 %v5542, 16
      %v5866 = vrot.slane %v5864, 4
      %v5867 = vshll.u32 %v5542, 16
      %v5869 = vrot.slane %v5867, 5
      %v5870 = vor.u32 %v5866, %v5869
      %v5871 = vrot.slane %v5870, 4
      %v5873 = vshll.u32 %v5543, 16
      %v5875 = vrot.slane %v5873, 5
      %v5876 = vsel %vm288, %v5871, %v5875
      %v5877 = vshrl.u32 %v5543, 16
      %v5879 = vrot.slane %v5877, 4
      %v5880 = vor.u32 %v5879, %v5875
      %v5881 = vrot.slane %v5880, 4
      %v5883 = vshll.u32 %v5544, 16
      %v5885 = vrot.slane %v5883, 5
      %v5886 = vsel %vm288, %v5881, %v5885
      %v5888 = vshrl.u32 %v5545, 16
      %v5890 = vrot.slane %v5888, 4
      %v5891 = vshll.u32 %v5545, 16
      %v5893 = vrot.slane %v5891, 5
      %v5894 = vor.u32 %v5890, %v5893
      %v5895 = vrot.slane %v5894, 4
      %v5897 = vshll.u32 %v5546, 16
      %v5899 = vrot.slane %v5897, 5
      %v5900 = vsel %vm288, %v5895, %v5899
      %v5901 = vshrl.u32 %v5546, 16
      %v5903 = vrot.slane %v5901, 4
      %v5904 = vor.u32 %v5903, %v5899
      %v5905 = vrot.slane %v5904, 4
      %v5907 = vshll.u32 %v5547, 16
      %v5909 = vrot.slane %v5907, 5
      %v5910 = vsel %vm288, %v5905, %v5909
      %v5912 = vshrl.u32 %v5548, 16
      %v5914 = vrot.slane %v5912, 4
      %v5915 = vshll.u32 %v5548, 16
      %v5917 = vrot.slane %v5915, 5
      %v5918 = vor.u32 %v5914, %v5917
      %v5919 = vrot.slane %v5918, 4
      %v5921 = vshll.u32 %v5549, 16
      %v5923 = vrot.slane %v5921, 5
      %v5924 = vsel %vm288, %v5919, %v5923
      %v5925 = vshrl.u32 %v5549, 16
      %v5927 = vrot.slane %v5925, 4
      %v5928 = vor.u32 %v5927, %v5923
      %v5929 = vrot.slane %v5928, 4
      %v5931 = vshll.u32 %v5550, 16
      %v5933 = vrot.slane %v5931, 5
      %v5934 = vsel %vm288, %v5929, %v5933
      %v5983 = vrot.slane %v5503, 5
      %v5984 = vrot.slane %v5983, 4
      %v5985 = vrot.slane %v5504, 5
      %v5986 = vsel %vm723, %v5984, %v5985
      %v5987 = vrot.slane %v5985, 4
      %v5988 = vrot.slane %v5505, 5
      %v5989 = vsel %vm723, %v5987, %v5988
      %v5990 = vrot.slane %v5506, 5
      %v5991 = vrot.slane %v5990, 4
      %v5992 = vrot.slane %v5507, 5
      %v5993 = vsel %vm723, %v5991, %v5992
      %v5994 = vrot.slane %v5992, 4
      %v5995 = vrot.slane %v5508, 5
      %v5996 = vsel %vm723, %v5994, %v5995
      %v5997 = vrot.slane %v5509, 5
      %v5998 = vrot.slane %v5997, 4
      %v5999 = vrot.slane %v5510, 5
      %v6000 = vsel %vm723, %v5998, %v5999
      %v6001 = vrot.slane %v5999, 4
      %v6002 = vrot.slane %v5511, 5
      %v6003 = vsel %vm723, %v6001, %v6002
      %v6004 = vrot.slane %v5512, 5
      %v6005 = vrot.slane %v6004, 4
      %v6006 = vrot.slane %v5513, 5
      %v6007 = vsel %vm723, %v6005, %v6006
      %v6008 = vrot.slane %v6006, 4
      %v6009 = vrot.slane %v5514, 5
      %v6010 = vsel %vm723, %v6008, %v6009
      %v6011 = vrot.slane %v5515, 5
      %v6012 = vrot.slane %v6011, 4
      %v6013 = vrot.slane %v5516, 5
      %v6014 = vsel %vm723, %v6012, %v6013
      %v6015 = vrot.slane %v6013, 4
      %v6016 = vrot.slane %v5517, 5
      %v6017 = vsel %vm723, %v6015, %v6016
      %v6018 = vrot.slane %v5518, 5
      %v6019 = vrot.slane %v6018, 4
      %v6020 = vrot.slane %v5519, 5
      %v6021 = vsel %vm723, %v6019, %v6020
      %v6022 = vrot.slane %v6020, 4
      %v6023 = vrot.slane %v5520, 5
      %v6024 = vsel %vm723, %v6022, %v6023
      %v6025 = vrot.slane %v5521, 5
      %v6026 = vrot.slane %v6025, 4
      %v6027 = vrot.slane %v5522, 5
      %v6028 = vsel %vm723, %v6026, %v6027
      %v6029 = vrot.slane %v6027, 4
      %v6030 = vrot.slane %v5523, 5
      %v6031 = vsel %vm723, %v6029, %v6030
      %v6032 = vrot.slane %v5524, 5
      %v6033 = vrot.slane %v6032, 4
      %v6034 = vrot.slane %v5525, 5
      %v6035 = vsel %vm723, %v6033, %v6034
      %v6036 = vrot.slane %v6034, 4
      %v6037 = vrot.slane %v5526, 5
      %v6038 = vsel %vm723, %v6036, %v6037
      %v6039 = vrot.slane %v5527, 5
      %v6040 = vrot.slane %v6039, 4
      %v6041 = vrot.slane %v5528, 5
      %v6042 = vsel %vm723, %v6040, %v6041
      %v6043 = vrot.slane %v6041, 4
      %v6044 = vrot.slane %v5529, 5
      %v6045 = vsel %vm723, %v6043, %v6044
      %v6046 = vrot.slane %v5530, 5
      %v6047 = vrot.slane %v6046, 4
      %v6048 = vrot.slane %v5531, 5
      %v6049 = vsel %vm723, %v6047, %v6048
      %v6050 = vrot.slane %v6048, 4
      %v6051 = vrot.slane %v5532, 5
      %v6052 = vsel %vm723, %v6050, %v6051
      %v6053 = vrot.slane %v5533, 5
      %v6054 = vrot.slane %v6053, 4
      %v6055 = vrot.slane %v5534, 5
      %v6056 = vsel %vm723, %v6054, %v6055
      %v6057 = vrot.slane %v6055, 4
      %v6058 = vrot.slane %v5535, 5
      %v6059 = vsel %vm723, %v6057, %v6058
      %v6060 = vrot.slane %v5536, 5
      %v6061 = vrot.slane %v6060, 4
      %v6062 = vrot.slane %v5537, 5
      %v6063 = vsel %vm723, %v6061, %v6062
      %v6064 = vrot.slane %v6062, 4
      %v6065 = vrot.slane %v5538, 5
      %v6066 = vsel %vm723, %v6064, %v6065
      %v6067 = vrot.slane %v5539, 5
      %v6068 = vrot.slane %v6067, 4
      %v6069 = vrot.slane %v5540, 5
      %v6070 = vsel %vm723, %v6068, %v6069
      %v6071 = vrot.slane %v6069, 4
      %v6072 = vrot.slane %v5541, 5
      %v6073 = vsel %vm723, %v6071, %v6072
      %v6074 = vrot.slane %v5542, 5
      %v6075 = vrot.slane %v6074, 4
      %v6076 = vrot.slane %v5543, 5
      %v6077 = vsel %vm723, %v6075, %v6076
      %v6078 = vrot.slane %v6076, 4
      %v6079 = vrot.slane %v5544, 5
      %v6080 = vsel %vm723, %v6078, %v6079
      %v6081 = vrot.slane %v5545, 5
      %v6082 = vrot.slane %v6081, 4
      %v6083 = vrot.slane %v5546, 5
      %v6084 = vsel %vm723, %v6082, %v6083
      %v6085 = vrot.slane %v6083, 4
      %v6086 = vrot.slane %v5547, 5
      %v6087 = vsel %vm723, %v6085, %v6086
      %v6088 = vrot.slane %v5548, 5
      %v6089 = vrot.slane %v6088, 4
      %v6090 = vrot.slane %v5549, 5
      %v6091 = vsel %vm723, %v6089, %v6090
      %v6092 = vrot.slane %v6090, 4
      %v6093 = vrot.slane %v5550, 5
      %v6094 = vsel %vm723, %v6092, %v6093
      %v6095 = vunpack.c.l.b16 %v5503
      %v6096 = vunpack.c.l.b16 %v5504
      %v6097 = vunpack.c.l.b16 %v5506
      %v6098 = vunpack.c.l.b16 %v5507
      %v6099 = vunpack.c.l.b16 %v5509
      %v6100 = vunpack.c.l.b16 %v5510
      %v6101 = vunpack.c.l.b16 %v5512
      %v6102 = vunpack.c.l.b16 %v5513
      %v6103 = vunpack.c.l.b16 %v5515
      %v6104 = vunpack.c.l.b16 %v5516
      %v6105 = vunpack.c.l.b16 %v5518
      %v6106 = vunpack.c.l.b16 %v5519
      %v6107 = vunpack.c.l.b16 %v5521
      %v6108 = vunpack.c.l.b16 %v5522
      %v6109 = vunpack.c.l.b16 %v5524
      %v6110 = vunpack.c.l.b16 %v5525
      %v6111 = vunpack.c.l.b16 %v5527
      %v6112 = vunpack.c.l.b16 %v5528
      %v6113 = vunpack.c.l.b16 %v5530
      %v6114 = vunpack.c.l.b16 %v5531
      %v6115 = vunpack.c.l.b16 %v5533
      %v6116 = vunpack.c.l.b16 %v5534
      %v6117 = vunpack.c.l.b16 %v5536
      %v6118 = vunpack.c.l.b16 %v5537
      %v6119 = vunpack.c.l.b16 %v5539
      %v6120 = vunpack.c.l.b16 %v5540
      %v6121 = vunpack.c.l.b16 %v5542
      %v6122 = vunpack.c.l.b16 %v5543
      %v6123 = vunpack.c.l.b16 %v5545
      %v6124 = vunpack.c.l.b16 %v5546
      %v6125 = vunpack.c.l.b16 %v5548
      %v6126 = vunpack.c.l.b16 %v5549
      %v6127 = vpack.c.b16 %v6096, %v6095
      %v6128 = vpack.c.b16 %v6098, %v6097
      %v6129 = vpack.c.b16 %v6100, %v6099
      %v6130 = vpack.c.b16 %v6102, %v6101
      %v6131 = vpack.c.b16 %v6104, %v6103
      %v6132 = vpack.c.b16 %v6106, %v6105
      %v6133 = vpack.c.b16 %v6108, %v6107
      %v6134 = vpack.c.b16 %v6110, %v6109
      %v6135 = vpack.c.b16 %v6112, %v6111
      %v6136 = vpack.c.b16 %v6114, %v6113
      %v6137 = vpack.c.b16 %v6116, %v6115
      %v6138 = vpack.c.b16 %v6118, %v6117
      %v6139 = vpack.c.b16 %v6120, %v6119
      %v6140 = vpack.c.b16 %v6122, %v6121
      %v6141 = vpack.c.b16 %v6124, %v6123
      %v6142 = vpack.c.b16 %v6126, %v6125
      %v6159 = vunpack.c.l.b16 %v5564
      %v6160 = vunpack.c.l.b16 %v5574
      %v6161 = vunpack.c.l.b16 %v5588
      %v6162 = vunpack.c.l.b16 %v5598
      %v6163 = vunpack.c.l.b16 %v5612
      %v6164 = vunpack.c.l.b16 %v5622
      %v6165 = vunpack.c.l.b16 %v5636
      %v6166 = vunpack.c.l.b16 %v5646
      %v6167 = vunpack.c.l.b16 %v5660
      %v6168 = vunpack.c.l.b16 %v5670
      %v6169 = vunpack.c.l.b16 %v5684
      %v6170 = vunpack.c.l.b16 %v5694
      %v6171 = vunpack.c.l.b16 %v5708
      %v6172 = vunpack.c.l.b16 %v5718
      %v6173 = vunpack.c.l.b16 %v5732
      %v6174 = vunpack.c.l.b16 %v5742
      %v6175 = vunpack.c.l.b16 %v5756
      %v6176 = vunpack.c.l.b16 %v5766
      %v6177 = vunpack.c.l.b16 %v5780
      %v6178 = vunpack.c.l.b16 %v5790
      %v6179 = vunpack.c.l.b16 %v5804
      %v6180 = vunpack.c.l.b16 %v5814
      %v6181 = vunpack.c.l.b16 %v5828
      %v6182 = vunpack.c.l.b16 %v5838
      %v6183 = vunpack.c.l.b16 %v5852
      %v6184 = vunpack.c.l.b16 %v5862
      %v6185 = vunpack.c.l.b16 %v5876
      %v6186 = vunpack.c.l.b16 %v5886
      %v6187 = vunpack.c.l.b16 %v5900
      %v6188 = vunpack.c.l.b16 %v5910
      %v6189 = vunpack.c.l.b16 %v5924
      %v6190 = vunpack.c.l.b16 %v5934
      %v6191 = vpack.c.b16 %v6160, %v6159
      %v6192 = vpack.c.b16 %v6162, %v6161
      %v6193 = vpack.c.b16 %v6164, %v6163
      %v6194 = vpack.c.b16 %v6166, %v6165
      %v6195 = vpack.c.b16 %v6168, %v6167
      %v6196 = vpack.c.b16 %v6170, %v6169
      %v6197 = vpack.c.b16 %v6172, %v6171
      %v6198 = vpack.c.b16 %v6174, %v6173
      %v6199 = vpack.c.b16 %v6176, %v6175
      %v6200 = vpack.c.b16 %v6178, %v6177
      %v6201 = vpack.c.b16 %v6180, %v6179
      %v6202 = vpack.c.b16 %v6182, %v6181
      %v6203 = vpack.c.b16 %v6184, %v6183
      %v6204 = vpack.c.b16 %v6186, %v6185
      %v6205 = vpack.c.b16 %v6188, %v6187
      %v6206 = vpack.c.b16 %v6190, %v6189
      %v6223 = vunpack.c.l.b16 %v5986
      %v6224 = vunpack.c.l.b16 %v5989
      %v6225 = vunpack.c.l.b16 %v5993
      %v6226 = vunpack.c.l.b16 %v5996
      %v6227 = vunpack.c.l.b16 %v6000
      %v6228 = vunpack.c.l.b16 %v6003
      %v6229 = vunpack.c.l.b16 %v6007
      %v6230 = vunpack.c.l.b16 %v6010
      %v6231 = vunpack.c.l.b16 %v6014
      %v6232 = vunpack.c.l.b16 %v6017
      %v6233 = vunpack.c.l.b16 %v6021
      %v6234 = vunpack.c.l.b16 %v6024
      %v6235 = vunpack.c.l.b16 %v6028
      %v6236 = vunpack.c.l.b16 %v6031
      %v6237 = vunpack.c.l.b16 %v6035
      %v6238 = vunpack.c.l.b16 %v6038
      %v6239 = vunpack.c.l.b16 %v6042
      %v6240 = vunpack.c.l.b16 %v6045
      %v6241 = vunpack.c.l.b16 %v6049
      %v6242 = vunpack.c.l.b16 %v6052
      %v6243 = vunpack.c.l.b16 %v6056
      %v6244 = vunpack.c.l.b16 %v6059
      %v6245 = vunpack.c.l.b16 %v6063
      %v6246 = vunpack.c.l.b16 %v6066
      %v6247 = vunpack.c.l.b16 %v6070
      %v6248 = vunpack.c.l.b16 %v6073
      %v6249 = vunpack.c.l.b16 %v6077
      %v6250 = vunpack.c.l.b16 %v6080
      %v6251 = vunpack.c.l.b16 %v6084
      %v6252 = vunpack.c.l.b16 %v6087
      %v6253 = vunpack.c.l.b16 %v6091
      %v6254 = vunpack.c.l.b16 %v6094
      %v6255 = vpack.c.b16 %v6224, %v6223
      %v6256 = vpack.c.b16 %v6226, %v6225
      %v6257 = vpack.c.b16 %v6228, %v6227
      %v6258 = vpack.c.b16 %v6230, %v6229
      %v6259 = vpack.c.b16 %v6232, %v6231
      %v6260 = vpack.c.b16 %v6234, %v6233
      %v6261 = vpack.c.b16 %v6236, %v6235
      %v6262 = vpack.c.b16 %v6238, %v6237
      %v6263 = vpack.c.b16 %v6240, %v6239
      %v6264 = vpack.c.b16 %v6242, %v6241
      %v6265 = vpack.c.b16 %v6244, %v6243
      %v6266 = vpack.c.b16 %v6246, %v6245
      %v6267 = vpack.c.b16 %v6248, %v6247
      %v6268 = vpack.c.b16 %v6250, %v6249
      %v6269 = vpack.c.b16 %v6252, %v6251
      %v6270 = vpack.c.b16 %v6254, %v6253
      %v6287 = vld [vmem:[%s2 + $0xc0] sm:$0xf]
      %v6288 = vld [vmem:[%s2 + $0xc4] sm:$0xf]
      %v6289 = vld [vmem:[%s2 + $0xc8] sm:$0xf]
      %v6290 = vld [vmem:[%s2 + $0xcc] sm:$0xf]
      %v6291 = vld [vmem:[%s2 + $0xd0] sm:$0xf]
      %v6292 = vld [vmem:[%s2 + $0xd4] sm:$0xf]
      %v6293 = vld [vmem:[%s2 + $0xd8] sm:$0xf]
      %v6294 = vld [vmem:[%s2 + $0xdc] sm:$0xf]
      %v6295 = vld [vmem:[%s2 + $0xe0] sm:$0xf]
      %v6296 = vld [vmem:[%s2 + $0xe4] sm:$0xf]
      %v6297 = vld [vmem:[%s2 + $0xe8] sm:$0xf]
      %v6298 = vld [vmem:[%s2 + $0xec] sm:$0xf]
      %v6299 = vld [vmem:[%s2 + $0xf0] sm:$0xf]
      %v6300 = vld [vmem:[%s2 + $0xf4] sm:$0xf]
      %v6301 = vld [vmem:[%s2 + $0xf8] sm:$0xf]
      %v6302 = vld [vmem:[%s2 + $0xfc] sm:$0xf]
      %v6303 = vld [vmem:[%s2 + $0x100] sm:$0xf]
      %v6304 = vld [vmem:[%s2 + $0x104] sm:$0xf]
      %v6305 = vld [vmem:[%s2 + $0x108] sm:$0xf]
      %v6306 = vld [vmem:[%s2 + $0x10c] sm:$0xf]
      %v6307 = vld [vmem:[%s2 + $0x110] sm:$0xf]
      %v6308 = vld [vmem:[%s2 + $0x114] sm:$0xf]
      %v6309 = vld [vmem:[%s2 + $0x118] sm:$0xf]
      %v6310 = vld [vmem:[%s2 + $0x11c] sm:$0xf]
      %v6311 = vld [vmem:[%s2 + $0x120] sm:$0xf]
      %v6312 = vld [vmem:[%s2 + $0x124] sm:$0xf]
      %v6313 = vld [vmem:[%s2 + $0x128] sm:$0xf]
      %v6314 = vld [vmem:[%s2 + $0x12c] sm:$0xf]
      %v6315 = vld [vmem:[%s2 + $0x130] sm:$0xf]
      %v6316 = vld [vmem:[%s2 + $0x134] sm:$0xf]
      %v6317 = vld [vmem:[%s2 + $0x138] sm:$0xf]
      %v6318 = vld [vmem:[%s2 + $0x13c] sm:$0xf]
      %v6319 = vld [vmem:[%s2 + $0x140] sm:$0xf]
      %v6320 = vld [vmem:[%s2 + $0x144] sm:$0xf]
      %v6321 = vld [vmem:[%s2 + $0x148] sm:$0xf]
      %v6322 = vld [vmem:[%s2 + $0x14c] sm:$0xf]
      %v6323 = vld [vmem:[%s2 + $0x150] sm:$0xf]
      %v6324 = vld [vmem:[%s2 + $0x154] sm:$0xf]
      %v6325 = vld [vmem:[%s2 + $0x158] sm:$0xf]
      %v6326 = vld [vmem:[%s2 + $0x15c] sm:$0xf]
      %v6327 = vld [vmem:[%s2 + $0x160] sm:$0xf]
      %v6328 = vld [vmem:[%s2 + $0x164] sm:$0xf]
      %v6329 = vld [vmem:[%s2 + $0x168] sm:$0xf]
      %v6330 = vld [vmem:[%s2 + $0x16c] sm:$0xf]
      %v6331 = vld [vmem:[%s2 + $0x170] sm:$0xf]
      %v6332 = vld [vmem:[%s2 + $0x174] sm:$0xf]
      %v6333 = vld [vmem:[%s2 + $0x178] sm:$0xf]
      %v6334 = vld [vmem:[%s2 + $0x17c] sm:$0xf]
      %v6383 = vunpack.c.l.b16 %v6287
      %v6384 = vunpack.c.l.b16 %v6288
      %v6385 = vunpack.c.l.b16 %v6289
      %v6386 = vunpack.c.l.b16 %v6290
      %v6387 = vunpack.c.l.b16 %v6291
      %v6388 = vunpack.c.l.b16 %v6292
      %v6389 = vunpack.c.l.b16 %v6293
      %v6390 = vunpack.c.l.b16 %v6294
      %v6391 = vunpack.c.l.b16 %v6295
      %v6392 = vunpack.c.l.b16 %v6296
      %v6393 = vunpack.c.l.b16 %v6297
      %v6394 = vunpack.c.l.b16 %v6298
      %v6395 = vunpack.c.l.b16 %v6299
      %v6396 = vunpack.c.l.b16 %v6300
      %v6397 = vunpack.c.l.b16 %v6301
      %v6398 = vunpack.c.l.b16 %v6302
      %v6399 = vunpack.c.l.b16 %v6303
      %v6400 = vunpack.c.l.b16 %v6304
      %v6401 = vunpack.c.l.b16 %v6305
      %v6402 = vunpack.c.l.b16 %v6306
      %v6403 = vunpack.c.l.b16 %v6307
      %v6404 = vunpack.c.l.b16 %v6308
      %v6405 = vunpack.c.l.b16 %v6309
      %v6406 = vunpack.c.l.b16 %v6310
      %v6407 = vunpack.c.l.b16 %v6311
      %v6408 = vunpack.c.l.b16 %v6312
      %v6409 = vunpack.c.l.b16 %v6313
      %v6410 = vunpack.c.l.b16 %v6314
      %v6411 = vunpack.c.l.b16 %v6315
      %v6412 = vunpack.c.l.b16 %v6316
      %v6413 = vunpack.c.l.b16 %v6317
      %v6414 = vunpack.c.l.b16 %v6318
      %v6415 = vunpack.c.l.b16 %v6319
      %v6416 = vunpack.c.l.b16 %v6320
      %v6417 = vunpack.c.l.b16 %v6321
      %v6418 = vunpack.c.l.b16 %v6322
      %v6419 = vunpack.c.l.b16 %v6323
      %v6420 = vunpack.c.l.b16 %v6324
      %v6421 = vunpack.c.l.b16 %v6325
      %v6422 = vunpack.c.l.b16 %v6326
      %v6423 = vunpack.c.l.b16 %v6327
      %v6424 = vunpack.c.l.b16 %v6328
      %v6425 = vunpack.c.l.b16 %v6329
      %v6426 = vunpack.c.l.b16 %v6330
      %v6427 = vunpack.c.l.b16 %v6331
      %v6428 = vunpack.c.l.b16 %v6332
      %v6429 = vunpack.c.l.b16 %v6333
      %v6430 = vunpack.c.l.b16 %v6334
      %v6431 = vpack.c.b16 %v6384, %v6383
      %v6432 = vpack.c.b16 %v6386, %v6385
      %v6433 = vpack.c.b16 %v6388, %v6387
      %v6434 = vpack.c.b16 %v6390, %v6389
      %v6435 = vpack.c.b16 %v6392, %v6391
      %v6436 = vpack.c.b16 %v6394, %v6393
      %v6437 = vpack.c.b16 %v6396, %v6395
      %v6438 = vpack.c.b16 %v6398, %v6397
      %v6439 = vpack.c.b16 %v6400, %v6399
      %v6440 = vpack.c.b16 %v6402, %v6401
      %v6441 = vpack.c.b16 %v6404, %v6403
      %v6442 = vpack.c.b16 %v6406, %v6405
      %v6443 = vpack.c.b16 %v6408, %v6407
      %v6444 = vpack.c.b16 %v6410, %v6409
      %v6445 = vpack.c.b16 %v6412, %v6411
      %v6446 = vpack.c.b16 %v6414, %v6413
      %v6447 = vpack.c.b16 %v6416, %v6415
      %v6448 = vpack.c.b16 %v6418, %v6417
      %v6449 = vpack.c.b16 %v6420, %v6419
      %v6450 = vpack.c.b16 %v6422, %v6421
      %v6451 = vpack.c.b16 %v6424, %v6423
      %v6452 = vpack.c.b16 %v6426, %v6425
      %v6453 = vpack.c.b16 %v6428, %v6427
      %v6454 = vpack.c.b16 %v6430, %v6429
      %6479 = vmatprep.subr.bf16.mxu0 0
      %6480 = vmatpush1.bf16.msra.mxu0 %v6438
      %6481 = vmatprep.subr.bf16.mxu0 0
      %6482 = vmatpush1.bf16.msra.mxu0 %v6437
      %6483 = vmatprep.subr.bf16.mxu0 0
      %6484 = vmatpush1.bf16.msra.mxu0 %v6436
      %6485 = vmatprep.subr.bf16.mxu0 0
      %6486 = vmatpush1.bf16.msra.mxu0 %v6435
      %6487 = vmatprep.subr.bf16.mxu0 0
      %6488 = vmatpush1.bf16.msra.mxu0 %v6434
      %6489 = vmatprep.subr.bf16.mxu0 0
      %6490 = vmatpush1.bf16.msra.mxu0 %v6433
      %6491 = vmatprep.subr.bf16.mxu0 0
      %6492 = vmatpush1.bf16.msra.mxu0 %v6432
      %6493 = vmatprep.subr.bf16.mxu0 0
      %6494 = vmatpush1.bf16.msra.mxu0 %v6431
      %6495 = vmatprep.subr.bf16.mxu0 0
      %6496 = vmatpush2.bf16.msra.mxu0 %v6446
      %6497 = vmatprep.subr.bf16.mxu0 0
      %6498 = vmatpush2.bf16.msra.mxu0 %v6445
      %6499 = vmatprep.subr.bf16.mxu0 0
      %6500 = vmatpush2.bf16.msra.mxu0 %v6444
      %6501 = vmatprep.subr.bf16.mxu0 0
      %6502 = vmatpush2.bf16.msra.mxu0 %v6443
      %6503 = vmatprep.subr.bf16.mxu0 0
      %6504 = vmatpush2.bf16.msra.mxu0 %v6442
      %6505 = vmatprep.subr.bf16.mxu0 0
      %6506 = vmatpush2.bf16.msra.mxu0 %v6441
      %6507 = vmatprep.subr.bf16.mxu0 0
      %6508 = vmatpush2.bf16.msra.mxu0 %v6440
      %6509 = vmatprep.subr.bf16.mxu0 0
      %6510 = vmatpush2.bf16.msra.mxu0 %v6439
      %6511 = vmatprep.mubr.bf16.mxu0 %v6191
      %6512 = vmatmul.mubr.bf16.gmra.mxu0 %v6127
      %v6513 = vpop.f32.mrf.mxu0
      %v6514 = vadd.f32 0.0, %v6513
      %v6515 = vpop.f32.mrf.mxu0
      %v6516 = vpop.f32.mrf.mxu0
      %v6517 = vadd.f32 0.0, %v6516
      %v6518 = vpop.f32.mrf.mxu0
      %6519 = vmatprep.mubr.bf16.mxu0 %v6192
      %6520 = vmatmul.mubr.bf16.gmra.mxu0 %v6128
      %v6521 = vpop.f32.mrf.mxu0
      %v6522 = vadd.f32 0.0, %v6521
      %v6523 = vpop.f32.mrf.mxu0
      %v6524 = vpop.f32.mrf.mxu0
      %v6525 = vadd.f32 0.0, %v6524
      %v6526 = vpop.f32.mrf.mxu0
      %6527 = vmatprep.mubr.bf16.mxu0 %v6193
      %6528 = vmatmul.mubr.bf16.gmra.mxu0 %v6129
      %v6529 = vpop.f32.mrf.mxu0
      %v6530 = vadd.f32 0.0, %v6529
      %v6531 = vpop.f32.mrf.mxu0
      %v6532 = vpop.f32.mrf.mxu0
      %v6533 = vadd.f32 0.0, %v6532
      %v6534 = vpop.f32.mrf.mxu0
      %6535 = vmatprep.mubr.bf16.mxu0 %v6194
      %6536 = vmatmul.mubr.bf16.gmra.mxu0 %v6130
      %v6537 = vpop.f32.mrf.mxu0
      %v6538 = vadd.f32 0.0, %v6537
      %v6539 = vpop.f32.mrf.mxu0
      %v6540 = vpop.f32.mrf.mxu0
      %v6541 = vadd.f32 0.0, %v6540
      %v6542 = vpop.f32.mrf.mxu0
      %6543 = vmatprep.mubr.bf16.mxu0 %v6195
      %6544 = vmatmul.mubr.bf16.gmra.mxu0 %v6131
      %v6545 = vpop.f32.mrf.mxu0
      %v6546 = vadd.f32 0.0, %v6545
      %v6547 = vpop.f32.mrf.mxu0
      %v6548 = vpop.f32.mrf.mxu0
      %v6549 = vadd.f32 0.0, %v6548
      %v6550 = vpop.f32.mrf.mxu0
      %6551 = vmatprep.mubr.bf16.mxu0 %v6196
      %6552 = vmatmul.mubr.bf16.gmra.mxu0 %v6132
      %v6553 = vpop.f32.mrf.mxu0
      %v6554 = vadd.f32 0.0, %v6553
      %v6555 = vpop.f32.mrf.mxu0
      %v6556 = vpop.f32.mrf.mxu0
      %v6557 = vadd.f32 0.0, %v6556
      %v6558 = vpop.f32.mrf.mxu0
      %6559 = vmatprep.mubr.bf16.mxu0 %v6197
      %6560 = vmatmul.mubr.bf16.gmra.mxu0 %v6133
      %v6561 = vpop.f32.mrf.mxu0
      %v6562 = vadd.f32 0.0, %v6561
      %v6563 = vpop.f32.mrf.mxu0
      %v6564 = vpop.f32.mrf.mxu0
      %v6565 = vadd.f32 0.0, %v6564
      %v6566 = vpop.f32.mrf.mxu0
      %6567 = vmatprep.mubr.bf16.mxu0 %v6198
      %6568 = vmatmul.mubr.bf16.gmra.mxu0 %v6134
      %v6569 = vpop.f32.mrf.mxu0
      %v6570 = vadd.f32 0.0, %v6569
      %v6571 = vpop.f32.mrf.mxu0
      %v6572 = vpop.f32.mrf.mxu0
      %v6573 = vadd.f32 0.0, %v6572
      %v6574 = vpop.f32.mrf.mxu0
      %6575 = vmatprep.mubr.bf16.mxu0 %v6199
      %6576 = vmatmul.mubr.bf16.gmra.mxu0 %v6135
      %v6577 = vpop.f32.mrf.mxu0
      %v6578 = vadd.f32 0.0, %v6577
      %v6579 = vpop.f32.mrf.mxu0
      %v6580 = vpop.f32.mrf.mxu0
      %v6581 = vadd.f32 0.0, %v6580
      %v6582 = vpop.f32.mrf.mxu0
      %6583 = vmatprep.mubr.bf16.mxu0 %v6200
      %6584 = vmatmul.mubr.bf16.gmra.mxu0 %v6136
      %v6585 = vpop.f32.mrf.mxu0
      %v6586 = vadd.f32 0.0, %v6585
      %v6587 = vpop.f32.mrf.mxu0
      %v6588 = vpop.f32.mrf.mxu0
      %v6589 = vadd.f32 0.0, %v6588
      %v6590 = vpop.f32.mrf.mxu0
      %6591 = vmatprep.mubr.bf16.mxu0 %v6201
      %6592 = vmatmul.mubr.bf16.gmra.mxu0 %v6137
      %v6593 = vpop.f32.mrf.mxu0
      %v6594 = vadd.f32 0.0, %v6593
      %v6595 = vpop.f32.mrf.mxu0
      %v6596 = vpop.f32.mrf.mxu0
      %v6597 = vadd.f32 0.0, %v6596
      %v6598 = vpop.f32.mrf.mxu0
      %6599 = vmatprep.mubr.bf16.mxu0 %v6202
      %6600 = vmatmul.mubr.bf16.gmra.mxu0 %v6138
      %v6601 = vpop.f32.mrf.mxu0
      %v6602 = vadd.f32 0.0, %v6601
      %v6603 = vpop.f32.mrf.mxu0
      %v6604 = vpop.f32.mrf.mxu0
      %v6605 = vadd.f32 0.0, %v6604
      %v6606 = vpop.f32.mrf.mxu0
      %6607 = vmatprep.mubr.bf16.mxu0 %v6203
      %6608 = vmatmul.mubr.bf16.gmra.mxu0 %v6139
      %v6609 = vpop.f32.mrf.mxu0
      %v6610 = vadd.f32 0.0, %v6609
      %v6611 = vpop.f32.mrf.mxu0
      %v6612 = vpop.f32.mrf.mxu0
      %v6613 = vadd.f32 0.0, %v6612
      %v6614 = vpop.f32.mrf.mxu0
      %6615 = vmatprep.mubr.bf16.mxu0 %v6204
      %6616 = vmatmul.mubr.bf16.gmra.mxu0 %v6140
      %v6617 = vpop.f32.mrf.mxu0
      %v6618 = vadd.f32 0.0, %v6617
      %v6619 = vpop.f32.mrf.mxu0
      %v6620 = vpop.f32.mrf.mxu0
      %v6621 = vadd.f32 0.0, %v6620
      %v6622 = vpop.f32.mrf.mxu0
      %6623 = vmatprep.mubr.bf16.mxu0 %v6205
      %6624 = vmatmul.mubr.bf16.gmra.mxu0 %v6141
      %v6625 = vpop.f32.mrf.mxu0
      %v6626 = vadd.f32 0.0, %v6625
      %v6627 = vpop.f32.mrf.mxu0
      %v6628 = vpop.f32.mrf.mxu0
      %v6629 = vadd.f32 0.0, %v6628
      %v6630 = vpop.f32.mrf.mxu0
      %6631 = vmatprep.mubr.bf16.mxu0 %v6206
      %6632 = vmatmul.mubr.bf16.gmra.mxu0 %v6142
      %v6633 = vpop.f32.mrf.mxu0
      %v6634 = vadd.f32 0.0, %v6633
      %v6635 = vpop.f32.mrf.mxu0
      %v6636 = vpop.f32.mrf.mxu0
      %v6637 = vadd.f32 0.0, %v6636
      %v6638 = vpop.f32.mrf.mxu0
      %6639 = vdwg.mxu0
      %6640 = vmatprep.subr.bf16.mxu0 0
      %6641 = vmatpush1.bf16.msra.mxu0 %v6454
      %6642 = vmatprep.subr.bf16.mxu0 0
      %6643 = vmatpush1.bf16.msra.mxu0 %v6453
      %6644 = vmatprep.subr.bf16.mxu0 0
      %6645 = vmatpush1.bf16.msra.mxu0 %v6452
      %6646 = vmatprep.subr.bf16.mxu0 0
      %6647 = vmatpush1.bf16.msra.mxu0 %v6451
      %6648 = vmatprep.subr.bf16.mxu0 0
      %6649 = vmatpush1.bf16.msra.mxu0 %v6450
      %6650 = vmatprep.subr.bf16.mxu0 0
      %6651 = vmatpush1.bf16.msra.mxu0 %v6449
      %6652 = vmatprep.subr.bf16.mxu0 0
      %6653 = vmatpush1.bf16.msra.mxu0 %v6448
      %6654 = vmatprep.subr.bf16.mxu0 0
      %6655 = vmatpush1.bf16.msra.mxu0 %v6447
      %6656 = vmatprep.subr.bf16.mxu0 0
      %6657 = vmatpush2.bf16.msra.mxu0 0
      %6658 = vmatprep.subr.bf16.mxu0 0
      %6659 = vmatpush2.bf16.msra.mxu0 0
      %6660 = vmatprep.subr.bf16.mxu0 0
      %6661 = vmatpush2.bf16.msra.mxu0 0
      %6662 = vmatprep.subr.bf16.mxu0 0
      %6663 = vmatpush2.bf16.msra.mxu0 0
      %6664 = vmatprep.subr.bf16.mxu0 0
      %6665 = vmatpush2.bf16.msra.mxu0 0
      %6666 = vmatprep.subr.bf16.mxu0 0
      %6667 = vmatpush2.bf16.msra.mxu0 0
      %6668 = vmatprep.subr.bf16.mxu0 0
      %6669 = vmatpush2.bf16.msra.mxu0 0
      %6670 = vmatprep.subr.bf16.mxu0 0
      %6671 = vmatpush2.bf16.msra.mxu0 0
      %6672 = vmatprep.mubr.bf16.mxu0 0
      %6673 = vmatmul.mubr.bf16.gmra.mxu0 %v6255
      %v6674 = vpop.f32.mrf.mxu0
      %v6675 = vadd.f32 %v6514, %v6674
      %v6676 = vpop.f32.mrf.mxu0
      %v6677 = vpop.f32.mrf.mxu0
      %v6678 = vadd.f32 %v6517, %v6677
      %v6679 = vpop.f32.mrf.mxu0
      %6680 = vmatprep.mubr.bf16.mxu0 0
      %6681 = vmatmul.mubr.bf16.gmra.mxu0 %v6256
      %v6682 = vpop.f32.mrf.mxu0
      %v6683 = vadd.f32 %v6522, %v6682
      %v6684 = vpop.f32.mrf.mxu0
      %v6685 = vpop.f32.mrf.mxu0
      %v6686 = vadd.f32 %v6525, %v6685
      %v6687 = vpop.f32.mrf.mxu0
      %6688 = vmatprep.mubr.bf16.mxu0 0
      %6689 = vmatmul.mubr.bf16.gmra.mxu0 %v6257
      %v6690 = vpop.f32.mrf.mxu0
      %v6691 = vadd.f32 %v6530, %v6690
      %v6692 = vpop.f32.mrf.mxu0
      %v6693 = vpop.f32.mrf.mxu0
      %v6694 = vadd.f32 %v6533, %v6693
      %v6695 = vpop.f32.mrf.mxu0
      %6696 = vmatprep.mubr.bf16.mxu0 0
      %6697 = vmatmul.mubr.bf16.gmra.mxu0 %v6258
      %v6698 = vpop.f32.mrf.mxu0
      %v6699 = vadd.f32 %v6538, %v6698
      %v6700 = vpop.f32.mrf.mxu0
      %v6701 = vpop.f32.mrf.mxu0
      %v6702 = vadd.f32 %v6541, %v6701
      %v6703 = vpop.f32.mrf.mxu0
      %6704 = vmatprep.mubr.bf16.mxu0 0
      %6705 = vmatmul.mubr.bf16.gmra.mxu0 %v6259
      %v6706 = vpop.f32.mrf.mxu0
      %v6707 = vadd.f32 %v6546, %v6706
      %v6708 = vpop.f32.mrf.mxu0
      %v6709 = vpop.f32.mrf.mxu0
      %v6710 = vadd.f32 %v6549, %v6709
      %v6711 = vpop.f32.mrf.mxu0
      %6712 = vmatprep.mubr.bf16.mxu0 0
      %6713 = vmatmul.mubr.bf16.gmra.mxu0 %v6260
      %v6714 = vpop.f32.mrf.mxu0
      %v6715 = vadd.f32 %v6554, %v6714
      %v6716 = vpop.f32.mrf.mxu0
      %v6717 = vpop.f32.mrf.mxu0
      %v6718 = vadd.f32 %v6557, %v6717
      %v6719 = vpop.f32.mrf.mxu0
      %6720 = vmatprep.mubr.bf16.mxu0 0
      %6721 = vmatmul.mubr.bf16.gmra.mxu0 %v6261
      %v6722 = vpop.f32.mrf.mxu0
      %v6723 = vadd.f32 %v6562, %v6722
      %v6724 = vpop.f32.mrf.mxu0
      %v6725 = vpop.f32.mrf.mxu0
      %v6726 = vadd.f32 %v6565, %v6725
      %v6727 = vpop.f32.mrf.mxu0
      %6728 = vmatprep.mubr.bf16.mxu0 0
      %6729 = vmatmul.mubr.bf16.gmra.mxu0 %v6262
      %v6730 = vpop.f32.mrf.mxu0
      %v6731 = vadd.f32 %v6570, %v6730
      %v6732 = vpop.f32.mrf.mxu0
      %v6733 = vpop.f32.mrf.mxu0
      %v6734 = vadd.f32 %v6573, %v6733
      %v6735 = vpop.f32.mrf.mxu0
      %6736 = vmatprep.mubr.bf16.mxu0 0
      %6737 = vmatmul.mubr.bf16.gmra.mxu0 %v6263
      %v6738 = vpop.f32.mrf.mxu0
      %v6739 = vadd.f32 %v6578, %v6738
      %v6740 = vpop.f32.mrf.mxu0
      %v6741 = vpop.f32.mrf.mxu0
      %v6742 = vadd.f32 %v6581, %v6741
      %v6743 = vpop.f32.mrf.mxu0
      %6744 = vmatprep.mubr.bf16.mxu0 0
      %6745 = vmatmul.mubr.bf16.gmra.mxu0 %v6264
      %v6746 = vpop.f32.mrf.mxu0
      %v6747 = vadd.f32 %v6586, %v6746
      %v6748 = vpop.f32.mrf.mxu0
      %v6749 = vpop.f32.mrf.mxu0
      %v6750 = vadd.f32 %v6589, %v6749
      %v6751 = vpop.f32.mrf.mxu0
      %6752 = vmatprep.mubr.bf16.mxu0 0
      %6753 = vmatmul.mubr.bf16.gmra.mxu0 %v6265
      %v6754 = vpop.f32.mrf.mxu0
      %v6755 = vadd.f32 %v6594, %v6754
      %v6756 = vpop.f32.mrf.mxu0
      %v6757 = vpop.f32.mrf.mxu0
      %v6758 = vadd.f32 %v6597, %v6757
      %v6759 = vpop.f32.mrf.mxu0
      %6760 = vmatprep.mubr.bf16.mxu0 0
      %6761 = vmatmul.mubr.bf16.gmra.mxu0 %v6266
      %v6762 = vpop.f32.mrf.mxu0
      %v6763 = vadd.f32 %v6602, %v6762
      %v6764 = vpop.f32.mrf.mxu0
      %v6765 = vpop.f32.mrf.mxu0
      %v6766 = vadd.f32 %v6605, %v6765
      %v6767 = vpop.f32.mrf.mxu0
      %6768 = vmatprep.mubr.bf16.mxu0 0
      %6769 = vmatmul.mubr.bf16.gmra.mxu0 %v6267
      %v6770 = vpop.f32.mrf.mxu0
      %v6771 = vadd.f32 %v6610, %v6770
      %v6772 = vpop.f32.mrf.mxu0
      %v6773 = vpop.f32.mrf.mxu0
      %v6774 = vadd.f32 %v6613, %v6773
      %v6775 = vpop.f32.mrf.mxu0
      %6776 = vmatprep.mubr.bf16.mxu0 0
      %6777 = vmatmul.mubr.bf16.gmra.mxu0 %v6268
      %v6778 = vpop.f32.mrf.mxu0
      %v6779 = vadd.f32 %v6618, %v6778
      %v6780 = vpop.f32.mrf.mxu0
      %v6781 = vpop.f32.mrf.mxu0
      %v6782 = vadd.f32 %v6621, %v6781
      %v6783 = vpop.f32.mrf.mxu0
      %6784 = vmatprep.mubr.bf16.mxu0 0
      %6785 = vmatmul.mubr.bf16.gmra.mxu0 %v6269
      %v6786 = vpop.f32.mrf.mxu0
      %v6787 = vadd.f32 %v6626, %v6786
      %v6788 = vpop.f32.mrf.mxu0
      %v6789 = vpop.f32.mrf.mxu0
      %v6790 = vadd.f32 %v6629, %v6789
      %v6791 = vpop.f32.mrf.mxu0
      %6792 = vmatprep.mubr.bf16.mxu0 0
      %6793 = vmatmul.mubr.bf16.gmra.mxu0 %v6270
      %v6794 = vpop.f32.mrf.mxu0
      %v6795 = vadd.f32 %v6634, %v6794
      %v6796 = vpop.f32.mrf.mxu0
      %v6797 = vpop.f32.mrf.mxu0
      %v6798 = vadd.f32 %v6637, %v6797
      %v6799 = vpop.f32.mrf.mxu0
      %6800 = vdwg.mxu0
      %v6849 = vunpack.c.l.b16 %v5455
      %v6850 = vunpack.c.l.b16 %v5456
      %v6851 = vunpack.c.l.b16 %v5457
      %v6852 = vunpack.c.l.b16 %v5458
      %v6853 = vunpack.c.l.b16 %v5459
      %v6854 = vunpack.c.l.b16 %v5460
      %v6855 = vunpack.c.l.b16 %v5461
      %v6856 = vunpack.c.l.b16 %v5462
      %v6857 = vunpack.c.l.b16 %v5463
      %v6858 = vunpack.c.l.b16 %v5464
      %v6859 = vunpack.c.l.b16 %v5465
      %v6860 = vunpack.c.l.b16 %v5466
      %v6861 = vunpack.c.l.b16 %v5467
      %v6862 = vunpack.c.l.b16 %v5468
      %v6863 = vunpack.c.l.b16 %v5469
      %v6864 = vunpack.c.l.b16 %v5470
      %v6865 = vunpack.c.l.b16 %v5471
      %v6866 = vunpack.c.l.b16 %v5472
      %v6867 = vunpack.c.l.b16 %v5473
      %v6868 = vunpack.c.l.b16 %v5474
      %v6869 = vunpack.c.l.b16 %v5475
      %v6870 = vunpack.c.l.b16 %v5476
      %v6871 = vunpack.c.l.b16 %v5477
      %v6872 = vunpack.c.l.b16 %v5478
      %v6873 = vunpack.c.l.b16 %v5479
      %v6874 = vunpack.c.l.b16 %v5480
      %v6875 = vunpack.c.l.b16 %v5481
      %v6876 = vunpack.c.l.b16 %v5482
      %v6877 = vunpack.c.l.b16 %v5483
      %v6878 = vunpack.c.l.b16 %v5484
      %v6879 = vunpack.c.l.b16 %v5485
      %v6880 = vunpack.c.l.b16 %v5486
      %v6881 = vunpack.c.l.b16 %v5487
      %v6882 = vunpack.c.l.b16 %v5488
      %v6883 = vunpack.c.l.b16 %v5489
      %v6884 = vunpack.c.l.b16 %v5490
      %v6885 = vunpack.c.l.b16 %v5491
      %v6886 = vunpack.c.l.b16 %v5492
      %v6887 = vunpack.c.l.b16 %v5493
      %v6888 = vunpack.c.l.b16 %v5494
      %v6889 = vunpack.c.l.b16 %v5495
      %v6890 = vunpack.c.l.b16 %v5496
      %v6891 = vunpack.c.l.b16 %v5497
      %v6892 = vunpack.c.l.b16 %v5498
      %v6893 = vunpack.c.l.b16 %v5499
      %v6894 = vunpack.c.l.b16 %v5500
      %v6895 = vunpack.c.l.b16 %v5501
      %v6896 = vunpack.c.l.b16 %v5502
      %v6897 = vpack.c.b16 %v6850, %v6849
      %v6898 = vpack.c.b16 %v6852, %v6851
      %v6899 = vpack.c.b16 %v6854, %v6853
      %v6900 = vpack.c.b16 %v6856, %v6855
      %v6901 = vpack.c.b16 %v6858, %v6857
      %v6902 = vpack.c.b16 %v6860, %v6859
      %v6903 = vpack.c.b16 %v6862, %v6861
      %v6904 = vpack.c.b16 %v6864, %v6863
      %v6905 = vpack.c.b16 %v6866, %v6865
      %v6906 = vpack.c.b16 %v6868, %v6867
      %v6907 = vpack.c.b16 %v6870, %v6869
      %v6908 = vpack.c.b16 %v6872, %v6871
      %v6909 = vpack.c.b16 %v6874, %v6873
      %v6910 = vpack.c.b16 %v6876, %v6875
      %v6911 = vpack.c.b16 %v6878, %v6877
      %v6912 = vpack.c.b16 %v6880, %v6879
      %v6913 = vpack.c.b16 %v6882, %v6881
      %v6914 = vpack.c.b16 %v6884, %v6883
      %v6915 = vpack.c.b16 %v6886, %v6885
      %v6916 = vpack.c.b16 %v6888, %v6887
      %v6917 = vpack.c.b16 %v6890, %v6889
      %v6918 = vpack.c.b16 %v6892, %v6891
      %v6919 = vpack.c.b16 %v6894, %v6893
      %v6920 = vpack.c.b16 %v6896, %v6895
      %6945 = vmatprep.subr.bf16.mxu0 0
      %6946 = vmatpush1.bf16.msra.mxu0 %v6904
      %6947 = vmatprep.subr.bf16.mxu0 0
      %6948 = vmatpush1.bf16.msra.mxu0 %v6903
      %6949 = vmatprep.subr.bf16.mxu0 0
      %6950 = vmatpush1.bf16.msra.mxu0 %v6902
      %6951 = vmatprep.subr.bf16.mxu0 0
      %6952 = vmatpush1.bf16.msra.mxu0 %v6901
      %6953 = vmatprep.subr.bf16.mxu0 0
      %6954 = vmatpush1.bf16.msra.mxu0 %v6900
      %6955 = vmatprep.subr.bf16.mxu0 0
      %6956 = vmatpush1.bf16.msra.mxu0 %v6899
      %6957 = vmatprep.subr.bf16.mxu0 0
      %6958 = vmatpush1.bf16.msra.mxu0 %v6898
      %6959 = vmatprep.subr.bf16.mxu0 0
      %6960 = vmatpush1.bf16.msra.mxu0 %v6897
      %6961 = vmatprep.subr.bf16.mxu0 0
      %6962 = vmatpush2.bf16.msra.mxu0 %v6912
      %6963 = vmatprep.subr.bf16.mxu0 0
      %6964 = vmatpush2.bf16.msra.mxu0 %v6911
      %6965 = vmatprep.subr.bf16.mxu0 0
      %6966 = vmatpush2.bf16.msra.mxu0 %v6910
      %6967 = vmatprep.subr.bf16.mxu0 0
      %6968 = vmatpush2.bf16.msra.mxu0 %v6909
      %6969 = vmatprep.subr.bf16.mxu0 0
      %6970 = vmatpush2.bf16.msra.mxu0 %v6908
      %6971 = vmatprep.subr.bf16.mxu0 0
      %6972 = vmatpush2.bf16.msra.mxu0 %v6907
      %6973 = vmatprep.subr.bf16.mxu0 0
      %6974 = vmatpush2.bf16.msra.mxu0 %v6906
      %6975 = vmatprep.subr.bf16.mxu0 0
      %6976 = vmatpush2.bf16.msra.mxu0 %v6905
      %6977 = vmatprep.mubr.bf16.mxu0 %v5359
      %6978 = vmatmul.mubr.bf16.gmra.mxu0 %v5295
      %v6979 = vpop.f32.mrf.mxu0
      %v6980 = vadd.f32 %v6675, %v6979
      %v6981 = vpop.f32.mrf.mxu0
      %v6982 = vpop.f32.mrf.mxu0
      %v6983 = vadd.f32 %v6678, %v6982
      %v6984 = vpop.f32.mrf.mxu0
      %6985 = vmatprep.mubr.bf16.mxu0 %v5360
      %6986 = vmatmul.mubr.bf16.gmra.mxu0 %v5296
      %v6987 = vpop.f32.mrf.mxu0
      %v6988 = vadd.f32 %v6683, %v6987
      %v6989 = vpop.f32.mrf.mxu0
      %v6990 = vpop.f32.mrf.mxu0
      %v6991 = vadd.f32 %v6686, %v6990
      %v6992 = vpop.f32.mrf.mxu0
      %6993 = vmatprep.mubr.bf16.mxu0 %v5361
      %6994 = vmatmul.mubr.bf16.gmra.mxu0 %v5297
      %v6995 = vpop.f32.mrf.mxu0
      %v6996 = vadd.f32 %v6691, %v6995
      %v6997 = vpop.f32.mrf.mxu0
      %v6998 = vpop.f32.mrf.mxu0
      %v6999 = vadd.f32 %v6694, %v6998
      %v7000 = vpop.f32.mrf.mxu0
      %7001 = vmatprep.mubr.bf16.mxu0 %v5362
      %7002 = vmatmul.mubr.bf16.gmra.mxu0 %v5298
      %v7003 = vpop.f32.mrf.mxu0
      %v7004 = vadd.f32 %v6699, %v7003
      %v7005 = vpop.f32.mrf.mxu0
      %v7006 = vpop.f32.mrf.mxu0
      %v7007 = vadd.f32 %v6702, %v7006
      %v7008 = vpop.f32.mrf.mxu0
      %7009 = vmatprep.mubr.bf16.mxu0 %v5363
      %7010 = vmatmul.mubr.bf16.gmra.mxu0 %v5299
      %v7011 = vpop.f32.mrf.mxu0
      %v7012 = vadd.f32 %v6707, %v7011
      %v7013 = vpop.f32.mrf.mxu0
      %v7014 = vpop.f32.mrf.mxu0
      %v7015 = vadd.f32 %v6710, %v7014
      %v7016 = vpop.f32.mrf.mxu0
      %7017 = vmatprep.mubr.bf16.mxu0 %v5364
      %7018 = vmatmul.mubr.bf16.gmra.mxu0 %v5300
      %v7019 = vpop.f32.mrf.mxu0
      %v7020 = vadd.f32 %v6715, %v7019
      %v7021 = vpop.f32.mrf.mxu0
      %v7022 = vpop.f32.mrf.mxu0
      %v7023 = vadd.f32 %v6718, %v7022
      %v7024 = vpop.f32.mrf.mxu0
      %7025 = vmatprep.mubr.bf16.mxu0 %v5365
      %7026 = vmatmul.mubr.bf16.gmra.mxu0 %v5301
      %v7027 = vpop.f32.mrf.mxu0
      %v7028 = vadd.f32 %v6723, %v7027
      %v7029 = vpop.f32.mrf.mxu0
      %v7030 = vpop.f32.mrf.mxu0
      %v7031 = vadd.f32 %v6726, %v7030
      %v7032 = vpop.f32.mrf.mxu0
      %7033 = vmatprep.mubr.bf16.mxu0 %v5366
      %7034 = vmatmul.mubr.bf16.gmra.mxu0 %v5302
      %v7035 = vpop.f32.mrf.mxu0
      %v7036 = vadd.f32 %v6731, %v7035
      %v7037 = vpop.f32.mrf.mxu0
      %v7038 = vpop.f32.mrf.mxu0
      %v7039 = vadd.f32 %v6734, %v7038
      %v7040 = vpop.f32.mrf.mxu0
      %7041 = vmatprep.mubr.bf16.mxu0 %v5367
      %7042 = vmatmul.mubr.bf16.gmra.mxu0 %v5303
      %v7043 = vpop.f32.mrf.mxu0
      %v7044 = vadd.f32 %v6739, %v7043
      %v7045 = vpop.f32.mrf.mxu0
      %v7046 = vpop.f32.mrf.mxu0
      %v7047 = vadd.f32 %v6742, %v7046
      %v7048 = vpop.f32.mrf.mxu0
      %7049 = vmatprep.mubr.bf16.mxu0 %v5368
      %7050 = vmatmul.mubr.bf16.gmra.mxu0 %v5304
      %v7051 = vpop.f32.mrf.mxu0
      %v7052 = vadd.f32 %v6747, %v7051
      %v7053 = vpop.f32.mrf.mxu0
      %v7054 = vpop.f32.mrf.mxu0
      %v7055 = vadd.f32 %v6750, %v7054
      %v7056 = vpop.f32.mrf.mxu0
      %7057 = vmatprep.mubr.bf16.mxu0 %v5369
      %7058 = vmatmul.mubr.bf16.gmra.mxu0 %v5305
      %v7059 = vpop.f32.mrf.mxu0
      %v7060 = vadd.f32 %v6755, %v7059
      %v7061 = vpop.f32.mrf.mxu0
      %v7062 = vpop.f32.mrf.mxu0
      %v7063 = vadd.f32 %v6758, %v7062
      %v7064 = vpop.f32.mrf.mxu0
      %7065 = vmatprep.mubr.bf16.mxu0 %v5370
      %7066 = vmatmul.mubr.bf16.gmra.mxu0 %v5306
      %v7067 = vpop.f32.mrf.mxu0
      %v7068 = vadd.f32 %v6763, %v7067
      %v7069 = vpop.f32.mrf.mxu0
      %v7070 = vpop.f32.mrf.mxu0
      %v7071 = vadd.f32 %v6766, %v7070
      %v7072 = vpop.f32.mrf.mxu0
      %7073 = vmatprep.mubr.bf16.mxu0 %v5371
      %7074 = vmatmul.mubr.bf16.gmra.mxu0 %v5307
      %v7075 = vpop.f32.mrf.mxu0
      %v7076 = vadd.f32 %v6771, %v7075
      %v7077 = vpop.f32.mrf.mxu0
      %v7078 = vpop.f32.mrf.mxu0
      %v7079 = vadd.f32 %v6774, %v7078
      %v7080 = vpop.f32.mrf.mxu0
      %7081 = vmatprep.mubr.bf16.mxu0 %v5372
      %7082 = vmatmul.mubr.bf16.gmra.mxu0 %v5308
      %v7083 = vpop.f32.mrf.mxu0
      %v7084 = vadd.f32 %v6779, %v7083
      %v7085 = vpop.f32.mrf.mxu0
      %v7086 = vpop.f32.mrf.mxu0
      %v7087 = vadd.f32 %v6782, %v7086
      %v7088 = vpop.f32.mrf.mxu0
      %7089 = vmatprep.mubr.bf16.mxu0 %v5373
      %7090 = vmatmul.mubr.bf16.gmra.mxu0 %v5309
      %v7091 = vpop.f32.mrf.mxu0
      %v7092 = vadd.f32 %v6787, %v7091
      %v7093 = vpop.f32.mrf.mxu0
      %v7094 = vpop.f32.mrf.mxu0
      %v7095 = vadd.f32 %v6790, %v7094
      %v7096 = vpop.f32.mrf.mxu0
      %7097 = vmatprep.mubr.bf16.mxu0 %v5374
      %7098 = vmatmul.mubr.bf16.gmra.mxu0 %v5310
      %v7099 = vpop.f32.mrf.mxu0
      %v7100 = vadd.f32 %v6795, %v7099
      %v7101 = vpop.f32.mrf.mxu0
      %v7102 = vpop.f32.mrf.mxu0
      %v7103 = vadd.f32 %v6798, %v7102
      %v7104 = vpop.f32.mrf.mxu0
      %7105 = vdwg.mxu0
      %7106 = vmatprep.subr.bf16.mxu0 0
      %7107 = vmatpush1.bf16.msra.mxu0 %v6920
      %7108 = vmatprep.subr.bf16.mxu0 0
      %7109 = vmatpush1.bf16.msra.mxu0 %v6919
      %7110 = vmatprep.subr.bf16.mxu0 0
      %7111 = vmatpush1.bf16.msra.mxu0 %v6918
      %7112 = vmatprep.subr.bf16.mxu0 0
      %7113 = vmatpush1.bf16.msra.mxu0 %v6917
      %7114 = vmatprep.subr.bf16.mxu0 0
      %7115 = vmatpush1.bf16.msra.mxu0 %v6916
      %7116 = vmatprep.subr.bf16.mxu0 0
      %7117 = vmatpush1.bf16.msra.mxu0 %v6915
      %7118 = vmatprep.subr.bf16.mxu0 0
      %7119 = vmatpush1.bf16.msra.mxu0 %v6914
      %7120 = vmatprep.subr.bf16.mxu0 0
      %7121 = vmatpush1.bf16.msra.mxu0 %v6913
      %7122 = vmatprep.subr.bf16.mxu0 0
      %7123 = vmatpush2.bf16.msra.mxu0 0
      %7124 = vmatprep.subr.bf16.mxu0 0
      %7125 = vmatpush2.bf16.msra.mxu0 0
      %7126 = vmatprep.subr.bf16.mxu0 0
      %7127 = vmatpush2.bf16.msra.mxu0 0
      %7128 = vmatprep.subr.bf16.mxu0 0
      %7129 = vmatpush2.bf16.msra.mxu0 0
      %7130 = vmatprep.subr.bf16.mxu0 0
      %7131 = vmatpush2.bf16.msra.mxu0 0
      %7132 = vmatprep.subr.bf16.mxu0 0
      %7133 = vmatpush2.bf16.msra.mxu0 0
      %7134 = vmatprep.subr.bf16.mxu0 0
      %7135 = vmatpush2.bf16.msra.mxu0 0
      %7136 = vmatprep.subr.bf16.mxu0 0
      %7137 = vmatpush2.bf16.msra.mxu0 0
      %7138 = vmatprep.mubr.bf16.mxu0 0
      %7139 = vmatmul.mubr.bf16.gmra.mxu0 %v5423
      %v7140 = vpop.f32.mrf.mxu0
      %v7141 = vadd.f32 %v6980, %v7140
      %v7142 = vpop.f32.mrf.mxu0
      %v7143 = vpop.f32.mrf.mxu0
      %v7144 = vadd.f32 %v6983, %v7143
      %v7145 = vpop.f32.mrf.mxu0
      %7146 = vmatprep.mubr.bf16.mxu0 0
      %7147 = vmatmul.mubr.bf16.gmra.mxu0 %v5424
      %v7148 = vpop.f32.mrf.mxu0
      %v7149 = vadd.f32 %v6988, %v7148
      %v7150 = vpop.f32.mrf.mxu0
      %v7151 = vpop.f32.mrf.mxu0
      %v7152 = vadd.f32 %v6991, %v7151
      %v7153 = vpop.f32.mrf.mxu0
      %7154 = vmatprep.mubr.bf16.mxu0 0
      %7155 = vmatmul.mubr.bf16.gmra.mxu0 %v5425
      %v7156 = vpop.f32.mrf.mxu0
      %v7157 = vadd.f32 %v6996, %v7156
      %v7158 = vpop.f32.mrf.mxu0
      %v7159 = vpop.f32.mrf.mxu0
      %v7160 = vadd.f32 %v6999, %v7159
      %v7161 = vpop.f32.mrf.mxu0
      %7162 = vmatprep.mubr.bf16.mxu0 0
      %7163 = vmatmul.mubr.bf16.gmra.mxu0 %v5426
      %v7164 = vpop.f32.mrf.mxu0
      %v7165 = vadd.f32 %v7004, %v7164
      %v7166 = vpop.f32.mrf.mxu0
      %v7167 = vpop.f32.mrf.mxu0
      %v7168 = vadd.f32 %v7007, %v7167
      %v7169 = vpop.f32.mrf.mxu0
      %7170 = vmatprep.mubr.bf16.mxu0 0
      %7171 = vmatmul.mubr.bf16.gmra.mxu0 %v5427
      %v7172 = vpop.f32.mrf.mxu0
      %v7173 = vadd.f32 %v7012, %v7172
      %v7174 = vpop.f32.mrf.mxu0
      %v7175 = vpop.f32.mrf.mxu0
      %v7176 = vadd.f32 %v7015, %v7175
      %v7177 = vpop.f32.mrf.mxu0
      %7178 = vmatprep.mubr.bf16.mxu0 0
      %7179 = vmatmul.mubr.bf16.gmra.mxu0 %v5428
      %v7180 = vpop.f32.mrf.mxu0
      %v7181 = vadd.f32 %v7020, %v7180
      %v7182 = vpop.f32.mrf.mxu0
      %v7183 = vpop.f32.mrf.mxu0
      %v7184 = vadd.f32 %v7023, %v7183
      %v7185 = vpop.f32.mrf.mxu0
      %7186 = vmatprep.mubr.bf16.mxu0 0
      %7187 = vmatmul.mubr.bf16.gmra.mxu0 %v5429
      %v7188 = vpop.f32.mrf.mxu0
      %v7189 = vadd.f32 %v7028, %v7188
      %v7190 = vpop.f32.mrf.mxu0
      %v7191 = vpop.f32.mrf.mxu0
      %v7192 = vadd.f32 %v7031, %v7191
      %v7193 = vpop.f32.mrf.mxu0
      %7194 = vmatprep.mubr.bf16.mxu0 0
      %7195 = vmatmul.mubr.bf16.gmra.mxu0 %v5430
      %v7196 = vpop.f32.mrf.mxu0
      %v7197 = vadd.f32 %v7036, %v7196
      %v7198 = vpop.f32.mrf.mxu0
      %v7199 = vpop.f32.mrf.mxu0
      %v7200 = vadd.f32 %v7039, %v7199
      %v7201 = vpop.f32.mrf.mxu0
      %7202 = vmatprep.mubr.bf16.mxu0 0
      %7203 = vmatmul.mubr.bf16.gmra.mxu0 %v5431
      %v7204 = vpop.f32.mrf.mxu0
      %v7205 = vadd.f32 %v7044, %v7204
      %v7206 = vpop.f32.mrf.mxu0
      %v7207 = vpop.f32.mrf.mxu0
      %v7208 = vadd.f32 %v7047, %v7207
      %v7209 = vpop.f32.mrf.mxu0
      %7210 = vmatprep.mubr.bf16.mxu0 0
      %7211 = vmatmul.mubr.bf16.gmra.mxu0 %v5432
      %v7212 = vpop.f32.mrf.mxu0
      %v7213 = vadd.f32 %v7052, %v7212
      %v7214 = vpop.f32.mrf.mxu0
      %v7215 = vpop.f32.mrf.mxu0
      %v7216 = vadd.f32 %v7055, %v7215
      %v7217 = vpop.f32.mrf.mxu0
      %7218 = vmatprep.mubr.bf16.mxu0 0
      %7219 = vmatmul.mubr.bf16.gmra.mxu0 %v5433
      %v7220 = vpop.f32.mrf.mxu0
      %v7221 = vadd.f32 %v7060, %v7220
      %v7222 = vpop.f32.mrf.mxu0
      %v7223 = vpop.f32.mrf.mxu0
      %v7224 = vadd.f32 %v7063, %v7223
      %v7225 = vpop.f32.mrf.mxu0
      %7226 = vmatprep.mubr.bf16.mxu0 0
      %7227 = vmatmul.mubr.bf16.gmra.mxu0 %v5434
      %v7228 = vpop.f32.mrf.mxu0
      %v7229 = vadd.f32 %v7068, %v7228
      %v7230 = vpop.f32.mrf.mxu0
      %v7231 = vpop.f32.mrf.mxu0
      %v7232 = vadd.f32 %v7071, %v7231
      %v7233 = vpop.f32.mrf.mxu0
      %7234 = vmatprep.mubr.bf16.mxu0 0
      %7235 = vmatmul.mubr.bf16.gmra.mxu0 %v5435
      %v7236 = vpop.f32.mrf.mxu0
      %v7237 = vadd.f32 %v7076, %v7236
      %v7238 = vpop.f32.mrf.mxu0
      %v7239 = vpop.f32.mrf.mxu0
      %v7240 = vadd.f32 %v7079, %v7239
      %v7241 = vpop.f32.mrf.mxu0
      %7242 = vmatprep.mubr.bf16.mxu0 0
      %7243 = vmatmul.mubr.bf16.gmra.mxu0 %v5436
      %v7244 = vpop.f32.mrf.mxu0
      %v7245 = vadd.f32 %v7084, %v7244
      %v7246 = vpop.f32.mrf.mxu0
      %v7247 = vpop.f32.mrf.mxu0
      %v7248 = vadd.f32 %v7087, %v7247
      %v7249 = vpop.f32.mrf.mxu0
      %7250 = vmatprep.mubr.bf16.mxu0 0
      %7251 = vmatmul.mubr.bf16.gmra.mxu0 %v5437
      %v7252 = vpop.f32.mrf.mxu0
      %v7253 = vadd.f32 %v7092, %v7252
      %v7254 = vpop.f32.mrf.mxu0
      %v7255 = vpop.f32.mrf.mxu0
      %v7256 = vadd.f32 %v7095, %v7255
      %v7257 = vpop.f32.mrf.mxu0
      %7258 = vmatprep.mubr.bf16.mxu0 0
      %7259 = vmatmul.mubr.bf16.gmra.mxu0 %v5438
      %v7260 = vpop.f32.mrf.mxu0
      %v7261 = vadd.f32 %v7100, %v7260
      %v7262 = vpop.f32.mrf.mxu0
      %v7263 = vpop.f32.mrf.mxu0
      %v7264 = vadd.f32 %v7103, %v7263
      %v7265 = vpop.f32.mrf.mxu0
      %7266 = vdwg.mxu0
      %s7267 = smul.addr %s2845, 4
      %s7268 = scalar_lea.vmem [#allocation2], %s7267
      %v7269 = vld [vmem:[%s7268] sm:$0xf]
      %v7270 = vld [vmem:[%s7268 + $0x4] sm:$0xf]
      %v7271 = vld [vmem:[%s7268 + $0x8] sm:$0x1]
      %v7272 = vld [vmem:[%s7268 + $0xc] sm:$0xf]
      %v7273 = vld [vmem:[%s7268 + $0x10] sm:$0xf]
      %v7274 = vld [vmem:[%s7268 + $0x14] sm:$0x1]
      %v7275 = vld [vmem:[%s7268 + $0x18] sm:$0xf]
      %v7276 = vld [vmem:[%s7268 + $0x1c] sm:$0xf]
      %v7277 = vld [vmem:[%s7268 + $0x20] sm:$0x1]
      %v7278 = vld [vmem:[%s7268 + $0x24] sm:$0xf]
      %v7279 = vld [vmem:[%s7268 + $0x28] sm:$0xf]
      %v7280 = vld [vmem:[%s7268 + $0x2c] sm:$0x1]
      %v7281 = vld [vmem:[%s7268 + $0x30] sm:$0xf]
      %v7282 = vld [vmem:[%s7268 + $0x34] sm:$0xf]
      %v7283 = vld [vmem:[%s7268 + $0x38] sm:$0x1]
      %v7284 = vld [vmem:[%s7268 + $0x3c] sm:$0xf]
      %v7285 = vld [vmem:[%s7268 + $0x40] sm:$0xf]
      %v7286 = vld [vmem:[%s7268 + $0x44] sm:$0x1]
      %v7287 = vld [vmem:[%s7268 + $0x48] sm:$0xf]
      %v7288 = vld [vmem:[%s7268 + $0x4c] sm:$0xf]
      %v7289 = vld [vmem:[%s7268 + $0x50] sm:$0x1]
      %v7290 = vld [vmem:[%s7268 + $0x54] sm:$0xf]
      %v7291 = vld [vmem:[%s7268 + $0x58] sm:$0xf]
      %v7292 = vld [vmem:[%s7268 + $0x5c] sm:$0x1]
      %v7293 = vld [vmem:[%s7268 + $0x60] sm:$0xf]
      %v7294 = vld [vmem:[%s7268 + $0x64] sm:$0xf]
      %v7295 = vld [vmem:[%s7268 + $0x68] sm:$0x1]
      %v7296 = vld [vmem:[%s7268 + $0x6c] sm:$0xf]
      %v7297 = vld [vmem:[%s7268 + $0x70] sm:$0xf]
      %v7298 = vld [vmem:[%s7268 + $0x74] sm:$0x1]
      %v7299 = vld [vmem:[%s7268 + $0x78] sm:$0xf]
      %v7300 = vld [vmem:[%s7268 + $0x7c] sm:$0xf]
      %v7301 = vld [vmem:[%s7268 + $0x80] sm:$0x1]
      %v7302 = vld [vmem:[%s7268 + $0x84] sm:$0xf]
      %v7303 = vld [vmem:[%s7268 + $0x88] sm:$0xf]
      %v7304 = vld [vmem:[%s7268 + $0x8c] sm:$0x1]
      %v7305 = vld [vmem:[%s7268 + $0x90] sm:$0xf]
      %v7306 = vld [vmem:[%s7268 + $0x94] sm:$0xf]
      %v7307 = vld [vmem:[%s7268 + $0x98] sm:$0x1]
      %v7308 = vld [vmem:[%s7268 + $0x9c] sm:$0xf]
      %v7309 = vld [vmem:[%s7268 + $0xa0] sm:$0xf]
      %v7310 = vld [vmem:[%s7268 + $0xa4] sm:$0x1]
      %v7311 = vld [vmem:[%s7268 + $0xa8] sm:$0xf]
      %v7312 = vld [vmem:[%s7268 + $0xac] sm:$0xf]
      %v7313 = vld [vmem:[%s7268 + $0xb0] sm:$0x1]
      %v7314 = vld [vmem:[%s7268 + $0xb4] sm:$0xf]
      %v7315 = vld [vmem:[%s7268 + $0xb8] sm:$0xf]
      %v7316 = vld [vmem:[%s7268 + $0xbc] sm:$0x1]
      %v7318 = vshrl.u32 %v7269, 16
      %v7320 = vrot.slane %v7318, 4
      %v7321 = vshll.u32 %v7269, 16
      %v7323 = vrot.slane %v7321, 5
      %v7324 = vor.u32 %v7320, %v7323
      %v7325 = vrot.slane %v7324, 4
      %v7327 = vshll.u32 %v7270, 16
      %v7329 = vrot.slane %v7327, 5
      %v7330 = vsel %vm288, %v7325, %v7329
      %v7331 = vshrl.u32 %v7270, 16
      %v7333 = vrot.slane %v7331, 4
      %v7334 = vor.u32 %v7333, %v7329
      %v7335 = vrot.slane %v7334, 4
      %v7337 = vshll.u32 %v7271, 16
      %v7339 = vrot.slane %v7337, 5
      %v7340 = vsel %vm288, %v7335, %v7339
      %v7342 = vshrl.u32 %v7272, 16
      %v7344 = vrot.slane %v7342, 4
      %v7345 = vshll.u32 %v7272, 16
      %v7347 = vrot.slane %v7345, 5
      %v7348 = vor.u32 %v7344, %v7347
      %v7349 = vrot.slane %v7348, 4
      %v7351 = vshll.u32 %v7273, 16
      %v7353 = vrot.slane %v7351, 5
      %v7354 = vsel %vm288, %v7349, %v7353
      %v7355 = vshrl.u32 %v7273, 16
      %v7357 = vrot.slane %v7355, 4
      %v7358 = vor.u32 %v7357, %v7353
      %v7359 = vrot.slane %v7358, 4
      %v7361 = vshll.u32 %v7274, 16
      %v7363 = vrot.slane %v7361, 5
      %v7364 = vsel %vm288, %v7359, %v7363
      %v7366 = vshrl.u32 %v7275, 16
      %v7368 = vrot.slane %v7366, 4
      %v7369 = vshll.u32 %v7275, 16
      %v7371 = vrot.slane %v7369, 5
      %v7372 = vor.u32 %v7368, %v7371
      %v7373 = vrot.slane %v7372, 4
      %v7375 = vshll.u32 %v7276, 16
      %v7377 = vrot.slane %v7375, 5
      %v7378 = vsel %vm288, %v7373, %v7377
      %v7379 = vshrl.u32 %v7276, 16
      %v7381 = vrot.slane %v7379, 4
      %v7382 = vor.u32 %v7381, %v7377
      %v7383 = vrot.slane %v7382, 4
      %v7385 = vshll.u32 %v7277, 16
      %v7387 = vrot.slane %v7385, 5
      %v7388 = vsel %vm288, %v7383, %v7387
      %v7390 = vshrl.u32 %v7278, 16
      %v7392 = vrot.slane %v7390, 4
      %v7393 = vshll.u32 %v7278, 16
      %v7395 = vrot.slane %v7393, 5
      %v7396 = vor.u32 %v7392, %v7395
      %v7397 = vrot.slane %v7396, 4
      %v7399 = vshll.u32 %v7279, 16
      %v7401 = vrot.slane %v7399, 5
      %v7402 = vsel %vm288, %v7397, %v7401
      %v7403 = vshrl.u32 %v7279, 16
      %v7405 = vrot.slane %v7403, 4
      %v7406 = vor.u32 %v7405, %v7401
      %v7407 = vrot.slane %v7406, 4
      %v7409 = vshll.u32 %v7280, 16
      %v7411 = vrot.slane %v7409, 5
      %v7412 = vsel %vm288, %v7407, %v7411
      %v7414 = vshrl.u32 %v7281, 16
      %v7416 = vrot.slane %v7414, 4
      %v7417 = vshll.u32 %v7281, 16
      %v7419 = vrot.slane %v7417, 5
      %v7420 = vor.u32 %v7416, %v7419
      %v7421 = vrot.slane %v7420, 4
      %v7423 = vshll.u32 %v7282, 16
      %v7425 = vrot.slane %v7423, 5
      %v7426 = vsel %vm288, %v7421, %v7425
      %v7427 = vshrl.u32 %v7282, 16
      %v7429 = vrot.slane %v7427, 4
      %v7430 = vor.u32 %v7429, %v7425
      %v7431 = vrot.slane %v7430, 4
      %v7433 = vshll.u32 %v7283, 16
      %v7435 = vrot.slane %v7433, 5
      %v7436 = vsel %vm288, %v7431, %v7435
      %v7438 = vshrl.u32 %v7284, 16
      %v7440 = vrot.slane %v7438, 4
      %v7441 = vshll.u32 %v7284, 16
      %v7443 = vrot.slane %v7441, 5
      %v7444 = vor.u32 %v7440, %v7443
      %v7445 = vrot.slane %v7444, 4
      %v7447 = vshll.u32 %v7285, 16
      %v7449 = vrot.slane %v7447, 5
      %v7450 = vsel %vm288, %v7445, %v7449
      %v7451 = vshrl.u32 %v7285, 16
      %v7453 = vrot.slane %v7451, 4
      %v7454 = vor.u32 %v7453, %v7449
      %v7455 = vrot.slane %v7454, 4
      %v7457 = vshll.u32 %v7286, 16
      %v7459 = vrot.slane %v7457, 5
      %v7460 = vsel %vm288, %v7455, %v7459
      %v7462 = vshrl.u32 %v7287, 16
      %v7464 = vrot.slane %v7462, 4
      %v7465 = vshll.u32 %v7287, 16
      %v7467 = vrot.slane %v7465, 5
      %v7468 = vor.u32 %v7464, %v7467
      %v7469 = vrot.slane %v7468, 4
      %v7471 = vshll.u32 %v7288, 16
      %v7473 = vrot.slane %v7471, 5
      %v7474 = vsel %vm288, %v7469, %v7473
      %v7475 = vshrl.u32 %v7288, 16
      %v7477 = vrot.slane %v7475, 4
      %v7478 = vor.u32 %v7477, %v7473
      %v7479 = vrot.slane %v7478, 4
      %v7481 = vshll.u32 %v7289, 16
      %v7483 = vrot.slane %v7481, 5
      %v7484 = vsel %vm288, %v7479, %v7483
      %v7486 = vshrl.u32 %v7290, 16
      %v7488 = vrot.slane %v7486, 4
      %v7489 = vshll.u32 %v7290, 16
      %v7491 = vrot.slane %v7489, 5
      %v7492 = vor.u32 %v7488, %v7491
      %v7493 = vrot.slane %v7492, 4
      %v7495 = vshll.u32 %v7291, 16
      %v7497 = vrot.slane %v7495, 5
      %v7498 = vsel %vm288, %v7493, %v7497
      %v7499 = vshrl.u32 %v7291, 16
      %v7501 = vrot.slane %v7499, 4
      %v7502 = vor.u32 %v7501, %v7497
      %v7503 = vrot.slane %v7502, 4
      %v7505 = vshll.u32 %v7292, 16
      %v7507 = vrot.slane %v7505, 5
      %v7508 = vsel %vm288, %v7503, %v7507
      %v7510 = vshrl.u32 %v7293, 16
      %v7512 = vrot.slane %v7510, 4
      %v7513 = vshll.u32 %v7293, 16
      %v7515 = vrot.slane %v7513, 5
      %v7516 = vor.u32 %v7512, %v7515
      %v7517 = vrot.slane %v7516, 4
      %v7519 = vshll.u32 %v7294, 16
      %v7521 = vrot.slane %v7519, 5
      %v7522 = vsel %vm288, %v7517, %v7521
      %v7523 = vshrl.u32 %v7294, 16
      %v7525 = vrot.slane %v7523, 4
      %v7526 = vor.u32 %v7525, %v7521
      %v7527 = vrot.slane %v7526, 4
      %v7529 = vshll.u32 %v7295, 16
      %v7531 = vrot.slane %v7529, 5
      %v7532 = vsel %vm288, %v7527, %v7531
      %v7534 = vshrl.u32 %v7296, 16
      %v7536 = vrot.slane %v7534, 4
      %v7537 = vshll.u32 %v7296, 16
      %v7539 = vrot.slane %v7537, 5
      %v7540 = vor.u32 %v7536, %v7539
      %v7541 = vrot.slane %v7540, 4
      %v7543 = vshll.u32 %v7297, 16
      %v7545 = vrot.slane %v7543, 5
      %v7546 = vsel %vm288, %v7541, %v7545
      %v7547 = vshrl.u32 %v7297, 16
      %v7549 = vrot.slane %v7547, 4
      %v7550 = vor.u32 %v7549, %v7545
      %v7551 = vrot.slane %v7550, 4
      %v7553 = vshll.u32 %v7298, 16
      %v7555 = vrot.slane %v7553, 5
      %v7556 = vsel %vm288, %v7551, %v7555
      %v7558 = vshrl.u32 %v7299, 16
      %v7560 = vrot.slane %v7558, 4
      %v7561 = vshll.u32 %v7299, 16
      %v7563 = vrot.slane %v7561, 5
      %v7564 = vor.u32 %v7560, %v7563
      %v7565 = vrot.slane %v7564, 4
      %v7567 = vshll.u32 %v7300, 16
      %v7569 = vrot.slane %v7567, 5
      %v7570 = vsel %vm288, %v7565, %v7569
      %v7571 = vshrl.u32 %v7300, 16
      %v7573 = vrot.slane %v7571, 4
      %v7574 = vor.u32 %v7573, %v7569
      %v7575 = vrot.slane %v7574, 4
      %v7577 = vshll.u32 %v7301, 16
      %v7579 = vrot.slane %v7577, 5
      %v7580 = vsel %vm288, %v7575, %v7579
      %v7582 = vshrl.u32 %v7302, 16
      %v7584 = vrot.slane %v7582, 4
      %v7585 = vshll.u32 %v7302, 16
      %v7587 = vrot.slane %v7585, 5
      %v7588 = vor.u32 %v7584, %v7587
      %v7589 = vrot.slane %v7588, 4
      %v7591 = vshll.u32 %v7303, 16
      %v7593 = vrot.slane %v7591, 5
      %v7594 = vsel %vm288, %v7589, %v7593
      %v7595 = vshrl.u32 %v7303, 16
      %v7597 = vrot.slane %v7595, 4
      %v7598 = vor.u32 %v7597, %v7593
      %v7599 = vrot.slane %v7598, 4
      %v7601 = vshll.u32 %v7304, 16
      %v7603 = vrot.slane %v7601, 5
      %v7604 = vsel %vm288, %v7599, %v7603
      %v7606 = vshrl.u32 %v7305, 16
      %v7608 = vrot.slane %v7606, 4
      %v7609 = vshll.u32 %v7305, 16
      %v7611 = vrot.slane %v7609, 5
      %v7612 = vor.u32 %v7608, %v7611
      %v7613 = vrot.slane %v7612, 4
      %v7615 = vshll.u32 %v7306, 16
      %v7617 = vrot.slane %v7615, 5
      %v7618 = vsel %vm288, %v7613, %v7617
      %v7619 = vshrl.u32 %v7306, 16
      %v7621 = vrot.slane %v7619, 4
      %v7622 = vor.u32 %v7621, %v7617
      %v7623 = vrot.slane %v7622, 4
      %v7625 = vshll.u32 %v7307, 16
      %v7627 = vrot.slane %v7625, 5
      %v7628 = vsel %vm288, %v7623, %v7627
      %v7630 = vshrl.u32 %v7308, 16
      %v7632 = vrot.slane %v7630, 4
      %v7633 = vshll.u32 %v7308, 16
      %v7635 = vrot.slane %v7633, 5
      %v7636 = vor.u32 %v7632, %v7635
      %v7637 = vrot.slane %v7636, 4
      %v7639 = vshll.u32 %v7309, 16
      %v7641 = vrot.slane %v7639, 5
      %v7642 = vsel %vm288, %v7637, %v7641
      %v7643 = vshrl.u32 %v7309, 16
      %v7645 = vrot.slane %v7643, 4
      %v7646 = vor.u32 %v7645, %v7641
      %v7647 = vrot.slane %v7646, 4
      %v7649 = vshll.u32 %v7310, 16
      %v7651 = vrot.slane %v7649, 5
      %v7652 = vsel %vm288, %v7647, %v7651
      %v7654 = vshrl.u32 %v7311, 16
      %v7656 = vrot.slane %v7654, 4
      %v7657 = vshll.u32 %v7311, 16
      %v7659 = vrot.slane %v7657, 5
      %v7660 = vor.u32 %v7656, %v7659
      %v7661 = vrot.slane %v7660, 4
      %v7663 = vshll.u32 %v7312, 16
      %v7665 = vrot.slane %v7663, 5
      %v7666 = vsel %vm288, %v7661, %v7665
      %v7667 = vshrl.u32 %v7312, 16
      %v7669 = vrot.slane %v7667, 4
      %v7670 = vor.u32 %v7669, %v7665
      %v7671 = vrot.slane %v7670, 4
      %v7673 = vshll.u32 %v7313, 16
      %v7675 = vrot.slane %v7673, 5
      %v7676 = vsel %vm288, %v7671, %v7675
      %v7678 = vshrl.u32 %v7314, 16
      %v7680 = vrot.slane %v7678, 4
      %v7681 = vshll.u32 %v7314, 16
      %v7683 = vrot.slane %v7681, 5
      %v7684 = vor.u32 %v7680, %v7683
      %v7685 = vrot.slane %v7684, 4
      %v7687 = vshll.u32 %v7315, 16
      %v7689 = vrot.slane %v7687, 5
      %v7690 = vsel %vm288, %v7685, %v7689
      %v7691 = vshrl.u32 %v7315, 16
      %v7693 = vrot.slane %v7691, 4
      %v7694 = vor.u32 %v7693, %v7689
      %v7695 = vrot.slane %v7694, 4
      %v7697 = vshll.u32 %v7316, 16
      %v7699 = vrot.slane %v7697, 5
      %v7700 = vsel %vm288, %v7695, %v7699
      %v7749 = vrot.slane %v7269, 5
      %v7750 = vrot.slane %v7749, 4
      %v7751 = vrot.slane %v7270, 5
      %v7752 = vsel %vm723, %v7750, %v7751
      %v7753 = vrot.slane %v7751, 4
      %v7754 = vrot.slane %v7271, 5
      %v7755 = vsel %vm723, %v7753, %v7754
      %v7756 = vrot.slane %v7272, 5
      %v7757 = vrot.slane %v7756, 4
      %v7758 = vrot.slane %v7273, 5
      %v7759 = vsel %vm723, %v7757, %v7758
      %v7760 = vrot.slane %v7758, 4
      %v7761 = vrot.slane %v7274, 5
      %v7762 = vsel %vm723, %v7760, %v7761
      %v7763 = vrot.slane %v7275, 5
      %v7764 = vrot.slane %v7763, 4
      %v7765 = vrot.slane %v7276, 5
      %v7766 = vsel %vm723, %v7764, %v7765
      %v7767 = vrot.slane %v7765, 4
      %v7768 = vrot.slane %v7277, 5
      %v7769 = vsel %vm723, %v7767, %v7768
      %v7770 = vrot.slane %v7278, 5
      %v7771 = vrot.slane %v7770, 4
      %v7772 = vrot.slane %v7279, 5
      %v7773 = vsel %vm723, %v7771, %v7772
      %v7774 = vrot.slane %v7772, 4
      %v7775 = vrot.slane %v7280, 5
      %v7776 = vsel %vm723, %v7774, %v7775
      %v7777 = vrot.slane %v7281, 5
      %v7778 = vrot.slane %v7777, 4
      %v7779 = vrot.slane %v7282, 5
      %v7780 = vsel %vm723, %v7778, %v7779
      %v7781 = vrot.slane %v7779, 4
      %v7782 = vrot.slane %v7283, 5
      %v7783 = vsel %vm723, %v7781, %v7782
      %v7784 = vrot.slane %v7284, 5
      %v7785 = vrot.slane %v7784, 4
      %v7786 = vrot.slane %v7285, 5
      %v7787 = vsel %vm723, %v7785, %v7786
      %v7788 = vrot.slane %v7786, 4
      %v7789 = vrot.slane %v7286, 5
      %v7790 = vsel %vm723, %v7788, %v7789
      %v7791 = vrot.slane %v7287, 5
      %v7792 = vrot.slane %v7791, 4
      %v7793 = vrot.slane %v7288, 5
      %v7794 = vsel %vm723, %v7792, %v7793
      %v7795 = vrot.slane %v7793, 4
      %v7796 = vrot.slane %v7289, 5
      %v7797 = vsel %vm723, %v7795, %v7796
      %v7798 = vrot.slane %v7290, 5
      %v7799 = vrot.slane %v7798, 4
      %v7800 = vrot.slane %v7291, 5
      %v7801 = vsel %vm723, %v7799, %v7800
      %v7802 = vrot.slane %v7800, 4
      %v7803 = vrot.slane %v7292, 5
      %v7804 = vsel %vm723, %v7802, %v7803
      %v7805 = vrot.slane %v7293, 5
      %v7806 = vrot.slane %v7805, 4
      %v7807 = vrot.slane %v7294, 5
      %v7808 = vsel %vm723, %v7806, %v7807
      %v7809 = vrot.slane %v7807, 4
      %v7810 = vrot.slane %v7295, 5
      %v7811 = vsel %vm723, %v7809, %v7810
      %v7812 = vrot.slane %v7296, 5
      %v7813 = vrot.slane %v7812, 4
      %v7814 = vrot.slane %v7297, 5
      %v7815 = vsel %vm723, %v7813, %v7814
      %v7816 = vrot.slane %v7814, 4
      %v7817 = vrot.slane %v7298, 5
      %v7818 = vsel %vm723, %v7816, %v7817
      %v7819 = vrot.slane %v7299, 5
      %v7820 = vrot.slane %v7819, 4
      %v7821 = vrot.slane %v7300, 5
      %v7822 = vsel %vm723, %v7820, %v7821
      %v7823 = vrot.slane %v7821, 4
      %v7824 = vrot.slane %v7301, 5
      %v7825 = vsel %vm723, %v7823, %v7824
      %v7826 = vrot.slane %v7302, 5
      %v7827 = vrot.slane %v7826, 4
      %v7828 = vrot.slane %v7303, 5
      %v7829 = vsel %vm723, %v7827, %v7828
      %v7830 = vrot.slane %v7828, 4
      %v7831 = vrot.slane %v7304, 5
      %v7832 = vsel %vm723, %v7830, %v7831
      %v7833 = vrot.slane %v7305, 5
      %v7834 = vrot.slane %v7833, 4
      %v7835 = vrot.slane %v7306, 5
      %v7836 = vsel %vm723, %v7834, %v7835
      %v7837 = vrot.slane %v7835, 4
      %v7838 = vrot.slane %v7307, 5
      %v7839 = vsel %vm723, %v7837, %v7838
      %v7840 = vrot.slane %v7308, 5
      %v7841 = vrot.slane %v7840, 4
      %v7842 = vrot.slane %v7309, 5
      %v7843 = vsel %vm723, %v7841, %v7842
      %v7844 = vrot.slane %v7842, 4
      %v7845 = vrot.slane %v7310, 5
      %v7846 = vsel %vm723, %v7844, %v7845
      %v7847 = vrot.slane %v7311, 5
      %v7848 = vrot.slane %v7847, 4
      %v7849 = vrot.slane %v7312, 5
      %v7850 = vsel %vm723, %v7848, %v7849
      %v7851 = vrot.slane %v7849, 4
      %v7852 = vrot.slane %v7313, 5
      %v7853 = vsel %vm723, %v7851, %v7852
      %v7854 = vrot.slane %v7314, 5
      %v7855 = vrot.slane %v7854, 4
      %v7856 = vrot.slane %v7315, 5
      %v7857 = vsel %vm723, %v7855, %v7856
      %v7858 = vrot.slane %v7856, 4
      %v7859 = vrot.slane %v7316, 5
      %v7860 = vsel %vm723, %v7858, %v7859
      %v7861 = vunpack.c.l.b16 %v7269
      %v7862 = vunpack.c.l.b16 %v7270
      %v7863 = vunpack.c.l.b16 %v7272
      %v7864 = vunpack.c.l.b16 %v7273
      %v7865 = vunpack.c.l.b16 %v7275
      %v7866 = vunpack.c.l.b16 %v7276
      %v7867 = vunpack.c.l.b16 %v7278
      %v7868 = vunpack.c.l.b16 %v7279
      %v7869 = vunpack.c.l.b16 %v7281
      %v7870 = vunpack.c.l.b16 %v7282
      %v7871 = vunpack.c.l.b16 %v7284
      %v7872 = vunpack.c.l.b16 %v7285
      %v7873 = vunpack.c.l.b16 %v7287
      %v7874 = vunpack.c.l.b16 %v7288
      %v7875 = vunpack.c.l.b16 %v7290
      %v7876 = vunpack.c.l.b16 %v7291
      %v7877 = vunpack.c.l.b16 %v7293
      %v7878 = vunpack.c.l.b16 %v7294
      %v7879 = vunpack.c.l.b16 %v7296
      %v7880 = vunpack.c.l.b16 %v7297
      %v7881 = vunpack.c.l.b16 %v7299
      %v7882 = vunpack.c.l.b16 %v7300
      %v7883 = vunpack.c.l.b16 %v7302
      %v7884 = vunpack.c.l.b16 %v7303
      %v7885 = vunpack.c.l.b16 %v7305
      %v7886 = vunpack.c.l.b16 %v7306
      %v7887 = vunpack.c.l.b16 %v7308
      %v7888 = vunpack.c.l.b16 %v7309
      %v7889 = vunpack.c.l.b16 %v7311
      %v7890 = vunpack.c.l.b16 %v7312
      %v7891 = vunpack.c.l.b16 %v7314
      %v7892 = vunpack.c.l.b16 %v7315
      %v7893 = vpack.c.b16 %v7862, %v7861
      %v7894 = vpack.c.b16 %v7864, %v7863
      %v7895 = vpack.c.b16 %v7866, %v7865
      %v7896 = vpack.c.b16 %v7868, %v7867
      %v7897 = vpack.c.b16 %v7870, %v7869
      %v7898 = vpack.c.b16 %v7872, %v7871
      %v7899 = vpack.c.b16 %v7874, %v7873
      %v7900 = vpack.c.b16 %v7876, %v7875
      %v7901 = vpack.c.b16 %v7878, %v7877
      %v7902 = vpack.c.b16 %v7880, %v7879
      %v7903 = vpack.c.b16 %v7882, %v7881
      %v7904 = vpack.c.b16 %v7884, %v7883
      %v7905 = vpack.c.b16 %v7886, %v7885
      %v7906 = vpack.c.b16 %v7888, %v7887
      %v7907 = vpack.c.b16 %v7890, %v7889
      %v7908 = vpack.c.b16 %v7892, %v7891
      %v7925 = vunpack.c.l.b16 %v7330
      %v7926 = vunpack.c.l.b16 %v7340
      %v7927 = vunpack.c.l.b16 %v7354
      %v7928 = vunpack.c.l.b16 %v7364
      %v7929 = vunpack.c.l.b16 %v7378
      %v7930 = vunpack.c.l.b16 %v7388
      %v7931 = vunpack.c.l.b16 %v7402
      %v7932 = vunpack.c.l.b16 %v7412
      %v7933 = vunpack.c.l.b16 %v7426
      %v7934 = vunpack.c.l.b16 %v7436
      %v7935 = vunpack.c.l.b16 %v7450
      %v7936 = vunpack.c.l.b16 %v7460
      %v7937 = vunpack.c.l.b16 %v7474
      %v7938 = vunpack.c.l.b16 %v7484
      %v7939 = vunpack.c.l.b16 %v7498
      %v7940 = vunpack.c.l.b16 %v7508
      %v7941 = vunpack.c.l.b16 %v7522
      %v7942 = vunpack.c.l.b16 %v7532
      %v7943 = vunpack.c.l.b16 %v7546
      %v7944 = vunpack.c.l.b16 %v7556
      %v7945 = vunpack.c.l.b16 %v7570
      %v7946 = vunpack.c.l.b16 %v7580
      %v7947 = vunpack.c.l.b16 %v7594
      %v7948 = vunpack.c.l.b16 %v7604
      %v7949 = vunpack.c.l.b16 %v7618
      %v7950 = vunpack.c.l.b16 %v7628
      %v7951 = vunpack.c.l.b16 %v7642
      %v7952 = vunpack.c.l.b16 %v7652
      %v7953 = vunpack.c.l.b16 %v7666
      %v7954 = vunpack.c.l.b16 %v7676
      %v7955 = vunpack.c.l.b16 %v7690
      %v7956 = vunpack.c.l.b16 %v7700
      %v7957 = vpack.c.b16 %v7926, %v7925
      %v7958 = vpack.c.b16 %v7928, %v7927
      %v7959 = vpack.c.b16 %v7930, %v7929
      %v7960 = vpack.c.b16 %v7932, %v7931
      %v7961 = vpack.c.b16 %v7934, %v7933
      %v7962 = vpack.c.b16 %v7936, %v7935
      %v7963 = vpack.c.b16 %v7938, %v7937
      %v7964 = vpack.c.b16 %v7940, %v7939
      %v7965 = vpack.c.b16 %v7942, %v7941
      %v7966 = vpack.c.b16 %v7944, %v7943
      %v7967 = vpack.c.b16 %v7946, %v7945
      %v7968 = vpack.c.b16 %v7948, %v7947
      %v7969 = vpack.c.b16 %v7950, %v7949
      %v7970 = vpack.c.b16 %v7952, %v7951
      %v7971 = vpack.c.b16 %v7954, %v7953
      %v7972 = vpack.c.b16 %v7956, %v7955
      %v7989 = vunpack.c.l.b16 %v7752
      %v7990 = vunpack.c.l.b16 %v7755
      %v7991 = vunpack.c.l.b16 %v7759
      %v7992 = vunpack.c.l.b16 %v7762
      %v7993 = vunpack.c.l.b16 %v7766
      %v7994 = vunpack.c.l.b16 %v7769
      %v7995 = vunpack.c.l.b16 %v7773
      %v7996 = vunpack.c.l.b16 %v7776
      %v7997 = vunpack.c.l.b16 %v7780
      %v7998 = vunpack.c.l.b16 %v7783
      %v7999 = vunpack.c.l.b16 %v7787
      %v8000 = vunpack.c.l.b16 %v7790
      %v8001 = vunpack.c.l.b16 %v7794
      %v8002 = vunpack.c.l.b16 %v7797
      %v8003 = vunpack.c.l.b16 %v7801
      %v8004 = vunpack.c.l.b16 %v7804
      %v8005 = vunpack.c.l.b16 %v7808
      %v8006 = vunpack.c.l.b16 %v7811
      %v8007 = vunpack.c.l.b16 %v7815
      %v8008 = vunpack.c.l.b16 %v7818
      %v8009 = vunpack.c.l.b16 %v7822
      %v8010 = vunpack.c.l.b16 %v7825
      %v8011 = vunpack.c.l.b16 %v7829
      %v8012 = vunpack.c.l.b16 %v7832
      %v8013 = vunpack.c.l.b16 %v7836
      %v8014 = vunpack.c.l.b16 %v7839
      %v8015 = vunpack.c.l.b16 %v7843
      %v8016 = vunpack.c.l.b16 %v7846
      %v8017 = vunpack.c.l.b16 %v7850
      %v8018 = vunpack.c.l.b16 %v7853
      %v8019 = vunpack.c.l.b16 %v7857
      %v8020 = vunpack.c.l.b16 %v7860
      %v8021 = vpack.c.b16 %v7990, %v7989
      %v8022 = vpack.c.b16 %v7992, %v7991
      %v8023 = vpack.c.b16 %v7994, %v7993
      %v8024 = vpack.c.b16 %v7996, %v7995
      %v8025 = vpack.c.b16 %v7998, %v7997
      %v8026 = vpack.c.b16 %v8000, %v7999
      %v8027 = vpack.c.b16 %v8002, %v8001
      %v8028 = vpack.c.b16 %v8004, %v8003
      %v8029 = vpack.c.b16 %v8006, %v8005
      %v8030 = vpack.c.b16 %v8008, %v8007
      %v8031 = vpack.c.b16 %v8010, %v8009
      %v8032 = vpack.c.b16 %v8012, %v8011
      %v8033 = vpack.c.b16 %v8014, %v8013
      %v8034 = vpack.c.b16 %v8016, %v8015
      %v8035 = vpack.c.b16 %v8018, %v8017
      %v8036 = vpack.c.b16 %v8020, %v8019
      %v8053 = vld [vmem:[%s2 + $0x180] sm:$0xf]
      %v8054 = vld [vmem:[%s2 + $0x184] sm:$0xf]
      %v8055 = vld [vmem:[%s2 + $0x188] sm:$0xf]
      %v8056 = vld [vmem:[%s2 + $0x18c] sm:$0xf]
      %v8057 = vld [vmem:[%s2 + $0x190] sm:$0xf]
      %v8058 = vld [vmem:[%s2 + $0x194] sm:$0xf]
      %v8059 = vld [vmem:[%s2 + $0x198] sm:$0xf]
      %v8060 = vld [vmem:[%s2 + $0x19c] sm:$0xf]
      %v8061 = vld [vmem:[%s2 + $0x1a0] sm:$0xf]
      %v8062 = vld [vmem:[%s2 + $0x1a4] sm:$0xf]
      %v8063 = vld [vmem:[%s2 + $0x1a8] sm:$0xf]
      %v8064 = vld [vmem:[%s2 + $0x1ac] sm:$0xf]
      %v8065 = vld [vmem:[%s2 + $0x1b0] sm:$0xf]
      %v8066 = vld [vmem:[%s2 + $0x1b4] sm:$0xf]
      %v8067 = vld [vmem:[%s2 + $0x1b8] sm:$0xf]
      %v8068 = vld [vmem:[%s2 + $0x1bc] sm:$0xf]
      %v8069 = vld [vmem:[%s2 + $0x1c0] sm:$0xf]
      %v8070 = vld [vmem:[%s2 + $0x1c4] sm:$0xf]
      %v8071 = vld [vmem:[%s2 + $0x1c8] sm:$0xf]
      %v8072 = vld [vmem:[%s2 + $0x1cc] sm:$0xf]
      %v8073 = vld [vmem:[%s2 + $0x1d0] sm:$0xf]
      %v8074 = vld [vmem:[%s2 + $0x1d4] sm:$0xf]
      %v8075 = vld [vmem:[%s2 + $0x1d8] sm:$0xf]
      %v8076 = vld [vmem:[%s2 + $0x1dc] sm:$0xf]
      %v8077 = vld [vmem:[%s2 + $0x1e0] sm:$0xf]
      %v8078 = vld [vmem:[%s2 + $0x1e4] sm:$0xf]
      %v8079 = vld [vmem:[%s2 + $0x1e8] sm:$0xf]
      %v8080 = vld [vmem:[%s2 + $0x1ec] sm:$0xf]
      %v8081 = vld [vmem:[%s2 + $0x1f0] sm:$0xf]
      %v8082 = vld [vmem:[%s2 + $0x1f4] sm:$0xf]
      %v8083 = vld [vmem:[%s2 + $0x1f8] sm:$0xf]
      %v8084 = vld [vmem:[%s2 + $0x1fc] sm:$0xf]
      %v8085 = vld [vmem:[%s2 + $0x200] sm:$0xf]
      %v8086 = vld [vmem:[%s2 + $0x204] sm:$0xf]
      %v8087 = vld [vmem:[%s2 + $0x208] sm:$0xf]
      %v8088 = vld [vmem:[%s2 + $0x20c] sm:$0xf]
      %v8089 = vld [vmem:[%s2 + $0x210] sm:$0xf]
      %v8090 = vld [vmem:[%s2 + $0x214] sm:$0xf]
      %v8091 = vld [vmem:[%s2 + $0x218] sm:$0xf]
      %v8092 = vld [vmem:[%s2 + $0x21c] sm:$0xf]
      %v8093 = vld [vmem:[%s2 + $0x220] sm:$0xf]
      %v8094 = vld [vmem:[%s2 + $0x224] sm:$0xf]
      %v8095 = vld [vmem:[%s2 + $0x228] sm:$0xf]
      %v8096 = vld [vmem:[%s2 + $0x22c] sm:$0xf]
      %v8097 = vld [vmem:[%s2 + $0x230] sm:$0xf]
      %v8098 = vld [vmem:[%s2 + $0x234] sm:$0xf]
      %v8099 = vld [vmem:[%s2 + $0x238] sm:$0xf]
      %v8100 = vld [vmem:[%s2 + $0x23c] sm:$0xf]
      %v8149 = vunpack.c.l.b16 %v8053
      %v8150 = vunpack.c.l.b16 %v8054
      %v8151 = vunpack.c.l.b16 %v8055
      %v8152 = vunpack.c.l.b16 %v8056
      %v8153 = vunpack.c.l.b16 %v8057
      %v8154 = vunpack.c.l.b16 %v8058
      %v8155 = vunpack.c.l.b16 %v8059
      %v8156 = vunpack.c.l.b16 %v8060
      %v8157 = vunpack.c.l.b16 %v8061
      %v8158 = vunpack.c.l.b16 %v8062
      %v8159 = vunpack.c.l.b16 %v8063
      %v8160 = vunpack.c.l.b16 %v8064
      %v8161 = vunpack.c.l.b16 %v8065
      %v8162 = vunpack.c.l.b16 %v8066
      %v8163 = vunpack.c.l.b16 %v8067
      %v8164 = vunpack.c.l.b16 %v8068
      %v8165 = vunpack.c.l.b16 %v8069
      %v8166 = vunpack.c.l.b16 %v8070
      %v8167 = vunpack.c.l.b16 %v8071
      %v8168 = vunpack.c.l.b16 %v8072
      %v8169 = vunpack.c.l.b16 %v8073
      %v8170 = vunpack.c.l.b16 %v8074
      %v8171 = vunpack.c.l.b16 %v8075
      %v8172 = vunpack.c.l.b16 %v8076
      %v8173 = vunpack.c.l.b16 %v8077
      %v8174 = vunpack.c.l.b16 %v8078
      %v8175 = vunpack.c.l.b16 %v8079
      %v8176 = vunpack.c.l.b16 %v8080
      %v8177 = vunpack.c.l.b16 %v8081
      %v8178 = vunpack.c.l.b16 %v8082
      %v8179 = vunpack.c.l.b16 %v8083
      %v8180 = vunpack.c.l.b16 %v8084
      %v8181 = vunpack.c.l.b16 %v8085
      %v8182 = vunpack.c.l.b16 %v8086
      %v8183 = vunpack.c.l.b16 %v8087
      %v8184 = vunpack.c.l.b16 %v8088
      %v8185 = vunpack.c.l.b16 %v8089
      %v8186 = vunpack.c.l.b16 %v8090
      %v8187 = vunpack.c.l.b16 %v8091
      %v8188 = vunpack.c.l.b16 %v8092
      %v8189 = vunpack.c.l.b16 %v8093
      %v8190 = vunpack.c.l.b16 %v8094
      %v8191 = vunpack.c.l.b16 %v8095
      %v8192 = vunpack.c.l.b16 %v8096
      %v8193 = vunpack.c.l.b16 %v8097
      %v8194 = vunpack.c.l.b16 %v8098
      %v8195 = vunpack.c.l.b16 %v8099
      %v8196 = vunpack.c.l.b16 %v8100
      %v8197 = vpack.c.b16 %v8150, %v8149
      %v8198 = vpack.c.b16 %v8152, %v8151
      %v8199 = vpack.c.b16 %v8154, %v8153
      %v8200 = vpack.c.b16 %v8156, %v8155
      %v8201 = vpack.c.b16 %v8158, %v8157
      %v8202 = vpack.c.b16 %v8160, %v8159
      %v8203 = vpack.c.b16 %v8162, %v8161
      %v8204 = vpack.c.b16 %v8164, %v8163
      %v8205 = vpack.c.b16 %v8166, %v8165
      %v8206 = vpack.c.b16 %v8168, %v8167
      %v8207 = vpack.c.b16 %v8170, %v8169
      %v8208 = vpack.c.b16 %v8172, %v8171
      %v8209 = vpack.c.b16 %v8174, %v8173
      %v8210 = vpack.c.b16 %v8176, %v8175
      %v8211 = vpack.c.b16 %v8178, %v8177
      %v8212 = vpack.c.b16 %v8180, %v8179
      %v8213 = vpack.c.b16 %v8182, %v8181
      %v8214 = vpack.c.b16 %v8184, %v8183
      %v8215 = vpack.c.b16 %v8186, %v8185
      %v8216 = vpack.c.b16 %v8188, %v8187
      %v8217 = vpack.c.b16 %v8190, %v8189
      %v8218 = vpack.c.b16 %v8192, %v8191
      %v8219 = vpack.c.b16 %v8194, %v8193
      %v8220 = vpack.c.b16 %v8196, %v8195
      %8245 = vmatprep.subr.bf16.mxu0 0
      %8246 = vmatpush1.bf16.msra.mxu0 %v8204
      %8247 = vmatprep.subr.bf16.mxu0 0
      %8248 = vmatpush1.bf16.msra.mxu0 %v8203
      %8249 = vmatprep.subr.bf16.mxu0 0
      %8250 = vmatpush1.bf16.msra.mxu0 %v8202
      %8251 = vmatprep.subr.bf16.mxu0 0
      %8252 = vmatpush1.bf16.msra.mxu0 %v8201
      %8253 = vmatprep.subr.bf16.mxu0 0
      %8254 = vmatpush1.bf16.msra.mxu0 %v8200
      %8255 = vmatprep.subr.bf16.mxu0 0
      %8256 = vmatpush1.bf16.msra.mxu0 %v8199
      %8257 = vmatprep.subr.bf16.mxu0 0
      %8258 = vmatpush1.bf16.msra.mxu0 %v8198
      %8259 = vmatprep.subr.bf16.mxu0 0
      %8260 = vmatpush1.bf16.msra.mxu0 %v8197
      %8261 = vmatprep.subr.bf16.mxu0 0
      %8262 = vmatpush2.bf16.msra.mxu0 %v8212
      %8263 = vmatprep.subr.bf16.mxu0 0
      %8264 = vmatpush2.bf16.msra.mxu0 %v8211
      %8265 = vmatprep.subr.bf16.mxu0 0
      %8266 = vmatpush2.bf16.msra.mxu0 %v8210
      %8267 = vmatprep.subr.bf16.mxu0 0
      %8268 = vmatpush2.bf16.msra.mxu0 %v8209
      %8269 = vmatprep.subr.bf16.mxu0 0
      %8270 = vmatpush2.bf16.msra.mxu0 %v8208
      %8271 = vmatprep.subr.bf16.mxu0 0
      %8272 = vmatpush2.bf16.msra.mxu0 %v8207
      %8273 = vmatprep.subr.bf16.mxu0 0
      %8274 = vmatpush2.bf16.msra.mxu0 %v8206
      %8275 = vmatprep.subr.bf16.mxu0 0
      %8276 = vmatpush2.bf16.msra.mxu0 %v8205
      %8277 = vmatprep.mubr.bf16.mxu0 %v7957
      %8278 = vmatmul.mubr.bf16.gmra.mxu0 %v7893
      %v8279 = vpop.f32.mrf.mxu0
      %v8280 = vadd.f32 0.0, %v8279
      %v8281 = vpop.f32.mrf.mxu0
      %v8282 = vpop.f32.mrf.mxu0
      %v8283 = vadd.f32 0.0, %v8282
      %v8284 = vpop.f32.mrf.mxu0
      %8285 = vmatprep.mubr.bf16.mxu0 %v7958
      %8286 = vmatmul.mubr.bf16.gmra.mxu0 %v7894
      %v8287 = vpop.f32.mrf.mxu0
      %v8288 = vadd.f32 0.0, %v8287
      %v8289 = vpop.f32.mrf.mxu0
      %v8290 = vpop.f32.mrf.mxu0
      %v8291 = vadd.f32 0.0, %v8290
      %v8292 = vpop.f32.mrf.mxu0
      %8293 = vmatprep.mubr.bf16.mxu0 %v7959
      %8294 = vmatmul.mubr.bf16.gmra.mxu0 %v7895
      %v8295 = vpop.f32.mrf.mxu0
      %v8296 = vadd.f32 0.0, %v8295
      %v8297 = vpop.f32.mrf.mxu0
      %v8298 = vpop.f32.mrf.mxu0
      %v8299 = vadd.f32 0.0, %v8298
      %v8300 = vpop.f32.mrf.mxu0
      %8301 = vmatprep.mubr.bf16.mxu0 %v7960
      %8302 = vmatmul.mubr.bf16.gmra.mxu0 %v7896
      %v8303 = vpop.f32.mrf.mxu0
      %v8304 = vadd.f32 0.0, %v8303
      %v8305 = vpop.f32.mrf.mxu0
      %v8306 = vpop.f32.mrf.mxu0
      %v8307 = vadd.f32 0.0, %v8306
      %v8308 = vpop.f32.mrf.mxu0
      %8309 = vmatprep.mubr.bf16.mxu0 %v7961
      %8310 = vmatmul.mubr.bf16.gmra.mxu0 %v7897
      %v8311 = vpop.f32.mrf.mxu0
      %v8312 = vadd.f32 0.0, %v8311
      %v8313 = vpop.f32.mrf.mxu0
      %v8314 = vpop.f32.mrf.mxu0
      %v8315 = vadd.f32 0.0, %v8314
      %v8316 = vpop.f32.mrf.mxu0
      %8317 = vmatprep.mubr.bf16.mxu0 %v7962
      %8318 = vmatmul.mubr.bf16.gmra.mxu0 %v7898
      %v8319 = vpop.f32.mrf.mxu0
      %v8320 = vadd.f32 0.0, %v8319
      %v8321 = vpop.f32.mrf.mxu0
      %v8322 = vpop.f32.mrf.mxu0
      %v8323 = vadd.f32 0.0, %v8322
      %v8324 = vpop.f32.mrf.mxu0
      %8325 = vmatprep.mubr.bf16.mxu0 %v7963
      %8326 = vmatmul.mubr.bf16.gmra.mxu0 %v7899
      %v8327 = vpop.f32.mrf.mxu0
      %v8328 = vadd.f32 0.0, %v8327
      %v8329 = vpop.f32.mrf.mxu0
      %v8330 = vpop.f32.mrf.mxu0
      %v8331 = vadd.f32 0.0, %v8330
      %v8332 = vpop.f32.mrf.mxu0
      %8333 = vmatprep.mubr.bf16.mxu0 %v7964
      %8334 = vmatmul.mubr.bf16.gmra.mxu0 %v7900
      %v8335 = vpop.f32.mrf.mxu0
      %v8336 = vadd.f32 0.0, %v8335
      %v8337 = vpop.f32.mrf.mxu0
      %v8338 = vpop.f32.mrf.mxu0
      %v8339 = vadd.f32 0.0, %v8338
      %v8340 = vpop.f32.mrf.mxu0
      %8341 = vmatprep.mubr.bf16.mxu0 %v7965
      %8342 = vmatmul.mubr.bf16.gmra.mxu0 %v7901
      %v8343 = vpop.f32.mrf.mxu0
      %v8344 = vadd.f32 0.0, %v8343
      %v8345 = vpop.f32.mrf.mxu0
      %v8346 = vpop.f32.mrf.mxu0
      %v8347 = vadd.f32 0.0, %v8346
      %v8348 = vpop.f32.mrf.mxu0
      %8349 = vmatprep.mubr.bf16.mxu0 %v7966
      %8350 = vmatmul.mubr.bf16.gmra.mxu0 %v7902
      %v8351 = vpop.f32.mrf.mxu0
      %v8352 = vadd.f32 0.0, %v8351
      %v8353 = vpop.f32.mrf.mxu0
      %v8354 = vpop.f32.mrf.mxu0
      %v8355 = vadd.f32 0.0, %v8354
      %v8356 = vpop.f32.mrf.mxu0
      %8357 = vmatprep.mubr.bf16.mxu0 %v7967
      %8358 = vmatmul.mubr.bf16.gmra.mxu0 %v7903
      %v8359 = vpop.f32.mrf.mxu0
      %v8360 = vadd.f32 0.0, %v8359
      %v8361 = vpop.f32.mrf.mxu0
      %v8362 = vpop.f32.mrf.mxu0
      %v8363 = vadd.f32 0.0, %v8362
      %v8364 = vpop.f32.mrf.mxu0
      %8365 = vmatprep.mubr.bf16.mxu0 %v7968
      %8366 = vmatmul.mubr.bf16.gmra.mxu0 %v7904
      %v8367 = vpop.f32.mrf.mxu0
      %v8368 = vadd.f32 0.0, %v8367
      %v8369 = vpop.f32.mrf.mxu0
      %v8370 = vpop.f32.mrf.mxu0
      %v8371 = vadd.f32 0.0, %v8370
      %v8372 = vpop.f32.mrf.mxu0
      %8373 = vmatprep.mubr.bf16.mxu0 %v7969
      %8374 = vmatmul.mubr.bf16.gmra.mxu0 %v7905
      %v8375 = vpop.f32.mrf.mxu0
      %v8376 = vadd.f32 0.0, %v8375
      %v8377 = vpop.f32.mrf.mxu0
      %v8378 = vpop.f32.mrf.mxu0
      %v8379 = vadd.f32 0.0, %v8378
      %v8380 = vpop.f32.mrf.mxu0
      %8381 = vmatprep.mubr.bf16.mxu0 %v7970
      %8382 = vmatmul.mubr.bf16.gmra.mxu0 %v7906
      %v8383 = vpop.f32.mrf.mxu0
      %v8384 = vadd.f32 0.0, %v8383
      %v8385 = vpop.f32.mrf.mxu0
      %v8386 = vpop.f32.mrf.mxu0
      %v8387 = vadd.f32 0.0, %v8386
      %v8388 = vpop.f32.mrf.mxu0
      %8389 = vmatprep.mubr.bf16.mxu0 %v7971
      %8390 = vmatmul.mubr.bf16.gmra.mxu0 %v7907
      %v8391 = vpop.f32.mrf.mxu0
      %v8392 = vadd.f32 0.0, %v8391
      %v8393 = vpop.f32.mrf.mxu0
      %v8394 = vpop.f32.mrf.mxu0
      %v8395 = vadd.f32 0.0, %v8394
      %v8396 = vpop.f32.mrf.mxu0
      %8397 = vmatprep.mubr.bf16.mxu0 %v7972
      %8398 = vmatmul.mubr.bf16.gmra.mxu0 %v7908
      %v8399 = vpop.f32.mrf.mxu0
      %v8400 = vadd.f32 0.0, %v8399
      %v8401 = vpop.f32.mrf.mxu0
      %v8402 = vpop.f32.mrf.mxu0
      %v8403 = vadd.f32 0.0, %v8402
      %v8404 = vpop.f32.mrf.mxu0
      %8405 = vdwg.mxu0
      %8406 = vmatprep.subr.bf16.mxu0 0
      %8407 = vmatpush1.bf16.msra.mxu0 %v8220
      %8408 = vmatprep.subr.bf16.mxu0 0
      %8409 = vmatpush1.bf16.msra.mxu0 %v8219
      %8410 = vmatprep.subr.bf16.mxu0 0
      %8411 = vmatpush1.bf16.msra.mxu0 %v8218
      %8412 = vmatprep.subr.bf16.mxu0 0
      %8413 = vmatpush1.bf16.msra.mxu0 %v8217
      %8414 = vmatprep.subr.bf16.mxu0 0
      %8415 = vmatpush1.bf16.msra.mxu0 %v8216
      %8416 = vmatprep.subr.bf16.mxu0 0
      %8417 = vmatpush1.bf16.msra.mxu0 %v8215
      %8418 = vmatprep.subr.bf16.mxu0 0
      %8419 = vmatpush1.bf16.msra.mxu0 %v8214
      %8420 = vmatprep.subr.bf16.mxu0 0
      %8421 = vmatpush1.bf16.msra.mxu0 %v8213
      %8422 = vmatprep.subr.bf16.mxu0 0
      %8423 = vmatpush2.bf16.msra.mxu0 0
      %8424 = vmatprep.subr.bf16.mxu0 0
      %8425 = vmatpush2.bf16.msra.mxu0 0
      %8426 = vmatprep.subr.bf16.mxu0 0
      %8427 = vmatpush2.bf16.msra.mxu0 0
      %8428 = vmatprep.subr.bf16.mxu0 0
      %8429 = vmatpush2.bf16.msra.mxu0 0
      %8430 = vmatprep.subr.bf16.mxu0 0
      %8431 = vmatpush2.bf16.msra.mxu0 0
      %8432 = vmatprep.subr.bf16.mxu0 0
      %8433 = vmatpush2.bf16.msra.mxu0 0
      %8434 = vmatprep.subr.bf16.mxu0 0
      %8435 = vmatpush2.bf16.msra.mxu0 0
      %8436 = vmatprep.subr.bf16.mxu0 0
      %8437 = vmatpush2.bf16.msra.mxu0 0
      %8438 = vmatprep.mubr.bf16.mxu0 0
      %8439 = vmatmul.mubr.bf16.gmra.mxu0 %v8021
      %v8440 = vpop.f32.mrf.mxu0
      %v8441 = vadd.f32 %v8280, %v8440
      %v8442 = vpop.f32.mrf.mxu0
      %v8443 = vpop.f32.mrf.mxu0
      %v8444 = vadd.f32 %v8283, %v8443
      %v8445 = vpop.f32.mrf.mxu0
      %8446 = vmatprep.mubr.bf16.mxu0 0
      %8447 = vmatmul.mubr.bf16.gmra.mxu0 %v8022
      %v8448 = vpop.f32.mrf.mxu0
      %v8449 = vadd.f32 %v8288, %v8448
      %v8450 = vpop.f32.mrf.mxu0
      %v8451 = vpop.f32.mrf.mxu0
      %v8452 = vadd.f32 %v8291, %v8451
      %v8453 = vpop.f32.mrf.mxu0
      %8454 = vmatprep.mubr.bf16.mxu0 0
      %8455 = vmatmul.mubr.bf16.gmra.mxu0 %v8023
      %v8456 = vpop.f32.mrf.mxu0
      %v8457 = vadd.f32 %v8296, %v8456
      %v8458 = vpop.f32.mrf.mxu0
      %v8459 = vpop.f32.mrf.mxu0
      %v8460 = vadd.f32 %v8299, %v8459
      %v8461 = vpop.f32.mrf.mxu0
      %8462 = vmatprep.mubr.bf16.mxu0 0
      %8463 = vmatmul.mubr.bf16.gmra.mxu0 %v8024
      %v8464 = vpop.f32.mrf.mxu0
      %v8465 = vadd.f32 %v8304, %v8464
      %v8466 = vpop.f32.mrf.mxu0
      %v8467 = vpop.f32.mrf.mxu0
      %v8468 = vadd.f32 %v8307, %v8467
      %v8469 = vpop.f32.mrf.mxu0
      %8470 = vmatprep.mubr.bf16.mxu0 0
      %8471 = vmatmul.mubr.bf16.gmra.mxu0 %v8025
      %v8472 = vpop.f32.mrf.mxu0
      %v8473 = vadd.f32 %v8312, %v8472
      %v8474 = vpop.f32.mrf.mxu0
      %v8475 = vpop.f32.mrf.mxu0
      %v8476 = vadd.f32 %v8315, %v8475
      %v8477 = vpop.f32.mrf.mxu0
      %8478 = vmatprep.mubr.bf16.mxu0 0
      %8479 = vmatmul.mubr.bf16.gmra.mxu0 %v8026
      %v8480 = vpop.f32.mrf.mxu0
      %v8481 = vadd.f32 %v8320, %v8480
      %v8482 = vpop.f32.mrf.mxu0
      %v8483 = vpop.f32.mrf.mxu0
      %v8484 = vadd.f32 %v8323, %v8483
      %v8485 = vpop.f32.mrf.mxu0
      %8486 = vmatprep.mubr.bf16.mxu0 0
      %8487 = vmatmul.mubr.bf16.gmra.mxu0 %v8027
      %v8488 = vpop.f32.mrf.mxu0
      %v8489 = vadd.f32 %v8328, %v8488
      %v8490 = vpop.f32.mrf.mxu0
      %v8491 = vpop.f32.mrf.mxu0
      %v8492 = vadd.f32 %v8331, %v8491
      %v8493 = vpop.f32.mrf.mxu0
      %8494 = vmatprep.mubr.bf16.mxu0 0
      %8495 = vmatmul.mubr.bf16.gmra.mxu0 %v8028
      %v8496 = vpop.f32.mrf.mxu0
      %v8497 = vadd.f32 %v8336, %v8496
      %v8498 = vpop.f32.mrf.mxu0
      %v8499 = vpop.f32.mrf.mxu0
      %v8500 = vadd.f32 %v8339, %v8499
      %v8501 = vpop.f32.mrf.mxu0
      %8502 = vmatprep.mubr.bf16.mxu0 0
      %8503 = vmatmul.mubr.bf16.gmra.mxu0 %v8029
      %v8504 = vpop.f32.mrf.mxu0
      %v8505 = vadd.f32 %v8344, %v8504
      %v8506 = vpop.f32.mrf.mxu0
      %v8507 = vpop.f32.mrf.mxu0
      %v8508 = vadd.f32 %v8347, %v8507
      %v8509 = vpop.f32.mrf.mxu0
      %8510 = vmatprep.mubr.bf16.mxu0 0
      %8511 = vmatmul.mubr.bf16.gmra.mxu0 %v8030
      %v8512 = vpop.f32.mrf.mxu0
      %v8513 = vadd.f32 %v8352, %v8512
      %v8514 = vpop.f32.mrf.mxu0
      %v8515 = vpop.f32.mrf.mxu0
      %v8516 = vadd.f32 %v8355, %v8515
      %v8517 = vpop.f32.mrf.mxu0
      %8518 = vmatprep.mubr.bf16.mxu0 0
      %8519 = vmatmul.mubr.bf16.gmra.mxu0 %v8031
      %v8520 = vpop.f32.mrf.mxu0
      %v8521 = vadd.f32 %v8360, %v8520
      %v8522 = vpop.f32.mrf.mxu0
      %v8523 = vpop.f32.mrf.mxu0
      %v8524 = vadd.f32 %v8363, %v8523
      %v8525 = vpop.f32.mrf.mxu0
      %8526 = vmatprep.mubr.bf16.mxu0 0
      %8527 = vmatmul.mubr.bf16.gmra.mxu0 %v8032
      %v8528 = vpop.f32.mrf.mxu0
      %v8529 = vadd.f32 %v8368, %v8528
      %v8530 = vpop.f32.mrf.mxu0
      %v8531 = vpop.f32.mrf.mxu0
      %v8532 = vadd.f32 %v8371, %v8531
      %v8533 = vpop.f32.mrf.mxu0
      %8534 = vmatprep.mubr.bf16.mxu0 0
      %8535 = vmatmul.mubr.bf16.gmra.mxu0 %v8033
      %v8536 = vpop.f32.mrf.mxu0
      %v8537 = vadd.f32 %v8376, %v8536
      %v8538 = vpop.f32.mrf.mxu0
      %v8539 = vpop.f32.mrf.mxu0
      %v8540 = vadd.f32 %v8379, %v8539
      %v8541 = vpop.f32.mrf.mxu0
      %8542 = vmatprep.mubr.bf16.mxu0 0
      %8543 = vmatmul.mubr.bf16.gmra.mxu0 %v8034
      %v8544 = vpop.f32.mrf.mxu0
      %v8545 = vadd.f32 %v8384, %v8544
      %v8546 = vpop.f32.mrf.mxu0
      %v8547 = vpop.f32.mrf.mxu0
      %v8548 = vadd.f32 %v8387, %v8547
      %v8549 = vpop.f32.mrf.mxu0
      %8550 = vmatprep.mubr.bf16.mxu0 0
      %8551 = vmatmul.mubr.bf16.gmra.mxu0 %v8035
      %v8552 = vpop.f32.mrf.mxu0
      %v8553 = vadd.f32 %v8392, %v8552
      %v8554 = vpop.f32.mrf.mxu0
      %v8555 = vpop.f32.mrf.mxu0
      %v8556 = vadd.f32 %v8395, %v8555
      %v8557 = vpop.f32.mrf.mxu0
      %8558 = vmatprep.mubr.bf16.mxu0 0
      %8559 = vmatmul.mubr.bf16.gmra.mxu0 %v8036
      %v8560 = vpop.f32.mrf.mxu0
      %v8561 = vadd.f32 %v8400, %v8560
      %v8562 = vpop.f32.mrf.mxu0
      %v8563 = vpop.f32.mrf.mxu0
      %v8564 = vadd.f32 %v8403, %v8563
      %v8565 = vpop.f32.mrf.mxu0
      %8566 = vdwg.mxu0
      %v8567 = vadd.f32 %v7141, %v8441
      %v8568 = vadd.f32 %v7144, %v8444
      %v8569 = vadd.f32 %v7149, %v8449
      %v8570 = vadd.f32 %v7152, %v8452
      %v8571 = vadd.f32 %v7157, %v8457
      %v8572 = vadd.f32 %v7160, %v8460
      %v8573 = vadd.f32 %v7165, %v8465
      %v8574 = vadd.f32 %v7168, %v8468
      %v8575 = vadd.f32 %v7173, %v8473
      %v8576 = vadd.f32 %v7176, %v8476
      %v8577 = vadd.f32 %v7181, %v8481
      %v8578 = vadd.f32 %v7184, %v8484
      %v8579 = vadd.f32 %v7189, %v8489
      %v8580 = vadd.f32 %v7192, %v8492
      %v8581 = vadd.f32 %v7197, %v8497
      %v8582 = vadd.f32 %v7200, %v8500
      %v8583 = vadd.f32 %v7205, %v8505
      %v8584 = vadd.f32 %v7208, %v8508
      %v8585 = vadd.f32 %v7213, %v8513
      %v8586 = vadd.f32 %v7216, %v8516
      %v8587 = vadd.f32 %v7221, %v8521
      %v8588 = vadd.f32 %v7224, %v8524
      %v8589 = vadd.f32 %v7229, %v8529
      %v8590 = vadd.f32 %v7232, %v8532
      %v8591 = vadd.f32 %v7237, %v8537
      %v8592 = vadd.f32 %v7240, %v8540
      %v8593 = vadd.f32 %v7245, %v8545
      %v8594 = vadd.f32 %v7248, %v8548
      %v8595 = vadd.f32 %v7253, %v8553
      %v8596 = vadd.f32 %v7256, %v8556
      %v8597 = vadd.f32 %v7261, %v8561
      %v8598 = vadd.f32 %v7264, %v8564
      %v8600 = vlaneseq
      %v8601 = vshrl.u32 %v8600, 7
      %v8602 = vsub.s32 0, %v8601
      %v8603 = vrot.slane %v234, %v8602
      %v8605 = vadd.f32 %v8567, %v8603
      %v8606 = vadd.f32 %v8568, %v8603
      %v8607 = vadd.f32 %v8569, %v8603
      %v8608 = vadd.f32 %v8570, %v8603
      %v8609 = vadd.f32 %v8571, %v8603
      %v8610 = vadd.f32 %v8572, %v8603
      %v8611 = vadd.f32 %v8573, %v8603
      %v8612 = vadd.f32 %v8574, %v8603
      %v8613 = vadd.f32 %v8575, %v8603
      %v8614 = vadd.f32 %v8576, %v8603
      %v8615 = vadd.f32 %v8577, %v8603
      %v8616 = vadd.f32 %v8578, %v8603
      %v8617 = vadd.f32 %v8579, %v8603
      %v8618 = vadd.f32 %v8580, %v8603
      %v8619 = vadd.f32 %v8581, %v8603
      %v8620 = vadd.f32 %v8582, %v8603
      %v8621 = vadd.f32 %v8583, %v8603
      %v8622 = vadd.f32 %v8584, %v8603
      %v8623 = vadd.f32 %v8585, %v8603
      %v8624 = vadd.f32 %v8586, %v8603
      %v8625 = vadd.f32 %v8587, %v8603
      %v8626 = vadd.f32 %v8588, %v8603
      %v8627 = vadd.f32 %v8589, %v8603
      %v8628 = vadd.f32 %v8590, %v8603
      %v8629 = vadd.f32 %v8591, %v8603
      %v8630 = vadd.f32 %v8592, %v8603
      %v8631 = vadd.f32 %v8593, %v8603
      %v8632 = vadd.f32 %v8594, %v8603
      %v8633 = vadd.f32 %v8595, %v8603
      %v8634 = vadd.f32 %v8596, %v8603
      %v8635 = vadd.f32 %v8597, %v8603
      %v8636 = vadd.f32 %v8598, %v8603
      %v8637 = vld [vmem:[%s1079] sm:$0xf]
      %v8638 = vld [vmem:[%s1079 + $0x4] sm:$0xf]
      %v8639 = vld [vmem:[%s1079 + $0x8] sm:$0x1]
      %v8640 = vld [vmem:[%s1079 + $0xc] sm:$0xf]
      %v8641 = vld [vmem:[%s1079 + $0x10] sm:$0xf]
      %v8642 = vld [vmem:[%s1079 + $0x14] sm:$0x1]
      %v8643 = vld [vmem:[%s1079 + $0x18] sm:$0xf]
      %v8644 = vld [vmem:[%s1079 + $0x1c] sm:$0xf]
      %v8645 = vld [vmem:[%s1079 + $0x20] sm:$0x1]
      %v8646 = vld [vmem:[%s1079 + $0x24] sm:$0xf]
      %v8647 = vld [vmem:[%s1079 + $0x28] sm:$0xf]
      %v8648 = vld [vmem:[%s1079 + $0x2c] sm:$0x1]
      %v8649 = vld [vmem:[%s1079 + $0x30] sm:$0xf]
      %v8650 = vld [vmem:[%s1079 + $0x34] sm:$0xf]
      %v8651 = vld [vmem:[%s1079 + $0x38] sm:$0x1]
      %v8652 = vld [vmem:[%s1079 + $0x3c] sm:$0xf]
      %v8653 = vld [vmem:[%s1079 + $0x40] sm:$0xf]
      %v8654 = vld [vmem:[%s1079 + $0x44] sm:$0x1]
      %v8655 = vld [vmem:[%s1079 + $0x48] sm:$0xf]
      %v8656 = vld [vmem:[%s1079 + $0x4c] sm:$0xf]
      %v8657 = vld [vmem:[%s1079 + $0x50] sm:$0x1]
      %v8658 = vld [vmem:[%s1079 + $0x54] sm:$0xf]
      %v8659 = vld [vmem:[%s1079 + $0x58] sm:$0xf]
      %v8660 = vld [vmem:[%s1079 + $0x5c] sm:$0x1]
      %v8661 = vld [vmem:[%s1079 + $0x60] sm:$0xf]
      %v8662 = vld [vmem:[%s1079 + $0x64] sm:$0xf]
      %v8663 = vld [vmem:[%s1079 + $0x68] sm:$0x1]
      %v8664 = vld [vmem:[%s1079 + $0x6c] sm:$0xf]
      %v8665 = vld [vmem:[%s1079 + $0x70] sm:$0xf]
      %v8666 = vld [vmem:[%s1079 + $0x74] sm:$0x1]
      %v8667 = vld [vmem:[%s1079 + $0x78] sm:$0xf]
      %v8668 = vld [vmem:[%s1079 + $0x7c] sm:$0xf]
      %v8669 = vld [vmem:[%s1079 + $0x80] sm:$0x1]
      %v8670 = vld [vmem:[%s1079 + $0x84] sm:$0xf]
      %v8671 = vld [vmem:[%s1079 + $0x88] sm:$0xf]
      %v8672 = vld [vmem:[%s1079 + $0x8c] sm:$0x1]
      %v8673 = vld [vmem:[%s1079 + $0x90] sm:$0xf]
      %v8674 = vld [vmem:[%s1079 + $0x94] sm:$0xf]
      %v8675 = vld [vmem:[%s1079 + $0x98] sm:$0x1]
      %v8676 = vld [vmem:[%s1079 + $0x9c] sm:$0xf]
      %v8677 = vld [vmem:[%s1079 + $0xa0] sm:$0xf]
      %v8678 = vld [vmem:[%s1079 + $0xa4] sm:$0x1]
      %v8679 = vld [vmem:[%s1079 + $0xa8] sm:$0xf]
      %v8680 = vld [vmem:[%s1079 + $0xac] sm:$0xf]
      %v8681 = vld [vmem:[%s1079 + $0xb0] sm:$0x1]
      %v8682 = vld [vmem:[%s1079 + $0xb4] sm:$0xf]
      %v8683 = vld [vmem:[%s1079 + $0xb8] sm:$0xf]
      %v8684 = vld [vmem:[%s1079 + $0xbc] sm:$0x1]
      %v8686 = vshrl.u32 %v8637, 16
      %v8688 = vrot.slane %v8686, 4
      %v8689 = vshll.u32 %v8637, 16
      %v8691 = vrot.slane %v8689, 5
      %v8692 = vor.u32 %v8688, %v8691
      %v8693 = vrot.slane %v8692, 4
      %v8695 = vshll.u32 %v8638, 16
      %v8697 = vrot.slane %v8695, 5
      %v8698 = vsel %vm288, %v8693, %v8697
      %v8699 = vshrl.u32 %v8638, 16
      %v8701 = vrot.slane %v8699, 4
      %v8702 = vor.u32 %v8701, %v8697
      %v8703 = vrot.slane %v8702, 4
      %v8705 = vshll.u32 %v8639, 16
      %v8707 = vrot.slane %v8705, 5
      %v8708 = vsel %vm288, %v8703, %v8707
      %v8710 = vshrl.u32 %v8640, 16
      %v8712 = vrot.slane %v8710, 4
      %v8713 = vshll.u32 %v8640, 16
      %v8715 = vrot.slane %v8713, 5
      %v8716 = vor.u32 %v8712, %v8715
      %v8717 = vrot.slane %v8716, 4
      %v8719 = vshll.u32 %v8641, 16
      %v8721 = vrot.slane %v8719, 5
      %v8722 = vsel %vm288, %v8717, %v8721
      %v8723 = vshrl.u32 %v8641, 16
      %v8725 = vrot.slane %v8723, 4
      %v8726 = vor.u32 %v8725, %v8721
      %v8727 = vrot.slane %v8726, 4
      %v8729 = vshll.u32 %v8642, 16
      %v8731 = vrot.slane %v8729, 5
      %v8732 = vsel %vm288, %v8727, %v8731
      %v8734 = vshrl.u32 %v8643, 16
      %v8736 = vrot.slane %v8734, 4
      %v8737 = vshll.u32 %v8643, 16
      %v8739 = vrot.slane %v8737, 5
      %v8740 = vor.u32 %v8736, %v8739
      %v8741 = vrot.slane %v8740, 4
      %v8743 = vshll.u32 %v8644, 16
      %v8745 = vrot.slane %v8743, 5
      %v8746 = vsel %vm288, %v8741, %v8745
      %v8747 = vshrl.u32 %v8644, 16
      %v8749 = vrot.slane %v8747, 4
      %v8750 = vor.u32 %v8749, %v8745
      %v8751 = vrot.slane %v8750, 4
      %v8753 = vshll.u32 %v8645, 16
      %v8755 = vrot.slane %v8753, 5
      %v8756 = vsel %vm288, %v8751, %v8755
      %v8758 = vshrl.u32 %v8646, 16
      %v8760 = vrot.slane %v8758, 4
      %v8761 = vshll.u32 %v8646, 16
      %v8763 = vrot.slane %v8761, 5
      %v8764 = vor.u32 %v8760, %v8763
      %v8765 = vrot.slane %v8764, 4
      %v8767 = vshll.u32 %v8647, 16
      %v8769 = vrot.slane %v8767, 5
      %v8770 = vsel %vm288, %v8765, %v8769
      %v8771 = vshrl.u32 %v8647, 16
      %v8773 = vrot.slane %v8771, 4
      %v8774 = vor.u32 %v8773, %v8769
      %v8775 = vrot.slane %v8774, 4
      %v8777 = vshll.u32 %v8648, 16
      %v8779 = vrot.slane %v8777, 5
      %v8780 = vsel %vm288, %v8775, %v8779
      %v8782 = vshrl.u32 %v8649, 16
      %v8784 = vrot.slane %v8782, 4
      %v8785 = vshll.u32 %v8649, 16
      %v8787 = vrot.slane %v8785, 5
      %v8788 = vor.u32 %v8784, %v8787
      %v8789 = vrot.slane %v8788, 4
      %v8791 = vshll.u32 %v8650, 16
      %v8793 = vrot.slane %v8791, 5
      %v8794 = vsel %vm288, %v8789, %v8793
      %v8795 = vshrl.u32 %v8650, 16
      %v8797 = vrot.slane %v8795, 4
      %v8798 = vor.u32 %v8797, %v8793
      %v8799 = vrot.slane %v8798, 4
      %v8801 = vshll.u32 %v8651, 16
      %v8803 = vrot.slane %v8801, 5
      %v8804 = vsel %vm288, %v8799, %v8803
      %v8806 = vshrl.u32 %v8652, 16
      %v8808 = vrot.slane %v8806, 4
      %v8809 = vshll.u32 %v8652, 16
      %v8811 = vrot.slane %v8809, 5
      %v8812 = vor.u32 %v8808, %v8811
      %v8813 = vrot.slane %v8812, 4
      %v8815 = vshll.u32 %v8653, 16
      %v8817 = vrot.slane %v8815, 5
      %v8818 = vsel %vm288, %v8813, %v8817
      %v8819 = vshrl.u32 %v8653, 16
      %v8821 = vrot.slane %v8819, 4
      %v8822 = vor.u32 %v8821, %v8817
      %v8823 = vrot.slane %v8822, 4
      %v8825 = vshll.u32 %v8654, 16
      %v8827 = vrot.slane %v8825, 5
      %v8828 = vsel %vm288, %v8823, %v8827
      %v8830 = vshrl.u32 %v8655, 16
      %v8832 = vrot.slane %v8830, 4
      %v8833 = vshll.u32 %v8655, 16
      %v8835 = vrot.slane %v8833, 5
      %v8836 = vor.u32 %v8832, %v8835
      %v8837 = vrot.slane %v8836, 4
      %v8839 = vshll.u32 %v8656, 16
      %v8841 = vrot.slane %v8839, 5
      %v8842 = vsel %vm288, %v8837, %v8841
      %v8843 = vshrl.u32 %v8656, 16
      %v8845 = vrot.slane %v8843, 4
      %v8846 = vor.u32 %v8845, %v8841
      %v8847 = vrot.slane %v8846, 4
      %v8849 = vshll.u32 %v8657, 16
      %v8851 = vrot.slane %v8849, 5
      %v8852 = vsel %vm288, %v8847, %v8851
      %v8854 = vshrl.u32 %v8658, 16
      %v8856 = vrot.slane %v8854, 4
      %v8857 = vshll.u32 %v8658, 16
      %v8859 = vrot.slane %v8857, 5
      %v8860 = vor.u32 %v8856, %v8859
      %v8861 = vrot.slane %v8860, 4
      %v8863 = vshll.u32 %v8659, 16
      %v8865 = vrot.slane %v8863, 5
      %v8866 = vsel %vm288, %v8861, %v8865
      %v8867 = vshrl.u32 %v8659, 16
      %v8869 = vrot.slane %v8867, 4
      %v8870 = vor.u32 %v8869, %v8865
      %v8871 = vrot.slane %v8870, 4
      %v8873 = vshll.u32 %v8660, 16
      %v8875 = vrot.slane %v8873, 5
      %v8876 = vsel %vm288, %v8871, %v8875
      %v8878 = vshrl.u32 %v8661, 16
      %v8880 = vrot.slane %v8878, 4
      %v8881 = vshll.u32 %v8661, 16
      %v8883 = vrot.slane %v8881, 5
      %v8884 = vor.u32 %v8880, %v8883
      %v8885 = vrot.slane %v8884, 4
      %v8887 = vshll.u32 %v8662, 16
      %v8889 = vrot.slane %v8887, 5
      %v8890 = vsel %vm288, %v8885, %v8889
      %v8891 = vshrl.u32 %v8662, 16
      %v8893 = vrot.slane %v8891, 4
      %v8894 = vor.u32 %v8893, %v8889
      %v8895 = vrot.slane %v8894, 4
      %v8897 = vshll.u32 %v8663, 16
      %v8899 = vrot.slane %v8897, 5
      %v8900 = vsel %vm288, %v8895, %v8899
      %v8902 = vshrl.u32 %v8664, 16
      %v8904 = vrot.slane %v8902, 4
      %v8905 = vshll.u32 %v8664, 16
      %v8907 = vrot.slane %v8905, 5
      %v8908 = vor.u32 %v8904, %v8907
      %v8909 = vrot.slane %v8908, 4
      %v8911 = vshll.u32 %v8665, 16
      %v8913 = vrot.slane %v8911, 5
      %v8914 = vsel %vm288, %v8909, %v8913
      %v8915 = vshrl.u32 %v8665, 16
      %v8917 = vrot.slane %v8915, 4
      %v8918 = vor.u32 %v8917, %v8913
      %v8919 = vrot.slane %v8918, 4
      %v8921 = vshll.u32 %v8666, 16
      %v8923 = vrot.slane %v8921, 5
      %v8924 = vsel %vm288, %v8919, %v8923
      %v8926 = vshrl.u32 %v8667, 16
      %v8928 = vrot.slane %v8926, 4
      %v8929 = vshll.u32 %v8667, 16
      %v8931 = vrot.slane %v8929, 5
      %v8932 = vor.u32 %v8928, %v8931
      %v8933 = vrot.slane %v8932, 4
      %v8935 = vshll.u32 %v8668, 16
      %v8937 = vrot.slane %v8935, 5
      %v8938 = vsel %vm288, %v8933, %v8937
      %v8939 = vshrl.u32 %v8668, 16
      %v8941 = vrot.slane %v8939, 4
      %v8942 = vor.u32 %v8941, %v8937
      %v8943 = vrot.slane %v8942, 4
      %v8945 = vshll.u32 %v8669, 16
      %v8947 = vrot.slane %v8945, 5
      %v8948 = vsel %vm288, %v8943, %v8947
      %v8950 = vshrl.u32 %v8670, 16
      %v8952 = vrot.slane %v8950, 4
      %v8953 = vshll.u32 %v8670, 16
      %v8955 = vrot.slane %v8953, 5
      %v8956 = vor.u32 %v8952, %v8955
      %v8957 = vrot.slane %v8956, 4
      %v8959 = vshll.u32 %v8671, 16
      %v8961 = vrot.slane %v8959, 5
      %v8962 = vsel %vm288, %v8957, %v8961
      %v8963 = vshrl.u32 %v8671, 16
      %v8965 = vrot.slane %v8963, 4
      %v8966 = vor.u32 %v8965, %v8961
      %v8967 = vrot.slane %v8966, 4
      %v8969 = vshll.u32 %v8672, 16
      %v8971 = vrot.slane %v8969, 5
      %v8972 = vsel %vm288, %v8967, %v8971
      %v8974 = vshrl.u32 %v8673, 16
      %v8976 = vrot.slane %v8974, 4
      %v8977 = vshll.u32 %v8673, 16
      %v8979 = vrot.slane %v8977, 5
      %v8980 = vor.u32 %v8976, %v8979
      %v8981 = vrot.slane %v8980, 4
      %v8983 = vshll.u32 %v8674, 16
      %v8985 = vrot.slane %v8983, 5
      %v8986 = vsel %vm288, %v8981, %v8985
      %v8987 = vshrl.u32 %v8674, 16
      %v8989 = vrot.slane %v8987, 4
      %v8990 = vor.u32 %v8989, %v8985
      %v8991 = vrot.slane %v8990, 4
      %v8993 = vshll.u32 %v8675, 16
      %v8995 = vrot.slane %v8993, 5
      %v8996 = vsel %vm288, %v8991, %v8995
      %v8998 = vshrl.u32 %v8676, 16
      %v9000 = vrot.slane %v8998, 4
      %v9001 = vshll.u32 %v8676, 16
      %v9003 = vrot.slane %v9001, 5
      %v9004 = vor.u32 %v9000, %v9003
      %v9005 = vrot.slane %v9004, 4
      %v9007 = vshll.u32 %v8677, 16
      %v9009 = vrot.slane %v9007, 5
      %v9010 = vsel %vm288, %v9005, %v9009
      %v9011 = vshrl.u32 %v8677, 16
      %v9013 = vrot.slane %v9011, 4
      %v9014 = vor.u32 %v9013, %v9009
      %v9015 = vrot.slane %v9014, 4
      %v9017 = vshll.u32 %v8678, 16
      %v9019 = vrot.slane %v9017, 5
      %v9020 = vsel %vm288, %v9015, %v9019
      %v9022 = vshrl.u32 %v8679, 16
      %v9024 = vrot.slane %v9022, 4
      %v9025 = vshll.u32 %v8679, 16
      %v9027 = vrot.slane %v9025, 5
      %v9028 = vor.u32 %v9024, %v9027
      %v9029 = vrot.slane %v9028, 4
      %v9031 = vshll.u32 %v8680, 16
      %v9033 = vrot.slane %v9031, 5
      %v9034 = vsel %vm288, %v9029, %v9033
      %v9035 = vshrl.u32 %v8680, 16
      %v9037 = vrot.slane %v9035, 4
      %v9038 = vor.u32 %v9037, %v9033
      %v9039 = vrot.slane %v9038, 4
      %v9041 = vshll.u32 %v8681, 16
      %v9043 = vrot.slane %v9041, 5
      %v9044 = vsel %vm288, %v9039, %v9043
      %v9046 = vshrl.u32 %v8682, 16
      %v9048 = vrot.slane %v9046, 4
      %v9049 = vshll.u32 %v8682, 16
      %v9051 = vrot.slane %v9049, 5
      %v9052 = vor.u32 %v9048, %v9051
      %v9053 = vrot.slane %v9052, 4
      %v9055 = vshll.u32 %v8683, 16
      %v9057 = vrot.slane %v9055, 5
      %v9058 = vsel %vm288, %v9053, %v9057
      %v9059 = vshrl.u32 %v8683, 16
      %v9061 = vrot.slane %v9059, 4
      %v9062 = vor.u32 %v9061, %v9057
      %v9063 = vrot.slane %v9062, 4
      %v9065 = vshll.u32 %v8684, 16
      %v9067 = vrot.slane %v9065, 5
      %v9068 = vsel %vm288, %v9063, %v9067
      %v9101 = vunpack.c.l.bf16 %v8698
      %v9102 = vunpack.c.l.bf16 %v8708
      %v9103 = vunpack.c.l.bf16 %v8722
      %v9104 = vunpack.c.l.bf16 %v8732
      %v9105 = vunpack.c.l.bf16 %v8746
      %v9106 = vunpack.c.l.bf16 %v8756
      %v9107 = vunpack.c.l.bf16 %v8770
      %v9108 = vunpack.c.l.bf16 %v8780
      %v9109 = vunpack.c.l.bf16 %v8794
      %v9110 = vunpack.c.l.bf16 %v8804
      %v9111 = vunpack.c.l.bf16 %v8818
      %v9112 = vunpack.c.l.bf16 %v8828
      %v9113 = vunpack.c.l.bf16 %v8842
      %v9114 = vunpack.c.l.bf16 %v8852
      %v9115 = vunpack.c.l.bf16 %v8866
      %v9116 = vunpack.c.l.bf16 %v8876
      %v9117 = vunpack.c.l.bf16 %v8890
      %v9118 = vunpack.c.l.bf16 %v8900
      %v9119 = vunpack.c.l.bf16 %v8914
      %v9120 = vunpack.c.l.bf16 %v8924
      %v9121 = vunpack.c.l.bf16 %v8938
      %v9122 = vunpack.c.l.bf16 %v8948
      %v9123 = vunpack.c.l.bf16 %v8962
      %v9124 = vunpack.c.l.bf16 %v8972
      %v9125 = vunpack.c.l.bf16 %v8986
      %v9126 = vunpack.c.l.bf16 %v8996
      %v9127 = vunpack.c.l.bf16 %v9010
      %v9128 = vunpack.c.l.bf16 %v9020
      %v9129 = vunpack.c.l.bf16 %v9034
      %v9130 = vunpack.c.l.bf16 %v9044
      %v9131 = vunpack.c.l.bf16 %v9058
      %v9132 = vunpack.c.l.bf16 %v9068
      %v9133 = vadd.f32 %v8605, %v9101
      %v9134 = vadd.f32 %v8606, %v9102
      %v9135 = vadd.f32 %v8607, %v9103
      %v9136 = vadd.f32 %v8608, %v9104
      %v9137 = vadd.f32 %v8609, %v9105
      %v9138 = vadd.f32 %v8610, %v9106
      %v9139 = vadd.f32 %v8611, %v9107
      %v9140 = vadd.f32 %v8612, %v9108
      %v9141 = vadd.f32 %v8613, %v9109
      %v9142 = vadd.f32 %v8614, %v9110
      %v9143 = vadd.f32 %v8615, %v9111
      %v9144 = vadd.f32 %v8616, %v9112
      %v9145 = vadd.f32 %v8617, %v9113
      %v9146 = vadd.f32 %v8618, %v9114
      %v9147 = vadd.f32 %v8619, %v9115
      %v9148 = vadd.f32 %v8620, %v9116
      %v9149 = vadd.f32 %v8621, %v9117
      %v9150 = vadd.f32 %v8622, %v9118
      %v9151 = vadd.f32 %v8623, %v9119
      %v9152 = vadd.f32 %v8624, %v9120
      %v9153 = vadd.f32 %v8625, %v9121
      %v9154 = vadd.f32 %v8626, %v9122
      %v9155 = vadd.f32 %v8627, %v9123
      %v9156 = vadd.f32 %v8628, %v9124
      %v9157 = vadd.f32 %v8629, %v9125
      %v9158 = vadd.f32 %v8630, %v9126
      %v9159 = vadd.f32 %v8631, %v9127
      %v9160 = vadd.f32 %v8632, %v9128
      %v9161 = vadd.f32 %v8633, %v9129
      %v9162 = vadd.f32 %v8634, %v9130
      %v9163 = vadd.f32 %v8635, %v9131
      %v9164 = vadd.f32 %v8636, %v9132
      %v9165 = vmax.f32 %v9133, 0.0
      %v9166 = vmax.f32 %v9134, 0.0
      %v9167 = vmax.f32 %v9135, 0.0
      %v9168 = vmax.f32 %v9136, 0.0
      %v9169 = vmax.f32 %v9137, 0.0
      %v9170 = vmax.f32 %v9138, 0.0
      %v9171 = vmax.f32 %v9139, 0.0
      %v9172 = vmax.f32 %v9140, 0.0
      %v9173 = vmax.f32 %v9141, 0.0
      %v9174 = vmax.f32 %v9142, 0.0
      %v9175 = vmax.f32 %v9143, 0.0
      %v9176 = vmax.f32 %v9144, 0.0
      %v9177 = vmax.f32 %v9145, 0.0
      %v9178 = vmax.f32 %v9146, 0.0
      %v9179 = vmax.f32 %v9147, 0.0
      %v9180 = vmax.f32 %v9148, 0.0
      %v9181 = vmax.f32 %v9149, 0.0
      %v9182 = vmax.f32 %v9150, 0.0
      %v9183 = vmax.f32 %v9151, 0.0
      %v9184 = vmax.f32 %v9152, 0.0
      %v9185 = vmax.f32 %v9153, 0.0
      %v9186 = vmax.f32 %v9154, 0.0
      %v9187 = vmax.f32 %v9155, 0.0
      %v9188 = vmax.f32 %v9156, 0.0
      %v9189 = vmax.f32 %v9157, 0.0
      %v9190 = vmax.f32 %v9158, 0.0
      %v9191 = vmax.f32 %v9159, 0.0
      %v9192 = vmax.f32 %v9160, 0.0
      %v9193 = vmax.f32 %v9161, 0.0
      %v9194 = vmax.f32 %v9162, 0.0
      %v9195 = vmax.f32 %v9163, 0.0
      %v9196 = vmax.f32 %v9164, 0.0
      %v9197 = vpack.c.bf16 %v9166, %v9165
      %v9198 = vpack.c.bf16 %v9168, %v9167
      %v9199 = vpack.c.bf16 %v9170, %v9169
      %v9200 = vpack.c.bf16 %v9172, %v9171
      %v9201 = vpack.c.bf16 %v9174, %v9173
      %v9202 = vpack.c.bf16 %v9176, %v9175
      %v9203 = vpack.c.bf16 %v9178, %v9177
      %v9204 = vpack.c.bf16 %v9180, %v9179
      %v9205 = vpack.c.bf16 %v9182, %v9181
      %v9206 = vpack.c.bf16 %v9184, %v9183
      %v9207 = vpack.c.bf16 %v9186, %v9185
      %v9208 = vpack.c.bf16 %v9188, %v9187
      %v9209 = vpack.c.bf16 %v9190, %v9189
      %v9210 = vpack.c.bf16 %v9192, %v9191
      %v9211 = vpack.c.bf16 %v9194, %v9193
      %v9212 = vpack.c.bf16 %v9196, %v9195
      %v9229 = vunpack.c.l.b16 %v9197
      %v9230 = vunpack.c.h.b16 %v9197
      %v9231 = vunpack.c.l.b16 %v9198
      %v9232 = vunpack.c.h.b16 %v9198
      %v9233 = vunpack.c.l.b16 %v9199
      %v9234 = vunpack.c.h.b16 %v9199
      %v9235 = vunpack.c.l.b16 %v9200
      %v9236 = vunpack.c.h.b16 %v9200
      %v9237 = vunpack.c.l.b16 %v9201
      %v9238 = vunpack.c.h.b16 %v9201
      %v9239 = vunpack.c.l.b16 %v9202
      %v9240 = vunpack.c.h.b16 %v9202
      %v9241 = vunpack.c.l.b16 %v9203
      %v9242 = vunpack.c.h.b16 %v9203
      %v9243 = vunpack.c.l.b16 %v9204
      %v9244 = vunpack.c.h.b16 %v9204
      %v9245 = vunpack.c.l.b16 %v9205
      %v9246 = vunpack.c.h.b16 %v9205
      %v9247 = vunpack.c.l.b16 %v9206
      %v9248 = vunpack.c.h.b16 %v9206
      %v9249 = vunpack.c.l.b16 %v9207
      %v9250 = vunpack.c.h.b16 %v9207
      %v9251 = vunpack.c.l.b16 %v9208
      %v9252 = vunpack.c.h.b16 %v9208
      %v9253 = vunpack.c.l.b16 %v9209
      %v9254 = vunpack.c.h.b16 %v9209
      %v9255 = vunpack.c.l.b16 %v9210
      %v9256 = vunpack.c.h.b16 %v9210
      %v9257 = vunpack.c.l.b16 %v9211
      %v9258 = vunpack.c.h.b16 %v9211
      %v9259 = vunpack.c.l.b16 %v9212
      %v9260 = vunpack.c.h.b16 %v9212
      %v9261 = vpack.c.b16 %v9229, %v9229
      %v9262 = vpack.c.b16 %v9230, %v9230
      %v9263 = vpack.c.b16 %v9231, %v9231
      %v9264 = vpack.c.b16 %v9232, %v9232
      %v9265 = vpack.c.b16 %v9233, %v9233
      %v9266 = vpack.c.b16 %v9234, %v9234
      %v9267 = vpack.c.b16 %v9235, %v9235
      %v9268 = vpack.c.b16 %v9236, %v9236
      %v9269 = vpack.c.b16 %v9237, %v9237
      %v9270 = vpack.c.b16 %v9238, %v9238
      %v9271 = vpack.c.b16 %v9239, %v9239
      %v9272 = vpack.c.b16 %v9240, %v9240
      %v9273 = vpack.c.b16 %v9241, %v9241
      %v9274 = vpack.c.b16 %v9242, %v9242
      %v9275 = vpack.c.b16 %v9243, %v9243
      %v9276 = vpack.c.b16 %v9244, %v9244
      %v9277 = vpack.c.b16 %v9245, %v9245
      %v9278 = vpack.c.b16 %v9246, %v9246
      %v9279 = vpack.c.b16 %v9247, %v9247
      %v9280 = vpack.c.b16 %v9248, %v9248
      %v9281 = vpack.c.b16 %v9249, %v9249
      %v9282 = vpack.c.b16 %v9250, %v9250
      %v9283 = vpack.c.b16 %v9251, %v9251
      %v9284 = vpack.c.b16 %v9252, %v9252
      %v9285 = vpack.c.b16 %v9253, %v9253
      %v9286 = vpack.c.b16 %v9254, %v9254
      %v9287 = vpack.c.b16 %v9255, %v9255
      %v9288 = vpack.c.b16 %v9256, %v9256
      %v9289 = vpack.c.b16 %v9257, %v9257
      %v9290 = vpack.c.b16 %v9258, %v9258
      %v9291 = vpack.c.b16 %v9259, %v9259
      %v9292 = vpack.c.b16 %v9260, %v9260
      %s9325 = smul.u32 0, 2
      %s9326 = smul.addr %s9325, 4
      %s9327 = scalar_lea.vmem %s224, %s9326
      %9328 = vst [vmem:[%s9327] sm:$0xf] %v9261
      %9329 = vst [vmem:[%s9327 + $0x4] sm:$0xf] %v9262
      %9330 = vst [vmem:[%s9327 + $0x8] sm:$0xf] %v9263
      %9331 = vst [vmem:[%s9327 + $0xc] sm:$0xf] %v9264
      %9332 = vst [vmem:[%s9327 + $0x10] sm:$0xf] %v9265
      %9333 = vst [vmem:[%s9327 + $0x14] sm:$0xf] %v9266
      %9334 = vst [vmem:[%s9327 + $0x18] sm:$0xf] %v9267
      %9335 = vst [vmem:[%s9327 + $0x1c] sm:$0xf] %v9268
      %9336 = vst [vmem:[%s9327 + $0x20] sm:$0xf] %v9269
      %9337 = vst [vmem:[%s9327 + $0x24] sm:$0xf] %v9270
      %9338 = vst [vmem:[%s9327 + $0x28] sm:$0xf] %v9271
      %9339 = vst [vmem:[%s9327 + $0x2c] sm:$0xf] %v9272
      %9340 = vst [vmem:[%s9327 + $0x30] sm:$0xf] %v9273
      %9341 = vst [vmem:[%s9327 + $0x34] sm:$0xf] %v9274
      %9342 = vst [vmem:[%s9327 + $0x38] sm:$0xf] %v9275
      %9343 = vst [vmem:[%s9327 + $0x3c] sm:$0xf] %v9276
      %9344 = vst [vmem:[%s9327 + $0x40] sm:$0xf] %v9277
      %9345 = vst [vmem:[%s9327 + $0x44] sm:$0xf] %v9278
      %9346 = vst [vmem:[%s9327 + $0x48] sm:$0xf] %v9279
      %9347 = vst [vmem:[%s9327 + $0x4c] sm:$0xf] %v9280
      %9348 = vst [vmem:[%s9327 + $0x50] sm:$0xf] %v9281
      %9349 = vst [vmem:[%s9327 + $0x54] sm:$0xf] %v9282
      %9350 = vst [vmem:[%s9327 + $0x58] sm:$0xf] %v9283
      %9351 = vst [vmem:[%s9327 + $0x5c] sm:$0xf] %v9284
      %9352 = vst [vmem:[%s9327 + $0x60] sm:$0xf] %v9285
      %9353 = vst [vmem:[%s9327 + $0x64] sm:$0xf] %v9286
      %9354 = vst [vmem:[%s9327 + $0x68] sm:$0xf] %v9287
      %9355 = vst [vmem:[%s9327 + $0x6c] sm:$0xf] %v9288
      %9356 = vst [vmem:[%s9327 + $0x70] sm:$0xf] %v9289
      %9357 = vst [vmem:[%s9327 + $0x74] sm:$0xf] %v9290
      %9358 = vst [vmem:[%s9327 + $0x78] sm:$0xf] %v9291
      %9359 = vst [vmem:[%s9327 + $0x7c] sm:$0xf] %v9292
      %p9360 = scmp.lt.s32.totalorder %s16, 1
      %s9361 = scalar_select %p9360, %s16, 1
      %s9362 = smul.addr %s9361, 32
      %s9363 = smul.addr %s9362, 4
      %s9364 = scalar_lea.vmem %s5, %s9363
      // Predicated region
      $region41: #{basic_block_pallas.1} parent=39 // pred_check
        %p9365 = pneg %p144
      $region42: #{basic_block_pallas.1} parent=39 // pred_check_branch
        %9367 = sbr.rel (%p9365) target = $region44
      $region43: #{basic_block_pallas.1} parent=39 // pred_region
        _
      $region44: #{basic_block_pallas.1} parent=39 // pred_fallthru
        _
    $region40: #{basic_block_pallas.1} parent=5 // pred_fallthru
      _
    %p9368 = scmp.le.s32.totalorder 2, %s11
    // Predicated region
    $region45: #{basic_block_pallas.1} parent=5 // pred_check
      %p9369 = pneg %p9368
    $region46: #{basic_block_pallas.1} parent=5 // pred_check_branch
      %9371 = sbr.rel (%p9369) target = $region48
    $region47: #{basic_block_pallas.1} parent=5 // pred_region
      %s9372 = ssub.s32 %s11, 2
      // Predicated region
      $region49: #{basic_block_pallas.1} parent=47 // pred_check
        %p9373 = pneg %p150
      $region50: #{basic_block_pallas.1} parent=47 // pred_check_branch
        %9375 = sbr.rel (%p9373) target = $region52
      $region51: #{basic_block_pallas.1} parent=47 // pred_region
        %p9376 = scmp.lt.s32.totalorder %s17, 1
        %s9377 = scalar_select %p9376, %s17, 1
        %s9378 = smul.addr %s9377, 32
        %s9379 = smul.addr %s9378, 4
        %s9380 = scalar_lea.vmem %s5, %s9379
      $region52: #{basic_block_pallas.1} parent=47 // pred_fallthru
        _
    $region48: #{basic_block_pallas.1} parent=5 // pred_fallthru
      _
  $region6: #{basic_block_pallas.1} parent=0 // loop_footer
    %s15 = sadd.s32 1, %s11
  $region7: #{basic_block_pallas.1} parent=0 // loop_footer_branch
    %10 = sbr.rel target = $region3
  $region8: #{basic_block_pallas.1} parent=0 // loop_exit
    _

</llo_original>
